<compile_context>
chip_gen: v5e
topology: v5e:2x2
jax: 0.10.0
libtpu: 0.0.40
codegen_flags: <defaults>
</compile_context>

<pallas_src>
import functools

import jax
import jax.numpy as jnp
from jax.experimental import pallas as pl
from jax.experimental.pallas import tpu as pltpu


# ----------------------------------------------------------------------------
# Single fused kernel: mask conv -> DCNv2(offset=0, loc+cla fused) -> BN ->
# LeakyReLU -> fused 1x1 heads (loc | cla | conf) -> one output slab.
# ----------------------------------------------------------------------------
def _mtr_head_fused_kernel(xp_ref, omw_ref, omb_ref, dw_ref, db_ref,
                           g_ref, bt_ref, hw_ref, hb_ref, o_ref):
    B, Hp, Wp, C = xp_ref.shape
    H, W = Hp - 2, Wp - 2
    M = B * H * W
    Nout = hw_ref.shape[1]

    # Center crop of the padded input == original activation; reused for the
    # mask conv and for the conf head.
    xc = xp_ref[:, 1:H + 1, 1:W + 1, :].astype(jnp.float32)
    xc2 = xc.reshape(M, C)

    # __conv_offset_mask: only the 9 mask columns are consumed (offsets are
    # identically zero because init_offset() zeroes that conv).
    mlog = (jnp.dot(xc2, omw_ref[...], preferred_element_type=jnp.float32)
            + omb_ref[...])
    mask = jax.nn.sigmoid(mlog).reshape(B, H, W, 9)

    # TODO(synk): deformable bilinear sampling with non-zero learned offsets is
    # not implemented; it is exact here only because the offsets are zero.
    #
    # Zero-offset DCNv2 for BOTH branches as ONE K = 9*C matmul: pack the
    # masked shifted taps into a (M, 9C) LHS (tap-major columns k*C + c) and
    # contract against the (9C, 2C) fused [loc | cla] weight.
    taps = []
    for k in range(9):
        dy, dx = k // 3, k % 3
        xs = xp_ref[:, dy:dy + H, dx:dx + W, :].astype(jnp.float32)
        taps.append(xs * mask[..., k:k + 1])
    lhs = jnp.concatenate(taps, axis=-1).reshape(M, 9 * C)
    y = (jnp.dot(lhs, dw_ref[...], preferred_element_type=jnp.float32)
         + db_ref[...])                                           # (M, 2C)

    # BatchNorm2d, training-mode batch statistics (biased variance, eps=1e-5),
    # per channel for the two concatenated branches at once.
    mean = jnp.mean(y, axis=0, keepdims=True)
    var = jnp.mean((y - mean) ** 2, axis=0, keepdims=True)
    yn = (y - mean) * jax.lax.rsqrt(var + 1e-5) * g_ref[...] + bt_ref[...]
    z = jnp.where(yn >= 0, yn, 0.01 * yn)                         # LeakyReLU

    # Fused 1x1 heads.  hw_ref rows: [0:C) -> loc head (from z_loc),
    # [C:2C) -> cla head (from z_cla), [2C:3C) -> conf head (from x).
    # Columns are already permuted to the final per-anchor
    # [loc(4), conf(1), cla(fo)] order -> single lane-dense store.
    out = (jnp.dot(z, hw_ref[0:2 * C, :], preferred_element_type=jnp.float32)
           + jnp.dot(xc2, hw_ref[2 * C:3 * C, :],
                     preferred_element_type=jnp.float32)
           + hb_ref[...])
    o_ref[...] = out.reshape(B, H, W, Nout).astype(o_ref.dtype)


# ----------------------------------------------------------------------------
# MTR_Head1 forward (wrapper: layout plumbing + host-side weight fusion)
# ----------------------------------------------------------------------------
@functools.partial(jax.jit, static_argnames=("anchor_num", "fo_class"))
def mtr_head1_forward(x_nchw, params, *, anchor_num, fo_class):
    B, C, H, W = x_nchw.shape
    A, FO = anchor_num, fo_class
    K = 5 + FO

    x = jnp.transpose(x_nchw, (0, 2, 3, 1))          # NCHW -> NHWC
    # TODO(synk): the 1-px halo is still built with an XLA pad; fold it into
    # the kernel (border-masked taps) when a spatial grid is added.
    x_pad = jnp.pad(x, ((0, 0), (1, 1), (1, 1), (0, 0)))

    # ---- host-side parameter fusion (tiny tensors, done once under jit) ----
    om_w_mask = params["om_w"][:, 18:27]                          # (C, 9)
    om_b_mask = params["om_b"][18:27].reshape(1, 9)

    dcn_w = jnp.concatenate([params["dcn_loc_w9"].reshape(9 * C, C),
                             params["dcn_cla_w9"].reshape(9 * C, C)],
                            axis=1)                               # (9C, 2C)
    dcn_b = jnp.concatenate([params["dcn_loc_b"],
                             params["dcn_cla_b"]]).reshape(1, 2 * C)
    gamma = jnp.concatenate([params["bn_loc_gamma"],
                             params["bn_cla_gamma"]]).reshape(1, 2 * C)
    beta = jnp.concatenate([params["bn_loc_beta"],
                            params["bn_cla_beta"]]).reshape(1, 2 * C)

    # Fused head weight: rows [loc | cla | conf] blocks of C each, columns
    # permuted so column a*K + j is (loc j<4, conf j==4, cla j>=5) of anchor a.
    bw = jnp.zeros((3, C, A, K), jnp.float32)
    bw = bw.at[0, :, :, 0:4].set(params["locx_w"].reshape(C, A, 4))
    bw = bw.at[1, :, :, 5:5 + FO].set(params["clax_w"].reshape(C, A, FO))
    bw = bw.at[2, :, :, 4].set(params["conf_w"])
    big_w = bw.reshape(3 * C, A * K)

    bb = jnp.zeros((A, K), jnp.float32)
    bb = bb.at[:, 0:4].set(params["locx_b"].reshape(A, 4))
    bb = bb.at[:, 5:5 + FO].set(params["clax_b"].reshape(A, FO))
    bb = bb.at[:, 4].set(params["conf_b"])
    big_b = bb.reshape(1, A * K)

    # TODO(synk): for real-size inputs (esp. v7x's 64 MiB VMEM) this should be
    # gridded (BlockSpec over B/H) with a two-pass BatchNorm, since the
    # training-mode BN statistics are global over (B, H, W).
    out = pl.pallas_call(
        _mtr_head_fused_kernel,
        out_shape=jax.ShapeDtypeStruct((B, H, W, A * K), jnp.float32),
        in_specs=[pl.BlockSpec(memory_space=pltpu.MemorySpace.VMEM)] * 9,
        out_specs=pl.BlockSpec(memory_space=pltpu.MemorySpace.VMEM),
    )(x_pad, om_w_mask, om_b_mask, dcn_w, dcn_b, gamma, beta, big_w, big_b)

    # (B,H,W,A,5+FO) -> (B,A,5+FO,H,W): single layout transpose.
    return jnp.transpose(out.reshape(B, H, W, A, K), (0, 3, 4, 1, 2))


# ----------------------------------------------------------------------------
# Pure-JAX reference (independent, per-branch) for a correctness check
# ----------------------------------------------------------------------------
def mtr_head1_reference(x_nchw, params, *, anchor_num, fo_class):
    B, C, H, W = x_nchw.shape
    A, FO = anchor_num, fo_class
    x = jnp.transpose(x_nchw, (0, 2, 3, 1))

    def pconv(x, w, b):
        return jnp.einsum("bhwc,cd->bhwd", x, w) + b

    out_conf = pconv(x, params["conf_w"], params["conf_b"])
    out_om = pconv(x, params["om_w"], params["om_b"])
    mask = jax.nn.sigmoid(out_om[..., 18:27])
    x_pad = jnp.pad(x, ((0, 0), (1, 1), (1, 1), (0, 0)))

    def branch(dw9, db, gamma, beta, hw, hb):
        acc = jnp.zeros((B, H, W, C), jnp.float32)
        for k in range(9):
            dy, dx = k // 3, k % 3
            xs = x_pad[:, dy:dy + H, dx:dx + W, :]
            acc = acc + jnp.einsum("bhwc,cd->bhwd", xs * mask[..., k:k + 1], dw9[k])
        y = acc + db
        mean = jnp.mean(y, axis=(0, 1, 2), keepdims=True)
        var = jnp.mean((y - mean) ** 2, axis=(0, 1, 2), keepdims=True)
        yn = (y - mean) * jax.lax.rsqrt(var + 1e-5) * gamma + beta
        z = jnp.where(yn >= 0, yn, 0.01 * yn)
        return jnp.einsum("bhwc,cd->bhwd", z, hw) + hb

    out_loc = branch(params["dcn_loc_w9"], params["dcn_loc_b"],
                     params["bn_loc_gamma"], params["bn_loc_beta"],
                     params["locx_w"], params["locx_b"])
    out_cla = branch(params["dcn_cla_w9"], params["dcn_cla_b"],
                     params["bn_cla_gamma"], params["bn_cla_beta"],
                     params["clax_w"], params["clax_b"])

    loc1 = jnp.transpose(out_loc.reshape(B, H, W, A, 4), (0, 3, 4, 1, 2))
    conf1 = jnp.transpose(out_conf.reshape(B, H, W, A, 1), (0, 3, 4, 1, 2))
    cla1 = jnp.transpose(out_cla.reshape(B, H, W, A, FO), (0, 3, 4, 1, 2))
    return jnp.concatenate([loc1, conf1, cla1], axis=2)  # (B, A, 5+FO, H, W)


# ----------------------------------------------------------------------------
# Deterministic parameter construction (shapes follow the module's __init__)
# ----------------------------------------------------------------------------
def make_params(key, filters_in, anchor_num, fo_class):
    C, A, FO = filters_in, anchor_num, fo_class
    ks = jax.random.split(key, 12)

    def n(k, shape, s=0.1):
        return (s * jax.random.normal(k, shape)).astype(jnp.float32)

    def dcn_to_9(w_torch):  # (Cout, Cin, 3, 3) -> (9, Cin, Cout)
        return jnp.transpose(w_torch, (2, 3, 1, 0)).reshape(9, C, C)

    return {
        # __conv_conf: 1x1, C -> A   (stored as (Cin, Cout))
        "conf_w": n(ks[0], (C, A)), "conf_b": n(ks[1], (A,)),
        # __conv_offset_mask: zero-initialized (init_offset)
        "om_w": jnp.zeros((C, 27), jnp.float32),
        "om_b": jnp.zeros((27,), jnp.float32),
        # __dconv_loc (DCNv2 3x3) + BN + 1x1 head (A*4)
        "dcn_loc_w9": dcn_to_9(n(ks[2], (C, C, 3, 3))),
        "dcn_loc_b": n(ks[3], (C,)),
        "bn_loc_gamma": jnp.ones((C,), jnp.float32),
        "bn_loc_beta": jnp.zeros((C,), jnp.float32),
        "locx_w": n(ks[4], (C, A * 4)), "locx_b": n(ks[5], (A * 4,)),
        # __dconv_cla (DCNv2 3x3) + BN + 1x1 head (A*FO)
        "dcn_cla_w9": dcn_to_9(n(ks[6], (C, C, 3, 3))),
        "dcn_cla_b": n(ks[7], (C,)),
        "bn_cla_gamma": jnp.ones((C,), jnp.float32),
        "bn_cla_beta": jnp.zeros((C,), jnp.float32),
        "clax_w": n(ks[8], (C, A * FO)), "clax_b": n(ks[9], (A * FO,)),
    }


if __name__ == "__main__":
    filters_in, anchor_num, fo_class = 16, 3, 4
    B, H, W = 2, 16, 16

    key = jax.random.PRNGKey(0)
    k_x, k_p = jax.random.split(key)
    x = jax.random.normal(k_x, (B, filters_in, H, W), dtype=jnp.float32)  # NCHW
    params = make_params(k_p, filters_in, anchor_num, fo_class)

    out = mtr_head1_forward(x, params, anchor_num=anchor_num, fo_class=fo_class)
    out = jax.block_until_ready(out)

    ref = mtr_head1_reference(x, params, anchor_num=anchor_num, fo_class=fo_class)
    assert out.shape == (B, anchor_num, 5 + fo_class, H, W), out.shape
    assert jnp.allclose(out, ref, rtol=1e-3, atol=1e-3), "mismatch vs reference"

    print("KERNEL_OK")
</pallas_src>

<mosaic_0001>
module attributes {stable_mosaic.version = 11 : i64} {
  func.func @_mtr_head_fused_kernel(%arg0: memref<2x18x18x16xf32, #tpu.memory_space<vmem>>, %arg1: memref<16x9xf32, #tpu.memory_space<vmem>>, %arg2: memref<1x9xf32, #tpu.memory_space<vmem>>, %arg3: memref<144x32xf32, #tpu.memory_space<vmem>>, %arg4: memref<1x32xf32, #tpu.memory_space<vmem>>, %arg5: memref<1x32xf32, #tpu.memory_space<vmem>>, %arg6: memref<1x32xf32, #tpu.memory_space<vmem>>, %arg7: memref<48x27xf32, #tpu.memory_space<vmem>>, %arg8: memref<1x27xf32, #tpu.memory_space<vmem>>, %arg9: memref<2x16x16x27xf32, #tpu.memory_space<vmem>>) attributes {dimension_semantics = [], scalar_prefetch = 0 : i64, scratch_operands = 0 : i64, tpu.core_type = #tpu.core_type<tc>} {
    %c0 = arith.constant 0 : index
    %c1 = arith.constant 1 : index
    %c1_0 = arith.constant 1 : index
    %c0_1 = arith.constant 0 : index
    %0 = vector.load %arg0[%c0, %c1, %c1_0, %c0_1] : memref<2x18x18x16xf32, #tpu.memory_space<vmem>>, vector<2x16x16x16xf32>
    %1 = vector.shape_cast %0 : vector<2x16x16x16xf32> to vector<512x16xf32>
    %c0_2 = arith.constant 0 : index
    %c0_3 = arith.constant 0 : index
    %2 = vector.load %arg1[%c0_2, %c0_3] : memref<16x9xf32, #tpu.memory_space<vmem>>, vector<16x9xf32>
    %cst = arith.constant dense<0.000000e+00> : vector<512x9xf32>
    %3 = tpu.matmul %1, %2, %cst {dimension_numbers = #tpu.dot_dimension_numbers<[1], [0], [0], [1], [0, 0, 1, 1], [], []>} : vector<512x16xf32>, vector<16x9xf32>, vector<512x9xf32> -> vector<512x9xf32>
    %c0_4 = arith.constant 0 : index
    %c0_5 = arith.constant 0 : index
    %4 = vector.load %arg2[%c0_4, %c0_5] : memref<1x9xf32, #tpu.memory_space<vmem>>, vector<1x9xf32>
    %5 = vector.broadcast %4 : vector<1x9xf32> to vector<512x9xf32>
    %6 = arith.addf %3, %5 : vector<512x9xf32>
    %7 = arith.negf %6 : vector<512x9xf32>
    %8 = math.exp %7 : vector<512x9xf32>
    %cst_6 = arith.constant 1.000000e+00 : f32
    %9 = vector.broadcast %cst_6 : f32 to vector<512x9xf32>
    %10 = arith.addf %9, %8 : vector<512x9xf32>
    %11 = arith.divf %9, %10 : vector<512x9xf32>
    %12 = vector.shape_cast %11 : vector<512x9xf32> to vector<2x16x16x9xf32>
    %c0_7 = arith.constant 0 : index
    %c0_8 = arith.constant 0 : index
    %c0_9 = arith.constant 0 : index
    %c0_10 = arith.constant 0 : index
    %13 = vector.load %arg0[%c0_7, %c0_8, %c0_9, %c0_10] : memref<2x18x18x16xf32, #tpu.memory_space<vmem>>, vector<2x16x16x16xf32>
    %14 = vector.extract_strided_slice %12 {offsets = [0, 0, 0, 0], sizes = [2, 16, 16, 1], strides = [1, 1, 1, 1]} : vector<2x16x16x9xf32> to vector<2x16x16x1xf32>
    %15 = vector.broadcast %14 : vector<2x16x16x1xf32> to vector<2x16x16x16xf32>
    %16 = arith.mulf %13, %15 : vector<2x16x16x16xf32>
    %c0_11 = arith.constant 0 : index
    %c0_12 = arith.constant 0 : index
    %c1_13 = arith.constant 1 : index
    %c0_14 = arith.constant 0 : index
    %17 = vector.load %arg0[%c0_11, %c0_12, %c1_13, %c0_14] : memref<2x18x18x16xf32, #tpu.memory_space<vmem>>, vector<2x16x16x16xf32>
    %18 = vector.extract_strided_slice %12 {offsets = [0, 0, 0, 1], sizes = [2, 16, 16, 1], strides = [1, 1, 1, 1]} : vector<2x16x16x9xf32> to vector<2x16x16x1xf32>
    %19 = vector.broadcast %18 : vector<2x16x16x1xf32> to vector<2x16x16x16xf32>
    %20 = arith.mulf %17, %19 : vector<2x16x16x16xf32>
    %c0_15 = arith.constant 0 : index
    %c0_16 = arith.constant 0 : index
    %c2 = arith.constant 2 : index
    %c0_17 = arith.constant 0 : index
    %21 = vector.load %arg0[%c0_15, %c0_16, %c2, %c0_17] : memref<2x18x18x16xf32, #tpu.memory_space<vmem>>, vector<2x16x16x16xf32>
    %22 = vector.extract_strided_slice %12 {offsets = [0, 0, 0, 2], sizes = [2, 16, 16, 1], strides = [1, 1, 1, 1]} : vector<2x16x16x9xf32> to vector<2x16x16x1xf32>
    %23 = vector.broadcast %22 : vector<2x16x16x1xf32> to vector<2x16x16x16xf32>
    %24 = arith.mulf %21, %23 : vector<2x16x16x16xf32>
    %c0_18 = arith.constant 0 : index
    %c1_19 = arith.constant 1 : index
    %c0_20 = arith.constant 0 : index
    %c0_21 = arith.constant 0 : index
    %25 = vector.load %arg0[%c0_18, %c1_19, %c0_20, %c0_21] : memref<2x18x18x16xf32, #tpu.memory_space<vmem>>, vector<2x16x16x16xf32>
    %26 = vector.extract_strided_slice %12 {offsets = [0, 0, 0, 3], sizes = [2, 16, 16, 1], strides = [1, 1, 1, 1]} : vector<2x16x16x9xf32> to vector<2x16x16x1xf32>
    %27 = vector.broadcast %26 : vector<2x16x16x1xf32> to vector<2x16x16x16xf32>
    %28 = arith.mulf %25, %27 : vector<2x16x16x16xf32>
    %c0_22 = arith.constant 0 : index
    %c1_23 = arith.constant 1 : index
    %c1_24 = arith.constant 1 : index
    %c0_25 = arith.constant 0 : index
    %29 = vector.load %arg0[%c0_22, %c1_23, %c1_24, %c0_25] : memref<2x18x18x16xf32, #tpu.memory_space<vmem>>, vector<2x16x16x16xf32>
    %30 = vector.extract_strided_slice %12 {offsets = [0, 0, 0, 4], sizes = [2, 16, 16, 1], strides = [1, 1, 1, 1]} : vector<2x16x16x9xf32> to vector<2x16x16x1xf32>
    %31 = vector.broadcast %30 : vector<2x16x16x1xf32> to vector<2x16x16x16xf32>
    %32 = arith.mulf %29, %31 : vector<2x16x16x16xf32>
    %c0_26 = arith.constant 0 : index
    %c1_27 = arith.constant 1 : index
    %c2_28 = arith.constant 2 : index
    %c0_29 = arith.constant 0 : index
    %33 = vector.load %arg0[%c0_26, %c1_27, %c2_28, %c0_29] : memref<2x18x18x16xf32, #tpu.memory_space<vmem>>, vector<2x16x16x16xf32>
    %34 = vector.extract_strided_slice %12 {offsets = [0, 0, 0, 5], sizes = [2, 16, 16, 1], strides = [1, 1, 1, 1]} : vector<2x16x16x9xf32> to vector<2x16x16x1xf32>
    %35 = vector.broadcast %34 : vector<2x16x16x1xf32> to vector<2x16x16x16xf32>
    %36 = arith.mulf %33, %35 : vector<2x16x16x16xf32>
    %c0_30 = arith.constant 0 : index
    %c2_31 = arith.constant 2 : index
    %c0_32 = arith.constant 0 : index
    %c0_33 = arith.constant 0 : index
    %37 = vector.load %arg0[%c0_30, %c2_31, %c0_32, %c0_33] : memref<2x18x18x16xf32, #tpu.memory_space<vmem>>, vector<2x16x16x16xf32>
    %38 = vector.extract_strided_slice %12 {offsets = [0, 0, 0, 6], sizes = [2, 16, 16, 1], strides = [1, 1, 1, 1]} : vector<2x16x16x9xf32> to vector<2x16x16x1xf32>
    %39 = vector.broadcast %38 : vector<2x16x16x1xf32> to vector<2x16x16x16xf32>
    %40 = arith.mulf %37, %39 : vector<2x16x16x16xf32>
    %c0_34 = arith.constant 0 : index
    %c2_35 = arith.constant 2 : index
    %c1_36 = arith.constant 1 : index
    %c0_37 = arith.constant 0 : index
    %41 = vector.load %arg0[%c0_34, %c2_35, %c1_36, %c0_37] : memref<2x18x18x16xf32, #tpu.memory_space<vmem>>, vector<2x16x16x16xf32>
    %42 = vector.extract_strided_slice %12 {offsets = [0, 0, 0, 7], sizes = [2, 16, 16, 1], strides = [1, 1, 1, 1]} : vector<2x16x16x9xf32> to vector<2x16x16x1xf32>
    %43 = vector.broadcast %42 : vector<2x16x16x1xf32> to vector<2x16x16x16xf32>
    %44 = arith.mulf %41, %43 : vector<2x16x16x16xf32>
    %c0_38 = arith.constant 0 : index
    %c2_39 = arith.constant 2 : index
    %c2_40 = arith.constant 2 : index
    %c0_41 = arith.constant 0 : index
    %45 = vector.load %arg0[%c0_38, %c2_39, %c2_40, %c0_41] : memref<2x18x18x16xf32, #tpu.memory_space<vmem>>, vector<2x16x16x16xf32>
    %46 = vector.extract_strided_slice %12 {offsets = [0, 0, 0, 8], sizes = [2, 16, 16, 1], strides = [1, 1, 1, 1]} : vector<2x16x16x9xf32> to vector<2x16x16x1xf32>
    %47 = vector.broadcast %46 : vector<2x16x16x1xf32> to vector<2x16x16x16xf32>
    %48 = arith.mulf %45, %47 : vector<2x16x16x16xf32>
    %49 = tpu.concatenate %16, %20, %24, %28, %32, %36, %40, %44, %48 in 3 : vector<2x16x16x16xf32>, vector<2x16x16x16xf32>, vector<2x16x16x16xf32>, vector<2x16x16x16xf32>, vector<2x16x16x16xf32>, vector<2x16x16x16xf32>, vector<2x16x16x16xf32>, vector<2x16x16x16xf32>, vector<2x16x16x16xf32> -> vector<2x16x16x144xf32>
    %50 = vector.shape_cast %49 : vector<2x16x16x144xf32> to vector<512x144xf32>
    %c0_42 = arith.constant 0 : index
    %c0_43 = arith.constant 0 : index
    %51 = vector.load %arg3[%c0_42, %c0_43] : memref<144x32xf32, #tpu.memory_space<vmem>>, vector<144x32xf32>
    %cst_44 = arith.constant dense<0.000000e+00> : vector<512x32xf32>
    %52 = tpu.matmul %50, %51, %cst_44 {dimension_numbers = #tpu.dot_dimension_numbers<[1], [0], [0], [1], [0, 0, 1, 1], [], []>} : vector<512x144xf32>, vector<144x32xf32>, vector<512x32xf32> -> vector<512x32xf32>
    %c0_45 = arith.constant 0 : index
    %c0_46 = arith.constant 0 : index
    %53 = vector.load %arg4[%c0_45, %c0_46] : memref<1x32xf32, #tpu.memory_space<vmem>>, vector<1x32xf32>
    %54 = vector.broadcast %53 : vector<1x32xf32> to vector<512x32xf32>
    %55 = arith.addf %52, %54 : vector<512x32xf32>
    %cst_47 = arith.constant dense<0.000000e+00> : vector<32xf32>
    %56 = vector.multi_reduction <add>, %55, %cst_47 [0] : vector<512x32xf32> to vector<32xf32>
    %57 = vector.shape_cast %56 : vector<32xf32> to vector<1x32xf32>
    %cst_48 = arith.constant 5.120000e+02 : f32
    %58 = vector.broadcast %cst_48 : f32 to vector<1x32xf32>
    %59 = arith.divf %57, %58 : vector<1x32xf32>
    %60 = vector.broadcast %59 : vector<1x32xf32> to vector<512x32xf32>
    %61 = arith.subf %55, %60 : vector<512x32xf32>
    %62 = arith.mulf %61, %61 : vector<512x32xf32>
    %cst_49 = arith.constant dense<0.000000e+00> : vector<32xf32>
    %63 = vector.multi_reduction <add>, %62, %cst_49 [0] : vector<512x32xf32> to vector<32xf32>
    %64 = vector.shape_cast %63 : vector<32xf32> to vector<1x32xf32>
    %cst_50 = arith.constant 5.120000e+02 : f32
    %65 = vector.broadcast %cst_50 : f32 to vector<1x32xf32>
    %66 = arith.divf %64, %65 : vector<1x32xf32>
    %67 = vector.broadcast %59 : vector<1x32xf32> to vector<512x32xf32>
    %68 = arith.subf %55, %67 : vector<512x32xf32>
    %cst_51 = arith.constant 9.99999974E-6 : f32
    %69 = vector.broadcast %cst_51 : f32 to vector<1x32xf32>
    %70 = arith.addf %66, %69 : vector<1x32xf32>
    %71 = math.rsqrt %70 : vector<1x32xf32>
    %72 = vector.broadcast %71 : vector<1x32xf32> to vector<512x32xf32>
    %73 = arith.mulf %68, %72 : vector<512x32xf32>
    %c0_52 = arith.constant 0 : index
    %c0_53 = arith.constant 0 : index
    %74 = vector.load %arg5[%c0_52, %c0_53] : memref<1x32xf32, #tpu.memory_space<vmem>>, vector<1x32xf32>
    %75 = vector.broadcast %74 : vector<1x32xf32> to vector<512x32xf32>
    %76 = arith.mulf %73, %75 : vector<512x32xf32>
    %c0_54 = arith.constant 0 : index
    %c0_55 = arith.constant 0 : index
    %77 = vector.load %arg6[%c0_54, %c0_55] : memref<1x32xf32, #tpu.memory_space<vmem>>, vector<1x32xf32>
    %78 = vector.broadcast %77 : vector<1x32xf32> to vector<512x32xf32>
    %79 = arith.addf %76, %78 : vector<512x32xf32>
    %cst_56 = arith.constant 0.000000e+00 : f32
    %80 = vector.broadcast %cst_56 : f32 to vector<512x32xf32>
    %81 = arith.cmpf oge, %79, %80 : vector<512x32xf32>
    %cst_57 = arith.constant 0.00999999977 : f32
    %82 = vector.broadcast %cst_57 : f32 to vector<512x32xf32>
    %83 = arith.mulf %82, %79 : vector<512x32xf32>
    %84 = arith.select %81, %79, %83 : vector<512x32xi1>, vector<512x32xf32>
    %c0_58 = arith.constant 0 : index
    %c0_59 = arith.constant 0 : index
    %85 = vector.load %arg7[%c0_58, %c0_59] : memref<48x27xf32, #tpu.memory_space<vmem>>, vector<32x27xf32>
    %cst_60 = arith.constant dense<0.000000e+00> : vector<512x27xf32>
    %86 = tpu.matmul %84, %85, %cst_60 {dimension_numbers = #tpu.dot_dimension_numbers<[1], [0], [0], [1], [0, 0, 1, 1], [], []>} : vector<512x32xf32>, vector<32x27xf32>, vector<512x27xf32> -> vector<512x27xf32>
    %c32 = arith.constant 32 : index
    %c0_61 = arith.constant 0 : index
    %87 = vector.load %arg7[%c32, %c0_61] : memref<48x27xf32, #tpu.memory_space<vmem>>, vector<16x27xf32>
    %cst_62 = arith.constant dense<0.000000e+00> : vector<512x27xf32>
    %88 = tpu.matmul %1, %87, %cst_62 {dimension_numbers = #tpu.dot_dimension_numbers<[1], [0], [0], [1], [0, 0, 1, 1], [], []>} : vector<512x16xf32>, vector<16x27xf32>, vector<512x27xf32> -> vector<512x27xf32>
    %89 = arith.addf %86, %88 : vector<512x27xf32>
    %c0_63 = arith.constant 0 : index
    %c0_64 = arith.constant 0 : index
    %90 = vector.load %arg8[%c0_63, %c0_64] : memref<1x27xf32, #tpu.memory_space<vmem>>, vector<1x27xf32>
    %91 = vector.broadcast %90 : vector<1x27xf32> to vector<512x27xf32>
    %92 = arith.addf %89, %91 : vector<512x27xf32>
    %93 = vector.shape_cast %92 : vector<512x27xf32> to vector<2x16x16x27xf32>
    %c0_65 = arith.constant 0 : index
    %c0_66 = arith.constant 0 : index
    %c0_67 = arith.constant 0 : index
    %c0_68 = arith.constant 0 : index
    %94 = vector.load %arg9[%c0_65, %c0_66, %c0_67, %c0_68] : memref<2x16x16x27xf32, #tpu.memory_space<vmem>>, vector<2x16x16x27xf32>
    tpu.vector_store %arg9[%c0_65, %c0_66, %c0_67, %c0_68], %93 {strides = array<i32>} : memref<2x16x16x27xf32, #tpu.memory_space<vmem>>, vector<2x16x16x27xf32>,
    return
  }
}

</mosaic_0001>

<llo_original>
// kernel: mtr_head1_forward.1
$region0: #{mtr_head1_forward.1}
  #allocation0 [shape = 'u32[]', space=smem, size = 0x4, offset = 0x4, fixed_abs, tag = 'smem constant byte address 0x4 - core index']
  #allocation1 [shape = 'u32[72,128]{1,0:T(1,128)}', space=vmem, size = 0x9000, scoped, tag = 'internal scratch']
  %s0 = inlined_call_operand.vmem [shape: f32[2,18,18,16], index: 0, kind: input, shape index: {}]
  %s1 = inlined_call_operand.vmem [shape: f32[16,9], index: 1, kind: input, shape index: {}]
  %s2 = inlined_call_operand.vmem [shape: f32[1,9], index: 2, kind: input, shape index: {}]
  %s3 = inlined_call_operand.vmem [shape: f32[144,32], index: 3, kind: input, shape index: {}]
  %s4 = inlined_call_operand.vmem [shape: f32[1,32], index: 4, kind: input, shape index: {}]
  %s5 = inlined_call_operand.vmem [shape: f32[1,32], index: 5, kind: input, shape index: {}]
  %s6 = inlined_call_operand.vmem [shape: f32[1,32], index: 6, kind: input, shape index: {}]
  %s7 = inlined_call_operand.vmem [shape: f32[48,27], index: 7, kind: input, shape index: {}]
  %s8 = inlined_call_operand.vmem [shape: f32[1,27], index: 8, kind: input, shape index: {}]
  %s9 = inlined_call_operand.vmem [shape: f32[2,16,16,27], index: 9, kind: output, shape index: {}]
  %s10 = sld [smem:[#allocation0]]
  $region46: #{mtr_head1_forward.1} parent=0
    _
  %s12 = ssub.s32 1, %s10
  %s13 = scalar_select 0, %s12, %s10
  // Predicated region
  $region2: #{mtr_head1_forward.1} parent=0 // pred_check
    _
  $region3: #{mtr_head1_forward.1} parent=0 // pred_check_branch
    %15 = sbr.rel (0) target = $region5
  $region4: #{mtr_head1_forward.1} parent=0 // pred_region
    _
  $region5: #{mtr_head1_forward.1} parent=0 // pred_fallthru
    _
  // Predicated region
  $region6: #{mtr_head1_forward.1} parent=0 // pred_check
    _
  $region7: #{mtr_head1_forward.1} parent=0 // pred_check_branch
    %17 = sbr.rel (0) target = $region9
  $region8: #{mtr_head1_forward.1} parent=0 // pred_region
    _
  $region9: #{mtr_head1_forward.1} parent=0 // pred_fallthru
    _
  // Predicated region
  $region10: #{mtr_head1_forward.1} parent=0 // pred_check
    _
  $region11: #{mtr_head1_forward.1} parent=0 // pred_check_branch
    %19 = sbr.rel (0) target = $region13
  $region12: #{mtr_head1_forward.1} parent=0 // pred_region
    _
  $region13: #{mtr_head1_forward.1} parent=0 // pred_fallthru
    _
  // Predicated region
  $region14: #{mtr_head1_forward.1} parent=0 // pred_check
    _
  $region15: #{mtr_head1_forward.1} parent=0 // pred_check_branch
    %21 = sbr.rel (0) target = $region17
  $region16: #{mtr_head1_forward.1} parent=0 // pred_region
    _
  $region17: #{mtr_head1_forward.1} parent=0 // pred_fallthru
    _
  // Predicated region
  $region18: #{mtr_head1_forward.1} parent=0 // pred_check
    _
  $region19: #{mtr_head1_forward.1} parent=0 // pred_check_branch
    %23 = sbr.rel (0) target = $region21
  $region20: #{mtr_head1_forward.1} parent=0 // pred_region
    _
  $region21: #{mtr_head1_forward.1} parent=0 // pred_fallthru
    _
  // Predicated region
  $region22: #{mtr_head1_forward.1} parent=0 // pred_check
    _
  $region23: #{mtr_head1_forward.1} parent=0 // pred_check_branch
    %25 = sbr.rel (0) target = $region25
  $region24: #{mtr_head1_forward.1} parent=0 // pred_region
    _
  $region25: #{mtr_head1_forward.1} parent=0 // pred_fallthru
    _
  // Predicated region
  $region26: #{mtr_head1_forward.1} parent=0 // pred_check
    _
  $region27: #{mtr_head1_forward.1} parent=0 // pred_check_branch
    %27 = sbr.rel (0) target = $region29
  $region28: #{mtr_head1_forward.1} parent=0 // pred_region
    _
  $region29: #{mtr_head1_forward.1} parent=0 // pred_fallthru
    _
  // Predicated region
  $region30: #{mtr_head1_forward.1} parent=0 // pred_check
    _
  $region31: #{mtr_head1_forward.1} parent=0 // pred_check_branch
    %29 = sbr.rel (0) target = $region33
  $region32: #{mtr_head1_forward.1} parent=0 // pred_region
    _
  $region33: #{mtr_head1_forward.1} parent=0 // pred_fallthru
    _
  // Predicated region
  $region34: #{mtr_head1_forward.1} parent=0 // pred_check
    _
  $region35: #{mtr_head1_forward.1} parent=0 // pred_check_branch
    %31 = sbr.rel (0) target = $region37
  $region36: #{mtr_head1_forward.1} parent=0 // pred_region
    _
  $region37: #{mtr_head1_forward.1} parent=0 // pred_fallthru
    _
  %s32 = scalar_lea.vmem %s0, 24
  %v33 = vld [vmem:[%s32 + $0x1] sm:$0xff]
  %v34 = vld [vmem:[%s32 + $0x9] sm:$0xff]
  %v35 = vld [vmem:[%s32 + $0x19] sm:$0xff]
  %v36 = vld [vmem:[%s32 + $0x21] sm:$0xff]
  %v37 = vld [vmem:[%s32 + $0x31] sm:$0xff]
  %v38 = vld [vmem:[%s32 + $0x39] sm:$0xff]
  %v39 = vld [vmem:[%s32 + $0x49] sm:$0xff]
  %v40 = vld [vmem:[%s32 + $0x51] sm:$0xff]
  %v41 = vld [vmem:[%s32 + $0x61] sm:$0xff]
  %v42 = vld [vmem:[%s32 + $0x69] sm:$0xff]
  %v43 = vld [vmem:[%s32 + $0x79] sm:$0xff]
  %v44 = vld [vmem:[%s32 + $0x81] sm:$0xff]
  %v45 = vld [vmem:[%s32 + $0x91] sm:$0xff]
  %v46 = vld [vmem:[%s32 + $0x99] sm:$0xff]
  %v47 = vld [vmem:[%s32 + $0xa9] sm:$0xff]
  %v48 = vld [vmem:[%s32 + $0xb1] sm:$0xff]
  %v49 = vld [vmem:[%s32 + $0xc1] sm:$0xff]
  %v50 = vld [vmem:[%s32 + $0xc9] sm:$0xff]
  %v51 = vld [vmem:[%s32 + $0xd9] sm:$0xff]
  %v52 = vld [vmem:[%s32 + $0xe1] sm:$0xff]
  %v53 = vld [vmem:[%s32 + $0xf1] sm:$0xff]
  %v54 = vld [vmem:[%s32 + $0xf9] sm:$0xff]
  %v55 = vld [vmem:[%s32 + $0x109] sm:$0xff]
  %v56 = vld [vmem:[%s32 + $0x111] sm:$0xff]
  %v57 = vld [vmem:[%s32 + $0x121] sm:$0xff]
  %v58 = vld [vmem:[%s32 + $0x129] sm:$0xff]
  %v59 = vld [vmem:[%s32 + $0x139] sm:$0xff]
  %v60 = vld [vmem:[%s32 + $0x141] sm:$0xff]
  %v61 = vld [vmem:[%s32 + $0x151] sm:$0xff]
  %v62 = vld [vmem:[%s32 + $0x159] sm:$0xff]
  %v63 = vld [vmem:[%s32 + $0x169] sm:$0xff]
  %v64 = vld [vmem:[%s32 + $0x171] sm:$0xff]
  %v65 = vld [vmem:[%s32 + $0x1b1] sm:$0xff]
  %v66 = vld [vmem:[%s32 + $0x1b9] sm:$0xff]
  %v67 = vld [vmem:[%s32 + $0x1c9] sm:$0xff]
  %v68 = vld [vmem:[%s32 + $0x1d1] sm:$0xff]
  %v69 = vld [vmem:[%s32 + $0x1e1] sm:$0xff]
  %v70 = vld [vmem:[%s32 + $0x1e9] sm:$0xff]
  %v71 = vld [vmem:[%s32 + $0x1f9] sm:$0xff]
  %v72 = vld [vmem:[%s32 + $0x201] sm:$0xff]
  %v73 = vld [vmem:[%s32 + $0x211] sm:$0xff]
  %v74 = vld [vmem:[%s32 + $0x219] sm:$0xff]
  %v75 = vld [vmem:[%s32 + $0x229] sm:$0xff]
  %v76 = vld [vmem:[%s32 + $0x231] sm:$0xff]
  %v77 = vld [vmem:[%s32 + $0x241] sm:$0xff]
  %v78 = vld [vmem:[%s32 + $0x249] sm:$0xff]
  %v79 = vld [vmem:[%s32 + $0x259] sm:$0xff]
  %v80 = vld [vmem:[%s32 + $0x261] sm:$0xff]
  %v81 = vld [vmem:[%s32 + $0x271] sm:$0xff]
  %v82 = vld [vmem:[%s32 + $0x279] sm:$0xff]
  %v83 = vld [vmem:[%s32 + $0x289] sm:$0xff]
  %v84 = vld [vmem:[%s32 + $0x291] sm:$0xff]
  %v85 = vld [vmem:[%s32 + $0x2a1] sm:$0xff]
  %v86 = vld [vmem:[%s32 + $0x2a9] sm:$0xff]
  %v87 = vld [vmem:[%s32 + $0x2b9] sm:$0xff]
  %v88 = vld [vmem:[%s32 + $0x2c1] sm:$0xff]
  %v89 = vld [vmem:[%s32 + $0x2d1] sm:$0xff]
  %v90 = vld [vmem:[%s32 + $0x2d9] sm:$0xff]
  %v91 = vld [vmem:[%s32 + $0x2e9] sm:$0xff]
  %v92 = vld [vmem:[%s32 + $0x2f1] sm:$0xff]
  %v93 = vld [vmem:[%s32 + $0x301] sm:$0xff]
  %v94 = vld [vmem:[%s32 + $0x309] sm:$0xff]
  %v95 = vld [vmem:[%s32 + $0x319] sm:$0xff]
  %v96 = vld [vmem:[%s32 + $0x321] sm:$0xff]
  %v97 = vld [vmem:[%s1] sm:$0xff]
  %v98 = vld [vmem:[%s1 + $0x8] sm:$0xff]
  %v99 = vld [vmem:[%s2] sm:$0x1]
  %v101 = vperm.slane %v99, 0
  %vm103 = vcmask 130048
  %v105 = vsel %vm103, %v33, 0
  %v108 = vsel %vm103, %v34, 0
  %v111 = vsel %vm103, %v35, 0
  %v114 = vsel %vm103, %v36, 0
  %v117 = vsel %vm103, %v37, 0
  %v120 = vsel %vm103, %v38, 0
  %v123 = vsel %vm103, %v39, 0
  %v126 = vsel %vm103, %v40, 0
  %v129 = vsel %vm103, %v41, 0
  %v132 = vsel %vm103, %v42, 0
  %v135 = vsel %vm103, %v43, 0
  %v138 = vsel %vm103, %v44, 0
  %v141 = vsel %vm103, %v45, 0
  %v144 = vsel %vm103, %v46, 0
  %v147 = vsel %vm103, %v47, 0
  %v150 = vsel %vm103, %v48, 0
  %v153 = vsel %vm103, %v49, 0
  %v156 = vsel %vm103, %v50, 0
  %v159 = vsel %vm103, %v51, 0
  %v162 = vsel %vm103, %v52, 0
  %v165 = vsel %vm103, %v53, 0
  %v168 = vsel %vm103, %v54, 0
  %v171 = vsel %vm103, %v55, 0
  %v174 = vsel %vm103, %v56, 0
  %v177 = vsel %vm103, %v57, 0
  %v180 = vsel %vm103, %v58, 0
  %v183 = vsel %vm103, %v59, 0
  %v186 = vsel %vm103, %v60, 0
  %v189 = vsel %vm103, %v61, 0
  %v192 = vsel %vm103, %v62, 0
  %v195 = vsel %vm103, %v63, 0
  %v198 = vsel %vm103, %v64, 0
  %v201 = vsel %vm103, %v65, 0
  %v204 = vsel %vm103, %v66, 0
  %v207 = vsel %vm103, %v67, 0
  %v210 = vsel %vm103, %v68, 0
  %v213 = vsel %vm103, %v69, 0
  %v216 = vsel %vm103, %v70, 0
  %v219 = vsel %vm103, %v71, 0
  %v222 = vsel %vm103, %v72, 0
  %v225 = vsel %vm103, %v73, 0
  %v228 = vsel %vm103, %v74, 0
  %v231 = vsel %vm103, %v75, 0
  %v234 = vsel %vm103, %v76, 0
  %v237 = vsel %vm103, %v77, 0
  %v240 = vsel %vm103, %v78, 0
  %v243 = vsel %vm103, %v79, 0
  %v246 = vsel %vm103, %v80, 0
  %v249 = vsel %vm103, %v81, 0
  %v252 = vsel %vm103, %v82, 0
  %v255 = vsel %vm103, %v83, 0
  %v258 = vsel %vm103, %v84, 0
  %v261 = vsel %vm103, %v85, 0
  %v264 = vsel %vm103, %v86, 0
  %v267 = vsel %vm103, %v87, 0
  %v270 = vsel %vm103, %v88, 0
  %v273 = vsel %vm103, %v89, 0
  %v276 = vsel %vm103, %v90, 0
  %v279 = vsel %vm103, %v91, 0
  %v282 = vsel %vm103, %v92, 0
  %v285 = vsel %vm103, %v93, 0
  %v288 = vsel %vm103, %v94, 0
  %v291 = vsel %vm103, %v95, 0
  %v294 = vsel %vm103, %v96, 0
  %296 = vmatpush.msra.mxu0 0.0
  %297 = vmatpush.msra.mxu0 0.0
  %298 = vmatpush.msra.mxu0 0.0
  %299 = vmatpush.msra.mxu0 0.0
  %300 = vmatpush.msra.mxu0 0.0
  %301 = vmatpush.msra.mxu0 0.0
  %302 = vmatpush.msra.mxu0 0.0
  %303 = vmatpush.msra.mxu0 0.0
  %304 = vmatpush.msra.mxu0 0.0
  %305 = vmatpush.msra.mxu0 0.0
  %306 = vmatpush.msra.mxu0 0.0
  %307 = vmatpush.msra.mxu0 0.0
  %308 = vmatpush.msra.mxu0 0.0
  %309 = vmatpush.msra.mxu0 0.0
  %310 = vmatpush.msra.mxu0 %v98
  %311 = vmatpush.msra.mxu0 %v97
  %312 = vmatmul.f32.gmra.mxu0 %v105
  %v313 = vpop.f32.mrf.mxu0
  %v314 = vadd.f32 %v101, %v313
  %315 = vmatmul.f32.gmra.mxu0 %v108
  %v316 = vpop.f32.mrf.mxu0
  %v317 = vadd.f32 %v101, %v316
  %318 = vmatmul.f32.gmra.mxu0 %v111
  %v319 = vpop.f32.mrf.mxu0
  %v320 = vadd.f32 %v101, %v319
  %321 = vmatmul.f32.gmra.mxu0 %v114
  %v322 = vpop.f32.mrf.mxu0
  %v323 = vadd.f32 %v101, %v322
  %324 = vmatmul.f32.gmra.mxu0 %v117
  %v325 = vpop.f32.mrf.mxu0
  %v326 = vadd.f32 %v101, %v325
  %327 = vmatmul.f32.gmra.mxu0 %v120
  %v328 = vpop.f32.mrf.mxu0
  %v329 = vadd.f32 %v101, %v328
  %330 = vmatmul.f32.gmra.mxu0 %v123
  %v331 = vpop.f32.mrf.mxu0
  %v332 = vadd.f32 %v101, %v331
  %333 = vmatmul.f32.gmra.mxu0 %v126
  %v334 = vpop.f32.mrf.mxu0
  %v335 = vadd.f32 %v101, %v334
  %336 = vmatmul.f32.gmra.mxu0 %v129
  %v337 = vpop.f32.mrf.mxu0
  %v338 = vadd.f32 %v101, %v337
  %339 = vmatmul.f32.gmra.mxu0 %v132
  %v340 = vpop.f32.mrf.mxu0
  %v341 = vadd.f32 %v101, %v340
  %342 = vmatmul.f32.gmra.mxu0 %v135
  %v343 = vpop.f32.mrf.mxu0
  %v344 = vadd.f32 %v101, %v343
  %345 = vmatmul.f32.gmra.mxu0 %v138
  %v346 = vpop.f32.mrf.mxu0
  %v347 = vadd.f32 %v101, %v346
  %348 = vmatmul.f32.gmra.mxu0 %v141
  %v349 = vpop.f32.mrf.mxu0
  %v350 = vadd.f32 %v101, %v349
  %351 = vmatmul.f32.gmra.mxu0 %v144
  %v352 = vpop.f32.mrf.mxu0
  %v353 = vadd.f32 %v101, %v352
  %354 = vmatmul.f32.gmra.mxu0 %v147
  %v355 = vpop.f32.mrf.mxu0
  %v356 = vadd.f32 %v101, %v355
  %357 = vmatmul.f32.gmra.mxu0 %v150
  %v358 = vpop.f32.mrf.mxu0
  %v359 = vadd.f32 %v101, %v358
  %360 = vmatmul.f32.gmra.mxu0 %v153
  %v361 = vpop.f32.mrf.mxu0
  %v362 = vadd.f32 %v101, %v361
  %363 = vmatmul.f32.gmra.mxu0 %v156
  %v364 = vpop.f32.mrf.mxu0
  %v365 = vadd.f32 %v101, %v364
  %366 = vmatmul.f32.gmra.mxu0 %v159
  %v367 = vpop.f32.mrf.mxu0
  %v368 = vadd.f32 %v101, %v367
  %369 = vmatmul.f32.gmra.mxu0 %v162
  %v370 = vpop.f32.mrf.mxu0
  %v371 = vadd.f32 %v101, %v370
  %372 = vmatmul.f32.gmra.mxu0 %v165
  %v373 = vpop.f32.mrf.mxu0
  %v374 = vadd.f32 %v101, %v373
  %375 = vmatmul.f32.gmra.mxu0 %v168
  %v376 = vpop.f32.mrf.mxu0
  %v377 = vadd.f32 %v101, %v376
  %378 = vmatmul.f32.gmra.mxu0 %v171
  %v379 = vpop.f32.mrf.mxu0
  %v380 = vadd.f32 %v101, %v379
  %381 = vmatmul.f32.gmra.mxu0 %v174
  %v382 = vpop.f32.mrf.mxu0
  %v383 = vadd.f32 %v101, %v382
  %384 = vmatmul.f32.gmra.mxu0 %v177
  %v385 = vpop.f32.mrf.mxu0
  %v386 = vadd.f32 %v101, %v385
  %387 = vmatmul.f32.gmra.mxu0 %v180
  %v388 = vpop.f32.mrf.mxu0
  %v389 = vadd.f32 %v101, %v388
  %390 = vmatmul.f32.gmra.mxu0 %v183
  %v391 = vpop.f32.mrf.mxu0
  %v392 = vadd.f32 %v101, %v391
  %393 = vmatmul.f32.gmra.mxu0 %v186
  %v394 = vpop.f32.mrf.mxu0
  %v395 = vadd.f32 %v101, %v394
  %396 = vmatmul.f32.gmra.mxu0 %v189
  %v397 = vpop.f32.mrf.mxu0
  %v398 = vadd.f32 %v101, %v397
  %399 = vmatmul.f32.gmra.mxu0 %v192
  %v400 = vpop.f32.mrf.mxu0
  %v401 = vadd.f32 %v101, %v400
  %402 = vmatmul.f32.gmra.mxu0 %v195
  %v403 = vpop.f32.mrf.mxu0
  %v404 = vadd.f32 %v101, %v403
  %405 = vmatmul.f32.gmra.mxu0 %v198
  %v406 = vpop.f32.mrf.mxu0
  %v407 = vadd.f32 %v101, %v406
  %408 = vmatmul.f32.gmra.mxu0 %v201
  %v409 = vpop.f32.mrf.mxu0
  %v410 = vadd.f32 %v101, %v409
  %411 = vmatmul.f32.gmra.mxu0 %v204
  %v412 = vpop.f32.mrf.mxu0
  %v413 = vadd.f32 %v101, %v412
  %414 = vmatmul.f32.gmra.mxu0 %v207
  %v415 = vpop.f32.mrf.mxu0
  %v416 = vadd.f32 %v101, %v415
  %417 = vmatmul.f32.gmra.mxu0 %v210
  %v418 = vpop.f32.mrf.mxu0
  %v419 = vadd.f32 %v101, %v418
  %420 = vmatmul.f32.gmra.mxu0 %v213
  %v421 = vpop.f32.mrf.mxu0
  %v422 = vadd.f32 %v101, %v421
  %423 = vmatmul.f32.gmra.mxu0 %v216
  %v424 = vpop.f32.mrf.mxu0
  %v425 = vadd.f32 %v101, %v424
  %426 = vmatmul.f32.gmra.mxu0 %v219
  %v427 = vpop.f32.mrf.mxu0
  %v428 = vadd.f32 %v101, %v427
  %429 = vmatmul.f32.gmra.mxu0 %v222
  %v430 = vpop.f32.mrf.mxu0
  %v431 = vadd.f32 %v101, %v430
  %432 = vmatmul.f32.gmra.mxu0 %v225
  %v433 = vpop.f32.mrf.mxu0
  %v434 = vadd.f32 %v101, %v433
  %435 = vmatmul.f32.gmra.mxu0 %v228
  %v436 = vpop.f32.mrf.mxu0
  %v437 = vadd.f32 %v101, %v436
  %438 = vmatmul.f32.gmra.mxu0 %v231
  %v439 = vpop.f32.mrf.mxu0
  %v440 = vadd.f32 %v101, %v439
  %441 = vmatmul.f32.gmra.mxu0 %v234
  %v442 = vpop.f32.mrf.mxu0
  %v443 = vadd.f32 %v101, %v442
  %444 = vmatmul.f32.gmra.mxu0 %v237
  %v445 = vpop.f32.mrf.mxu0
  %v446 = vadd.f32 %v101, %v445
  %447 = vmatmul.f32.gmra.mxu0 %v240
  %v448 = vpop.f32.mrf.mxu0
  %v449 = vadd.f32 %v101, %v448
  %450 = vmatmul.f32.gmra.mxu0 %v243
  %v451 = vpop.f32.mrf.mxu0
  %v452 = vadd.f32 %v101, %v451
  %453 = vmatmul.f32.gmra.mxu0 %v246
  %v454 = vpop.f32.mrf.mxu0
  %v455 = vadd.f32 %v101, %v454
  %456 = vmatmul.f32.gmra.mxu0 %v249
  %v457 = vpop.f32.mrf.mxu0
  %v458 = vadd.f32 %v101, %v457
  %459 = vmatmul.f32.gmra.mxu0 %v252
  %v460 = vpop.f32.mrf.mxu0
  %v461 = vadd.f32 %v101, %v460
  %462 = vmatmul.f32.gmra.mxu0 %v255
  %v463 = vpop.f32.mrf.mxu0
  %v464 = vadd.f32 %v101, %v463
  %465 = vmatmul.f32.gmra.mxu0 %v258
  %v466 = vpop.f32.mrf.mxu0
  %v467 = vadd.f32 %v101, %v466
  %468 = vmatmul.f32.gmra.mxu0 %v261
  %v469 = vpop.f32.mrf.mxu0
  %v470 = vadd.f32 %v101, %v469
  %471 = vmatmul.f32.gmra.mxu0 %v264
  %v472 = vpop.f32.mrf.mxu0
  %v473 = vadd.f32 %v101, %v472
  %474 = vmatmul.f32.gmra.mxu0 %v267
  %v475 = vpop.f32.mrf.mxu0
  %v476 = vadd.f32 %v101, %v475
  %477 = vmatmul.f32.gmra.mxu0 %v270
  %v478 = vpop.f32.mrf.mxu0
  %v479 = vadd.f32 %v101, %v478
  %480 = vmatmul.f32.gmra.mxu0 %v273
  %v481 = vpop.f32.mrf.mxu0
  %v482 = vadd.f32 %v101, %v481
  %483 = vmatmul.f32.gmra.mxu0 %v276
  %v484 = vpop.f32.mrf.mxu0
  %v485 = vadd.f32 %v101, %v484
  %486 = vmatmul.f32.gmra.mxu0 %v279
  %v487 = vpop.f32.mrf.mxu0
  %v488 = vadd.f32 %v101, %v487
  %489 = vmatmul.f32.gmra.mxu0 %v282
  %v490 = vpop.f32.mrf.mxu0
  %v491 = vadd.f32 %v101, %v490
  %492 = vmatmul.f32.gmra.mxu0 %v285
  %v493 = vpop.f32.mrf.mxu0
  %v494 = vadd.f32 %v101, %v493
  %495 = vmatmul.f32.gmra.mxu0 %v288
  %v496 = vpop.f32.mrf.mxu0
  %v497 = vadd.f32 %v101, %v496
  %498 = vmatmul.f32.gmra.mxu0 %v291
  %v499 = vpop.f32.mrf.mxu0
  %v500 = vadd.f32 %v101, %v499
  %501 = vmatmul.f32.gmra.mxu0 %v294
  %v502 = vpop.f32.mrf.mxu0
  %v503 = vadd.f32 %v101, %v502
  %504 = vdwg.mxu0
  %v505 = vxor.u32 %v314, 2147483648
  %v506 = vxor.u32 %v317, 2147483648
  %v507 = vxor.u32 %v320, 2147483648
  %v508 = vxor.u32 %v323, 2147483648
  %v509 = vxor.u32 %v326, 2147483648
  %v510 = vxor.u32 %v329, 2147483648
  %v511 = vxor.u32 %v332, 2147483648
  %v512 = vxor.u32 %v335, 2147483648
  %v513 = vxor.u32 %v338, 2147483648
  %v514 = vxor.u32 %v341, 2147483648
  %v515 = vxor.u32 %v344, 2147483648
  %v516 = vxor.u32 %v347, 2147483648
  %v517 = vxor.u32 %v350, 2147483648
  %v518 = vxor.u32 %v353, 2147483648
  %v519 = vxor.u32 %v356, 2147483648
  %v520 = vxor.u32 %v359, 2147483648
  %v521 = vxor.u32 %v362, 2147483648
  %v522 = vxor.u32 %v365, 2147483648
  %v523 = vxor.u32 %v368, 2147483648
  %v524 = vxor.u32 %v371, 2147483648
  %v525 = vxor.u32 %v374, 2147483648
  %v526 = vxor.u32 %v377, 2147483648
  %v527 = vxor.u32 %v380, 2147483648
  %v528 = vxor.u32 %v383, 2147483648
  %v529 = vxor.u32 %v386, 2147483648
  %v530 = vxor.u32 %v389, 2147483648
  %v531 = vxor.u32 %v392, 2147483648
  %v532 = vxor.u32 %v395, 2147483648
  %v533 = vxor.u32 %v398, 2147483648
  %v534 = vxor.u32 %v401, 2147483648
  %v535 = vxor.u32 %v404, 2147483648
  %v536 = vxor.u32 %v407, 2147483648
  %v537 = vxor.u32 %v410, 2147483648
  %v538 = vxor.u32 %v413, 2147483648
  %v539 = vxor.u32 %v416, 2147483648
  %v540 = vxor.u32 %v419, 2147483648
  %v541 = vxor.u32 %v422, 2147483648
  %v542 = vxor.u32 %v425, 2147483648
  %v543 = vxor.u32 %v428, 2147483648
  %v544 = vxor.u32 %v431, 2147483648
  %v545 = vxor.u32 %v434, 2147483648
  %v546 = vxor.u32 %v437, 2147483648
  %v547 = vxor.u32 %v440, 2147483648
  %v548 = vxor.u32 %v443, 2147483648
  %v549 = vxor.u32 %v446, 2147483648
  %v550 = vxor.u32 %v449, 2147483648
  %v551 = vxor.u32 %v452, 2147483648
  %v552 = vxor.u32 %v455, 2147483648
  %v553 = vxor.u32 %v458, 2147483648
  %v554 = vxor.u32 %v461, 2147483648
  %v555 = vxor.u32 %v464, 2147483648
  %v556 = vxor.u32 %v467, 2147483648
  %v557 = vxor.u32 %v470, 2147483648
  %v558 = vxor.u32 %v473, 2147483648
  %v559 = vxor.u32 %v476, 2147483648
  %v560 = vxor.u32 %v479, 2147483648
  %v561 = vxor.u32 %v482, 2147483648
  %v562 = vxor.u32 %v485, 2147483648
  %v563 = vxor.u32 %v488, 2147483648
  %v564 = vxor.u32 %v491, 2147483648
  %v565 = vxor.u32 %v494, 2147483648
  %v566 = vxor.u32 %v497, 2147483648
  %v567 = vxor.u32 %v500, 2147483648
  %v568 = vxor.u32 %v503, 2147483648
  %v569 = vmul.f32 %v505, 1.442695
  %v570 = vpow.pop %v569
  %v571 = vmul.f32 %v506, 1.442695
  %v572 = vpow.pop %v571
  %v573 = vmul.f32 %v507, 1.442695
  %v574 = vpow.pop %v573
  %v575 = vmul.f32 %v508, 1.442695
  %v576 = vpow.pop %v575
  %v577 = vmul.f32 %v509, 1.442695
  %v578 = vpow.pop %v577
  %v579 = vmul.f32 %v510, 1.442695
  %v580 = vpow.pop %v579
  %v581 = vmul.f32 %v511, 1.442695
  %v582 = vpow.pop %v581
  %v583 = vmul.f32 %v512, 1.442695
  %v584 = vpow.pop %v583
  %v585 = vmul.f32 %v513, 1.442695
  %v586 = vpow.pop %v585
  %v587 = vmul.f32 %v514, 1.442695
  %v588 = vpow.pop %v587
  %v589 = vmul.f32 %v515, 1.442695
  %v590 = vpow.pop %v589
  %v591 = vmul.f32 %v516, 1.442695
  %v592 = vpow.pop %v591
  %v593 = vmul.f32 %v517, 1.442695
  %v594 = vpow.pop %v593
  %v595 = vmul.f32 %v518, 1.442695
  %v596 = vpow.pop %v595
  %v597 = vmul.f32 %v519, 1.442695
  %v598 = vpow.pop %v597
  %v599 = vmul.f32 %v520, 1.442695
  %v600 = vpow.pop %v599
  %v601 = vmul.f32 %v521, 1.442695
  %v602 = vpow.pop %v601
  %v603 = vmul.f32 %v522, 1.442695
  %v604 = vpow.pop %v603
  %v605 = vmul.f32 %v523, 1.442695
  %v606 = vpow.pop %v605
  %v607 = vmul.f32 %v524, 1.442695
  %v608 = vpow.pop %v607
  %v609 = vmul.f32 %v525, 1.442695
  %v610 = vpow.pop %v609
  %v611 = vmul.f32 %v526, 1.442695
  %v612 = vpow.pop %v611
  %v613 = vmul.f32 %v527, 1.442695
  %v614 = vpow.pop %v613
  %v615 = vmul.f32 %v528, 1.442695
  %v616 = vpow.pop %v615
  %v617 = vmul.f32 %v529, 1.442695
  %v618 = vpow.pop %v617
  %v619 = vmul.f32 %v530, 1.442695
  %v620 = vpow.pop %v619
  %v621 = vmul.f32 %v531, 1.442695
  %v622 = vpow.pop %v621
  %v623 = vmul.f32 %v532, 1.442695
  %v624 = vpow.pop %v623
  %v625 = vmul.f32 %v533, 1.442695
  %v626 = vpow.pop %v625
  %v627 = vmul.f32 %v534, 1.442695
  %v628 = vpow.pop %v627
  %v629 = vmul.f32 %v535, 1.442695
  %v630 = vpow.pop %v629
  %v631 = vmul.f32 %v536, 1.442695
  %v632 = vpow.pop %v631
  %v633 = vmul.f32 %v537, 1.442695
  %v634 = vpow.pop %v633
  %v635 = vmul.f32 %v538, 1.442695
  %v636 = vpow.pop %v635
  %v637 = vmul.f32 %v539, 1.442695
  %v638 = vpow.pop %v637
  %v639 = vmul.f32 %v540, 1.442695
  %v640 = vpow.pop %v639
  %v641 = vmul.f32 %v541, 1.442695
  %v642 = vpow.pop %v641
  %v643 = vmul.f32 %v542, 1.442695
  %v644 = vpow.pop %v643
  %v645 = vmul.f32 %v543, 1.442695
  %v646 = vpow.pop %v645
  %v647 = vmul.f32 %v544, 1.442695
  %v648 = vpow.pop %v647
  %v649 = vmul.f32 %v545, 1.442695
  %v650 = vpow.pop %v649
  %v651 = vmul.f32 %v546, 1.442695
  %v652 = vpow.pop %v651
  %v653 = vmul.f32 %v547, 1.442695
  %v654 = vpow.pop %v653
  %v655 = vmul.f32 %v548, 1.442695
  %v656 = vpow.pop %v655
  %v657 = vmul.f32 %v549, 1.442695
  %v658 = vpow.pop %v657
  %v659 = vmul.f32 %v550, 1.442695
  %v660 = vpow.pop %v659
  %v661 = vmul.f32 %v551, 1.442695
  %v662 = vpow.pop %v661
  %v663 = vmul.f32 %v552, 1.442695
  %v664 = vpow.pop %v663
  %v665 = vmul.f32 %v553, 1.442695
  %v666 = vpow.pop %v665
  %v667 = vmul.f32 %v554, 1.442695
  %v668 = vpow.pop %v667
  %v669 = vmul.f32 %v555, 1.442695
  %v670 = vpow.pop %v669
  %v671 = vmul.f32 %v556, 1.442695
  %v672 = vpow.pop %v671
  %v673 = vmul.f32 %v557, 1.442695
  %v674 = vpow.pop %v673
  %v675 = vmul.f32 %v558, 1.442695
  %v676 = vpow.pop %v675
  %v677 = vmul.f32 %v559, 1.442695
  %v678 = vpow.pop %v677
  %v679 = vmul.f32 %v560, 1.442695
  %v680 = vpow.pop %v679
  %v681 = vmul.f32 %v561, 1.442695
  %v682 = vpow.pop %v681
  %v683 = vmul.f32 %v562, 1.442695
  %v684 = vpow.pop %v683
  %v685 = vmul.f32 %v563, 1.442695
  %v686 = vpow.pop %v685
  %v687 = vmul.f32 %v564, 1.442695
  %v688 = vpow.pop %v687
  %v689 = vmul.f32 %v565, 1.442695
  %v690 = vpow.pop %v689
  %v691 = vmul.f32 %v566, 1.442695
  %v692 = vpow.pop %v691
  %v693 = vmul.f32 %v567, 1.442695
  %v694 = vpow.pop %v693
  %v695 = vmul.f32 %v568, 1.442695
  %v696 = vpow.pop %v695
  %v697 = vadd.f32 %v570, 1.0
  %v698 = vadd.f32 %v572, 1.0
  %v699 = vadd.f32 %v574, 1.0
  %v700 = vadd.f32 %v576, 1.0
  %v701 = vadd.f32 %v578, 1.0
  %v702 = vadd.f32 %v580, 1.0
  %v703 = vadd.f32 %v582, 1.0
  %v704 = vadd.f32 %v584, 1.0
  %v705 = vadd.f32 %v586, 1.0
  %v706 = vadd.f32 %v588, 1.0
  %v707 = vadd.f32 %v590, 1.0
  %v708 = vadd.f32 %v592, 1.0
  %v709 = vadd.f32 %v594, 1.0
  %v710 = vadd.f32 %v596, 1.0
  %v711 = vadd.f32 %v598, 1.0
  %v712 = vadd.f32 %v600, 1.0
  %v713 = vadd.f32 %v602, 1.0
  %v714 = vadd.f32 %v604, 1.0
  %v715 = vadd.f32 %v606, 1.0
  %v716 = vadd.f32 %v608, 1.0
  %v717 = vadd.f32 %v610, 1.0
  %v718 = vadd.f32 %v612, 1.0
  %v719 = vadd.f32 %v614, 1.0
  %v720 = vadd.f32 %v616, 1.0
  %v721 = vadd.f32 %v618, 1.0
  %v722 = vadd.f32 %v620, 1.0
  %v723 = vadd.f32 %v622, 1.0
  %v724 = vadd.f32 %v624, 1.0
  %v725 = vadd.f32 %v626, 1.0
  %v726 = vadd.f32 %v628, 1.0
  %v727 = vadd.f32 %v630, 1.0
  %v728 = vadd.f32 %v632, 1.0
  %v729 = vadd.f32 %v634, 1.0
  %v730 = vadd.f32 %v636, 1.0
  %v731 = vadd.f32 %v638, 1.0
  %v732 = vadd.f32 %v640, 1.0
  %v733 = vadd.f32 %v642, 1.0
  %v734 = vadd.f32 %v644, 1.0
  %v735 = vadd.f32 %v646, 1.0
  %v736 = vadd.f32 %v648, 1.0
  %v737 = vadd.f32 %v650, 1.0
  %v738 = vadd.f32 %v652, 1.0
  %v739 = vadd.f32 %v654, 1.0
  %v740 = vadd.f32 %v656, 1.0
  %v741 = vadd.f32 %v658, 1.0
  %v742 = vadd.f32 %v660, 1.0
  %v743 = vadd.f32 %v662, 1.0
  %v744 = vadd.f32 %v664, 1.0
  %v745 = vadd.f32 %v666, 1.0
  %v746 = vadd.f32 %v668, 1.0
  %v747 = vadd.f32 %v670, 1.0
  %v748 = vadd.f32 %v672, 1.0
  %v749 = vadd.f32 %v674, 1.0
  %v750 = vadd.f32 %v676, 1.0
  %v751 = vadd.f32 %v678, 1.0
  %v752 = vadd.f32 %v680, 1.0
  %v753 = vadd.f32 %v682, 1.0
  %v754 = vadd.f32 %v684, 1.0
  %v755 = vadd.f32 %v686, 1.0
  %v756 = vadd.f32 %v688, 1.0
  %v757 = vadd.f32 %v690, 1.0
  %v758 = vadd.f32 %v692, 1.0
  %v759 = vadd.f32 %v694, 1.0
  %v760 = vadd.f32 %v696, 1.0
  %v761 = vrcp.pop %v697
  %v762 = vmul.f32 %v697, %v761
  %v763 = vsub.f32 1.0, %v762
  %v764 = vmul.f32 %v761, %v763
  %v765 = vadd.f32 %v761, %v764
  %vm766 = vweird.f32 %v697
  %vm767 = vweird.f32 %v761
  %vm768 = vmor %vm766, %vm767
  %v769 = vsel %vm768, %v761, %v765
  %v770 = vand.u32 2147483647, %v697
  %vm771 = vcmp.eq.f32.partialorder %v770, 8.507059e+37
  %v772 = vand.u32 %v697, 2147483648
  %v773 = vor.u32 1.1754944e-38, %v772
  %v774 = vsel %vm771, %v773, %v769
  %v775 = vmul.f32 1.0, %v774
  %v776 = vrcp.pop %v698
  %v777 = vmul.f32 %v698, %v776
  %v778 = vsub.f32 1.0, %v777
  %v779 = vmul.f32 %v776, %v778
  %v780 = vadd.f32 %v776, %v779
  %vm781 = vweird.f32 %v698
  %vm782 = vweird.f32 %v776
  %vm783 = vmor %vm781, %vm782
  %v784 = vsel %vm783, %v776, %v780
  %v785 = vand.u32 2147483647, %v698
  %vm786 = vcmp.eq.f32.partialorder %v785, 8.507059e+37
  %v787 = vand.u32 %v698, 2147483648
  %v788 = vor.u32 1.1754944e-38, %v787
  %v789 = vsel %vm786, %v788, %v784
  %v790 = vmul.f32 1.0, %v789
  %v791 = vrcp.pop %v699
  %v792 = vmul.f32 %v699, %v791
  %v793 = vsub.f32 1.0, %v792
  %v794 = vmul.f32 %v791, %v793
  %v795 = vadd.f32 %v791, %v794
  %vm796 = vweird.f32 %v699
  %vm797 = vweird.f32 %v791
  %vm798 = vmor %vm796, %vm797
  %v799 = vsel %vm798, %v791, %v795
  %v800 = vand.u32 2147483647, %v699
  %vm801 = vcmp.eq.f32.partialorder %v800, 8.507059e+37
  %v802 = vand.u32 %v699, 2147483648
  %v803 = vor.u32 1.1754944e-38, %v802
  %v804 = vsel %vm801, %v803, %v799
  %v805 = vmul.f32 1.0, %v804
  %v806 = vrcp.pop %v700
  %v807 = vmul.f32 %v700, %v806
  %v808 = vsub.f32 1.0, %v807
  %v809 = vmul.f32 %v806, %v808
  %v810 = vadd.f32 %v806, %v809
  %vm811 = vweird.f32 %v700
  %vm812 = vweird.f32 %v806
  %vm813 = vmor %vm811, %vm812
  %v814 = vsel %vm813, %v806, %v810
  %v815 = vand.u32 2147483647, %v700
  %vm816 = vcmp.eq.f32.partialorder %v815, 8.507059e+37
  %v817 = vand.u32 %v700, 2147483648
  %v818 = vor.u32 1.1754944e-38, %v817
  %v819 = vsel %vm816, %v818, %v814
  %v820 = vmul.f32 1.0, %v819
  %v821 = vrcp.pop %v701
  %v822 = vmul.f32 %v701, %v821
  %v823 = vsub.f32 1.0, %v822
  %v824 = vmul.f32 %v821, %v823
  %v825 = vadd.f32 %v821, %v824
  %vm826 = vweird.f32 %v701
  %vm827 = vweird.f32 %v821
  %vm828 = vmor %vm826, %vm827
  %v829 = vsel %vm828, %v821, %v825
  %v830 = vand.u32 2147483647, %v701
  %vm831 = vcmp.eq.f32.partialorder %v830, 8.507059e+37
  %v832 = vand.u32 %v701, 2147483648
  %v833 = vor.u32 1.1754944e-38, %v832
  %v834 = vsel %vm831, %v833, %v829
  %v835 = vmul.f32 1.0, %v834
  %v836 = vrcp.pop %v702
  %v837 = vmul.f32 %v702, %v836
  %v838 = vsub.f32 1.0, %v837
  %v839 = vmul.f32 %v836, %v838
  %v840 = vadd.f32 %v836, %v839
  %vm841 = vweird.f32 %v702
  %vm842 = vweird.f32 %v836
  %vm843 = vmor %vm841, %vm842
  %v844 = vsel %vm843, %v836, %v840
  %v845 = vand.u32 2147483647, %v702
  %vm846 = vcmp.eq.f32.partialorder %v845, 8.507059e+37
  %v847 = vand.u32 %v702, 2147483648
  %v848 = vor.u32 1.1754944e-38, %v847
  %v849 = vsel %vm846, %v848, %v844
  %v850 = vmul.f32 1.0, %v849
  %v851 = vrcp.pop %v703
  %v852 = vmul.f32 %v703, %v851
  %v853 = vsub.f32 1.0, %v852
  %v854 = vmul.f32 %v851, %v853
  %v855 = vadd.f32 %v851, %v854
  %vm856 = vweird.f32 %v703
  %vm857 = vweird.f32 %v851
  %vm858 = vmor %vm856, %vm857
  %v859 = vsel %vm858, %v851, %v855
  %v860 = vand.u32 2147483647, %v703
  %vm861 = vcmp.eq.f32.partialorder %v860, 8.507059e+37
  %v862 = vand.u32 %v703, 2147483648
  %v863 = vor.u32 1.1754944e-38, %v862
  %v864 = vsel %vm861, %v863, %v859
  %v865 = vmul.f32 1.0, %v864
  %v866 = vrcp.pop %v704
  %v867 = vmul.f32 %v704, %v866
  %v868 = vsub.f32 1.0, %v867
  %v869 = vmul.f32 %v866, %v868
  %v870 = vadd.f32 %v866, %v869
  %vm871 = vweird.f32 %v704
  %vm872 = vweird.f32 %v866
  %vm873 = vmor %vm871, %vm872
  %v874 = vsel %vm873, %v866, %v870
  %v875 = vand.u32 2147483647, %v704
  %vm876 = vcmp.eq.f32.partialorder %v875, 8.507059e+37
  %v877 = vand.u32 %v704, 2147483648
  %v878 = vor.u32 1.1754944e-38, %v877
  %v879 = vsel %vm876, %v878, %v874
  %v880 = vmul.f32 1.0, %v879
  %v881 = vrcp.pop %v705
  %v882 = vmul.f32 %v705, %v881
  %v883 = vsub.f32 1.0, %v882
  %v884 = vmul.f32 %v881, %v883
  %v885 = vadd.f32 %v881, %v884
  %vm886 = vweird.f32 %v705
  %vm887 = vweird.f32 %v881
  %vm888 = vmor %vm886, %vm887
  %v889 = vsel %vm888, %v881, %v885
  %v890 = vand.u32 2147483647, %v705
  %vm891 = vcmp.eq.f32.partialorder %v890, 8.507059e+37
  %v892 = vand.u32 %v705, 2147483648
  %v893 = vor.u32 1.1754944e-38, %v892
  %v894 = vsel %vm891, %v893, %v889
  %v895 = vmul.f32 1.0, %v894
  %v896 = vrcp.pop %v706
  %v897 = vmul.f32 %v706, %v896
  %v898 = vsub.f32 1.0, %v897
  %v899 = vmul.f32 %v896, %v898
  %v900 = vadd.f32 %v896, %v899
  %vm901 = vweird.f32 %v706
  %vm902 = vweird.f32 %v896
  %vm903 = vmor %vm901, %vm902
  %v904 = vsel %vm903, %v896, %v900
  %v905 = vand.u32 2147483647, %v706
  %vm906 = vcmp.eq.f32.partialorder %v905, 8.507059e+37
  %v907 = vand.u32 %v706, 2147483648
  %v908 = vor.u32 1.1754944e-38, %v907
  %v909 = vsel %vm906, %v908, %v904
  %v910 = vmul.f32 1.0, %v909
  %v911 = vrcp.pop %v707
  %v912 = vmul.f32 %v707, %v911
  %v913 = vsub.f32 1.0, %v912
  %v914 = vmul.f32 %v911, %v913
  %v915 = vadd.f32 %v911, %v914
  %vm916 = vweird.f32 %v707
  %vm917 = vweird.f32 %v911
  %vm918 = vmor %vm916, %vm917
  %v919 = vsel %vm918, %v911, %v915
  %v920 = vand.u32 2147483647, %v707
  %vm921 = vcmp.eq.f32.partialorder %v920, 8.507059e+37
  %v922 = vand.u32 %v707, 2147483648
  %v923 = vor.u32 1.1754944e-38, %v922
  %v924 = vsel %vm921, %v923, %v919
  %v925 = vmul.f32 1.0, %v924
  %v926 = vrcp.pop %v708
  %v927 = vmul.f32 %v708, %v926
  %v928 = vsub.f32 1.0, %v927
  %v929 = vmul.f32 %v926, %v928
  %v930 = vadd.f32 %v926, %v929
  %vm931 = vweird.f32 %v708
  %vm932 = vweird.f32 %v926
  %vm933 = vmor %vm931, %vm932
  %v934 = vsel %vm933, %v926, %v930
  %v935 = vand.u32 2147483647, %v708
  %vm936 = vcmp.eq.f32.partialorder %v935, 8.507059e+37
  %v937 = vand.u32 %v708, 2147483648
  %v938 = vor.u32 1.1754944e-38, %v937
  %v939 = vsel %vm936, %v938, %v934
  %v940 = vmul.f32 1.0, %v939
  %v941 = vrcp.pop %v709
  %v942 = vmul.f32 %v709, %v941
  %v943 = vsub.f32 1.0, %v942
  %v944 = vmul.f32 %v941, %v943
  %v945 = vadd.f32 %v941, %v944
  %vm946 = vweird.f32 %v709
  %vm947 = vweird.f32 %v941
  %vm948 = vmor %vm946, %vm947
  %v949 = vsel %vm948, %v941, %v945
  %v950 = vand.u32 2147483647, %v709
  %vm951 = vcmp.eq.f32.partialorder %v950, 8.507059e+37
  %v952 = vand.u32 %v709, 2147483648
  %v953 = vor.u32 1.1754944e-38, %v952
  %v954 = vsel %vm951, %v953, %v949
  %v955 = vmul.f32 1.0, %v954
  %v956 = vrcp.pop %v710
  %v957 = vmul.f32 %v710, %v956
  %v958 = vsub.f32 1.0, %v957
  %v959 = vmul.f32 %v956, %v958
  %v960 = vadd.f32 %v956, %v959
  %vm961 = vweird.f32 %v710
  %vm962 = vweird.f32 %v956
  %vm963 = vmor %vm961, %vm962
  %v964 = vsel %vm963, %v956, %v960
  %v965 = vand.u32 2147483647, %v710
  %vm966 = vcmp.eq.f32.partialorder %v965, 8.507059e+37
  %v967 = vand.u32 %v710, 2147483648
  %v968 = vor.u32 1.1754944e-38, %v967
  %v969 = vsel %vm966, %v968, %v964
  %v970 = vmul.f32 1.0, %v969
  %v971 = vrcp.pop %v711
  %v972 = vmul.f32 %v711, %v971
  %v973 = vsub.f32 1.0, %v972
  %v974 = vmul.f32 %v971, %v973
  %v975 = vadd.f32 %v971, %v974
  %vm976 = vweird.f32 %v711
  %vm977 = vweird.f32 %v971
  %vm978 = vmor %vm976, %vm977
  %v979 = vsel %vm978, %v971, %v975
  %v980 = vand.u32 2147483647, %v711
  %vm981 = vcmp.eq.f32.partialorder %v980, 8.507059e+37
  %v982 = vand.u32 %v711, 2147483648
  %v983 = vor.u32 1.1754944e-38, %v982
  %v984 = vsel %vm981, %v983, %v979
  %v985 = vmul.f32 1.0, %v984
  %v986 = vrcp.pop %v712
  %v987 = vmul.f32 %v712, %v986
  %v988 = vsub.f32 1.0, %v987
  %v989 = vmul.f32 %v986, %v988
  %v990 = vadd.f32 %v986, %v989
  %vm991 = vweird.f32 %v712
  %vm992 = vweird.f32 %v986
  %vm993 = vmor %vm991, %vm992
  %v994 = vsel %vm993, %v986, %v990
  %v995 = vand.u32 2147483647, %v712
  %vm996 = vcmp.eq.f32.partialorder %v995, 8.507059e+37
  %v997 = vand.u32 %v712, 2147483648
  %v998 = vor.u32 1.1754944e-38, %v997
  %v999 = vsel %vm996, %v998, %v994
  %v1000 = vmul.f32 1.0, %v999
  %v1001 = vrcp.pop %v713
  %v1002 = vmul.f32 %v713, %v1001
  %v1003 = vsub.f32 1.0, %v1002
  %v1004 = vmul.f32 %v1001, %v1003
  %v1005 = vadd.f32 %v1001, %v1004
  %vm1006 = vweird.f32 %v713
  %vm1007 = vweird.f32 %v1001
  %vm1008 = vmor %vm1006, %vm1007
  %v1009 = vsel %vm1008, %v1001, %v1005
  %v1010 = vand.u32 2147483647, %v713
  %vm1011 = vcmp.eq.f32.partialorder %v1010, 8.507059e+37
  %v1012 = vand.u32 %v713, 2147483648
  %v1013 = vor.u32 1.1754944e-38, %v1012
  %v1014 = vsel %vm1011, %v1013, %v1009
  %v1015 = vmul.f32 1.0, %v1014
  %v1016 = vrcp.pop %v714
  %v1017 = vmul.f32 %v714, %v1016
  %v1018 = vsub.f32 1.0, %v1017
  %v1019 = vmul.f32 %v1016, %v1018
  %v1020 = vadd.f32 %v1016, %v1019
  %vm1021 = vweird.f32 %v714
  %vm1022 = vweird.f32 %v1016
  %vm1023 = vmor %vm1021, %vm1022
  %v1024 = vsel %vm1023, %v1016, %v1020
  %v1025 = vand.u32 2147483647, %v714
  %vm1026 = vcmp.eq.f32.partialorder %v1025, 8.507059e+37
  %v1027 = vand.u32 %v714, 2147483648
  %v1028 = vor.u32 1.1754944e-38, %v1027
  %v1029 = vsel %vm1026, %v1028, %v1024
  %v1030 = vmul.f32 1.0, %v1029
  %v1031 = vrcp.pop %v715
  %v1032 = vmul.f32 %v715, %v1031
  %v1033 = vsub.f32 1.0, %v1032
  %v1034 = vmul.f32 %v1031, %v1033
  %v1035 = vadd.f32 %v1031, %v1034
  %vm1036 = vweird.f32 %v715
  %vm1037 = vweird.f32 %v1031
  %vm1038 = vmor %vm1036, %vm1037
  %v1039 = vsel %vm1038, %v1031, %v1035
  %v1040 = vand.u32 2147483647, %v715
  %vm1041 = vcmp.eq.f32.partialorder %v1040, 8.507059e+37
  %v1042 = vand.u32 %v715, 2147483648
  %v1043 = vor.u32 1.1754944e-38, %v1042
  %v1044 = vsel %vm1041, %v1043, %v1039
  %v1045 = vmul.f32 1.0, %v1044
  %v1046 = vrcp.pop %v716
  %v1047 = vmul.f32 %v716, %v1046
  %v1048 = vsub.f32 1.0, %v1047
  %v1049 = vmul.f32 %v1046, %v1048
  %v1050 = vadd.f32 %v1046, %v1049
  %vm1051 = vweird.f32 %v716
  %vm1052 = vweird.f32 %v1046
  %vm1053 = vmor %vm1051, %vm1052
  %v1054 = vsel %vm1053, %v1046, %v1050
  %v1055 = vand.u32 2147483647, %v716
  %vm1056 = vcmp.eq.f32.partialorder %v1055, 8.507059e+37
  %v1057 = vand.u32 %v716, 2147483648
  %v1058 = vor.u32 1.1754944e-38, %v1057
  %v1059 = vsel %vm1056, %v1058, %v1054
  %v1060 = vmul.f32 1.0, %v1059
  %v1061 = vrcp.pop %v717
  %v1062 = vmul.f32 %v717, %v1061
  %v1063 = vsub.f32 1.0, %v1062
  %v1064 = vmul.f32 %v1061, %v1063
  %v1065 = vadd.f32 %v1061, %v1064
  %vm1066 = vweird.f32 %v717
  %vm1067 = vweird.f32 %v1061
  %vm1068 = vmor %vm1066, %vm1067
  %v1069 = vsel %vm1068, %v1061, %v1065
  %v1070 = vand.u32 2147483647, %v717
  %vm1071 = vcmp.eq.f32.partialorder %v1070, 8.507059e+37
  %v1072 = vand.u32 %v717, 2147483648
  %v1073 = vor.u32 1.1754944e-38, %v1072
  %v1074 = vsel %vm1071, %v1073, %v1069
  %v1075 = vmul.f32 1.0, %v1074
  %v1076 = vrcp.pop %v718
  %v1077 = vmul.f32 %v718, %v1076
  %v1078 = vsub.f32 1.0, %v1077
  %v1079 = vmul.f32 %v1076, %v1078
  %v1080 = vadd.f32 %v1076, %v1079
  %vm1081 = vweird.f32 %v718
  %vm1082 = vweird.f32 %v1076
  %vm1083 = vmor %vm1081, %vm1082
  %v1084 = vsel %vm1083, %v1076, %v1080
  %v1085 = vand.u32 2147483647, %v718
  %vm1086 = vcmp.eq.f32.partialorder %v1085, 8.507059e+37
  %v1087 = vand.u32 %v718, 2147483648
  %v1088 = vor.u32 1.1754944e-38, %v1087
  %v1089 = vsel %vm1086, %v1088, %v1084
  %v1090 = vmul.f32 1.0, %v1089
  %v1091 = vrcp.pop %v719
  %v1092 = vmul.f32 %v719, %v1091
  %v1093 = vsub.f32 1.0, %v1092
  %v1094 = vmul.f32 %v1091, %v1093
  %v1095 = vadd.f32 %v1091, %v1094
  %vm1096 = vweird.f32 %v719
  %vm1097 = vweird.f32 %v1091
  %vm1098 = vmor %vm1096, %vm1097
  %v1099 = vsel %vm1098, %v1091, %v1095
  %v1100 = vand.u32 2147483647, %v719
  %vm1101 = vcmp.eq.f32.partialorder %v1100, 8.507059e+37
  %v1102 = vand.u32 %v719, 2147483648
  %v1103 = vor.u32 1.1754944e-38, %v1102
  %v1104 = vsel %vm1101, %v1103, %v1099
  %v1105 = vmul.f32 1.0, %v1104
  %v1106 = vrcp.pop %v720
  %v1107 = vmul.f32 %v720, %v1106
  %v1108 = vsub.f32 1.0, %v1107
  %v1109 = vmul.f32 %v1106, %v1108
  %v1110 = vadd.f32 %v1106, %v1109
  %vm1111 = vweird.f32 %v720
  %vm1112 = vweird.f32 %v1106
  %vm1113 = vmor %vm1111, %vm1112
  %v1114 = vsel %vm1113, %v1106, %v1110
  %v1115 = vand.u32 2147483647, %v720
  %vm1116 = vcmp.eq.f32.partialorder %v1115, 8.507059e+37
  %v1117 = vand.u32 %v720, 2147483648
  %v1118 = vor.u32 1.1754944e-38, %v1117
  %v1119 = vsel %vm1116, %v1118, %v1114
  %v1120 = vmul.f32 1.0, %v1119
  %v1121 = vrcp.pop %v721
  %v1122 = vmul.f32 %v721, %v1121
  %v1123 = vsub.f32 1.0, %v1122
  %v1124 = vmul.f32 %v1121, %v1123
  %v1125 = vadd.f32 %v1121, %v1124
  %vm1126 = vweird.f32 %v721
  %vm1127 = vweird.f32 %v1121
  %vm1128 = vmor %vm1126, %vm1127
  %v1129 = vsel %vm1128, %v1121, %v1125
  %v1130 = vand.u32 2147483647, %v721
  %vm1131 = vcmp.eq.f32.partialorder %v1130, 8.507059e+37
  %v1132 = vand.u32 %v721, 2147483648
  %v1133 = vor.u32 1.1754944e-38, %v1132
  %v1134 = vsel %vm1131, %v1133, %v1129
  %v1135 = vmul.f32 1.0, %v1134
  %v1136 = vrcp.pop %v722
  %v1137 = vmul.f32 %v722, %v1136
  %v1138 = vsub.f32 1.0, %v1137
  %v1139 = vmul.f32 %v1136, %v1138
  %v1140 = vadd.f32 %v1136, %v1139
  %vm1141 = vweird.f32 %v722
  %vm1142 = vweird.f32 %v1136
  %vm1143 = vmor %vm1141, %vm1142
  %v1144 = vsel %vm1143, %v1136, %v1140
  %v1145 = vand.u32 2147483647, %v722
  %vm1146 = vcmp.eq.f32.partialorder %v1145, 8.507059e+37
  %v1147 = vand.u32 %v722, 2147483648
  %v1148 = vor.u32 1.1754944e-38, %v1147
  %v1149 = vsel %vm1146, %v1148, %v1144
  %v1150 = vmul.f32 1.0, %v1149
  %v1151 = vrcp.pop %v723
  %v1152 = vmul.f32 %v723, %v1151
  %v1153 = vsub.f32 1.0, %v1152
  %v1154 = vmul.f32 %v1151, %v1153
  %v1155 = vadd.f32 %v1151, %v1154
  %vm1156 = vweird.f32 %v723
  %vm1157 = vweird.f32 %v1151
  %vm1158 = vmor %vm1156, %vm1157
  %v1159 = vsel %vm1158, %v1151, %v1155
  %v1160 = vand.u32 2147483647, %v723
  %vm1161 = vcmp.eq.f32.partialorder %v1160, 8.507059e+37
  %v1162 = vand.u32 %v723, 2147483648
  %v1163 = vor.u32 1.1754944e-38, %v1162
  %v1164 = vsel %vm1161, %v1163, %v1159
  %v1165 = vmul.f32 1.0, %v1164
  %v1166 = vrcp.pop %v724
  %v1167 = vmul.f32 %v724, %v1166
  %v1168 = vsub.f32 1.0, %v1167
  %v1169 = vmul.f32 %v1166, %v1168
  %v1170 = vadd.f32 %v1166, %v1169
  %vm1171 = vweird.f32 %v724
  %vm1172 = vweird.f32 %v1166
  %vm1173 = vmor %vm1171, %vm1172
  %v1174 = vsel %vm1173, %v1166, %v1170
  %v1175 = vand.u32 2147483647, %v724
  %vm1176 = vcmp.eq.f32.partialorder %v1175, 8.507059e+37
  %v1177 = vand.u32 %v724, 2147483648
  %v1178 = vor.u32 1.1754944e-38, %v1177
  %v1179 = vsel %vm1176, %v1178, %v1174
  %v1180 = vmul.f32 1.0, %v1179
  %v1181 = vrcp.pop %v725
  %v1182 = vmul.f32 %v725, %v1181
  %v1183 = vsub.f32 1.0, %v1182
  %v1184 = vmul.f32 %v1181, %v1183
  %v1185 = vadd.f32 %v1181, %v1184
  %vm1186 = vweird.f32 %v725
  %vm1187 = vweird.f32 %v1181
  %vm1188 = vmor %vm1186, %vm1187
  %v1189 = vsel %vm1188, %v1181, %v1185
  %v1190 = vand.u32 2147483647, %v725
  %vm1191 = vcmp.eq.f32.partialorder %v1190, 8.507059e+37
  %v1192 = vand.u32 %v725, 2147483648
  %v1193 = vor.u32 1.1754944e-38, %v1192
  %v1194 = vsel %vm1191, %v1193, %v1189
  %v1195 = vmul.f32 1.0, %v1194
  %v1196 = vrcp.pop %v726
  %v1197 = vmul.f32 %v726, %v1196
  %v1198 = vsub.f32 1.0, %v1197
  %v1199 = vmul.f32 %v1196, %v1198
  %v1200 = vadd.f32 %v1196, %v1199
  %vm1201 = vweird.f32 %v726
  %vm1202 = vweird.f32 %v1196
  %vm1203 = vmor %vm1201, %vm1202
  %v1204 = vsel %vm1203, %v1196, %v1200
  %v1205 = vand.u32 2147483647, %v726
  %vm1206 = vcmp.eq.f32.partialorder %v1205, 8.507059e+37
  %v1207 = vand.u32 %v726, 2147483648
  %v1208 = vor.u32 1.1754944e-38, %v1207
  %v1209 = vsel %vm1206, %v1208, %v1204
  %v1210 = vmul.f32 1.0, %v1209
  %v1211 = vrcp.pop %v727
  %v1212 = vmul.f32 %v727, %v1211
  %v1213 = vsub.f32 1.0, %v1212
  %v1214 = vmul.f32 %v1211, %v1213
  %v1215 = vadd.f32 %v1211, %v1214
  %vm1216 = vweird.f32 %v727
  %vm1217 = vweird.f32 %v1211
  %vm1218 = vmor %vm1216, %vm1217
  %v1219 = vsel %vm1218, %v1211, %v1215
  %v1220 = vand.u32 2147483647, %v727
  %vm1221 = vcmp.eq.f32.partialorder %v1220, 8.507059e+37
  %v1222 = vand.u32 %v727, 2147483648
  %v1223 = vor.u32 1.1754944e-38, %v1222
  %v1224 = vsel %vm1221, %v1223, %v1219
  %v1225 = vmul.f32 1.0, %v1224
  %v1226 = vrcp.pop %v728
  %v1227 = vmul.f32 %v728, %v1226
  %v1228 = vsub.f32 1.0, %v1227
  %v1229 = vmul.f32 %v1226, %v1228
  %v1230 = vadd.f32 %v1226, %v1229
  %vm1231 = vweird.f32 %v728
  %vm1232 = vweird.f32 %v1226
  %vm1233 = vmor %vm1231, %vm1232
  %v1234 = vsel %vm1233, %v1226, %v1230
  %v1235 = vand.u32 2147483647, %v728
  %vm1236 = vcmp.eq.f32.partialorder %v1235, 8.507059e+37
  %v1237 = vand.u32 %v728, 2147483648
  %v1238 = vor.u32 1.1754944e-38, %v1237
  %v1239 = vsel %vm1236, %v1238, %v1234
  %v1240 = vmul.f32 1.0, %v1239
  %v1241 = vrcp.pop %v729
  %v1242 = vmul.f32 %v729, %v1241
  %v1243 = vsub.f32 1.0, %v1242
  %v1244 = vmul.f32 %v1241, %v1243
  %v1245 = vadd.f32 %v1241, %v1244
  %vm1246 = vweird.f32 %v729
  %vm1247 = vweird.f32 %v1241
  %vm1248 = vmor %vm1246, %vm1247
  %v1249 = vsel %vm1248, %v1241, %v1245
  %v1250 = vand.u32 2147483647, %v729
  %vm1251 = vcmp.eq.f32.partialorder %v1250, 8.507059e+37
  %v1252 = vand.u32 %v729, 2147483648
  %v1253 = vor.u32 1.1754944e-38, %v1252
  %v1254 = vsel %vm1251, %v1253, %v1249
  %v1255 = vmul.f32 1.0, %v1254
  %v1256 = vrcp.pop %v730
  %v1257 = vmul.f32 %v730, %v1256
  %v1258 = vsub.f32 1.0, %v1257
  %v1259 = vmul.f32 %v1256, %v1258
  %v1260 = vadd.f32 %v1256, %v1259
  %vm1261 = vweird.f32 %v730
  %vm1262 = vweird.f32 %v1256
  %vm1263 = vmor %vm1261, %vm1262
  %v1264 = vsel %vm1263, %v1256, %v1260
  %v1265 = vand.u32 2147483647, %v730
  %vm1266 = vcmp.eq.f32.partialorder %v1265, 8.507059e+37
  %v1267 = vand.u32 %v730, 2147483648
  %v1268 = vor.u32 1.1754944e-38, %v1267
  %v1269 = vsel %vm1266, %v1268, %v1264
  %v1270 = vmul.f32 1.0, %v1269
  %v1271 = vrcp.pop %v731
  %v1272 = vmul.f32 %v731, %v1271
  %v1273 = vsub.f32 1.0, %v1272
  %v1274 = vmul.f32 %v1271, %v1273
  %v1275 = vadd.f32 %v1271, %v1274
  %vm1276 = vweird.f32 %v731
  %vm1277 = vweird.f32 %v1271
  %vm1278 = vmor %vm1276, %vm1277
  %v1279 = vsel %vm1278, %v1271, %v1275
  %v1280 = vand.u32 2147483647, %v731
  %vm1281 = vcmp.eq.f32.partialorder %v1280, 8.507059e+37
  %v1282 = vand.u32 %v731, 2147483648
  %v1283 = vor.u32 1.1754944e-38, %v1282
  %v1284 = vsel %vm1281, %v1283, %v1279
  %v1285 = vmul.f32 1.0, %v1284
  %v1286 = vrcp.pop %v732
  %v1287 = vmul.f32 %v732, %v1286
  %v1288 = vsub.f32 1.0, %v1287
  %v1289 = vmul.f32 %v1286, %v1288
  %v1290 = vadd.f32 %v1286, %v1289
  %vm1291 = vweird.f32 %v732
  %vm1292 = vweird.f32 %v1286
  %vm1293 = vmor %vm1291, %vm1292
  %v1294 = vsel %vm1293, %v1286, %v1290
  %v1295 = vand.u32 2147483647, %v732
  %vm1296 = vcmp.eq.f32.partialorder %v1295, 8.507059e+37
  %v1297 = vand.u32 %v732, 2147483648
  %v1298 = vor.u32 1.1754944e-38, %v1297
  %v1299 = vsel %vm1296, %v1298, %v1294
  %v1300 = vmul.f32 1.0, %v1299
  %v1301 = vrcp.pop %v733
  %v1302 = vmul.f32 %v733, %v1301
  %v1303 = vsub.f32 1.0, %v1302
  %v1304 = vmul.f32 %v1301, %v1303
  %v1305 = vadd.f32 %v1301, %v1304
  %vm1306 = vweird.f32 %v733
  %vm1307 = vweird.f32 %v1301
  %vm1308 = vmor %vm1306, %vm1307
  %v1309 = vsel %vm1308, %v1301, %v1305
  %v1310 = vand.u32 2147483647, %v733
  %vm1311 = vcmp.eq.f32.partialorder %v1310, 8.507059e+37
  %v1312 = vand.u32 %v733, 2147483648
  %v1313 = vor.u32 1.1754944e-38, %v1312
  %v1314 = vsel %vm1311, %v1313, %v1309
  %v1315 = vmul.f32 1.0, %v1314
  %v1316 = vrcp.pop %v734
  %v1317 = vmul.f32 %v734, %v1316
  %v1318 = vsub.f32 1.0, %v1317
  %v1319 = vmul.f32 %v1316, %v1318
  %v1320 = vadd.f32 %v1316, %v1319
  %vm1321 = vweird.f32 %v734
  %vm1322 = vweird.f32 %v1316
  %vm1323 = vmor %vm1321, %vm1322
  %v1324 = vsel %vm1323, %v1316, %v1320
  %v1325 = vand.u32 2147483647, %v734
  %vm1326 = vcmp.eq.f32.partialorder %v1325, 8.507059e+37
  %v1327 = vand.u32 %v734, 2147483648
  %v1328 = vor.u32 1.1754944e-38, %v1327
  %v1329 = vsel %vm1326, %v1328, %v1324
  %v1330 = vmul.f32 1.0, %v1329
  %v1331 = vrcp.pop %v735
  %v1332 = vmul.f32 %v735, %v1331
  %v1333 = vsub.f32 1.0, %v1332
  %v1334 = vmul.f32 %v1331, %v1333
  %v1335 = vadd.f32 %v1331, %v1334
  %vm1336 = vweird.f32 %v735
  %vm1337 = vweird.f32 %v1331
  %vm1338 = vmor %vm1336, %vm1337
  %v1339 = vsel %vm1338, %v1331, %v1335
  %v1340 = vand.u32 2147483647, %v735
  %vm1341 = vcmp.eq.f32.partialorder %v1340, 8.507059e+37
  %v1342 = vand.u32 %v735, 2147483648
  %v1343 = vor.u32 1.1754944e-38, %v1342
  %v1344 = vsel %vm1341, %v1343, %v1339
  %v1345 = vmul.f32 1.0, %v1344
  %v1346 = vrcp.pop %v736
  %v1347 = vmul.f32 %v736, %v1346
  %v1348 = vsub.f32 1.0, %v1347
  %v1349 = vmul.f32 %v1346, %v1348
  %v1350 = vadd.f32 %v1346, %v1349
  %vm1351 = vweird.f32 %v736
  %vm1352 = vweird.f32 %v1346
  %vm1353 = vmor %vm1351, %vm1352
  %v1354 = vsel %vm1353, %v1346, %v1350
  %v1355 = vand.u32 2147483647, %v736
  %vm1356 = vcmp.eq.f32.partialorder %v1355, 8.507059e+37
  %v1357 = vand.u32 %v736, 2147483648
  %v1358 = vor.u32 1.1754944e-38, %v1357
  %v1359 = vsel %vm1356, %v1358, %v1354
  %v1360 = vmul.f32 1.0, %v1359
  %v1361 = vrcp.pop %v737
  %v1362 = vmul.f32 %v737, %v1361
  %v1363 = vsub.f32 1.0, %v1362
  %v1364 = vmul.f32 %v1361, %v1363
  %v1365 = vadd.f32 %v1361, %v1364
  %vm1366 = vweird.f32 %v737
  %vm1367 = vweird.f32 %v1361
  %vm1368 = vmor %vm1366, %vm1367
  %v1369 = vsel %vm1368, %v1361, %v1365
  %v1370 = vand.u32 2147483647, %v737
  %vm1371 = vcmp.eq.f32.partialorder %v1370, 8.507059e+37
  %v1372 = vand.u32 %v737, 2147483648
  %v1373 = vor.u32 1.1754944e-38, %v1372
  %v1374 = vsel %vm1371, %v1373, %v1369
  %v1375 = vmul.f32 1.0, %v1374
  %v1376 = vrcp.pop %v738
  %v1377 = vmul.f32 %v738, %v1376
  %v1378 = vsub.f32 1.0, %v1377
  %v1379 = vmul.f32 %v1376, %v1378
  %v1380 = vadd.f32 %v1376, %v1379
  %vm1381 = vweird.f32 %v738
  %vm1382 = vweird.f32 %v1376
  %vm1383 = vmor %vm1381, %vm1382
  %v1384 = vsel %vm1383, %v1376, %v1380
  %v1385 = vand.u32 2147483647, %v738
  %vm1386 = vcmp.eq.f32.partialorder %v1385, 8.507059e+37
  %v1387 = vand.u32 %v738, 2147483648
  %v1388 = vor.u32 1.1754944e-38, %v1387
  %v1389 = vsel %vm1386, %v1388, %v1384
  %v1390 = vmul.f32 1.0, %v1389
  %v1391 = vrcp.pop %v739
  %v1392 = vmul.f32 %v739, %v1391
  %v1393 = vsub.f32 1.0, %v1392
  %v1394 = vmul.f32 %v1391, %v1393
  %v1395 = vadd.f32 %v1391, %v1394
  %vm1396 = vweird.f32 %v739
  %vm1397 = vweird.f32 %v1391
  %vm1398 = vmor %vm1396, %vm1397
  %v1399 = vsel %vm1398, %v1391, %v1395
  %v1400 = vand.u32 2147483647, %v739
  %vm1401 = vcmp.eq.f32.partialorder %v1400, 8.507059e+37
  %v1402 = vand.u32 %v739, 2147483648
  %v1403 = vor.u32 1.1754944e-38, %v1402
  %v1404 = vsel %vm1401, %v1403, %v1399
  %v1405 = vmul.f32 1.0, %v1404
  %v1406 = vrcp.pop %v740
  %v1407 = vmul.f32 %v740, %v1406
  %v1408 = vsub.f32 1.0, %v1407
  %v1409 = vmul.f32 %v1406, %v1408
  %v1410 = vadd.f32 %v1406, %v1409
  %vm1411 = vweird.f32 %v740
  %vm1412 = vweird.f32 %v1406
  %vm1413 = vmor %vm1411, %vm1412
  %v1414 = vsel %vm1413, %v1406, %v1410
  %v1415 = vand.u32 2147483647, %v740
  %vm1416 = vcmp.eq.f32.partialorder %v1415, 8.507059e+37
  %v1417 = vand.u32 %v740, 2147483648
  %v1418 = vor.u32 1.1754944e-38, %v1417
  %v1419 = vsel %vm1416, %v1418, %v1414
  %v1420 = vmul.f32 1.0, %v1419
  %v1421 = vrcp.pop %v741
  %v1422 = vmul.f32 %v741, %v1421
  %v1423 = vsub.f32 1.0, %v1422
  %v1424 = vmul.f32 %v1421, %v1423
  %v1425 = vadd.f32 %v1421, %v1424
  %vm1426 = vweird.f32 %v741
  %vm1427 = vweird.f32 %v1421
  %vm1428 = vmor %vm1426, %vm1427
  %v1429 = vsel %vm1428, %v1421, %v1425
  %v1430 = vand.u32 2147483647, %v741
  %vm1431 = vcmp.eq.f32.partialorder %v1430, 8.507059e+37
  %v1432 = vand.u32 %v741, 2147483648
  %v1433 = vor.u32 1.1754944e-38, %v1432
  %v1434 = vsel %vm1431, %v1433, %v1429
  %v1435 = vmul.f32 1.0, %v1434
  %v1436 = vrcp.pop %v742
  %v1437 = vmul.f32 %v742, %v1436
  %v1438 = vsub.f32 1.0, %v1437
  %v1439 = vmul.f32 %v1436, %v1438
  %v1440 = vadd.f32 %v1436, %v1439
  %vm1441 = vweird.f32 %v742
  %vm1442 = vweird.f32 %v1436
  %vm1443 = vmor %vm1441, %vm1442
  %v1444 = vsel %vm1443, %v1436, %v1440
  %v1445 = vand.u32 2147483647, %v742
  %vm1446 = vcmp.eq.f32.partialorder %v1445, 8.507059e+37
  %v1447 = vand.u32 %v742, 2147483648
  %v1448 = vor.u32 1.1754944e-38, %v1447
  %v1449 = vsel %vm1446, %v1448, %v1444
  %v1450 = vmul.f32 1.0, %v1449
  %v1451 = vrcp.pop %v743
  %v1452 = vmul.f32 %v743, %v1451
  %v1453 = vsub.f32 1.0, %v1452
  %v1454 = vmul.f32 %v1451, %v1453
  %v1455 = vadd.f32 %v1451, %v1454
  %vm1456 = vweird.f32 %v743
  %vm1457 = vweird.f32 %v1451
  %vm1458 = vmor %vm1456, %vm1457
  %v1459 = vsel %vm1458, %v1451, %v1455
  %v1460 = vand.u32 2147483647, %v743
  %vm1461 = vcmp.eq.f32.partialorder %v1460, 8.507059e+37
  %v1462 = vand.u32 %v743, 2147483648
  %v1463 = vor.u32 1.1754944e-38, %v1462
  %v1464 = vsel %vm1461, %v1463, %v1459
  %v1465 = vmul.f32 1.0, %v1464
  %v1466 = vrcp.pop %v744
  %v1467 = vmul.f32 %v744, %v1466
  %v1468 = vsub.f32 1.0, %v1467
  %v1469 = vmul.f32 %v1466, %v1468
  %v1470 = vadd.f32 %v1466, %v1469
  %vm1471 = vweird.f32 %v744
  %vm1472 = vweird.f32 %v1466
  %vm1473 = vmor %vm1471, %vm1472
  %v1474 = vsel %vm1473, %v1466, %v1470
  %v1475 = vand.u32 2147483647, %v744
  %vm1476 = vcmp.eq.f32.partialorder %v1475, 8.507059e+37
  %v1477 = vand.u32 %v744, 2147483648
  %v1478 = vor.u32 1.1754944e-38, %v1477
  %v1479 = vsel %vm1476, %v1478, %v1474
  %v1480 = vmul.f32 1.0, %v1479
  %v1481 = vrcp.pop %v745
  %v1482 = vmul.f32 %v745, %v1481
  %v1483 = vsub.f32 1.0, %v1482
  %v1484 = vmul.f32 %v1481, %v1483
  %v1485 = vadd.f32 %v1481, %v1484
  %vm1486 = vweird.f32 %v745
  %vm1487 = vweird.f32 %v1481
  %vm1488 = vmor %vm1486, %vm1487
  %v1489 = vsel %vm1488, %v1481, %v1485
  %v1490 = vand.u32 2147483647, %v745
  %vm1491 = vcmp.eq.f32.partialorder %v1490, 8.507059e+37
  %v1492 = vand.u32 %v745, 2147483648
  %v1493 = vor.u32 1.1754944e-38, %v1492
  %v1494 = vsel %vm1491, %v1493, %v1489
  %v1495 = vmul.f32 1.0, %v1494
  %v1496 = vrcp.pop %v746
  %v1497 = vmul.f32 %v746, %v1496
  %v1498 = vsub.f32 1.0, %v1497
  %v1499 = vmul.f32 %v1496, %v1498
  %v1500 = vadd.f32 %v1496, %v1499
  %vm1501 = vweird.f32 %v746
  %vm1502 = vweird.f32 %v1496
  %vm1503 = vmor %vm1501, %vm1502
  %v1504 = vsel %vm1503, %v1496, %v1500
  %v1505 = vand.u32 2147483647, %v746
  %vm1506 = vcmp.eq.f32.partialorder %v1505, 8.507059e+37
  %v1507 = vand.u32 %v746, 2147483648
  %v1508 = vor.u32 1.1754944e-38, %v1507
  %v1509 = vsel %vm1506, %v1508, %v1504
  %v1510 = vmul.f32 1.0, %v1509
  %v1511 = vrcp.pop %v747
  %v1512 = vmul.f32 %v747, %v1511
  %v1513 = vsub.f32 1.0, %v1512
  %v1514 = vmul.f32 %v1511, %v1513
  %v1515 = vadd.f32 %v1511, %v1514
  %vm1516 = vweird.f32 %v747
  %vm1517 = vweird.f32 %v1511
  %vm1518 = vmor %vm1516, %vm1517
  %v1519 = vsel %vm1518, %v1511, %v1515
  %v1520 = vand.u32 2147483647, %v747
  %vm1521 = vcmp.eq.f32.partialorder %v1520, 8.507059e+37
  %v1522 = vand.u32 %v747, 2147483648
  %v1523 = vor.u32 1.1754944e-38, %v1522
  %v1524 = vsel %vm1521, %v1523, %v1519
  %v1525 = vmul.f32 1.0, %v1524
  %v1526 = vrcp.pop %v748
  %v1527 = vmul.f32 %v748, %v1526
  %v1528 = vsub.f32 1.0, %v1527
  %v1529 = vmul.f32 %v1526, %v1528
  %v1530 = vadd.f32 %v1526, %v1529
  %vm1531 = vweird.f32 %v748
  %vm1532 = vweird.f32 %v1526
  %vm1533 = vmor %vm1531, %vm1532
  %v1534 = vsel %vm1533, %v1526, %v1530
  %v1535 = vand.u32 2147483647, %v748
  %vm1536 = vcmp.eq.f32.partialorder %v1535, 8.507059e+37
  %v1537 = vand.u32 %v748, 2147483648
  %v1538 = vor.u32 1.1754944e-38, %v1537
  %v1539 = vsel %vm1536, %v1538, %v1534
  %v1540 = vmul.f32 1.0, %v1539
  %v1541 = vrcp.pop %v749
  %v1542 = vmul.f32 %v749, %v1541
  %v1543 = vsub.f32 1.0, %v1542
  %v1544 = vmul.f32 %v1541, %v1543
  %v1545 = vadd.f32 %v1541, %v1544
  %vm1546 = vweird.f32 %v749
  %vm1547 = vweird.f32 %v1541
  %vm1548 = vmor %vm1546, %vm1547
  %v1549 = vsel %vm1548, %v1541, %v1545
  %v1550 = vand.u32 2147483647, %v749
  %vm1551 = vcmp.eq.f32.partialorder %v1550, 8.507059e+37
  %v1552 = vand.u32 %v749, 2147483648
  %v1553 = vor.u32 1.1754944e-38, %v1552
  %v1554 = vsel %vm1551, %v1553, %v1549
  %v1555 = vmul.f32 1.0, %v1554
  %v1556 = vrcp.pop %v750
  %v1557 = vmul.f32 %v750, %v1556
  %v1558 = vsub.f32 1.0, %v1557
  %v1559 = vmul.f32 %v1556, %v1558
  %v1560 = vadd.f32 %v1556, %v1559
  %vm1561 = vweird.f32 %v750
  %vm1562 = vweird.f32 %v1556
  %vm1563 = vmor %vm1561, %vm1562
  %v1564 = vsel %vm1563, %v1556, %v1560
  %v1565 = vand.u32 2147483647, %v750
  %vm1566 = vcmp.eq.f32.partialorder %v1565, 8.507059e+37
  %v1567 = vand.u32 %v750, 2147483648
  %v1568 = vor.u32 1.1754944e-38, %v1567
  %v1569 = vsel %vm1566, %v1568, %v1564
  %v1570 = vmul.f32 1.0, %v1569
  %v1571 = vrcp.pop %v751
  %v1572 = vmul.f32 %v751, %v1571
  %v1573 = vsub.f32 1.0, %v1572
  %v1574 = vmul.f32 %v1571, %v1573
  %v1575 = vadd.f32 %v1571, %v1574
  %vm1576 = vweird.f32 %v751
  %vm1577 = vweird.f32 %v1571
  %vm1578 = vmor %vm1576, %vm1577
  %v1579 = vsel %vm1578, %v1571, %v1575
  %v1580 = vand.u32 2147483647, %v751
  %vm1581 = vcmp.eq.f32.partialorder %v1580, 8.507059e+37
  %v1582 = vand.u32 %v751, 2147483648
  %v1583 = vor.u32 1.1754944e-38, %v1582
  %v1584 = vsel %vm1581, %v1583, %v1579
  %v1585 = vmul.f32 1.0, %v1584
  %v1586 = vrcp.pop %v752
  %v1587 = vmul.f32 %v752, %v1586
  %v1588 = vsub.f32 1.0, %v1587
  %v1589 = vmul.f32 %v1586, %v1588
  %v1590 = vadd.f32 %v1586, %v1589
  %vm1591 = vweird.f32 %v752
  %vm1592 = vweird.f32 %v1586
  %vm1593 = vmor %vm1591, %vm1592
  %v1594 = vsel %vm1593, %v1586, %v1590
  %v1595 = vand.u32 2147483647, %v752
  %vm1596 = vcmp.eq.f32.partialorder %v1595, 8.507059e+37
  %v1597 = vand.u32 %v752, 2147483648
  %v1598 = vor.u32 1.1754944e-38, %v1597
  %v1599 = vsel %vm1596, %v1598, %v1594
  %v1600 = vmul.f32 1.0, %v1599
  %v1601 = vrcp.pop %v753
  %v1602 = vmul.f32 %v753, %v1601
  %v1603 = vsub.f32 1.0, %v1602
  %v1604 = vmul.f32 %v1601, %v1603
  %v1605 = vadd.f32 %v1601, %v1604
  %vm1606 = vweird.f32 %v753
  %vm1607 = vweird.f32 %v1601
  %vm1608 = vmor %vm1606, %vm1607
  %v1609 = vsel %vm1608, %v1601, %v1605
  %v1610 = vand.u32 2147483647, %v753
  %vm1611 = vcmp.eq.f32.partialorder %v1610, 8.507059e+37
  %v1612 = vand.u32 %v753, 2147483648
  %v1613 = vor.u32 1.1754944e-38, %v1612
  %v1614 = vsel %vm1611, %v1613, %v1609
  %v1615 = vmul.f32 1.0, %v1614
  %v1616 = vrcp.pop %v754
  %v1617 = vmul.f32 %v754, %v1616
  %v1618 = vsub.f32 1.0, %v1617
  %v1619 = vmul.f32 %v1616, %v1618
  %v1620 = vadd.f32 %v1616, %v1619
  %vm1621 = vweird.f32 %v754
  %vm1622 = vweird.f32 %v1616
  %vm1623 = vmor %vm1621, %vm1622
  %v1624 = vsel %vm1623, %v1616, %v1620
  %v1625 = vand.u32 2147483647, %v754
  %vm1626 = vcmp.eq.f32.partialorder %v1625, 8.507059e+37
  %v1627 = vand.u32 %v754, 2147483648
  %v1628 = vor.u32 1.1754944e-38, %v1627
  %v1629 = vsel %vm1626, %v1628, %v1624
  %v1630 = vmul.f32 1.0, %v1629
  %v1631 = vrcp.pop %v755
  %v1632 = vmul.f32 %v755, %v1631
  %v1633 = vsub.f32 1.0, %v1632
  %v1634 = vmul.f32 %v1631, %v1633
  %v1635 = vadd.f32 %v1631, %v1634
  %vm1636 = vweird.f32 %v755
  %vm1637 = vweird.f32 %v1631
  %vm1638 = vmor %vm1636, %vm1637
  %v1639 = vsel %vm1638, %v1631, %v1635
  %v1640 = vand.u32 2147483647, %v755
  %vm1641 = vcmp.eq.f32.partialorder %v1640, 8.507059e+37
  %v1642 = vand.u32 %v755, 2147483648
  %v1643 = vor.u32 1.1754944e-38, %v1642
  %v1644 = vsel %vm1641, %v1643, %v1639
  %v1645 = vmul.f32 1.0, %v1644
  %v1646 = vrcp.pop %v756
  %v1647 = vmul.f32 %v756, %v1646
  %v1648 = vsub.f32 1.0, %v1647
  %v1649 = vmul.f32 %v1646, %v1648
  %v1650 = vadd.f32 %v1646, %v1649
  %vm1651 = vweird.f32 %v756
  %vm1652 = vweird.f32 %v1646
  %vm1653 = vmor %vm1651, %vm1652
  %v1654 = vsel %vm1653, %v1646, %v1650
  %v1655 = vand.u32 2147483647, %v756
  %vm1656 = vcmp.eq.f32.partialorder %v1655, 8.507059e+37
  %v1657 = vand.u32 %v756, 2147483648
  %v1658 = vor.u32 1.1754944e-38, %v1657
  %v1659 = vsel %vm1656, %v1658, %v1654
  %v1660 = vmul.f32 1.0, %v1659
  %v1661 = vrcp.pop %v757
  %v1662 = vmul.f32 %v757, %v1661
  %v1663 = vsub.f32 1.0, %v1662
  %v1664 = vmul.f32 %v1661, %v1663
  %v1665 = vadd.f32 %v1661, %v1664
  %vm1666 = vweird.f32 %v757
  %vm1667 = vweird.f32 %v1661
  %vm1668 = vmor %vm1666, %vm1667
  %v1669 = vsel %vm1668, %v1661, %v1665
  %v1670 = vand.u32 2147483647, %v757
  %vm1671 = vcmp.eq.f32.partialorder %v1670, 8.507059e+37
  %v1672 = vand.u32 %v757, 2147483648
  %v1673 = vor.u32 1.1754944e-38, %v1672
  %v1674 = vsel %vm1671, %v1673, %v1669
  %v1675 = vmul.f32 1.0, %v1674
  %v1676 = vrcp.pop %v758
  %v1677 = vmul.f32 %v758, %v1676
  %v1678 = vsub.f32 1.0, %v1677
  %v1679 = vmul.f32 %v1676, %v1678
  %v1680 = vadd.f32 %v1676, %v1679
  %vm1681 = vweird.f32 %v758
  %vm1682 = vweird.f32 %v1676
  %vm1683 = vmor %vm1681, %vm1682
  %v1684 = vsel %vm1683, %v1676, %v1680
  %v1685 = vand.u32 2147483647, %v758
  %vm1686 = vcmp.eq.f32.partialorder %v1685, 8.507059e+37
  %v1687 = vand.u32 %v758, 2147483648
  %v1688 = vor.u32 1.1754944e-38, %v1687
  %v1689 = vsel %vm1686, %v1688, %v1684
  %v1690 = vmul.f32 1.0, %v1689
  %v1691 = vrcp.pop %v759
  %v1692 = vmul.f32 %v759, %v1691
  %v1693 = vsub.f32 1.0, %v1692
  %v1694 = vmul.f32 %v1691, %v1693
  %v1695 = vadd.f32 %v1691, %v1694
  %vm1696 = vweird.f32 %v759
  %vm1697 = vweird.f32 %v1691
  %vm1698 = vmor %vm1696, %vm1697
  %v1699 = vsel %vm1698, %v1691, %v1695
  %v1700 = vand.u32 2147483647, %v759
  %vm1701 = vcmp.eq.f32.partialorder %v1700, 8.507059e+37
  %v1702 = vand.u32 %v759, 2147483648
  %v1703 = vor.u32 1.1754944e-38, %v1702
  %v1704 = vsel %vm1701, %v1703, %v1699
  %v1705 = vmul.f32 1.0, %v1704
  %v1706 = vrcp.pop %v760
  %v1707 = vmul.f32 %v760, %v1706
  %v1708 = vsub.f32 1.0, %v1707
  %v1709 = vmul.f32 %v1706, %v1708
  %v1710 = vadd.f32 %v1706, %v1709
  %vm1711 = vweird.f32 %v760
  %vm1712 = vweird.f32 %v1706
  %vm1713 = vmor %vm1711, %vm1712
  %v1714 = vsel %vm1713, %v1706, %v1710
  %v1715 = vand.u32 2147483647, %v760
  %vm1716 = vcmp.eq.f32.partialorder %v1715, 8.507059e+37
  %v1717 = vand.u32 %v760, 2147483648
  %v1718 = vor.u32 1.1754944e-38, %v1717
  %v1719 = vsel %vm1716, %v1718, %v1714
  %v1720 = vmul.f32 1.0, %v1719
  %v1721 = vld [vmem:[%s0] sm:$0xff]
  %v1722 = vld [vmem:[%s0 + $0x8] sm:$0xff]
  %v1723 = vld [vmem:[%s0 + $0x18] sm:$0xff]
  %v1724 = vld [vmem:[%s0 + $0x20] sm:$0xff]
  %v1725 = vld [vmem:[%s0 + $0x30] sm:$0xff]
  %v1726 = vld [vmem:[%s0 + $0x38] sm:$0xff]
  %v1727 = vld [vmem:[%s0 + $0x48] sm:$0xff]
  %v1728 = vld [vmem:[%s0 + $0x50] sm:$0xff]
  %v1729 = vld [vmem:[%s0 + $0x60] sm:$0xff]
  %v1730 = vld [vmem:[%s0 + $0x68] sm:$0xff]
  %v1731 = vld [vmem:[%s0 + $0x78] sm:$0xff]
  %v1732 = vld [vmem:[%s0 + $0x80] sm:$0xff]
  %v1733 = vld [vmem:[%s0 + $0x90] sm:$0xff]
  %v1734 = vld [vmem:[%s0 + $0x98] sm:$0xff]
  %v1735 = vld [vmem:[%s0 + $0xa8] sm:$0xff]
  %v1736 = vld [vmem:[%s0 + $0xb0] sm:$0xff]
  %v1737 = vld [vmem:[%s0 + $0xc0] sm:$0xff]
  %v1738 = vld [vmem:[%s0 + $0xc8] sm:$0xff]
  %v1739 = vld [vmem:[%s0 + $0xd8] sm:$0xff]
  %v1740 = vld [vmem:[%s0 + $0xe0] sm:$0xff]
  %v1741 = vld [vmem:[%s0 + $0xf0] sm:$0xff]
  %v1742 = vld [vmem:[%s0 + $0xf8] sm:$0xff]
  %v1743 = vld [vmem:[%s0 + $0x108] sm:$0xff]
  %v1744 = vld [vmem:[%s0 + $0x110] sm:$0xff]
  %v1745 = vld [vmem:[%s0 + $0x120] sm:$0xff]
  %v1746 = vld [vmem:[%s0 + $0x128] sm:$0xff]
  %v1747 = vld [vmem:[%s0 + $0x138] sm:$0xff]
  %v1748 = vld [vmem:[%s0 + $0x140] sm:$0xff]
  %v1749 = vld [vmem:[%s0 + $0x150] sm:$0xff]
  %v1750 = vld [vmem:[%s0 + $0x158] sm:$0xff]
  %v1751 = vld [vmem:[%s0 + $0x168] sm:$0xff]
  %v1752 = vld [vmem:[%s0 + $0x170] sm:$0xff]
  %v1753 = vld [vmem:[%s0 + $0x1b0] sm:$0xff]
  %v1754 = vld [vmem:[%s0 + $0x1b8] sm:$0xff]
  %v1755 = vld [vmem:[%s0 + $0x1c8] sm:$0xff]
  %v1756 = vld [vmem:[%s0 + $0x1d0] sm:$0xff]
  %v1757 = vld [vmem:[%s0 + $0x1e0] sm:$0xff]
  %v1758 = vld [vmem:[%s0 + $0x1e8] sm:$0xff]
  %v1759 = vld [vmem:[%s0 + $0x1f8] sm:$0xff]
  %v1760 = vld [vmem:[%s0 + $0x200] sm:$0xff]
  %v1761 = vld [vmem:[%s0 + $0x210] sm:$0xff]
  %v1762 = vld [vmem:[%s0 + $0x218] sm:$0xff]
  %v1763 = vld [vmem:[%s0 + $0x228] sm:$0xff]
  %v1764 = vld [vmem:[%s0 + $0x230] sm:$0xff]
  %v1765 = vld [vmem:[%s0 + $0x240] sm:$0xff]
  %v1766 = vld [vmem:[%s0 + $0x248] sm:$0xff]
  %v1767 = vld [vmem:[%s0 + $0x258] sm:$0xff]
  %v1768 = vld [vmem:[%s0 + $0x260] sm:$0xff]
  %v1769 = vld [vmem:[%s0 + $0x270] sm:$0xff]
  %v1770 = vld [vmem:[%s0 + $0x278] sm:$0xff]
  %v1771 = vld [vmem:[%s0 + $0x288] sm:$0xff]
  %v1772 = vld [vmem:[%s0 + $0x290] sm:$0xff]
  %v1773 = vld [vmem:[%s0 + $0x2a0] sm:$0xff]
  %v1774 = vld [vmem:[%s0 + $0x2a8] sm:$0xff]
  %v1775 = vld [vmem:[%s0 + $0x2b8] sm:$0xff]
  %v1776 = vld [vmem:[%s0 + $0x2c0] sm:$0xff]
  %v1777 = vld [vmem:[%s0 + $0x2d0] sm:$0xff]
  %v1778 = vld [vmem:[%s0 + $0x2d8] sm:$0xff]
  %v1779 = vld [vmem:[%s0 + $0x2e8] sm:$0xff]
  %v1780 = vld [vmem:[%s0 + $0x2f0] sm:$0xff]
  %v1781 = vld [vmem:[%s0 + $0x300] sm:$0xff]
  %v1782 = vld [vmem:[%s0 + $0x308] sm:$0xff]
  %v1783 = vld [vmem:[%s0 + $0x318] sm:$0xff]
  %v1784 = vld [vmem:[%s0 + $0x320] sm:$0xff]
  %1786 = vset.pattern.permute.xlu0 0
  %1787 = vperm.xlu0 %1786, %v775
  %v1788 = vpop.permute.xlu0 %1787
  %1791 = vset.pattern.permute.xlu0 0
  %1792 = vperm.xlu0 %1791, %v790
  %v1793 = vpop.permute.xlu0 %1792
  %1796 = vset.pattern.permute.xlu0 0
  %1797 = vperm.xlu0 %1796, %v805
  %v1798 = vpop.permute.xlu0 %1797
  %1801 = vset.pattern.permute.xlu0 0
  %1802 = vperm.xlu0 %1801, %v820
  %v1803 = vpop.permute.xlu0 %1802
  %1806 = vset.pattern.permute.xlu0 0
  %1807 = vperm.xlu0 %1806, %v835
  %v1808 = vpop.permute.xlu0 %1807
  %1811 = vset.pattern.permute.xlu0 0
  %1812 = vperm.xlu0 %1811, %v850
  %v1813 = vpop.permute.xlu0 %1812
  %1816 = vset.pattern.permute.xlu0 0
  %1817 = vperm.xlu0 %1816, %v865
  %v1818 = vpop.permute.xlu0 %1817
  %1821 = vset.pattern.permute.xlu0 0
  %1822 = vperm.xlu0 %1821, %v880
  %v1823 = vpop.permute.xlu0 %1822
  %1826 = vset.pattern.permute.xlu0 0
  %1827 = vperm.xlu0 %1826, %v895
  %v1828 = vpop.permute.xlu0 %1827
  %1831 = vset.pattern.permute.xlu0 0
  %1832 = vperm.xlu0 %1831, %v910
  %v1833 = vpop.permute.xlu0 %1832
  %1836 = vset.pattern.permute.xlu0 0
  %1837 = vperm.xlu0 %1836, %v925
  %v1838 = vpop.permute.xlu0 %1837
  %1841 = vset.pattern.permute.xlu0 0
  %1842 = vperm.xlu0 %1841, %v940
  %v1843 = vpop.permute.xlu0 %1842
  %1846 = vset.pattern.permute.xlu0 0
  %1847 = vperm.xlu0 %1846, %v955
  %v1848 = vpop.permute.xlu0 %1847
  %1851 = vset.pattern.permute.xlu0 0
  %1852 = vperm.xlu0 %1851, %v970
  %v1853 = vpop.permute.xlu0 %1852
  %1856 = vset.pattern.permute.xlu0 0
  %1857 = vperm.xlu0 %1856, %v985
  %v1858 = vpop.permute.xlu0 %1857
  %1861 = vset.pattern.permute.xlu0 0
  %1862 = vperm.xlu0 %1861, %v1000
  %v1863 = vpop.permute.xlu0 %1862
  %1866 = vset.pattern.permute.xlu0 0
  %1867 = vperm.xlu0 %1866, %v1015
  %v1868 = vpop.permute.xlu0 %1867
  %1871 = vset.pattern.permute.xlu0 0
  %1872 = vperm.xlu0 %1871, %v1030
  %v1873 = vpop.permute.xlu0 %1872
  %1876 = vset.pattern.permute.xlu0 0
  %1877 = vperm.xlu0 %1876, %v1045
  %v1878 = vpop.permute.xlu0 %1877
  %1881 = vset.pattern.permute.xlu0 0
  %1882 = vperm.xlu0 %1881, %v1060
  %v1883 = vpop.permute.xlu0 %1882
  %1886 = vset.pattern.permute.xlu0 0
  %1887 = vperm.xlu0 %1886, %v1075
  %v1888 = vpop.permute.xlu0 %1887
  %1891 = vset.pattern.permute.xlu0 0
  %1892 = vperm.xlu0 %1891, %v1090
  %v1893 = vpop.permute.xlu0 %1892
  %1896 = vset.pattern.permute.xlu0 0
  %1897 = vperm.xlu0 %1896, %v1105
  %v1898 = vpop.permute.xlu0 %1897
  %1901 = vset.pattern.permute.xlu0 0
  %1902 = vperm.xlu0 %1901, %v1120
  %v1903 = vpop.permute.xlu0 %1902
  %1906 = vset.pattern.permute.xlu0 0
  %1907 = vperm.xlu0 %1906, %v1135
  %v1908 = vpop.permute.xlu0 %1907
  %1911 = vset.pattern.permute.xlu0 0
  %1912 = vperm.xlu0 %1911, %v1150
  %v1913 = vpop.permute.xlu0 %1912
  %1916 = vset.pattern.permute.xlu0 0
  %1917 = vperm.xlu0 %1916, %v1165
  %v1918 = vpop.permute.xlu0 %1917
  %1921 = vset.pattern.permute.xlu0 0
  %1922 = vperm.xlu0 %1921, %v1180
  %v1923 = vpop.permute.xlu0 %1922
  %1926 = vset.pattern.permute.xlu0 0
  %1927 = vperm.xlu0 %1926, %v1195
  %v1928 = vpop.permute.xlu0 %1927
  %1931 = vset.pattern.permute.xlu0 0
  %1932 = vperm.xlu0 %1931, %v1210
  %v1933 = vpop.permute.xlu0 %1932
  %1936 = vset.pattern.permute.xlu0 0
  %1937 = vperm.xlu0 %1936, %v1225
  %v1938 = vpop.permute.xlu0 %1937
  %1941 = vset.pattern.permute.xlu0 0
  %1942 = vperm.xlu0 %1941, %v1240
  %v1943 = vpop.permute.xlu0 %1942
  %1946 = vset.pattern.permute.xlu0 0
  %1947 = vperm.xlu0 %1946, %v1255
  %v1948 = vpop.permute.xlu0 %1947
  %1951 = vset.pattern.permute.xlu0 0
  %1952 = vperm.xlu0 %1951, %v1270
  %v1953 = vpop.permute.xlu0 %1952
  %1956 = vset.pattern.permute.xlu0 0
  %1957 = vperm.xlu0 %1956, %v1285
  %v1958 = vpop.permute.xlu0 %1957
  %1961 = vset.pattern.permute.xlu0 0
  %1962 = vperm.xlu0 %1961, %v1300
  %v1963 = vpop.permute.xlu0 %1962
  %1966 = vset.pattern.permute.xlu0 0
  %1967 = vperm.xlu0 %1966, %v1315
  %v1968 = vpop.permute.xlu0 %1967
  %1971 = vset.pattern.permute.xlu0 0
  %1972 = vperm.xlu0 %1971, %v1330
  %v1973 = vpop.permute.xlu0 %1972
  %1976 = vset.pattern.permute.xlu0 0
  %1977 = vperm.xlu0 %1976, %v1345
  %v1978 = vpop.permute.xlu0 %1977
  %1981 = vset.pattern.permute.xlu0 0
  %1982 = vperm.xlu0 %1981, %v1360
  %v1983 = vpop.permute.xlu0 %1982
  %1986 = vset.pattern.permute.xlu0 0
  %1987 = vperm.xlu0 %1986, %v1375
  %v1988 = vpop.permute.xlu0 %1987
  %1991 = vset.pattern.permute.xlu0 0
  %1992 = vperm.xlu0 %1991, %v1390
  %v1993 = vpop.permute.xlu0 %1992
  %1996 = vset.pattern.permute.xlu0 0
  %1997 = vperm.xlu0 %1996, %v1405
  %v1998 = vpop.permute.xlu0 %1997
  %2001 = vset.pattern.permute.xlu0 0
  %2002 = vperm.xlu0 %2001, %v1420
  %v2003 = vpop.permute.xlu0 %2002
  %2006 = vset.pattern.permute.xlu0 0
  %2007 = vperm.xlu0 %2006, %v1435
  %v2008 = vpop.permute.xlu0 %2007
  %2011 = vset.pattern.permute.xlu0 0
  %2012 = vperm.xlu0 %2011, %v1450
  %v2013 = vpop.permute.xlu0 %2012
  %2016 = vset.pattern.permute.xlu0 0
  %2017 = vperm.xlu0 %2016, %v1465
  %v2018 = vpop.permute.xlu0 %2017
  %2021 = vset.pattern.permute.xlu0 0
  %2022 = vperm.xlu0 %2021, %v1480
  %v2023 = vpop.permute.xlu0 %2022
  %2026 = vset.pattern.permute.xlu0 0
  %2027 = vperm.xlu0 %2026, %v1495
  %v2028 = vpop.permute.xlu0 %2027
  %2031 = vset.pattern.permute.xlu0 0
  %2032 = vperm.xlu0 %2031, %v1510
  %v2033 = vpop.permute.xlu0 %2032
  %2036 = vset.pattern.permute.xlu0 0
  %2037 = vperm.xlu0 %2036, %v1525
  %v2038 = vpop.permute.xlu0 %2037
  %2041 = vset.pattern.permute.xlu0 0
  %2042 = vperm.xlu0 %2041, %v1540
  %v2043 = vpop.permute.xlu0 %2042
  %2046 = vset.pattern.permute.xlu0 0
  %2047 = vperm.xlu0 %2046, %v1555
  %v2048 = vpop.permute.xlu0 %2047
  %2051 = vset.pattern.permute.xlu0 0
  %2052 = vperm.xlu0 %2051, %v1570
  %v2053 = vpop.permute.xlu0 %2052
  %2056 = vset.pattern.permute.xlu0 0
  %2057 = vperm.xlu0 %2056, %v1585
  %v2058 = vpop.permute.xlu0 %2057
  %2061 = vset.pattern.permute.xlu0 0
  %2062 = vperm.xlu0 %2061, %v1600
  %v2063 = vpop.permute.xlu0 %2062
  %2066 = vset.pattern.permute.xlu0 0
  %2067 = vperm.xlu0 %2066, %v1615
  %v2068 = vpop.permute.xlu0 %2067
  %2071 = vset.pattern.permute.xlu0 0
  %2072 = vperm.xlu0 %2071, %v1630
  %v2073 = vpop.permute.xlu0 %2072
  %2076 = vset.pattern.permute.xlu0 0
  %2077 = vperm.xlu0 %2076, %v1645
  %v2078 = vpop.permute.xlu0 %2077
  %2081 = vset.pattern.permute.xlu0 0
  %2082 = vperm.xlu0 %2081, %v1660
  %v2083 = vpop.permute.xlu0 %2082
  %2086 = vset.pattern.permute.xlu0 0
  %2087 = vperm.xlu0 %2086, %v1675
  %v2088 = vpop.permute.xlu0 %2087
  %2091 = vset.pattern.permute.xlu0 0
  %2092 = vperm.xlu0 %2091, %v1690
  %v2093 = vpop.permute.xlu0 %2092
  %2096 = vset.pattern.permute.xlu0 0
  %2097 = vperm.xlu0 %2096, %v1705
  %v2098 = vpop.permute.xlu0 %2097
  %2101 = vset.pattern.permute.xlu0 0
  %2102 = vperm.xlu0 %2101, %v1720
  %v2103 = vpop.permute.xlu0 %2102
  %v2105 = vmul.f32 %v1721, %v1788
  %v2106 = vmul.f32 %v1722, %v1793
  %v2107 = vmul.f32 %v1723, %v1798
  %v2108 = vmul.f32 %v1724, %v1803
  %v2109 = vmul.f32 %v1725, %v1808
  %v2110 = vmul.f32 %v1726, %v1813
  %v2111 = vmul.f32 %v1727, %v1818
  %v2112 = vmul.f32 %v1728, %v1823
  %v2113 = vmul.f32 %v1729, %v1828
  %v2114 = vmul.f32 %v1730, %v1833
  %v2115 = vmul.f32 %v1731, %v1838
  %v2116 = vmul.f32 %v1732, %v1843
  %v2117 = vmul.f32 %v1733, %v1848
  %v2118 = vmul.f32 %v1734, %v1853
  %v2119 = vmul.f32 %v1735, %v1858
  %v2120 = vmul.f32 %v1736, %v1863
  %v2121 = vmul.f32 %v1737, %v1868
  %v2122 = vmul.f32 %v1738, %v1873
  %v2123 = vmul.f32 %v1739, %v1878
  %v2124 = vmul.f32 %v1740, %v1883
  %v2125 = vmul.f32 %v1741, %v1888
  %v2126 = vmul.f32 %v1742, %v1893
  %v2127 = vmul.f32 %v1743, %v1898
  %v2128 = vmul.f32 %v1744, %v1903
  %v2129 = vmul.f32 %v1745, %v1908
  %v2130 = vmul.f32 %v1746, %v1913
  %v2131 = vmul.f32 %v1747, %v1918
  %v2132 = vmul.f32 %v1748, %v1923
  %v2133 = vmul.f32 %v1749, %v1928
  %v2134 = vmul.f32 %v1750, %v1933
  %v2135 = vmul.f32 %v1751, %v1938
  %v2136 = vmul.f32 %v1752, %v1943
  %v2137 = vmul.f32 %v1753, %v1948
  %v2138 = vmul.f32 %v1754, %v1953
  %v2139 = vmul.f32 %v1755, %v1958
  %v2140 = vmul.f32 %v1756, %v1963
  %v2141 = vmul.f32 %v1757, %v1968
  %v2142 = vmul.f32 %v1758, %v1973
  %v2143 = vmul.f32 %v1759, %v1978
  %v2144 = vmul.f32 %v1760, %v1983
  %v2145 = vmul.f32 %v1761, %v1988
  %v2146 = vmul.f32 %v1762, %v1993
  %v2147 = vmul.f32 %v1763, %v1998
  %v2148 = vmul.f32 %v1764, %v2003
  %v2149 = vmul.f32 %v1765, %v2008
  %v2150 = vmul.f32 %v1766, %v2013
  %v2151 = vmul.f32 %v1767, %v2018
  %v2152 = vmul.f32 %v1768, %v2023
  %v2153 = vmul.f32 %v1769, %v2028
  %v2154 = vmul.f32 %v1770, %v2033
  %v2155 = vmul.f32 %v1771, %v2038
  %v2156 = vmul.f32 %v1772, %v2043
  %v2157 = vmul.f32 %v1773, %v2048
  %v2158 = vmul.f32 %v1774, %v2053
  %v2159 = vmul.f32 %v1775, %v2058
  %v2160 = vmul.f32 %v1776, %v2063
  %v2161 = vmul.f32 %v1777, %v2068
  %v2162 = vmul.f32 %v1778, %v2073
  %v2163 = vmul.f32 %v1779, %v2078
  %v2164 = vmul.f32 %v1780, %v2083
  %v2165 = vmul.f32 %v1781, %v2088
  %v2166 = vmul.f32 %v1782, %v2093
  %v2167 = vmul.f32 %v1783, %v2098
  %v2168 = vmul.f32 %v1784, %v2103
  %v2169 = vld [vmem:[%s0 + $0x1] sm:$0xff]
  %v2170 = vld [vmem:[%s0 + $0x9] sm:$0xff]
  %v2171 = vld [vmem:[%s0 + $0x19] sm:$0xff]
  %v2172 = vld [vmem:[%s0 + $0x21] sm:$0xff]
  %v2173 = vld [vmem:[%s0 + $0x31] sm:$0xff]
  %v2174 = vld [vmem:[%s0 + $0x39] sm:$0xff]
  %v2175 = vld [vmem:[%s0 + $0x49] sm:$0xff]
  %v2176 = vld [vmem:[%s0 + $0x51] sm:$0xff]
  %v2177 = vld [vmem:[%s0 + $0x61] sm:$0xff]
  %v2178 = vld [vmem:[%s0 + $0x69] sm:$0xff]
  %v2179 = vld [vmem:[%s0 + $0x79] sm:$0xff]
  %v2180 = vld [vmem:[%s0 + $0x81] sm:$0xff]
  %v2181 = vld [vmem:[%s0 + $0x91] sm:$0xff]
  %v2182 = vld [vmem:[%s0 + $0x99] sm:$0xff]
  %v2183 = vld [vmem:[%s0 + $0xa9] sm:$0xff]
  %v2184 = vld [vmem:[%s0 + $0xb1] sm:$0xff]
  %v2185 = vld [vmem:[%s0 + $0xc1] sm:$0xff]
  %v2186 = vld [vmem:[%s0 + $0xc9] sm:$0xff]
  %v2187 = vld [vmem:[%s0 + $0xd9] sm:$0xff]
  %v2188 = vld [vmem:[%s0 + $0xe1] sm:$0xff]
  %v2189 = vld [vmem:[%s0 + $0xf1] sm:$0xff]
  %v2190 = vld [vmem:[%s0 + $0xf9] sm:$0xff]
  %v2191 = vld [vmem:[%s0 + $0x109] sm:$0xff]
  %v2192 = vld [vmem:[%s0 + $0x111] sm:$0xff]
  %v2193 = vld [vmem:[%s0 + $0x121] sm:$0xff]
  %v2194 = vld [vmem:[%s0 + $0x129] sm:$0xff]
  %v2195 = vld [vmem:[%s0 + $0x139] sm:$0xff]
  %v2196 = vld [vmem:[%s0 + $0x141] sm:$0xff]
  %v2197 = vld [vmem:[%s0 + $0x151] sm:$0xff]
  %v2198 = vld [vmem:[%s0 + $0x159] sm:$0xff]
  %v2199 = vld [vmem:[%s0 + $0x169] sm:$0xff]
  %v2200 = vld [vmem:[%s0 + $0x171] sm:$0xff]
  %v2201 = vld [vmem:[%s0 + $0x1b1] sm:$0xff]
  %v2202 = vld [vmem:[%s0 + $0x1b9] sm:$0xff]
  %v2203 = vld [vmem:[%s0 + $0x1c9] sm:$0xff]
  %v2204 = vld [vmem:[%s0 + $0x1d1] sm:$0xff]
  %v2205 = vld [vmem:[%s0 + $0x1e1] sm:$0xff]
  %v2206 = vld [vmem:[%s0 + $0x1e9] sm:$0xff]
  %v2207 = vld [vmem:[%s0 + $0x1f9] sm:$0xff]
  %v2208 = vld [vmem:[%s0 + $0x201] sm:$0xff]
  %v2209 = vld [vmem:[%s0 + $0x211] sm:$0xff]
  %v2210 = vld [vmem:[%s0 + $0x219] sm:$0xff]
  %v2211 = vld [vmem:[%s0 + $0x229] sm:$0xff]
  %v2212 = vld [vmem:[%s0 + $0x231] sm:$0xff]
  %v2213 = vld [vmem:[%s0 + $0x241] sm:$0xff]
  %v2214 = vld [vmem:[%s0 + $0x249] sm:$0xff]
  %v2215 = vld [vmem:[%s0 + $0x259] sm:$0xff]
  %v2216 = vld [vmem:[%s0 + $0x261] sm:$0xff]
  %v2217 = vld [vmem:[%s0 + $0x271] sm:$0xff]
  %v2218 = vld [vmem:[%s0 + $0x279] sm:$0xff]
  %v2219 = vld [vmem:[%s0 + $0x289] sm:$0xff]
  %v2220 = vld [vmem:[%s0 + $0x291] sm:$0xff]
  %v2221 = vld [vmem:[%s0 + $0x2a1] sm:$0xff]
  %v2222 = vld [vmem:[%s0 + $0x2a9] sm:$0xff]
  %v2223 = vld [vmem:[%s0 + $0x2b9] sm:$0xff]
  %v2224 = vld [vmem:[%s0 + $0x2c1] sm:$0xff]
  %v2225 = vld [vmem:[%s0 + $0x2d1] sm:$0xff]
  %v2226 = vld [vmem:[%s0 + $0x2d9] sm:$0xff]
  %v2227 = vld [vmem:[%s0 + $0x2e9] sm:$0xff]
  %v2228 = vld [vmem:[%s0 + $0x2f1] sm:$0xff]
  %v2229 = vld [vmem:[%s0 + $0x301] sm:$0xff]
  %v2230 = vld [vmem:[%s0 + $0x309] sm:$0xff]
  %v2231 = vld [vmem:[%s0 + $0x319] sm:$0xff]
  %v2232 = vld [vmem:[%s0 + $0x321] sm:$0xff]
  %2233 = vset.pattern.permute.xlu0 1
  %2234 = vperm.xlu0 %2233, %v775
  %v2235 = vpop.permute.xlu0 %2234
  %2237 = vset.pattern.permute.xlu0 1
  %2238 = vperm.xlu0 %2237, %v790
  %v2239 = vpop.permute.xlu0 %2238
  %2241 = vset.pattern.permute.xlu0 1
  %2242 = vperm.xlu0 %2241, %v805
  %v2243 = vpop.permute.xlu0 %2242
  %2245 = vset.pattern.permute.xlu0 1
  %2246 = vperm.xlu0 %2245, %v820
  %v2247 = vpop.permute.xlu0 %2246
  %2249 = vset.pattern.permute.xlu0 1
  %2250 = vperm.xlu0 %2249, %v835
  %v2251 = vpop.permute.xlu0 %2250
  %2253 = vset.pattern.permute.xlu0 1
  %2254 = vperm.xlu0 %2253, %v850
  %v2255 = vpop.permute.xlu0 %2254
  %2257 = vset.pattern.permute.xlu0 1
  %2258 = vperm.xlu0 %2257, %v865
  %v2259 = vpop.permute.xlu0 %2258
  %2261 = vset.pattern.permute.xlu0 1
  %2262 = vperm.xlu0 %2261, %v880
  %v2263 = vpop.permute.xlu0 %2262
  %2265 = vset.pattern.permute.xlu0 1
  %2266 = vperm.xlu0 %2265, %v895
  %v2267 = vpop.permute.xlu0 %2266
  %2269 = vset.pattern.permute.xlu0 1
  %2270 = vperm.xlu0 %2269, %v910
  %v2271 = vpop.permute.xlu0 %2270
  %2273 = vset.pattern.permute.xlu0 1
  %2274 = vperm.xlu0 %2273, %v925
  %v2275 = vpop.permute.xlu0 %2274
  %2277 = vset.pattern.permute.xlu0 1
  %2278 = vperm.xlu0 %2277, %v940
  %v2279 = vpop.permute.xlu0 %2278
  %2281 = vset.pattern.permute.xlu0 1
  %2282 = vperm.xlu0 %2281, %v955
  %v2283 = vpop.permute.xlu0 %2282
  %2285 = vset.pattern.permute.xlu0 1
  %2286 = vperm.xlu0 %2285, %v970
  %v2287 = vpop.permute.xlu0 %2286
  %2289 = vset.pattern.permute.xlu0 1
  %2290 = vperm.xlu0 %2289, %v985
  %v2291 = vpop.permute.xlu0 %2290
  %2293 = vset.pattern.permute.xlu0 1
  %2294 = vperm.xlu0 %2293, %v1000
  %v2295 = vpop.permute.xlu0 %2294
  %2297 = vset.pattern.permute.xlu0 1
  %2298 = vperm.xlu0 %2297, %v1015
  %v2299 = vpop.permute.xlu0 %2298
  %2301 = vset.pattern.permute.xlu0 1
  %2302 = vperm.xlu0 %2301, %v1030
  %v2303 = vpop.permute.xlu0 %2302
  %2305 = vset.pattern.permute.xlu0 1
  %2306 = vperm.xlu0 %2305, %v1045
  %v2307 = vpop.permute.xlu0 %2306
  %2309 = vset.pattern.permute.xlu0 1
  %2310 = vperm.xlu0 %2309, %v1060
  %v2311 = vpop.permute.xlu0 %2310
  %2313 = vset.pattern.permute.xlu0 1
  %2314 = vperm.xlu0 %2313, %v1075
  %v2315 = vpop.permute.xlu0 %2314
  %2317 = vset.pattern.permute.xlu0 1
  %2318 = vperm.xlu0 %2317, %v1090
  %v2319 = vpop.permute.xlu0 %2318
  %2321 = vset.pattern.permute.xlu0 1
  %2322 = vperm.xlu0 %2321, %v1105
  %v2323 = vpop.permute.xlu0 %2322
  %2325 = vset.pattern.permute.xlu0 1
  %2326 = vperm.xlu0 %2325, %v1120
  %v2327 = vpop.permute.xlu0 %2326
  %2329 = vset.pattern.permute.xlu0 1
  %2330 = vperm.xlu0 %2329, %v1135
  %v2331 = vpop.permute.xlu0 %2330
  %2333 = vset.pattern.permute.xlu0 1
  %2334 = vperm.xlu0 %2333, %v1150
  %v2335 = vpop.permute.xlu0 %2334
  %2337 = vset.pattern.permute.xlu0 1
  %2338 = vperm.xlu0 %2337, %v1165
  %v2339 = vpop.permute.xlu0 %2338
  %2341 = vset.pattern.permute.xlu0 1
  %2342 = vperm.xlu0 %2341, %v1180
  %v2343 = vpop.permute.xlu0 %2342
  %2345 = vset.pattern.permute.xlu0 1
  %2346 = vperm.xlu0 %2345, %v1195
  %v2347 = vpop.permute.xlu0 %2346
  %2349 = vset.pattern.permute.xlu0 1
  %2350 = vperm.xlu0 %2349, %v1210
  %v2351 = vpop.permute.xlu0 %2350
  %2353 = vset.pattern.permute.xlu0 1
  %2354 = vperm.xlu0 %2353, %v1225
  %v2355 = vpop.permute.xlu0 %2354
  %2357 = vset.pattern.permute.xlu0 1
  %2358 = vperm.xlu0 %2357, %v1240
  %v2359 = vpop.permute.xlu0 %2358
  %2361 = vset.pattern.permute.xlu0 1
  %2362 = vperm.xlu0 %2361, %v1255
  %v2363 = vpop.permute.xlu0 %2362
  %2365 = vset.pattern.permute.xlu0 1
  %2366 = vperm.xlu0 %2365, %v1270
  %v2367 = vpop.permute.xlu0 %2366
  %2369 = vset.pattern.permute.xlu0 1
  %2370 = vperm.xlu0 %2369, %v1285
  %v2371 = vpop.permute.xlu0 %2370
  %2373 = vset.pattern.permute.xlu0 1
  %2374 = vperm.xlu0 %2373, %v1300
  %v2375 = vpop.permute.xlu0 %2374
  %2377 = vset.pattern.permute.xlu0 1
  %2378 = vperm.xlu0 %2377, %v1315
  %v2379 = vpop.permute.xlu0 %2378
  %2381 = vset.pattern.permute.xlu0 1
  %2382 = vperm.xlu0 %2381, %v1330
  %v2383 = vpop.permute.xlu0 %2382
  %2385 = vset.pattern.permute.xlu0 1
  %2386 = vperm.xlu0 %2385, %v1345
  %v2387 = vpop.permute.xlu0 %2386
  %2389 = vset.pattern.permute.xlu0 1
  %2390 = vperm.xlu0 %2389, %v1360
  %v2391 = vpop.permute.xlu0 %2390
  %2393 = vset.pattern.permute.xlu0 1
  %2394 = vperm.xlu0 %2393, %v1375
  %v2395 = vpop.permute.xlu0 %2394
  %2397 = vset.pattern.permute.xlu0 1
  %2398 = vperm.xlu0 %2397, %v1390
  %v2399 = vpop.permute.xlu0 %2398
  %2401 = vset.pattern.permute.xlu0 1
  %2402 = vperm.xlu0 %2401, %v1405
  %v2403 = vpop.permute.xlu0 %2402
  %2405 = vset.pattern.permute.xlu0 1
  %2406 = vperm.xlu0 %2405, %v1420
  %v2407 = vpop.permute.xlu0 %2406
  %2409 = vset.pattern.permute.xlu0 1
  %2410 = vperm.xlu0 %2409, %v1435
  %v2411 = vpop.permute.xlu0 %2410
  %2413 = vset.pattern.permute.xlu0 1
  %2414 = vperm.xlu0 %2413, %v1450
  %v2415 = vpop.permute.xlu0 %2414
  %2417 = vset.pattern.permute.xlu0 1
  %2418 = vperm.xlu0 %2417, %v1465
  %v2419 = vpop.permute.xlu0 %2418
  %2421 = vset.pattern.permute.xlu0 1
  %2422 = vperm.xlu0 %2421, %v1480
  %v2423 = vpop.permute.xlu0 %2422
  %2425 = vset.pattern.permute.xlu0 1
  %2426 = vperm.xlu0 %2425, %v1495
  %v2427 = vpop.permute.xlu0 %2426
  %2429 = vset.pattern.permute.xlu0 1
  %2430 = vperm.xlu0 %2429, %v1510
  %v2431 = vpop.permute.xlu0 %2430
  %2433 = vset.pattern.permute.xlu0 1
  %2434 = vperm.xlu0 %2433, %v1525
  %v2435 = vpop.permute.xlu0 %2434
  %2437 = vset.pattern.permute.xlu0 1
  %2438 = vperm.xlu0 %2437, %v1540
  %v2439 = vpop.permute.xlu0 %2438
  %2441 = vset.pattern.permute.xlu0 1
  %2442 = vperm.xlu0 %2441, %v1555
  %v2443 = vpop.permute.xlu0 %2442
  %2445 = vset.pattern.permute.xlu0 1
  %2446 = vperm.xlu0 %2445, %v1570
  %v2447 = vpop.permute.xlu0 %2446
  %2449 = vset.pattern.permute.xlu0 1
  %2450 = vperm.xlu0 %2449, %v1585
  %v2451 = vpop.permute.xlu0 %2450
  %2453 = vset.pattern.permute.xlu0 1
  %2454 = vperm.xlu0 %2453, %v1600
  %v2455 = vpop.permute.xlu0 %2454
  %2457 = vset.pattern.permute.xlu0 1
  %2458 = vperm.xlu0 %2457, %v1615
  %v2459 = vpop.permute.xlu0 %2458
  %2461 = vset.pattern.permute.xlu0 1
  %2462 = vperm.xlu0 %2461, %v1630
  %v2463 = vpop.permute.xlu0 %2462
  %2465 = vset.pattern.permute.xlu0 1
  %2466 = vperm.xlu0 %2465, %v1645
  %v2467 = vpop.permute.xlu0 %2466
  %2469 = vset.pattern.permute.xlu0 1
  %2470 = vperm.xlu0 %2469, %v1660
  %v2471 = vpop.permute.xlu0 %2470
  %2473 = vset.pattern.permute.xlu0 1
  %2474 = vperm.xlu0 %2473, %v1675
  %v2475 = vpop.permute.xlu0 %2474
  %2477 = vset.pattern.permute.xlu0 1
  %2478 = vperm.xlu0 %2477, %v1690
  %v2479 = vpop.permute.xlu0 %2478
  %2481 = vset.pattern.permute.xlu0 1
  %2482 = vperm.xlu0 %2481, %v1705
  %v2483 = vpop.permute.xlu0 %2482
  %2485 = vset.pattern.permute.xlu0 1
  %2486 = vperm.xlu0 %2485, %v1720
  %v2487 = vpop.permute.xlu0 %2486
  %v2489 = vmul.f32 %v2169, %v2235
  %v2490 = vmul.f32 %v2170, %v2239
  %v2491 = vmul.f32 %v2171, %v2243
  %v2492 = vmul.f32 %v2172, %v2247
  %v2493 = vmul.f32 %v2173, %v2251
  %v2494 = vmul.f32 %v2174, %v2255
  %v2495 = vmul.f32 %v2175, %v2259
  %v2496 = vmul.f32 %v2176, %v2263
  %v2497 = vmul.f32 %v2177, %v2267
  %v2498 = vmul.f32 %v2178, %v2271
  %v2499 = vmul.f32 %v2179, %v2275
  %v2500 = vmul.f32 %v2180, %v2279
  %v2501 = vmul.f32 %v2181, %v2283
  %v2502 = vmul.f32 %v2182, %v2287
  %v2503 = vmul.f32 %v2183, %v2291
  %v2504 = vmul.f32 %v2184, %v2295
  %v2505 = vmul.f32 %v2185, %v2299
  %v2506 = vmul.f32 %v2186, %v2303
  %v2507 = vmul.f32 %v2187, %v2307
  %v2508 = vmul.f32 %v2188, %v2311
  %v2509 = vmul.f32 %v2189, %v2315
  %v2510 = vmul.f32 %v2190, %v2319
  %v2511 = vmul.f32 %v2191, %v2323
  %v2512 = vmul.f32 %v2192, %v2327
  %v2513 = vmul.f32 %v2193, %v2331
  %v2514 = vmul.f32 %v2194, %v2335
  %v2515 = vmul.f32 %v2195, %v2339
  %v2516 = vmul.f32 %v2196, %v2343
  %v2517 = vmul.f32 %v2197, %v2347
  %v2518 = vmul.f32 %v2198, %v2351
  %v2519 = vmul.f32 %v2199, %v2355
  %v2520 = vmul.f32 %v2200, %v2359
  %v2521 = vmul.f32 %v2201, %v2363
  %v2522 = vmul.f32 %v2202, %v2367
  %v2523 = vmul.f32 %v2203, %v2371
  %v2524 = vmul.f32 %v2204, %v2375
  %v2525 = vmul.f32 %v2205, %v2379
  %v2526 = vmul.f32 %v2206, %v2383
  %v2527 = vmul.f32 %v2207, %v2387
  %v2528 = vmul.f32 %v2208, %v2391
  %v2529 = vmul.f32 %v2209, %v2395
  %v2530 = vmul.f32 %v2210, %v2399
  %v2531 = vmul.f32 %v2211, %v2403
  %v2532 = vmul.f32 %v2212, %v2407
  %v2533 = vmul.f32 %v2213, %v2411
  %v2534 = vmul.f32 %v2214, %v2415
  %v2535 = vmul.f32 %v2215, %v2419
  %v2536 = vmul.f32 %v2216, %v2423
  %v2537 = vmul.f32 %v2217, %v2427
  %v2538 = vmul.f32 %v2218, %v2431
  %v2539 = vmul.f32 %v2219, %v2435
  %v2540 = vmul.f32 %v2220, %v2439
  %v2541 = vmul.f32 %v2221, %v2443
  %v2542 = vmul.f32 %v2222, %v2447
  %v2543 = vmul.f32 %v2223, %v2451
  %v2544 = vmul.f32 %v2224, %v2455
  %v2545 = vmul.f32 %v2225, %v2459
  %v2546 = vmul.f32 %v2226, %v2463
  %v2547 = vmul.f32 %v2227, %v2467
  %v2548 = vmul.f32 %v2228, %v2471
  %v2549 = vmul.f32 %v2229, %v2475
  %v2550 = vmul.f32 %v2230, %v2479
  %v2551 = vmul.f32 %v2231, %v2483
  %v2552 = vmul.f32 %v2232, %v2487
  %v2553 = vld [vmem:[%s0 + $0x2] sm:$0xff]
  %v2554 = vld [vmem:[%s0 + $0xa] sm:$0xff]
  %v2555 = vld [vmem:[%s0 + $0x1a] sm:$0xff]
  %v2556 = vld [vmem:[%s0 + $0x22] sm:$0xff]
  %v2557 = vld [vmem:[%s0 + $0x32] sm:$0xff]
  %v2558 = vld [vmem:[%s0 + $0x3a] sm:$0xff]
  %v2559 = vld [vmem:[%s0 + $0x4a] sm:$0xff]
  %v2560 = vld [vmem:[%s0 + $0x52] sm:$0xff]
  %v2561 = vld [vmem:[%s0 + $0x62] sm:$0xff]
  %v2562 = vld [vmem:[%s0 + $0x6a] sm:$0xff]
  %v2563 = vld [vmem:[%s0 + $0x7a] sm:$0xff]
  %v2564 = vld [vmem:[%s0 + $0x82] sm:$0xff]
  %v2565 = vld [vmem:[%s0 + $0x92] sm:$0xff]
  %v2566 = vld [vmem:[%s0 + $0x9a] sm:$0xff]
  %v2567 = vld [vmem:[%s0 + $0xaa] sm:$0xff]
  %v2568 = vld [vmem:[%s0 + $0xb2] sm:$0xff]
  %v2569 = vld [vmem:[%s0 + $0xc2] sm:$0xff]
  %v2570 = vld [vmem:[%s0 + $0xca] sm:$0xff]
  %v2571 = vld [vmem:[%s0 + $0xda] sm:$0xff]
  %v2572 = vld [vmem:[%s0 + $0xe2] sm:$0xff]
  %v2573 = vld [vmem:[%s0 + $0xf2] sm:$0xff]
  %v2574 = vld [vmem:[%s0 + $0xfa] sm:$0xff]
  %v2575 = vld [vmem:[%s0 + $0x10a] sm:$0xff]
  %v2576 = vld [vmem:[%s0 + $0x112] sm:$0xff]
  %v2577 = vld [vmem:[%s0 + $0x122] sm:$0xff]
  %v2578 = vld [vmem:[%s0 + $0x12a] sm:$0xff]
  %v2579 = vld [vmem:[%s0 + $0x13a] sm:$0xff]
  %v2580 = vld [vmem:[%s0 + $0x142] sm:$0xff]
  %v2581 = vld [vmem:[%s0 + $0x152] sm:$0xff]
  %v2582 = vld [vmem:[%s0 + $0x15a] sm:$0xff]
  %v2583 = vld [vmem:[%s0 + $0x16a] sm:$0xff]
  %v2584 = vld [vmem:[%s0 + $0x172] sm:$0xff]
  %v2585 = vld [vmem:[%s0 + $0x1b2] sm:$0xff]
  %v2586 = vld [vmem:[%s0 + $0x1ba] sm:$0xff]
  %v2587 = vld [vmem:[%s0 + $0x1ca] sm:$0xff]
  %v2588 = vld [vmem:[%s0 + $0x1d2] sm:$0xff]
  %v2589 = vld [vmem:[%s0 + $0x1e2] sm:$0xff]
  %v2590 = vld [vmem:[%s0 + $0x1ea] sm:$0xff]
  %v2591 = vld [vmem:[%s0 + $0x1fa] sm:$0xff]
  %v2592 = vld [vmem:[%s0 + $0x202] sm:$0xff]
  %v2593 = vld [vmem:[%s0 + $0x212] sm:$0xff]
  %v2594 = vld [vmem:[%s0 + $0x21a] sm:$0xff]
  %v2595 = vld [vmem:[%s0 + $0x22a] sm:$0xff]
  %v2596 = vld [vmem:[%s0 + $0x232] sm:$0xff]
  %v2597 = vld [vmem:[%s0 + $0x242] sm:$0xff]
  %v2598 = vld [vmem:[%s0 + $0x24a] sm:$0xff]
  %v2599 = vld [vmem:[%s0 + $0x25a] sm:$0xff]
  %v2600 = vld [vmem:[%s0 + $0x262] sm:$0xff]
  %v2601 = vld [vmem:[%s0 + $0x272] sm:$0xff]
  %v2602 = vld [vmem:[%s0 + $0x27a] sm:$0xff]
  %v2603 = vld [vmem:[%s0 + $0x28a] sm:$0xff]
  %v2604 = vld [vmem:[%s0 + $0x292] sm:$0xff]
  %v2605 = vld [vmem:[%s0 + $0x2a2] sm:$0xff]
  %v2606 = vld [vmem:[%s0 + $0x2aa] sm:$0xff]
  %v2607 = vld [vmem:[%s0 + $0x2ba] sm:$0xff]
  %v2608 = vld [vmem:[%s0 + $0x2c2] sm:$0xff]
  %v2609 = vld [vmem:[%s0 + $0x2d2] sm:$0xff]
  %v2610 = vld [vmem:[%s0 + $0x2da] sm:$0xff]
  %v2611 = vld [vmem:[%s0 + $0x2ea] sm:$0xff]
  %v2612 = vld [vmem:[%s0 + $0x2f2] sm:$0xff]
  %v2613 = vld [vmem:[%s0 + $0x302] sm:$0xff]
  %v2614 = vld [vmem:[%s0 + $0x30a] sm:$0xff]
  %v2615 = vld [vmem:[%s0 + $0x31a] sm:$0xff]
  %v2616 = vld [vmem:[%s0 + $0x322] sm:$0xff]
  %2617 = vset.pattern.permute.xlu0 2
  %2618 = vperm.xlu0 %2617, %v775
  %v2619 = vpop.permute.xlu0 %2618
  %2621 = vset.pattern.permute.xlu0 2
  %2622 = vperm.xlu0 %2621, %v790
  %v2623 = vpop.permute.xlu0 %2622
  %2625 = vset.pattern.permute.xlu0 2
  %2626 = vperm.xlu0 %2625, %v805
  %v2627 = vpop.permute.xlu0 %2626
  %2629 = vset.pattern.permute.xlu0 2
  %2630 = vperm.xlu0 %2629, %v820
  %v2631 = vpop.permute.xlu0 %2630
  %2633 = vset.pattern.permute.xlu0 2
  %2634 = vperm.xlu0 %2633, %v835
  %v2635 = vpop.permute.xlu0 %2634
  %2637 = vset.pattern.permute.xlu0 2
  %2638 = vperm.xlu0 %2637, %v850
  %v2639 = vpop.permute.xlu0 %2638
  %2641 = vset.pattern.permute.xlu0 2
  %2642 = vperm.xlu0 %2641, %v865
  %v2643 = vpop.permute.xlu0 %2642
  %2645 = vset.pattern.permute.xlu0 2
  %2646 = vperm.xlu0 %2645, %v880
  %v2647 = vpop.permute.xlu0 %2646
  %2649 = vset.pattern.permute.xlu0 2
  %2650 = vperm.xlu0 %2649, %v895
  %v2651 = vpop.permute.xlu0 %2650
  %2653 = vset.pattern.permute.xlu0 2
  %2654 = vperm.xlu0 %2653, %v910
  %v2655 = vpop.permute.xlu0 %2654
  %2657 = vset.pattern.permute.xlu0 2
  %2658 = vperm.xlu0 %2657, %v925
  %v2659 = vpop.permute.xlu0 %2658
  %2661 = vset.pattern.permute.xlu0 2
  %2662 = vperm.xlu0 %2661, %v940
  %v2663 = vpop.permute.xlu0 %2662
  %2665 = vset.pattern.permute.xlu0 2
  %2666 = vperm.xlu0 %2665, %v955
  %v2667 = vpop.permute.xlu0 %2666
  %2669 = vset.pattern.permute.xlu0 2
  %2670 = vperm.xlu0 %2669, %v970
  %v2671 = vpop.permute.xlu0 %2670
  %2673 = vset.pattern.permute.xlu0 2
  %2674 = vperm.xlu0 %2673, %v985
  %v2675 = vpop.permute.xlu0 %2674
  %2677 = vset.pattern.permute.xlu0 2
  %2678 = vperm.xlu0 %2677, %v1000
  %v2679 = vpop.permute.xlu0 %2678
  %2681 = vset.pattern.permute.xlu0 2
  %2682 = vperm.xlu0 %2681, %v1015
  %v2683 = vpop.permute.xlu0 %2682
  %2685 = vset.pattern.permute.xlu0 2
  %2686 = vperm.xlu0 %2685, %v1030
  %v2687 = vpop.permute.xlu0 %2686
  %2689 = vset.pattern.permute.xlu0 2
  %2690 = vperm.xlu0 %2689, %v1045
  %v2691 = vpop.permute.xlu0 %2690
  %2693 = vset.pattern.permute.xlu0 2
  %2694 = vperm.xlu0 %2693, %v1060
  %v2695 = vpop.permute.xlu0 %2694
  %2697 = vset.pattern.permute.xlu0 2
  %2698 = vperm.xlu0 %2697, %v1075
  %v2699 = vpop.permute.xlu0 %2698
  %2701 = vset.pattern.permute.xlu0 2
  %2702 = vperm.xlu0 %2701, %v1090
  %v2703 = vpop.permute.xlu0 %2702
  %2705 = vset.pattern.permute.xlu0 2
  %2706 = vperm.xlu0 %2705, %v1105
  %v2707 = vpop.permute.xlu0 %2706
  %2709 = vset.pattern.permute.xlu0 2
  %2710 = vperm.xlu0 %2709, %v1120
  %v2711 = vpop.permute.xlu0 %2710
  %2713 = vset.pattern.permute.xlu0 2
  %2714 = vperm.xlu0 %2713, %v1135
  %v2715 = vpop.permute.xlu0 %2714
  %2717 = vset.pattern.permute.xlu0 2
  %2718 = vperm.xlu0 %2717, %v1150
  %v2719 = vpop.permute.xlu0 %2718
  %2721 = vset.pattern.permute.xlu0 2
  %2722 = vperm.xlu0 %2721, %v1165
  %v2723 = vpop.permute.xlu0 %2722
  %2725 = vset.pattern.permute.xlu0 2
  %2726 = vperm.xlu0 %2725, %v1180
  %v2727 = vpop.permute.xlu0 %2726
  %2729 = vset.pattern.permute.xlu0 2
  %2730 = vperm.xlu0 %2729, %v1195
  %v2731 = vpop.permute.xlu0 %2730
  %2733 = vset.pattern.permute.xlu0 2
  %2734 = vperm.xlu0 %2733, %v1210
  %v2735 = vpop.permute.xlu0 %2734
  %2737 = vset.pattern.permute.xlu0 2
  %2738 = vperm.xlu0 %2737, %v1225
  %v2739 = vpop.permute.xlu0 %2738
  %2741 = vset.pattern.permute.xlu0 2
  %2742 = vperm.xlu0 %2741, %v1240
  %v2743 = vpop.permute.xlu0 %2742
  %2745 = vset.pattern.permute.xlu0 2
  %2746 = vperm.xlu0 %2745, %v1255
  %v2747 = vpop.permute.xlu0 %2746
  %2749 = vset.pattern.permute.xlu0 2
  %2750 = vperm.xlu0 %2749, %v1270
  %v2751 = vpop.permute.xlu0 %2750
  %2753 = vset.pattern.permute.xlu0 2
  %2754 = vperm.xlu0 %2753, %v1285
  %v2755 = vpop.permute.xlu0 %2754
  %2757 = vset.pattern.permute.xlu0 2
  %2758 = vperm.xlu0 %2757, %v1300
  %v2759 = vpop.permute.xlu0 %2758
  %2761 = vset.pattern.permute.xlu0 2
  %2762 = vperm.xlu0 %2761, %v1315
  %v2763 = vpop.permute.xlu0 %2762
  %2765 = vset.pattern.permute.xlu0 2
  %2766 = vperm.xlu0 %2765, %v1330
  %v2767 = vpop.permute.xlu0 %2766
  %2769 = vset.pattern.permute.xlu0 2
  %2770 = vperm.xlu0 %2769, %v1345
  %v2771 = vpop.permute.xlu0 %2770
  %2773 = vset.pattern.permute.xlu0 2
  %2774 = vperm.xlu0 %2773, %v1360
  %v2775 = vpop.permute.xlu0 %2774
  %2777 = vset.pattern.permute.xlu0 2
  %2778 = vperm.xlu0 %2777, %v1375
  %v2779 = vpop.permute.xlu0 %2778
  %2781 = vset.pattern.permute.xlu0 2
  %2782 = vperm.xlu0 %2781, %v1390
  %v2783 = vpop.permute.xlu0 %2782
  %2785 = vset.pattern.permute.xlu0 2
  %2786 = vperm.xlu0 %2785, %v1405
  %v2787 = vpop.permute.xlu0 %2786
  %2789 = vset.pattern.permute.xlu0 2
  %2790 = vperm.xlu0 %2789, %v1420
  %v2791 = vpop.permute.xlu0 %2790
  %2793 = vset.pattern.permute.xlu0 2
  %2794 = vperm.xlu0 %2793, %v1435
  %v2795 = vpop.permute.xlu0 %2794
  %2797 = vset.pattern.permute.xlu0 2
  %2798 = vperm.xlu0 %2797, %v1450
  %v2799 = vpop.permute.xlu0 %2798
  %2801 = vset.pattern.permute.xlu0 2
  %2802 = vperm.xlu0 %2801, %v1465
  %v2803 = vpop.permute.xlu0 %2802
  %2805 = vset.pattern.permute.xlu0 2
  %2806 = vperm.xlu0 %2805, %v1480
  %v2807 = vpop.permute.xlu0 %2806
  %2809 = vset.pattern.permute.xlu0 2
  %2810 = vperm.xlu0 %2809, %v1495
  %v2811 = vpop.permute.xlu0 %2810
  %2813 = vset.pattern.permute.xlu0 2
  %2814 = vperm.xlu0 %2813, %v1510
  %v2815 = vpop.permute.xlu0 %2814
  %2817 = vset.pattern.permute.xlu0 2
  %2818 = vperm.xlu0 %2817, %v1525
  %v2819 = vpop.permute.xlu0 %2818
  %2821 = vset.pattern.permute.xlu0 2
  %2822 = vperm.xlu0 %2821, %v1540
  %v2823 = vpop.permute.xlu0 %2822
  %2825 = vset.pattern.permute.xlu0 2
  %2826 = vperm.xlu0 %2825, %v1555
  %v2827 = vpop.permute.xlu0 %2826
  %2829 = vset.pattern.permute.xlu0 2
  %2830 = vperm.xlu0 %2829, %v1570
  %v2831 = vpop.permute.xlu0 %2830
  %2833 = vset.pattern.permute.xlu0 2
  %2834 = vperm.xlu0 %2833, %v1585
  %v2835 = vpop.permute.xlu0 %2834
  %2837 = vset.pattern.permute.xlu0 2
  %2838 = vperm.xlu0 %2837, %v1600
  %v2839 = vpop.permute.xlu0 %2838
  %2841 = vset.pattern.permute.xlu0 2
  %2842 = vperm.xlu0 %2841, %v1615
  %v2843 = vpop.permute.xlu0 %2842
  %2845 = vset.pattern.permute.xlu0 2
  %2846 = vperm.xlu0 %2845, %v1630
  %v2847 = vpop.permute.xlu0 %2846
  %2849 = vset.pattern.permute.xlu0 2
  %2850 = vperm.xlu0 %2849, %v1645
  %v2851 = vpop.permute.xlu0 %2850
  %2853 = vset.pattern.permute.xlu0 2
  %2854 = vperm.xlu0 %2853, %v1660
  %v2855 = vpop.permute.xlu0 %2854
  %2857 = vset.pattern.permute.xlu0 2
  %2858 = vperm.xlu0 %2857, %v1675
  %v2859 = vpop.permute.xlu0 %2858
  %2861 = vset.pattern.permute.xlu0 2
  %2862 = vperm.xlu0 %2861, %v1690
  %v2863 = vpop.permute.xlu0 %2862
  %2865 = vset.pattern.permute.xlu0 2
  %2866 = vperm.xlu0 %2865, %v1705
  %v2867 = vpop.permute.xlu0 %2866
  %2869 = vset.pattern.permute.xlu0 2
  %2870 = vperm.xlu0 %2869, %v1720
  %v2871 = vpop.permute.xlu0 %2870
  %v2873 = vmul.f32 %v2553, %v2619
  %v2874 = vmul.f32 %v2554, %v2623
  %v2875 = vmul.f32 %v2555, %v2627
  %v2876 = vmul.f32 %v2556, %v2631
  %v2877 = vmul.f32 %v2557, %v2635
  %v2878 = vmul.f32 %v2558, %v2639
  %v2879 = vmul.f32 %v2559, %v2643
  %v2880 = vmul.f32 %v2560, %v2647
  %v2881 = vmul.f32 %v2561, %v2651
  %v2882 = vmul.f32 %v2562, %v2655
  %v2883 = vmul.f32 %v2563, %v2659
  %v2884 = vmul.f32 %v2564, %v2663
  %v2885 = vmul.f32 %v2565, %v2667
  %v2886 = vmul.f32 %v2566, %v2671
  %v2887 = vmul.f32 %v2567, %v2675
  %v2888 = vmul.f32 %v2568, %v2679
  %v2889 = vmul.f32 %v2569, %v2683
  %v2890 = vmul.f32 %v2570, %v2687
  %v2891 = vmul.f32 %v2571, %v2691
  %v2892 = vmul.f32 %v2572, %v2695
  %v2893 = vmul.f32 %v2573, %v2699
  %v2894 = vmul.f32 %v2574, %v2703
  %v2895 = vmul.f32 %v2575, %v2707
  %v2896 = vmul.f32 %v2576, %v2711
  %v2897 = vmul.f32 %v2577, %v2715
  %v2898 = vmul.f32 %v2578, %v2719
  %v2899 = vmul.f32 %v2579, %v2723
  %v2900 = vmul.f32 %v2580, %v2727
  %v2901 = vmul.f32 %v2581, %v2731
  %v2902 = vmul.f32 %v2582, %v2735
  %v2903 = vmul.f32 %v2583, %v2739
  %v2904 = vmul.f32 %v2584, %v2743
  %v2905 = vmul.f32 %v2585, %v2747
  %v2906 = vmul.f32 %v2586, %v2751
  %v2907 = vmul.f32 %v2587, %v2755
  %v2908 = vmul.f32 %v2588, %v2759
  %v2909 = vmul.f32 %v2589, %v2763
  %v2910 = vmul.f32 %v2590, %v2767
  %v2911 = vmul.f32 %v2591, %v2771
  %v2912 = vmul.f32 %v2592, %v2775
  %v2913 = vmul.f32 %v2593, %v2779
  %v2914 = vmul.f32 %v2594, %v2783
  %v2915 = vmul.f32 %v2595, %v2787
  %v2916 = vmul.f32 %v2596, %v2791
  %v2917 = vmul.f32 %v2597, %v2795
  %v2918 = vmul.f32 %v2598, %v2799
  %v2919 = vmul.f32 %v2599, %v2803
  %v2920 = vmul.f32 %v2600, %v2807
  %v2921 = vmul.f32 %v2601, %v2811
  %v2922 = vmul.f32 %v2602, %v2815
  %v2923 = vmul.f32 %v2603, %v2819
  %v2924 = vmul.f32 %v2604, %v2823
  %v2925 = vmul.f32 %v2605, %v2827
  %v2926 = vmul.f32 %v2606, %v2831
  %v2927 = vmul.f32 %v2607, %v2835
  %v2928 = vmul.f32 %v2608, %v2839
  %v2929 = vmul.f32 %v2609, %v2843
  %v2930 = vmul.f32 %v2610, %v2847
  %v2931 = vmul.f32 %v2611, %v2851
  %v2932 = vmul.f32 %v2612, %v2855
  %v2933 = vmul.f32 %v2613, %v2859
  %v2934 = vmul.f32 %v2614, %v2863
  %v2935 = vmul.f32 %v2615, %v2867
  %v2936 = vmul.f32 %v2616, %v2871
  %v2937 = vld [vmem:[%s32] sm:$0xff]
  %v2938 = vld [vmem:[%s32 + $0x8] sm:$0xff]
  %v2939 = vld [vmem:[%s32 + $0x18] sm:$0xff]
  %v2940 = vld [vmem:[%s32 + $0x20] sm:$0xff]
  %v2941 = vld [vmem:[%s32 + $0x30] sm:$0xff]
  %v2942 = vld [vmem:[%s32 + $0x38] sm:$0xff]
  %v2943 = vld [vmem:[%s32 + $0x48] sm:$0xff]
  %v2944 = vld [vmem:[%s32 + $0x50] sm:$0xff]
  %v2945 = vld [vmem:[%s32 + $0x60] sm:$0xff]
  %v2946 = vld [vmem:[%s32 + $0x68] sm:$0xff]
  %v2947 = vld [vmem:[%s32 + $0x78] sm:$0xff]
  %v2948 = vld [vmem:[%s32 + $0x80] sm:$0xff]
  %v2949 = vld [vmem:[%s32 + $0x90] sm:$0xff]
  %v2950 = vld [vmem:[%s32 + $0x98] sm:$0xff]
  %v2951 = vld [vmem:[%s32 + $0xa8] sm:$0xff]
  %v2952 = vld [vmem:[%s32 + $0xb0] sm:$0xff]
  %v2953 = vld [vmem:[%s32 + $0xc0] sm:$0xff]
  %v2954 = vld [vmem:[%s32 + $0xc8] sm:$0xff]
  %v2955 = vld [vmem:[%s32 + $0xd8] sm:$0xff]
  %v2956 = vld [vmem:[%s32 + $0xe0] sm:$0xff]
  %v2957 = vld [vmem:[%s32 + $0xf0] sm:$0xff]
  %v2958 = vld [vmem:[%s32 + $0xf8] sm:$0xff]
  %v2959 = vld [vmem:[%s32 + $0x108] sm:$0xff]
  %v2960 = vld [vmem:[%s32 + $0x110] sm:$0xff]
  %v2961 = vld [vmem:[%s32 + $0x120] sm:$0xff]
  %v2962 = vld [vmem:[%s32 + $0x128] sm:$0xff]
  %v2963 = vld [vmem:[%s32 + $0x138] sm:$0xff]
  %v2964 = vld [vmem:[%s32 + $0x140] sm:$0xff]
  %v2965 = vld [vmem:[%s32 + $0x150] sm:$0xff]
  %v2966 = vld [vmem:[%s32 + $0x158] sm:$0xff]
  %v2967 = vld [vmem:[%s32 + $0x168] sm:$0xff]
  %v2968 = vld [vmem:[%s32 + $0x170] sm:$0xff]
  %v2969 = vld [vmem:[%s32 + $0x1b0] sm:$0xff]
  %v2970 = vld [vmem:[%s32 + $0x1b8] sm:$0xff]
  %v2971 = vld [vmem:[%s32 + $0x1c8] sm:$0xff]
  %v2972 = vld [vmem:[%s32 + $0x1d0] sm:$0xff]
  %v2973 = vld [vmem:[%s32 + $0x1e0] sm:$0xff]
  %v2974 = vld [vmem:[%s32 + $0x1e8] sm:$0xff]
  %v2975 = vld [vmem:[%s32 + $0x1f8] sm:$0xff]
  %v2976 = vld [vmem:[%s32 + $0x200] sm:$0xff]
  %v2977 = vld [vmem:[%s32 + $0x210] sm:$0xff]
  %v2978 = vld [vmem:[%s32 + $0x218] sm:$0xff]
  %v2979 = vld [vmem:[%s32 + $0x228] sm:$0xff]
  %v2980 = vld [vmem:[%s32 + $0x230] sm:$0xff]
  %v2981 = vld [vmem:[%s32 + $0x240] sm:$0xff]
  %v2982 = vld [vmem:[%s32 + $0x248] sm:$0xff]
  %v2983 = vld [vmem:[%s32 + $0x258] sm:$0xff]
  %v2984 = vld [vmem:[%s32 + $0x260] sm:$0xff]
  %v2985 = vld [vmem:[%s32 + $0x270] sm:$0xff]
  %v2986 = vld [vmem:[%s32 + $0x278] sm:$0xff]
  %v2987 = vld [vmem:[%s32 + $0x288] sm:$0xff]
  %v2988 = vld [vmem:[%s32 + $0x290] sm:$0xff]
  %v2989 = vld [vmem:[%s32 + $0x2a0] sm:$0xff]
  %v2990 = vld [vmem:[%s32 + $0x2a8] sm:$0xff]
  %v2991 = vld [vmem:[%s32 + $0x2b8] sm:$0xff]
  %v2992 = vld [vmem:[%s32 + $0x2c0] sm:$0xff]
  %v2993 = vld [vmem:[%s32 + $0x2d0] sm:$0xff]
  %v2994 = vld [vmem:[%s32 + $0x2d8] sm:$0xff]
  %v2995 = vld [vmem:[%s32 + $0x2e8] sm:$0xff]
  %v2996 = vld [vmem:[%s32 + $0x2f0] sm:$0xff]
  %v2997 = vld [vmem:[%s32 + $0x300] sm:$0xff]
  %v2998 = vld [vmem:[%s32 + $0x308] sm:$0xff]
  %v2999 = vld [vmem:[%s32 + $0x318] sm:$0xff]
  %v3000 = vld [vmem:[%s32 + $0x320] sm:$0xff]
  %3001 = vset.pattern.permute.xlu0 3
  %3002 = vperm.xlu0 %3001, %v775
  %v3003 = vpop.permute.xlu0 %3002
  %3005 = vset.pattern.permute.xlu0 3
  %3006 = vperm.xlu0 %3005, %v790
  %v3007 = vpop.permute.xlu0 %3006
  %3009 = vset.pattern.permute.xlu0 3
  %3010 = vperm.xlu0 %3009, %v805
  %v3011 = vpop.permute.xlu0 %3010
  %3013 = vset.pattern.permute.xlu0 3
  %3014 = vperm.xlu0 %3013, %v820
  %v3015 = vpop.permute.xlu0 %3014
  %3017 = vset.pattern.permute.xlu0 3
  %3018 = vperm.xlu0 %3017, %v835
  %v3019 = vpop.permute.xlu0 %3018
  %3021 = vset.pattern.permute.xlu0 3
  %3022 = vperm.xlu0 %3021, %v850
  %v3023 = vpop.permute.xlu0 %3022
  %3025 = vset.pattern.permute.xlu0 3
  %3026 = vperm.xlu0 %3025, %v865
  %v3027 = vpop.permute.xlu0 %3026
  %3029 = vset.pattern.permute.xlu0 3
  %3030 = vperm.xlu0 %3029, %v880
  %v3031 = vpop.permute.xlu0 %3030
  %3033 = vset.pattern.permute.xlu0 3
  %3034 = vperm.xlu0 %3033, %v895
  %v3035 = vpop.permute.xlu0 %3034
  %3037 = vset.pattern.permute.xlu0 3
  %3038 = vperm.xlu0 %3037, %v910
  %v3039 = vpop.permute.xlu0 %3038
  %3041 = vset.pattern.permute.xlu0 3
  %3042 = vperm.xlu0 %3041, %v925
  %v3043 = vpop.permute.xlu0 %3042
  %3045 = vset.pattern.permute.xlu0 3
  %3046 = vperm.xlu0 %3045, %v940
  %v3047 = vpop.permute.xlu0 %3046
  %3049 = vset.pattern.permute.xlu0 3
  %3050 = vperm.xlu0 %3049, %v955
  %v3051 = vpop.permute.xlu0 %3050
  %3053 = vset.pattern.permute.xlu0 3
  %3054 = vperm.xlu0 %3053, %v970
  %v3055 = vpop.permute.xlu0 %3054
  %3057 = vset.pattern.permute.xlu0 3
  %3058 = vperm.xlu0 %3057, %v985
  %v3059 = vpop.permute.xlu0 %3058
  %3061 = vset.pattern.permute.xlu0 3
  %3062 = vperm.xlu0 %3061, %v1000
  %v3063 = vpop.permute.xlu0 %3062
  %3065 = vset.pattern.permute.xlu0 3
  %3066 = vperm.xlu0 %3065, %v1015
  %v3067 = vpop.permute.xlu0 %3066
  %3069 = vset.pattern.permute.xlu0 3
  %3070 = vperm.xlu0 %3069, %v1030
  %v3071 = vpop.permute.xlu0 %3070
  %3073 = vset.pattern.permute.xlu0 3
  %3074 = vperm.xlu0 %3073, %v1045
  %v3075 = vpop.permute.xlu0 %3074
  %3077 = vset.pattern.permute.xlu0 3
  %3078 = vperm.xlu0 %3077, %v1060
  %v3079 = vpop.permute.xlu0 %3078
  %3081 = vset.pattern.permute.xlu0 3
  %3082 = vperm.xlu0 %3081, %v1075
  %v3083 = vpop.permute.xlu0 %3082
  %3085 = vset.pattern.permute.xlu0 3
  %3086 = vperm.xlu0 %3085, %v1090
  %v3087 = vpop.permute.xlu0 %3086
  %3089 = vset.pattern.permute.xlu0 3
  %3090 = vperm.xlu0 %3089, %v1105
  %v3091 = vpop.permute.xlu0 %3090
  %3093 = vset.pattern.permute.xlu0 3
  %3094 = vperm.xlu0 %3093, %v1120
  %v3095 = vpop.permute.xlu0 %3094
  %3097 = vset.pattern.permute.xlu0 3
  %3098 = vperm.xlu0 %3097, %v1135
  %v3099 = vpop.permute.xlu0 %3098
  %3101 = vset.pattern.permute.xlu0 3
  %3102 = vperm.xlu0 %3101, %v1150
  %v3103 = vpop.permute.xlu0 %3102
  %3105 = vset.pattern.permute.xlu0 3
  %3106 = vperm.xlu0 %3105, %v1165
  %v3107 = vpop.permute.xlu0 %3106
  %3109 = vset.pattern.permute.xlu0 3
  %3110 = vperm.xlu0 %3109, %v1180
  %v3111 = vpop.permute.xlu0 %3110
  %3113 = vset.pattern.permute.xlu0 3
  %3114 = vperm.xlu0 %3113, %v1195
  %v3115 = vpop.permute.xlu0 %3114
  %3117 = vset.pattern.permute.xlu0 3
  %3118 = vperm.xlu0 %3117, %v1210
  %v3119 = vpop.permute.xlu0 %3118
  %3121 = vset.pattern.permute.xlu0 3
  %3122 = vperm.xlu0 %3121, %v1225
  %v3123 = vpop.permute.xlu0 %3122
  %3125 = vset.pattern.permute.xlu0 3
  %3126 = vperm.xlu0 %3125, %v1240
  %v3127 = vpop.permute.xlu0 %3126
  %3129 = vset.pattern.permute.xlu0 3
  %3130 = vperm.xlu0 %3129, %v1255
  %v3131 = vpop.permute.xlu0 %3130
  %3133 = vset.pattern.permute.xlu0 3
  %3134 = vperm.xlu0 %3133, %v1270
  %v3135 = vpop.permute.xlu0 %3134
  %3137 = vset.pattern.permute.xlu0 3
  %3138 = vperm.xlu0 %3137, %v1285
  %v3139 = vpop.permute.xlu0 %3138
  %3141 = vset.pattern.permute.xlu0 3
  %3142 = vperm.xlu0 %3141, %v1300
  %v3143 = vpop.permute.xlu0 %3142
  %3145 = vset.pattern.permute.xlu0 3
  %3146 = vperm.xlu0 %3145, %v1315
  %v3147 = vpop.permute.xlu0 %3146
  %3149 = vset.pattern.permute.xlu0 3
  %3150 = vperm.xlu0 %3149, %v1330
  %v3151 = vpop.permute.xlu0 %3150
  %3153 = vset.pattern.permute.xlu0 3
  %3154 = vperm.xlu0 %3153, %v1345
  %v3155 = vpop.permute.xlu0 %3154
  %3157 = vset.pattern.permute.xlu0 3
  %3158 = vperm.xlu0 %3157, %v1360
  %v3159 = vpop.permute.xlu0 %3158
  %3161 = vset.pattern.permute.xlu0 3
  %3162 = vperm.xlu0 %3161, %v1375
  %v3163 = vpop.permute.xlu0 %3162
  %3165 = vset.pattern.permute.xlu0 3
  %3166 = vperm.xlu0 %3165, %v1390
  %v3167 = vpop.permute.xlu0 %3166
  %3169 = vset.pattern.permute.xlu0 3
  %3170 = vperm.xlu0 %3169, %v1405
  %v3171 = vpop.permute.xlu0 %3170
  %3173 = vset.pattern.permute.xlu0 3
  %3174 = vperm.xlu0 %3173, %v1420
  %v3175 = vpop.permute.xlu0 %3174
  %3177 = vset.pattern.permute.xlu0 3
  %3178 = vperm.xlu0 %3177, %v1435
  %v3179 = vpop.permute.xlu0 %3178
  %3181 = vset.pattern.permute.xlu0 3
  %3182 = vperm.xlu0 %3181, %v1450
  %v3183 = vpop.permute.xlu0 %3182
  %3185 = vset.pattern.permute.xlu0 3
  %3186 = vperm.xlu0 %3185, %v1465
  %v3187 = vpop.permute.xlu0 %3186
  %3189 = vset.pattern.permute.xlu0 3
  %3190 = vperm.xlu0 %3189, %v1480
  %v3191 = vpop.permute.xlu0 %3190
  %3193 = vset.pattern.permute.xlu0 3
  %3194 = vperm.xlu0 %3193, %v1495
  %v3195 = vpop.permute.xlu0 %3194
  %3197 = vset.pattern.permute.xlu0 3
  %3198 = vperm.xlu0 %3197, %v1510
  %v3199 = vpop.permute.xlu0 %3198
  %3201 = vset.pattern.permute.xlu0 3
  %3202 = vperm.xlu0 %3201, %v1525
  %v3203 = vpop.permute.xlu0 %3202
  %3205 = vset.pattern.permute.xlu0 3
  %3206 = vperm.xlu0 %3205, %v1540
  %v3207 = vpop.permute.xlu0 %3206
  %3209 = vset.pattern.permute.xlu0 3
  %3210 = vperm.xlu0 %3209, %v1555
  %v3211 = vpop.permute.xlu0 %3210
  %3213 = vset.pattern.permute.xlu0 3
  %3214 = vperm.xlu0 %3213, %v1570
  %v3215 = vpop.permute.xlu0 %3214
  %3217 = vset.pattern.permute.xlu0 3
  %3218 = vperm.xlu0 %3217, %v1585
  %v3219 = vpop.permute.xlu0 %3218
  %3221 = vset.pattern.permute.xlu0 3
  %3222 = vperm.xlu0 %3221, %v1600
  %v3223 = vpop.permute.xlu0 %3222
  %3225 = vset.pattern.permute.xlu0 3
  %3226 = vperm.xlu0 %3225, %v1615
  %v3227 = vpop.permute.xlu0 %3226
  %3229 = vset.pattern.permute.xlu0 3
  %3230 = vperm.xlu0 %3229, %v1630
  %v3231 = vpop.permute.xlu0 %3230
  %3233 = vset.pattern.permute.xlu0 3
  %3234 = vperm.xlu0 %3233, %v1645
  %v3235 = vpop.permute.xlu0 %3234
  %3237 = vset.pattern.permute.xlu0 3
  %3238 = vperm.xlu0 %3237, %v1660
  %v3239 = vpop.permute.xlu0 %3238
  %3241 = vset.pattern.permute.xlu0 3
  %3242 = vperm.xlu0 %3241, %v1675
  %v3243 = vpop.permute.xlu0 %3242
  %3245 = vset.pattern.permute.xlu0 3
  %3246 = vperm.xlu0 %3245, %v1690
  %v3247 = vpop.permute.xlu0 %3246
  %3249 = vset.pattern.permute.xlu0 3
  %3250 = vperm.xlu0 %3249, %v1705
  %v3251 = vpop.permute.xlu0 %3250
  %3253 = vset.pattern.permute.xlu0 3
  %3254 = vperm.xlu0 %3253, %v1720
  %v3255 = vpop.permute.xlu0 %3254
  %v3257 = vmul.f32 %v2937, %v3003
  %v3258 = vmul.f32 %v2938, %v3007
  %v3259 = vmul.f32 %v2939, %v3011
  %v3260 = vmul.f32 %v2940, %v3015
  %v3261 = vmul.f32 %v2941, %v3019
  %v3262 = vmul.f32 %v2942, %v3023
  %v3263 = vmul.f32 %v2943, %v3027
  %v3264 = vmul.f32 %v2944, %v3031
  %v3265 = vmul.f32 %v2945, %v3035
  %v3266 = vmul.f32 %v2946, %v3039
  %v3267 = vmul.f32 %v2947, %v3043
  %v3268 = vmul.f32 %v2948, %v3047
  %v3269 = vmul.f32 %v2949, %v3051
  %v3270 = vmul.f32 %v2950, %v3055
  %v3271 = vmul.f32 %v2951, %v3059
  %v3272 = vmul.f32 %v2952, %v3063
  %v3273 = vmul.f32 %v2953, %v3067
  %v3274 = vmul.f32 %v2954, %v3071
  %v3275 = vmul.f32 %v2955, %v3075
  %v3276 = vmul.f32 %v2956, %v3079
  %v3277 = vmul.f32 %v2957, %v3083
  %v3278 = vmul.f32 %v2958, %v3087
  %v3279 = vmul.f32 %v2959, %v3091
  %v3280 = vmul.f32 %v2960, %v3095
  %v3281 = vmul.f32 %v2961, %v3099
  %v3282 = vmul.f32 %v2962, %v3103
  %v3283 = vmul.f32 %v2963, %v3107
  %v3284 = vmul.f32 %v2964, %v3111
  %v3285 = vmul.f32 %v2965, %v3115
  %v3286 = vmul.f32 %v2966, %v3119
  %v3287 = vmul.f32 %v2967, %v3123
  %v3288 = vmul.f32 %v2968, %v3127
  %v3289 = vmul.f32 %v2969, %v3131
  %v3290 = vmul.f32 %v2970, %v3135
  %v3291 = vmul.f32 %v2971, %v3139
  %v3292 = vmul.f32 %v2972, %v3143
  %v3293 = vmul.f32 %v2973, %v3147
  %v3294 = vmul.f32 %v2974, %v3151
  %v3295 = vmul.f32 %v2975, %v3155
  %v3296 = vmul.f32 %v2976, %v3159
  %v3297 = vmul.f32 %v2977, %v3163
  %v3298 = vmul.f32 %v2978, %v3167
  %v3299 = vmul.f32 %v2979, %v3171
  %v3300 = vmul.f32 %v2980, %v3175
  %v3301 = vmul.f32 %v2981, %v3179
  %v3302 = vmul.f32 %v2982, %v3183
  %v3303 = vmul.f32 %v2983, %v3187
  %v3304 = vmul.f32 %v2984, %v3191
  %v3305 = vmul.f32 %v2985, %v3195
  %v3306 = vmul.f32 %v2986, %v3199
  %v3307 = vmul.f32 %v2987, %v3203
  %v3308 = vmul.f32 %v2988, %v3207
  %v3309 = vmul.f32 %v2989, %v3211
  %v3310 = vmul.f32 %v2990, %v3215
  %v3311 = vmul.f32 %v2991, %v3219
  %v3312 = vmul.f32 %v2992, %v3223
  %v3313 = vmul.f32 %v2993, %v3227
  %v3314 = vmul.f32 %v2994, %v3231
  %v3315 = vmul.f32 %v2995, %v3235
  %v3316 = vmul.f32 %v2996, %v3239
  %v3317 = vmul.f32 %v2997, %v3243
  %v3318 = vmul.f32 %v2998, %v3247
  %v3319 = vmul.f32 %v2999, %v3251
  %v3320 = vmul.f32 %v3000, %v3255
  %3321 = vset.pattern.permute.xlu0 4
  %3322 = vperm.xlu0 %3321, %v775
  %v3323 = vpop.permute.xlu0 %3322
  %3325 = vset.pattern.permute.xlu0 4
  %3326 = vperm.xlu0 %3325, %v790
  %v3327 = vpop.permute.xlu0 %3326
  %3329 = vset.pattern.permute.xlu0 4
  %3330 = vperm.xlu0 %3329, %v805
  %v3331 = vpop.permute.xlu0 %3330
  %3333 = vset.pattern.permute.xlu0 4
  %3334 = vperm.xlu0 %3333, %v820
  %v3335 = vpop.permute.xlu0 %3334
  %3337 = vset.pattern.permute.xlu0 4
  %3338 = vperm.xlu0 %3337, %v835
  %v3339 = vpop.permute.xlu0 %3338
  %3341 = vset.pattern.permute.xlu0 4
  %3342 = vperm.xlu0 %3341, %v850
  %v3343 = vpop.permute.xlu0 %3342
  %3345 = vset.pattern.permute.xlu0 4
  %3346 = vperm.xlu0 %3345, %v865
  %v3347 = vpop.permute.xlu0 %3346
  %3349 = vset.pattern.permute.xlu0 4
  %3350 = vperm.xlu0 %3349, %v880
  %v3351 = vpop.permute.xlu0 %3350
  %3353 = vset.pattern.permute.xlu0 4
  %3354 = vperm.xlu0 %3353, %v895
  %v3355 = vpop.permute.xlu0 %3354
  %3357 = vset.pattern.permute.xlu0 4
  %3358 = vperm.xlu0 %3357, %v910
  %v3359 = vpop.permute.xlu0 %3358
  %3361 = vset.pattern.permute.xlu0 4
  %3362 = vperm.xlu0 %3361, %v925
  %v3363 = vpop.permute.xlu0 %3362
  %3365 = vset.pattern.permute.xlu0 4
  %3366 = vperm.xlu0 %3365, %v940
  %v3367 = vpop.permute.xlu0 %3366
  %3369 = vset.pattern.permute.xlu0 4
  %3370 = vperm.xlu0 %3369, %v955
  %v3371 = vpop.permute.xlu0 %3370
  %3373 = vset.pattern.permute.xlu0 4
  %3374 = vperm.xlu0 %3373, %v970
  %v3375 = vpop.permute.xlu0 %3374
  %3377 = vset.pattern.permute.xlu0 4
  %3378 = vperm.xlu0 %3377, %v985
  %v3379 = vpop.permute.xlu0 %3378
  %3381 = vset.pattern.permute.xlu0 4
  %3382 = vperm.xlu0 %3381, %v1000
  %v3383 = vpop.permute.xlu0 %3382
  %3385 = vset.pattern.permute.xlu0 4
  %3386 = vperm.xlu0 %3385, %v1015
  %v3387 = vpop.permute.xlu0 %3386
  %3389 = vset.pattern.permute.xlu0 4
  %3390 = vperm.xlu0 %3389, %v1030
  %v3391 = vpop.permute.xlu0 %3390
  %3393 = vset.pattern.permute.xlu0 4
  %3394 = vperm.xlu0 %3393, %v1045
  %v3395 = vpop.permute.xlu0 %3394
  %3397 = vset.pattern.permute.xlu0 4
  %3398 = vperm.xlu0 %3397, %v1060
  %v3399 = vpop.permute.xlu0 %3398
  %3401 = vset.pattern.permute.xlu0 4
  %3402 = vperm.xlu0 %3401, %v1075
  %v3403 = vpop.permute.xlu0 %3402
  %3405 = vset.pattern.permute.xlu0 4
  %3406 = vperm.xlu0 %3405, %v1090
  %v3407 = vpop.permute.xlu0 %3406
  %3409 = vset.pattern.permute.xlu0 4
  %3410 = vperm.xlu0 %3409, %v1105
  %v3411 = vpop.permute.xlu0 %3410
  %3413 = vset.pattern.permute.xlu0 4
  %3414 = vperm.xlu0 %3413, %v1120
  %v3415 = vpop.permute.xlu0 %3414
  %3417 = vset.pattern.permute.xlu0 4
  %3418 = vperm.xlu0 %3417, %v1135
  %v3419 = vpop.permute.xlu0 %3418
  %3421 = vset.pattern.permute.xlu0 4
  %3422 = vperm.xlu0 %3421, %v1150
  %v3423 = vpop.permute.xlu0 %3422
  %3425 = vset.pattern.permute.xlu0 4
  %3426 = vperm.xlu0 %3425, %v1165
  %v3427 = vpop.permute.xlu0 %3426
  %3429 = vset.pattern.permute.xlu0 4
  %3430 = vperm.xlu0 %3429, %v1180
  %v3431 = vpop.permute.xlu0 %3430
  %3433 = vset.pattern.permute.xlu0 4
  %3434 = vperm.xlu0 %3433, %v1195
  %v3435 = vpop.permute.xlu0 %3434
  %3437 = vset.pattern.permute.xlu0 4
  %3438 = vperm.xlu0 %3437, %v1210
  %v3439 = vpop.permute.xlu0 %3438
  %3441 = vset.pattern.permute.xlu0 4
  %3442 = vperm.xlu0 %3441, %v1225
  %v3443 = vpop.permute.xlu0 %3442
  %3445 = vset.pattern.permute.xlu0 4
  %3446 = vperm.xlu0 %3445, %v1240
  %v3447 = vpop.permute.xlu0 %3446
  %3449 = vset.pattern.permute.xlu0 4
  %3450 = vperm.xlu0 %3449, %v1255
  %v3451 = vpop.permute.xlu0 %3450
  %3453 = vset.pattern.permute.xlu0 4
  %3454 = vperm.xlu0 %3453, %v1270
  %v3455 = vpop.permute.xlu0 %3454
  %3457 = vset.pattern.permute.xlu0 4
  %3458 = vperm.xlu0 %3457, %v1285
  %v3459 = vpop.permute.xlu0 %3458
  %3461 = vset.pattern.permute.xlu0 4
  %3462 = vperm.xlu0 %3461, %v1300
  %v3463 = vpop.permute.xlu0 %3462
  %3465 = vset.pattern.permute.xlu0 4
  %3466 = vperm.xlu0 %3465, %v1315
  %v3467 = vpop.permute.xlu0 %3466
  %3469 = vset.pattern.permute.xlu0 4
  %3470 = vperm.xlu0 %3469, %v1330
  %v3471 = vpop.permute.xlu0 %3470
  %3473 = vset.pattern.permute.xlu0 4
  %3474 = vperm.xlu0 %3473, %v1345
  %v3475 = vpop.permute.xlu0 %3474
  %3477 = vset.pattern.permute.xlu0 4
  %3478 = vperm.xlu0 %3477, %v1360
  %v3479 = vpop.permute.xlu0 %3478
  %3481 = vset.pattern.permute.xlu0 4
  %3482 = vperm.xlu0 %3481, %v1375
  %v3483 = vpop.permute.xlu0 %3482
  %3485 = vset.pattern.permute.xlu0 4
  %3486 = vperm.xlu0 %3485, %v1390
  %v3487 = vpop.permute.xlu0 %3486
  %3489 = vset.pattern.permute.xlu0 4
  %3490 = vperm.xlu0 %3489, %v1405
  %v3491 = vpop.permute.xlu0 %3490
  %3493 = vset.pattern.permute.xlu0 4
  %3494 = vperm.xlu0 %3493, %v1420
  %v3495 = vpop.permute.xlu0 %3494
  %3497 = vset.pattern.permute.xlu0 4
  %3498 = vperm.xlu0 %3497, %v1435
  %v3499 = vpop.permute.xlu0 %3498
  %3501 = vset.pattern.permute.xlu0 4
  %3502 = vperm.xlu0 %3501, %v1450
  %v3503 = vpop.permute.xlu0 %3502
  %3505 = vset.pattern.permute.xlu0 4
  %3506 = vperm.xlu0 %3505, %v1465
  %v3507 = vpop.permute.xlu0 %3506
  %3509 = vset.pattern.permute.xlu0 4
  %3510 = vperm.xlu0 %3509, %v1480
  %v3511 = vpop.permute.xlu0 %3510
  %3513 = vset.pattern.permute.xlu0 4
  %3514 = vperm.xlu0 %3513, %v1495
  %v3515 = vpop.permute.xlu0 %3514
  %3517 = vset.pattern.permute.xlu0 4
  %3518 = vperm.xlu0 %3517, %v1510
  %v3519 = vpop.permute.xlu0 %3518
  %3521 = vset.pattern.permute.xlu0 4
  %3522 = vperm.xlu0 %3521, %v1525
  %v3523 = vpop.permute.xlu0 %3522
  %3525 = vset.pattern.permute.xlu0 4
  %3526 = vperm.xlu0 %3525, %v1540
  %v3527 = vpop.permute.xlu0 %3526
  %3529 = vset.pattern.permute.xlu0 4
  %3530 = vperm.xlu0 %3529, %v1555
  %v3531 = vpop.permute.xlu0 %3530
  %3533 = vset.pattern.permute.xlu0 4
  %3534 = vperm.xlu0 %3533, %v1570
  %v3535 = vpop.permute.xlu0 %3534
  %3537 = vset.pattern.permute.xlu0 4
  %3538 = vperm.xlu0 %3537, %v1585
  %v3539 = vpop.permute.xlu0 %3538
  %3541 = vset.pattern.permute.xlu0 4
  %3542 = vperm.xlu0 %3541, %v1600
  %v3543 = vpop.permute.xlu0 %3542
  %3545 = vset.pattern.permute.xlu0 4
  %3546 = vperm.xlu0 %3545, %v1615
  %v3547 = vpop.permute.xlu0 %3546
  %3549 = vset.pattern.permute.xlu0 4
  %3550 = vperm.xlu0 %3549, %v1630
  %v3551 = vpop.permute.xlu0 %3550
  %3553 = vset.pattern.permute.xlu0 4
  %3554 = vperm.xlu0 %3553, %v1645
  %v3555 = vpop.permute.xlu0 %3554
  %3557 = vset.pattern.permute.xlu0 4
  %3558 = vperm.xlu0 %3557, %v1660
  %v3559 = vpop.permute.xlu0 %3558
  %3561 = vset.pattern.permute.xlu0 4
  %3562 = vperm.xlu0 %3561, %v1675
  %v3563 = vpop.permute.xlu0 %3562
  %3565 = vset.pattern.permute.xlu0 4
  %3566 = vperm.xlu0 %3565, %v1690
  %v3567 = vpop.permute.xlu0 %3566
  %3569 = vset.pattern.permute.xlu0 4
  %3570 = vperm.xlu0 %3569, %v1705
  %v3571 = vpop.permute.xlu0 %3570
  %3573 = vset.pattern.permute.xlu0 4
  %3574 = vperm.xlu0 %3573, %v1720
  %v3575 = vpop.permute.xlu0 %3574
  %v3577 = vmul.f32 %v33, %v3323
  %v3578 = vmul.f32 %v34, %v3327
  %v3579 = vmul.f32 %v35, %v3331
  %v3580 = vmul.f32 %v36, %v3335
  %v3581 = vmul.f32 %v37, %v3339
  %v3582 = vmul.f32 %v38, %v3343
  %v3583 = vmul.f32 %v39, %v3347
  %v3584 = vmul.f32 %v40, %v3351
  %v3585 = vmul.f32 %v41, %v3355
  %v3586 = vmul.f32 %v42, %v3359
  %v3587 = vmul.f32 %v43, %v3363
  %v3588 = vmul.f32 %v44, %v3367
  %v3589 = vmul.f32 %v45, %v3371
  %v3590 = vmul.f32 %v46, %v3375
  %v3591 = vmul.f32 %v47, %v3379
  %v3592 = vmul.f32 %v48, %v3383
  %v3593 = vmul.f32 %v49, %v3387
  %v3594 = vmul.f32 %v50, %v3391
  %v3595 = vmul.f32 %v51, %v3395
  %v3596 = vmul.f32 %v52, %v3399
  %v3597 = vmul.f32 %v53, %v3403
  %v3598 = vmul.f32 %v54, %v3407
  %v3599 = vmul.f32 %v55, %v3411
  %v3600 = vmul.f32 %v56, %v3415
  %v3601 = vmul.f32 %v57, %v3419
  %v3602 = vmul.f32 %v58, %v3423
  %v3603 = vmul.f32 %v59, %v3427
  %v3604 = vmul.f32 %v60, %v3431
  %v3605 = vmul.f32 %v61, %v3435
  %v3606 = vmul.f32 %v62, %v3439
  %v3607 = vmul.f32 %v63, %v3443
  %v3608 = vmul.f32 %v64, %v3447
  %v3609 = vmul.f32 %v65, %v3451
  %v3610 = vmul.f32 %v66, %v3455
  %v3611 = vmul.f32 %v67, %v3459
  %v3612 = vmul.f32 %v68, %v3463
  %v3613 = vmul.f32 %v69, %v3467
  %v3614 = vmul.f32 %v70, %v3471
  %v3615 = vmul.f32 %v71, %v3475
  %v3616 = vmul.f32 %v72, %v3479
  %v3617 = vmul.f32 %v73, %v3483
  %v3618 = vmul.f32 %v74, %v3487
  %v3619 = vmul.f32 %v75, %v3491
  %v3620 = vmul.f32 %v76, %v3495
  %v3621 = vmul.f32 %v77, %v3499
  %v3622 = vmul.f32 %v78, %v3503
  %v3623 = vmul.f32 %v79, %v3507
  %v3624 = vmul.f32 %v80, %v3511
  %v3625 = vmul.f32 %v81, %v3515
  %v3626 = vmul.f32 %v82, %v3519
  %v3627 = vmul.f32 %v83, %v3523
  %v3628 = vmul.f32 %v84, %v3527
  %v3629 = vmul.f32 %v85, %v3531
  %v3630 = vmul.f32 %v86, %v3535
  %v3631 = vmul.f32 %v87, %v3539
  %v3632 = vmul.f32 %v88, %v3543
  %v3633 = vmul.f32 %v89, %v3547
  %v3634 = vmul.f32 %v90, %v3551
  %v3635 = vmul.f32 %v91, %v3555
  %v3636 = vmul.f32 %v92, %v3559
  %v3637 = vmul.f32 %v93, %v3563
  %v3638 = vmul.f32 %v94, %v3567
  %v3639 = vmul.f32 %v95, %v3571
  %v3640 = vmul.f32 %v96, %v3575
  %v3641 = vld [vmem:[%s32 + $0x2] sm:$0xff]
  %v3642 = vld [vmem:[%s32 + $0xa] sm:$0xff]
  %v3643 = vld [vmem:[%s32 + $0x1a] sm:$0xff]
  %v3644 = vld [vmem:[%s32 + $0x22] sm:$0xff]
  %v3645 = vld [vmem:[%s32 + $0x32] sm:$0xff]
  %v3646 = vld [vmem:[%s32 + $0x3a] sm:$0xff]
  %v3647 = vld [vmem:[%s32 + $0x4a] sm:$0xff]
  %v3648 = vld [vmem:[%s32 + $0x52] sm:$0xff]
  %v3649 = vld [vmem:[%s32 + $0x62] sm:$0xff]
  %v3650 = vld [vmem:[%s32 + $0x6a] sm:$0xff]
  %v3651 = vld [vmem:[%s32 + $0x7a] sm:$0xff]
  %v3652 = vld [vmem:[%s32 + $0x82] sm:$0xff]
  %v3653 = vld [vmem:[%s32 + $0x92] sm:$0xff]
  %v3654 = vld [vmem:[%s32 + $0x9a] sm:$0xff]
  %v3655 = vld [vmem:[%s32 + $0xaa] sm:$0xff]
  %v3656 = vld [vmem:[%s32 + $0xb2] sm:$0xff]
  %v3657 = vld [vmem:[%s32 + $0xc2] sm:$0xff]
  %v3658 = vld [vmem:[%s32 + $0xca] sm:$0xff]
  %v3659 = vld [vmem:[%s32 + $0xda] sm:$0xff]
  %v3660 = vld [vmem:[%s32 + $0xe2] sm:$0xff]
  %v3661 = vld [vmem:[%s32 + $0xf2] sm:$0xff]
  %v3662 = vld [vmem:[%s32 + $0xfa] sm:$0xff]
  %v3663 = vld [vmem:[%s32 + $0x10a] sm:$0xff]
  %v3664 = vld [vmem:[%s32 + $0x112] sm:$0xff]
  %v3665 = vld [vmem:[%s32 + $0x122] sm:$0xff]
  %v3666 = vld [vmem:[%s32 + $0x12a] sm:$0xff]
  %v3667 = vld [vmem:[%s32 + $0x13a] sm:$0xff]
  %v3668 = vld [vmem:[%s32 + $0x142] sm:$0xff]
  %v3669 = vld [vmem:[%s32 + $0x152] sm:$0xff]
  %v3670 = vld [vmem:[%s32 + $0x15a] sm:$0xff]
  %v3671 = vld [vmem:[%s32 + $0x16a] sm:$0xff]
  %v3672 = vld [vmem:[%s32 + $0x172] sm:$0xff]
  %v3673 = vld [vmem:[%s32 + $0x1b2] sm:$0xff]
  %v3674 = vld [vmem:[%s32 + $0x1ba] sm:$0xff]
  %v3675 = vld [vmem:[%s32 + $0x1ca] sm:$0xff]
  %v3676 = vld [vmem:[%s32 + $0x1d2] sm:$0xff]
  %v3677 = vld [vmem:[%s32 + $0x1e2] sm:$0xff]
  %v3678 = vld [vmem:[%s32 + $0x1ea] sm:$0xff]
  %v3679 = vld [vmem:[%s32 + $0x1fa] sm:$0xff]
  %v3680 = vld [vmem:[%s32 + $0x202] sm:$0xff]
  %v3681 = vld [vmem:[%s32 + $0x212] sm:$0xff]
  %v3682 = vld [vmem:[%s32 + $0x21a] sm:$0xff]
  %v3683 = vld [vmem:[%s32 + $0x22a] sm:$0xff]
  %v3684 = vld [vmem:[%s32 + $0x232] sm:$0xff]
  %v3685 = vld [vmem:[%s32 + $0x242] sm:$0xff]
  %v3686 = vld [vmem:[%s32 + $0x24a] sm:$0xff]
  %v3687 = vld [vmem:[%s32 + $0x25a] sm:$0xff]
  %v3688 = vld [vmem:[%s32 + $0x262] sm:$0xff]
  %v3689 = vld [vmem:[%s32 + $0x272] sm:$0xff]
  %v3690 = vld [vmem:[%s32 + $0x27a] sm:$0xff]
  %v3691 = vld [vmem:[%s32 + $0x28a] sm:$0xff]
  %v3692 = vld [vmem:[%s32 + $0x292] sm:$0xff]
  %v3693 = vld [vmem:[%s32 + $0x2a2] sm:$0xff]
  %v3694 = vld [vmem:[%s32 + $0x2aa] sm:$0xff]
  %v3695 = vld [vmem:[%s32 + $0x2ba] sm:$0xff]
  %v3696 = vld [vmem:[%s32 + $0x2c2] sm:$0xff]
  %v3697 = vld [vmem:[%s32 + $0x2d2] sm:$0xff]
  %v3698 = vld [vmem:[%s32 + $0x2da] sm:$0xff]
  %v3699 = vld [vmem:[%s32 + $0x2ea] sm:$0xff]
  %v3700 = vld [vmem:[%s32 + $0x2f2] sm:$0xff]
  %v3701 = vld [vmem:[%s32 + $0x302] sm:$0xff]
  %v3702 = vld [vmem:[%s32 + $0x30a] sm:$0xff]
  %v3703 = vld [vmem:[%s32 + $0x31a] sm:$0xff]
  %v3704 = vld [vmem:[%s32 + $0x322] sm:$0xff]
  %3705 = vset.pattern.permute.xlu0 5
  %3706 = vperm.xlu0 %3705, %v775
  %v3707 = vpop.permute.xlu0 %3706
  %3709 = vset.pattern.permute.xlu0 5
  %3710 = vperm.xlu0 %3709, %v790
  %v3711 = vpop.permute.xlu0 %3710
  %3713 = vset.pattern.permute.xlu0 5
  %3714 = vperm.xlu0 %3713, %v805
  %v3715 = vpop.permute.xlu0 %3714
  %3717 = vset.pattern.permute.xlu0 5
  %3718 = vperm.xlu0 %3717, %v820
  %v3719 = vpop.permute.xlu0 %3718
  %3721 = vset.pattern.permute.xlu0 5
  %3722 = vperm.xlu0 %3721, %v835
  %v3723 = vpop.permute.xlu0 %3722
  %3725 = vset.pattern.permute.xlu0 5
  %3726 = vperm.xlu0 %3725, %v850
  %v3727 = vpop.permute.xlu0 %3726
  %3729 = vset.pattern.permute.xlu0 5
  %3730 = vperm.xlu0 %3729, %v865
  %v3731 = vpop.permute.xlu0 %3730
  %3733 = vset.pattern.permute.xlu0 5
  %3734 = vperm.xlu0 %3733, %v880
  %v3735 = vpop.permute.xlu0 %3734
  %3737 = vset.pattern.permute.xlu0 5
  %3738 = vperm.xlu0 %3737, %v895
  %v3739 = vpop.permute.xlu0 %3738
  %3741 = vset.pattern.permute.xlu0 5
  %3742 = vperm.xlu0 %3741, %v910
  %v3743 = vpop.permute.xlu0 %3742
  %3745 = vset.pattern.permute.xlu0 5
  %3746 = vperm.xlu0 %3745, %v925
  %v3747 = vpop.permute.xlu0 %3746
  %3749 = vset.pattern.permute.xlu0 5
  %3750 = vperm.xlu0 %3749, %v940
  %v3751 = vpop.permute.xlu0 %3750
  %3753 = vset.pattern.permute.xlu0 5
  %3754 = vperm.xlu0 %3753, %v955
  %v3755 = vpop.permute.xlu0 %3754
  %3757 = vset.pattern.permute.xlu0 5
  %3758 = vperm.xlu0 %3757, %v970
  %v3759 = vpop.permute.xlu0 %3758
  %3761 = vset.pattern.permute.xlu0 5
  %3762 = vperm.xlu0 %3761, %v985
  %v3763 = vpop.permute.xlu0 %3762
  %3765 = vset.pattern.permute.xlu0 5
  %3766 = vperm.xlu0 %3765, %v1000
  %v3767 = vpop.permute.xlu0 %3766
  %3769 = vset.pattern.permute.xlu0 5
  %3770 = vperm.xlu0 %3769, %v1015
  %v3771 = vpop.permute.xlu0 %3770
  %3773 = vset.pattern.permute.xlu0 5
  %3774 = vperm.xlu0 %3773, %v1030
  %v3775 = vpop.permute.xlu0 %3774
  %3777 = vset.pattern.permute.xlu0 5
  %3778 = vperm.xlu0 %3777, %v1045
  %v3779 = vpop.permute.xlu0 %3778
  %3781 = vset.pattern.permute.xlu0 5
  %3782 = vperm.xlu0 %3781, %v1060
  %v3783 = vpop.permute.xlu0 %3782
  %3785 = vset.pattern.permute.xlu0 5
  %3786 = vperm.xlu0 %3785, %v1075
  %v3787 = vpop.permute.xlu0 %3786
  %3789 = vset.pattern.permute.xlu0 5
  %3790 = vperm.xlu0 %3789, %v1090
  %v3791 = vpop.permute.xlu0 %3790
  %3793 = vset.pattern.permute.xlu0 5
  %3794 = vperm.xlu0 %3793, %v1105
  %v3795 = vpop.permute.xlu0 %3794
  %3797 = vset.pattern.permute.xlu0 5
  %3798 = vperm.xlu0 %3797, %v1120
  %v3799 = vpop.permute.xlu0 %3798
  %3801 = vset.pattern.permute.xlu0 5
  %3802 = vperm.xlu0 %3801, %v1135
  %v3803 = vpop.permute.xlu0 %3802
  %3805 = vset.pattern.permute.xlu0 5
  %3806 = vperm.xlu0 %3805, %v1150
  %v3807 = vpop.permute.xlu0 %3806
  %3809 = vset.pattern.permute.xlu0 5
  %3810 = vperm.xlu0 %3809, %v1165
  %v3811 = vpop.permute.xlu0 %3810
  %3813 = vset.pattern.permute.xlu0 5
  %3814 = vperm.xlu0 %3813, %v1180
  %v3815 = vpop.permute.xlu0 %3814
  %3817 = vset.pattern.permute.xlu0 5
  %3818 = vperm.xlu0 %3817, %v1195
  %v3819 = vpop.permute.xlu0 %3818
  %3821 = vset.pattern.permute.xlu0 5
  %3822 = vperm.xlu0 %3821, %v1210
  %v3823 = vpop.permute.xlu0 %3822
  %3825 = vset.pattern.permute.xlu0 5
  %3826 = vperm.xlu0 %3825, %v1225
  %v3827 = vpop.permute.xlu0 %3826
  %3829 = vset.pattern.permute.xlu0 5
  %3830 = vperm.xlu0 %3829, %v1240
  %v3831 = vpop.permute.xlu0 %3830
  %3833 = vset.pattern.permute.xlu0 5
  %3834 = vperm.xlu0 %3833, %v1255
  %v3835 = vpop.permute.xlu0 %3834
  %3837 = vset.pattern.permute.xlu0 5
  %3838 = vperm.xlu0 %3837, %v1270
  %v3839 = vpop.permute.xlu0 %3838
  %3841 = vset.pattern.permute.xlu0 5
  %3842 = vperm.xlu0 %3841, %v1285
  %v3843 = vpop.permute.xlu0 %3842
  %3845 = vset.pattern.permute.xlu0 5
  %3846 = vperm.xlu0 %3845, %v1300
  %v3847 = vpop.permute.xlu0 %3846
  %3849 = vset.pattern.permute.xlu0 5
  %3850 = vperm.xlu0 %3849, %v1315
  %v3851 = vpop.permute.xlu0 %3850
  %3853 = vset.pattern.permute.xlu0 5
  %3854 = vperm.xlu0 %3853, %v1330
  %v3855 = vpop.permute.xlu0 %3854
  %3857 = vset.pattern.permute.xlu0 5
  %3858 = vperm.xlu0 %3857, %v1345
  %v3859 = vpop.permute.xlu0 %3858
  %3861 = vset.pattern.permute.xlu0 5
  %3862 = vperm.xlu0 %3861, %v1360
  %v3863 = vpop.permute.xlu0 %3862
  %3865 = vset.pattern.permute.xlu0 5
  %3866 = vperm.xlu0 %3865, %v1375
  %v3867 = vpop.permute.xlu0 %3866
  %3869 = vset.pattern.permute.xlu0 5
  %3870 = vperm.xlu0 %3869, %v1390
  %v3871 = vpop.permute.xlu0 %3870
  %3873 = vset.pattern.permute.xlu0 5
  %3874 = vperm.xlu0 %3873, %v1405
  %v3875 = vpop.permute.xlu0 %3874
  %3877 = vset.pattern.permute.xlu0 5
  %3878 = vperm.xlu0 %3877, %v1420
  %v3879 = vpop.permute.xlu0 %3878
  %3881 = vset.pattern.permute.xlu0 5
  %3882 = vperm.xlu0 %3881, %v1435
  %v3883 = vpop.permute.xlu0 %3882
  %3885 = vset.pattern.permute.xlu0 5
  %3886 = vperm.xlu0 %3885, %v1450
  %v3887 = vpop.permute.xlu0 %3886
  %3889 = vset.pattern.permute.xlu0 5
  %3890 = vperm.xlu0 %3889, %v1465
  %v3891 = vpop.permute.xlu0 %3890
  %3893 = vset.pattern.permute.xlu0 5
  %3894 = vperm.xlu0 %3893, %v1480
  %v3895 = vpop.permute.xlu0 %3894
  %3897 = vset.pattern.permute.xlu0 5
  %3898 = vperm.xlu0 %3897, %v1495
  %v3899 = vpop.permute.xlu0 %3898
  %3901 = vset.pattern.permute.xlu0 5
  %3902 = vperm.xlu0 %3901, %v1510
  %v3903 = vpop.permute.xlu0 %3902
  %3905 = vset.pattern.permute.xlu0 5
  %3906 = vperm.xlu0 %3905, %v1525
  %v3907 = vpop.permute.xlu0 %3906
  %3909 = vset.pattern.permute.xlu0 5
  %3910 = vperm.xlu0 %3909, %v1540
  %v3911 = vpop.permute.xlu0 %3910
  %3913 = vset.pattern.permute.xlu0 5
  %3914 = vperm.xlu0 %3913, %v1555
  %v3915 = vpop.permute.xlu0 %3914
  %3917 = vset.pattern.permute.xlu0 5
  %3918 = vperm.xlu0 %3917, %v1570
  %v3919 = vpop.permute.xlu0 %3918
  %3921 = vset.pattern.permute.xlu0 5
  %3922 = vperm.xlu0 %3921, %v1585
  %v3923 = vpop.permute.xlu0 %3922
  %3925 = vset.pattern.permute.xlu0 5
  %3926 = vperm.xlu0 %3925, %v1600
  %v3927 = vpop.permute.xlu0 %3926
  %3929 = vset.pattern.permute.xlu0 5
  %3930 = vperm.xlu0 %3929, %v1615
  %v3931 = vpop.permute.xlu0 %3930
  %3933 = vset.pattern.permute.xlu0 5
  %3934 = vperm.xlu0 %3933, %v1630
  %v3935 = vpop.permute.xlu0 %3934
  %3937 = vset.pattern.permute.xlu0 5
  %3938 = vperm.xlu0 %3937, %v1645
  %v3939 = vpop.permute.xlu0 %3938
  %3941 = vset.pattern.permute.xlu0 5
  %3942 = vperm.xlu0 %3941, %v1660
  %v3943 = vpop.permute.xlu0 %3942
  %3945 = vset.pattern.permute.xlu0 5
  %3946 = vperm.xlu0 %3945, %v1675
  %v3947 = vpop.permute.xlu0 %3946
  %3949 = vset.pattern.permute.xlu0 5
  %3950 = vperm.xlu0 %3949, %v1690
  %v3951 = vpop.permute.xlu0 %3950
  %3953 = vset.pattern.permute.xlu0 5
  %3954 = vperm.xlu0 %3953, %v1705
  %v3955 = vpop.permute.xlu0 %3954
  %3957 = vset.pattern.permute.xlu0 5
  %3958 = vperm.xlu0 %3957, %v1720
  %v3959 = vpop.permute.xlu0 %3958
  %v3961 = vmul.f32 %v3641, %v3707
  %v3962 = vmul.f32 %v3642, %v3711
  %v3963 = vmul.f32 %v3643, %v3715
  %v3964 = vmul.f32 %v3644, %v3719
  %v3965 = vmul.f32 %v3645, %v3723
  %v3966 = vmul.f32 %v3646, %v3727
  %v3967 = vmul.f32 %v3647, %v3731
  %v3968 = vmul.f32 %v3648, %v3735
  %v3969 = vmul.f32 %v3649, %v3739
  %v3970 = vmul.f32 %v3650, %v3743
  %v3971 = vmul.f32 %v3651, %v3747
  %v3972 = vmul.f32 %v3652, %v3751
  %v3973 = vmul.f32 %v3653, %v3755
  %v3974 = vmul.f32 %v3654, %v3759
  %v3975 = vmul.f32 %v3655, %v3763
  %v3976 = vmul.f32 %v3656, %v3767
  %v3977 = vmul.f32 %v3657, %v3771
  %v3978 = vmul.f32 %v3658, %v3775
  %v3979 = vmul.f32 %v3659, %v3779
  %v3980 = vmul.f32 %v3660, %v3783
  %v3981 = vmul.f32 %v3661, %v3787
  %v3982 = vmul.f32 %v3662, %v3791
  %v3983 = vmul.f32 %v3663, %v3795
  %v3984 = vmul.f32 %v3664, %v3799
  %v3985 = vmul.f32 %v3665, %v3803
  %v3986 = vmul.f32 %v3666, %v3807
  %v3987 = vmul.f32 %v3667, %v3811
  %v3988 = vmul.f32 %v3668, %v3815
  %v3989 = vmul.f32 %v3669, %v3819
  %v3990 = vmul.f32 %v3670, %v3823
  %v3991 = vmul.f32 %v3671, %v3827
  %v3992 = vmul.f32 %v3672, %v3831
  %v3993 = vmul.f32 %v3673, %v3835
  %v3994 = vmul.f32 %v3674, %v3839
  %v3995 = vmul.f32 %v3675, %v3843
  %v3996 = vmul.f32 %v3676, %v3847
  %v3997 = vmul.f32 %v3677, %v3851
  %v3998 = vmul.f32 %v3678, %v3855
  %v3999 = vmul.f32 %v3679, %v3859
  %v4000 = vmul.f32 %v3680, %v3863
  %v4001 = vmul.f32 %v3681, %v3867
  %v4002 = vmul.f32 %v3682, %v3871
  %v4003 = vmul.f32 %v3683, %v3875
  %v4004 = vmul.f32 %v3684, %v3879
  %v4005 = vmul.f32 %v3685, %v3883
  %v4006 = vmul.f32 %v3686, %v3887
  %v4007 = vmul.f32 %v3687, %v3891
  %v4008 = vmul.f32 %v3688, %v3895
  %v4009 = vmul.f32 %v3689, %v3899
  %v4010 = vmul.f32 %v3690, %v3903
  %v4011 = vmul.f32 %v3691, %v3907
  %v4012 = vmul.f32 %v3692, %v3911
  %v4013 = vmul.f32 %v3693, %v3915
  %v4014 = vmul.f32 %v3694, %v3919
  %v4015 = vmul.f32 %v3695, %v3923
  %v4016 = vmul.f32 %v3696, %v3927
  %v4017 = vmul.f32 %v3697, %v3931
  %v4018 = vmul.f32 %v3698, %v3935
  %v4019 = vmul.f32 %v3699, %v3939
  %v4020 = vmul.f32 %v3700, %v3943
  %v4021 = vmul.f32 %v3701, %v3947
  %v4022 = vmul.f32 %v3702, %v3951
  %v4023 = vmul.f32 %v3703, %v3955
  %v4024 = vmul.f32 %v3704, %v3959
  %s4025 = scalar_lea.vmem %s0, 48
  %v4026 = vld [vmem:[%s4025] sm:$0xff]
  %v4027 = vld [vmem:[%s4025 + $0x8] sm:$0xff]
  %v4028 = vld [vmem:[%s4025 + $0x18] sm:$0xff]
  %v4029 = vld [vmem:[%s4025 + $0x20] sm:$0xff]
  %v4030 = vld [vmem:[%s4025 + $0x30] sm:$0xff]
  %v4031 = vld [vmem:[%s4025 + $0x38] sm:$0xff]
  %v4032 = vld [vmem:[%s4025 + $0x48] sm:$0xff]
  %v4033 = vld [vmem:[%s4025 + $0x50] sm:$0xff]
  %v4034 = vld [vmem:[%s4025 + $0x60] sm:$0xff]
  %v4035 = vld [vmem:[%s4025 + $0x68] sm:$0xff]
  %v4036 = vld [vmem:[%s4025 + $0x78] sm:$0xff]
  %v4037 = vld [vmem:[%s4025 + $0x80] sm:$0xff]
  %v4038 = vld [vmem:[%s4025 + $0x90] sm:$0xff]
  %v4039 = vld [vmem:[%s4025 + $0x98] sm:$0xff]
  %v4040 = vld [vmem:[%s4025 + $0xa8] sm:$0xff]
  %v4041 = vld [vmem:[%s4025 + $0xb0] sm:$0xff]
  %v4042 = vld [vmem:[%s4025 + $0xc0] sm:$0xff]
  %v4043 = vld [vmem:[%s4025 + $0xc8] sm:$0xff]
  %v4044 = vld [vmem:[%s4025 + $0xd8] sm:$0xff]
  %v4045 = vld [vmem:[%s4025 + $0xe0] sm:$0xff]
  %v4046 = vld [vmem:[%s4025 + $0xf0] sm:$0xff]
  %v4047 = vld [vmem:[%s4025 + $0xf8] sm:$0xff]
  %v4048 = vld [vmem:[%s4025 + $0x108] sm:$0xff]
  %v4049 = vld [vmem:[%s4025 + $0x110] sm:$0xff]
  %v4050 = vld [vmem:[%s4025 + $0x120] sm:$0xff]
  %v4051 = vld [vmem:[%s4025 + $0x128] sm:$0xff]
  %v4052 = vld [vmem:[%s4025 + $0x138] sm:$0xff]
  %v4053 = vld [vmem:[%s4025 + $0x140] sm:$0xff]
  %v4054 = vld [vmem:[%s4025 + $0x150] sm:$0xff]
  %v4055 = vld [vmem:[%s4025 + $0x158] sm:$0xff]
  %v4056 = vld [vmem:[%s4025 + $0x168] sm:$0xff]
  %v4057 = vld [vmem:[%s4025 + $0x170] sm:$0xff]
  %v4058 = vld [vmem:[%s4025 + $0x1b0] sm:$0xff]
  %v4059 = vld [vmem:[%s4025 + $0x1b8] sm:$0xff]
  %v4060 = vld [vmem:[%s4025 + $0x1c8] sm:$0xff]
  %v4061 = vld [vmem:[%s4025 + $0x1d0] sm:$0xff]
  %v4062 = vld [vmem:[%s4025 + $0x1e0] sm:$0xff]
  %v4063 = vld [vmem:[%s4025 + $0x1e8] sm:$0xff]
  %v4064 = vld [vmem:[%s4025 + $0x1f8] sm:$0xff]
  %v4065 = vld [vmem:[%s4025 + $0x200] sm:$0xff]
  %v4066 = vld [vmem:[%s4025 + $0x210] sm:$0xff]
  %v4067 = vld [vmem:[%s4025 + $0x218] sm:$0xff]
  %v4068 = vld [vmem:[%s4025 + $0x228] sm:$0xff]
  %v4069 = vld [vmem:[%s4025 + $0x230] sm:$0xff]
  %v4070 = vld [vmem:[%s4025 + $0x240] sm:$0xff]
  %v4071 = vld [vmem:[%s4025 + $0x248] sm:$0xff]
  %v4072 = vld [vmem:[%s4025 + $0x258] sm:$0xff]
  %v4073 = vld [vmem:[%s4025 + $0x260] sm:$0xff]
  %v4074 = vld [vmem:[%s4025 + $0x270] sm:$0xff]
  %v4075 = vld [vmem:[%s4025 + $0x278] sm:$0xff]
  %v4076 = vld [vmem:[%s4025 + $0x288] sm:$0xff]
  %v4077 = vld [vmem:[%s4025 + $0x290] sm:$0xff]
  %v4078 = vld [vmem:[%s4025 + $0x2a0] sm:$0xff]
  %v4079 = vld [vmem:[%s4025 + $0x2a8] sm:$0xff]
  %v4080 = vld [vmem:[%s4025 + $0x2b8] sm:$0xff]
  %v4081 = vld [vmem:[%s4025 + $0x2c0] sm:$0xff]
  %v4082 = vld [vmem:[%s4025 + $0x2d0] sm:$0xff]
  %v4083 = vld [vmem:[%s4025 + $0x2d8] sm:$0xff]
  %v4084 = vld [vmem:[%s4025 + $0x2e8] sm:$0xff]
  %v4085 = vld [vmem:[%s4025 + $0x2f0] sm:$0xff]
  %v4086 = vld [vmem:[%s4025 + $0x300] sm:$0xff]
  %v4087 = vld [vmem:[%s4025 + $0x308] sm:$0xff]
  %v4088 = vld [vmem:[%s4025 + $0x318] sm:$0xff]
  %v4089 = vld [vmem:[%s4025 + $0x320] sm:$0xff]
  %4090 = vset.pattern.permute.xlu0 6
  %4091 = vperm.xlu0 %4090, %v775
  %v4092 = vpop.permute.xlu0 %4091
  %4094 = vset.pattern.permute.xlu0 6
  %4095 = vperm.xlu0 %4094, %v790
  %v4096 = vpop.permute.xlu0 %4095
  %4098 = vset.pattern.permute.xlu0 6
  %4099 = vperm.xlu0 %4098, %v805
  %v4100 = vpop.permute.xlu0 %4099
  %4102 = vset.pattern.permute.xlu0 6
  %4103 = vperm.xlu0 %4102, %v820
  %v4104 = vpop.permute.xlu0 %4103
  %4106 = vset.pattern.permute.xlu0 6
  %4107 = vperm.xlu0 %4106, %v835
  %v4108 = vpop.permute.xlu0 %4107
  %4110 = vset.pattern.permute.xlu0 6
  %4111 = vperm.xlu0 %4110, %v850
  %v4112 = vpop.permute.xlu0 %4111
  %4114 = vset.pattern.permute.xlu0 6
  %4115 = vperm.xlu0 %4114, %v865
  %v4116 = vpop.permute.xlu0 %4115
  %4118 = vset.pattern.permute.xlu0 6
  %4119 = vperm.xlu0 %4118, %v880
  %v4120 = vpop.permute.xlu0 %4119
  %4122 = vset.pattern.permute.xlu0 6
  %4123 = vperm.xlu0 %4122, %v895
  %v4124 = vpop.permute.xlu0 %4123
  %4126 = vset.pattern.permute.xlu0 6
  %4127 = vperm.xlu0 %4126, %v910
  %v4128 = vpop.permute.xlu0 %4127
  %4130 = vset.pattern.permute.xlu0 6
  %4131 = vperm.xlu0 %4130, %v925
  %v4132 = vpop.permute.xlu0 %4131
  %4134 = vset.pattern.permute.xlu0 6
  %4135 = vperm.xlu0 %4134, %v940
  %v4136 = vpop.permute.xlu0 %4135
  %4138 = vset.pattern.permute.xlu0 6
  %4139 = vperm.xlu0 %4138, %v955
  %v4140 = vpop.permute.xlu0 %4139
  %4142 = vset.pattern.permute.xlu0 6
  %4143 = vperm.xlu0 %4142, %v970
  %v4144 = vpop.permute.xlu0 %4143
  %4146 = vset.pattern.permute.xlu0 6
  %4147 = vperm.xlu0 %4146, %v985
  %v4148 = vpop.permute.xlu0 %4147
  %4150 = vset.pattern.permute.xlu0 6
  %4151 = vperm.xlu0 %4150, %v1000
  %v4152 = vpop.permute.xlu0 %4151
  %4154 = vset.pattern.permute.xlu0 6
  %4155 = vperm.xlu0 %4154, %v1015
  %v4156 = vpop.permute.xlu0 %4155
  %4158 = vset.pattern.permute.xlu0 6
  %4159 = vperm.xlu0 %4158, %v1030
  %v4160 = vpop.permute.xlu0 %4159
  %4162 = vset.pattern.permute.xlu0 6
  %4163 = vperm.xlu0 %4162, %v1045
  %v4164 = vpop.permute.xlu0 %4163
  %4166 = vset.pattern.permute.xlu0 6
  %4167 = vperm.xlu0 %4166, %v1060
  %v4168 = vpop.permute.xlu0 %4167
  %4170 = vset.pattern.permute.xlu0 6
  %4171 = vperm.xlu0 %4170, %v1075
  %v4172 = vpop.permute.xlu0 %4171
  %4174 = vset.pattern.permute.xlu0 6
  %4175 = vperm.xlu0 %4174, %v1090
  %v4176 = vpop.permute.xlu0 %4175
  %4178 = vset.pattern.permute.xlu0 6
  %4179 = vperm.xlu0 %4178, %v1105
  %v4180 = vpop.permute.xlu0 %4179
  %4182 = vset.pattern.permute.xlu0 6
  %4183 = vperm.xlu0 %4182, %v1120
  %v4184 = vpop.permute.xlu0 %4183
  %4186 = vset.pattern.permute.xlu0 6
  %4187 = vperm.xlu0 %4186, %v1135
  %v4188 = vpop.permute.xlu0 %4187
  %4190 = vset.pattern.permute.xlu0 6
  %4191 = vperm.xlu0 %4190, %v1150
  %v4192 = vpop.permute.xlu0 %4191
  %4194 = vset.pattern.permute.xlu0 6
  %4195 = vperm.xlu0 %4194, %v1165
  %v4196 = vpop.permute.xlu0 %4195
  %4198 = vset.pattern.permute.xlu0 6
  %4199 = vperm.xlu0 %4198, %v1180
  %v4200 = vpop.permute.xlu0 %4199
  %4202 = vset.pattern.permute.xlu0 6
  %4203 = vperm.xlu0 %4202, %v1195
  %v4204 = vpop.permute.xlu0 %4203
  %4206 = vset.pattern.permute.xlu0 6
  %4207 = vperm.xlu0 %4206, %v1210
  %v4208 = vpop.permute.xlu0 %4207
  %4210 = vset.pattern.permute.xlu0 6
  %4211 = vperm.xlu0 %4210, %v1225
  %v4212 = vpop.permute.xlu0 %4211
  %4214 = vset.pattern.permute.xlu0 6
  %4215 = vperm.xlu0 %4214, %v1240
  %v4216 = vpop.permute.xlu0 %4215
  %4218 = vset.pattern.permute.xlu0 6
  %4219 = vperm.xlu0 %4218, %v1255
  %v4220 = vpop.permute.xlu0 %4219
  %4222 = vset.pattern.permute.xlu0 6
  %4223 = vperm.xlu0 %4222, %v1270
  %v4224 = vpop.permute.xlu0 %4223
  %4226 = vset.pattern.permute.xlu0 6
  %4227 = vperm.xlu0 %4226, %v1285
  %v4228 = vpop.permute.xlu0 %4227
  %4230 = vset.pattern.permute.xlu0 6
  %4231 = vperm.xlu0 %4230, %v1300
  %v4232 = vpop.permute.xlu0 %4231
  %4234 = vset.pattern.permute.xlu0 6
  %4235 = vperm.xlu0 %4234, %v1315
  %v4236 = vpop.permute.xlu0 %4235
  %4238 = vset.pattern.permute.xlu0 6
  %4239 = vperm.xlu0 %4238, %v1330
  %v4240 = vpop.permute.xlu0 %4239
  %4242 = vset.pattern.permute.xlu0 6
  %4243 = vperm.xlu0 %4242, %v1345
  %v4244 = vpop.permute.xlu0 %4243
  %4246 = vset.pattern.permute.xlu0 6
  %4247 = vperm.xlu0 %4246, %v1360
  %v4248 = vpop.permute.xlu0 %4247
  %4250 = vset.pattern.permute.xlu0 6
  %4251 = vperm.xlu0 %4250, %v1375
  %v4252 = vpop.permute.xlu0 %4251
  %4254 = vset.pattern.permute.xlu0 6
  %4255 = vperm.xlu0 %4254, %v1390
  %v4256 = vpop.permute.xlu0 %4255
  %4258 = vset.pattern.permute.xlu0 6
  %4259 = vperm.xlu0 %4258, %v1405
  %v4260 = vpop.permute.xlu0 %4259
  %4262 = vset.pattern.permute.xlu0 6
  %4263 = vperm.xlu0 %4262, %v1420
  %v4264 = vpop.permute.xlu0 %4263
  %4266 = vset.pattern.permute.xlu0 6
  %4267 = vperm.xlu0 %4266, %v1435
  %v4268 = vpop.permute.xlu0 %4267
  %4270 = vset.pattern.permute.xlu0 6
  %4271 = vperm.xlu0 %4270, %v1450
  %v4272 = vpop.permute.xlu0 %4271
  %4274 = vset.pattern.permute.xlu0 6
  %4275 = vperm.xlu0 %4274, %v1465
  %v4276 = vpop.permute.xlu0 %4275
  %4278 = vset.pattern.permute.xlu0 6
  %4279 = vperm.xlu0 %4278, %v1480
  %v4280 = vpop.permute.xlu0 %4279
  %4282 = vset.pattern.permute.xlu0 6
  %4283 = vperm.xlu0 %4282, %v1495
  %v4284 = vpop.permute.xlu0 %4283
  %4286 = vset.pattern.permute.xlu0 6
  %4287 = vperm.xlu0 %4286, %v1510
  %v4288 = vpop.permute.xlu0 %4287
  %4290 = vset.pattern.permute.xlu0 6
  %4291 = vperm.xlu0 %4290, %v1525
  %v4292 = vpop.permute.xlu0 %4291
  %4294 = vset.pattern.permute.xlu0 6
  %4295 = vperm.xlu0 %4294, %v1540
  %v4296 = vpop.permute.xlu0 %4295
  %4298 = vset.pattern.permute.xlu0 6
  %4299 = vperm.xlu0 %4298, %v1555
  %v4300 = vpop.permute.xlu0 %4299
  %4302 = vset.pattern.permute.xlu0 6
  %4303 = vperm.xlu0 %4302, %v1570
  %v4304 = vpop.permute.xlu0 %4303
  %4306 = vset.pattern.permute.xlu0 6
  %4307 = vperm.xlu0 %4306, %v1585
  %v4308 = vpop.permute.xlu0 %4307
  %4310 = vset.pattern.permute.xlu0 6
  %4311 = vperm.xlu0 %4310, %v1600
  %v4312 = vpop.permute.xlu0 %4311
  %4314 = vset.pattern.permute.xlu0 6
  %4315 = vperm.xlu0 %4314, %v1615
  %v4316 = vpop.permute.xlu0 %4315
  %4318 = vset.pattern.permute.xlu0 6
  %4319 = vperm.xlu0 %4318, %v1630
  %v4320 = vpop.permute.xlu0 %4319
  %4322 = vset.pattern.permute.xlu0 6
  %4323 = vperm.xlu0 %4322, %v1645
  %v4324 = vpop.permute.xlu0 %4323
  %4326 = vset.pattern.permute.xlu0 6
  %4327 = vperm.xlu0 %4326, %v1660
  %v4328 = vpop.permute.xlu0 %4327
  %4330 = vset.pattern.permute.xlu0 6
  %4331 = vperm.xlu0 %4330, %v1675
  %v4332 = vpop.permute.xlu0 %4331
  %4334 = vset.pattern.permute.xlu0 6
  %4335 = vperm.xlu0 %4334, %v1690
  %v4336 = vpop.permute.xlu0 %4335
  %4338 = vset.pattern.permute.xlu0 6
  %4339 = vperm.xlu0 %4338, %v1705
  %v4340 = vpop.permute.xlu0 %4339
  %4342 = vset.pattern.permute.xlu0 6
  %4343 = vperm.xlu0 %4342, %v1720
  %v4344 = vpop.permute.xlu0 %4343
  %v4346 = vmul.f32 %v4026, %v4092
  %v4347 = vmul.f32 %v4027, %v4096
  %v4348 = vmul.f32 %v4028, %v4100
  %v4349 = vmul.f32 %v4029, %v4104
  %v4350 = vmul.f32 %v4030, %v4108
  %v4351 = vmul.f32 %v4031, %v4112
  %v4352 = vmul.f32 %v4032, %v4116
  %v4353 = vmul.f32 %v4033, %v4120
  %v4354 = vmul.f32 %v4034, %v4124
  %v4355 = vmul.f32 %v4035, %v4128
  %v4356 = vmul.f32 %v4036, %v4132
  %v4357 = vmul.f32 %v4037, %v4136
  %v4358 = vmul.f32 %v4038, %v4140
  %v4359 = vmul.f32 %v4039, %v4144
  %v4360 = vmul.f32 %v4040, %v4148
  %v4361 = vmul.f32 %v4041, %v4152
  %v4362 = vmul.f32 %v4042, %v4156
  %v4363 = vmul.f32 %v4043, %v4160
  %v4364 = vmul.f32 %v4044, %v4164
  %v4365 = vmul.f32 %v4045, %v4168
  %v4366 = vmul.f32 %v4046, %v4172
  %v4367 = vmul.f32 %v4047, %v4176
  %v4368 = vmul.f32 %v4048, %v4180
  %v4369 = vmul.f32 %v4049, %v4184
  %v4370 = vmul.f32 %v4050, %v4188
  %v4371 = vmul.f32 %v4051, %v4192
  %v4372 = vmul.f32 %v4052, %v4196
  %v4373 = vmul.f32 %v4053, %v4200
  %v4374 = vmul.f32 %v4054, %v4204
  %v4375 = vmul.f32 %v4055, %v4208
  %v4376 = vmul.f32 %v4056, %v4212
  %v4377 = vmul.f32 %v4057, %v4216
  %v4378 = vmul.f32 %v4058, %v4220
  %v4379 = vmul.f32 %v4059, %v4224
  %v4380 = vmul.f32 %v4060, %v4228
  %v4381 = vmul.f32 %v4061, %v4232
  %v4382 = vmul.f32 %v4062, %v4236
  %v4383 = vmul.f32 %v4063, %v4240
  %v4384 = vmul.f32 %v4064, %v4244
  %v4385 = vmul.f32 %v4065, %v4248
  %v4386 = vmul.f32 %v4066, %v4252
  %v4387 = vmul.f32 %v4067, %v4256
  %v4388 = vmul.f32 %v4068, %v4260
  %v4389 = vmul.f32 %v4069, %v4264
  %v4390 = vmul.f32 %v4070, %v4268
  %v4391 = vmul.f32 %v4071, %v4272
  %v4392 = vmul.f32 %v4072, %v4276
  %v4393 = vmul.f32 %v4073, %v4280
  %v4394 = vmul.f32 %v4074, %v4284
  %v4395 = vmul.f32 %v4075, %v4288
  %v4396 = vmul.f32 %v4076, %v4292
  %v4397 = vmul.f32 %v4077, %v4296
  %v4398 = vmul.f32 %v4078, %v4300
  %v4399 = vmul.f32 %v4079, %v4304
  %v4400 = vmul.f32 %v4080, %v4308
  %v4401 = vmul.f32 %v4081, %v4312
  %v4402 = vmul.f32 %v4082, %v4316
  %v4403 = vmul.f32 %v4083, %v4320
  %v4404 = vmul.f32 %v4084, %v4324
  %v4405 = vmul.f32 %v4085, %v4328
  %v4406 = vmul.f32 %v4086, %v4332
  %v4407 = vmul.f32 %v4087, %v4336
  %v4408 = vmul.f32 %v4088, %v4340
  %v4409 = vmul.f32 %v4089, %v4344
  %v4410 = vld [vmem:[%s4025 + $0x1] sm:$0xff]
  %v4411 = vld [vmem:[%s4025 + $0x9] sm:$0xff]
  %v4412 = vld [vmem:[%s4025 + $0x19] sm:$0xff]
  %v4413 = vld [vmem:[%s4025 + $0x21] sm:$0xff]
  %v4414 = vld [vmem:[%s4025 + $0x31] sm:$0xff]
  %v4415 = vld [vmem:[%s4025 + $0x39] sm:$0xff]
  %v4416 = vld [vmem:[%s4025 + $0x49] sm:$0xff]
  %v4417 = vld [vmem:[%s4025 + $0x51] sm:$0xff]
  %v4418 = vld [vmem:[%s4025 + $0x61] sm:$0xff]
  %v4419 = vld [vmem:[%s4025 + $0x69] sm:$0xff]
  %v4420 = vld [vmem:[%s4025 + $0x79] sm:$0xff]
  %v4421 = vld [vmem:[%s4025 + $0x81] sm:$0xff]
  %v4422 = vld [vmem:[%s4025 + $0x91] sm:$0xff]
  %v4423 = vld [vmem:[%s4025 + $0x99] sm:$0xff]
  %v4424 = vld [vmem:[%s4025 + $0xa9] sm:$0xff]
  %v4425 = vld [vmem:[%s4025 + $0xb1] sm:$0xff]
  %v4426 = vld [vmem:[%s4025 + $0xc1] sm:$0xff]
  %v4427 = vld [vmem:[%s4025 + $0xc9] sm:$0xff]
  %v4428 = vld [vmem:[%s4025 + $0xd9] sm:$0xff]
  %v4429 = vld [vmem:[%s4025 + $0xe1] sm:$0xff]
  %v4430 = vld [vmem:[%s4025 + $0xf1] sm:$0xff]
  %v4431 = vld [vmem:[%s4025 + $0xf9] sm:$0xff]
  %v4432 = vld [vmem:[%s4025 + $0x109] sm:$0xff]
  %v4433 = vld [vmem:[%s4025 + $0x111] sm:$0xff]
  %v4434 = vld [vmem:[%s4025 + $0x121] sm:$0xff]
  %v4435 = vld [vmem:[%s4025 + $0x129] sm:$0xff]
  %v4436 = vld [vmem:[%s4025 + $0x139] sm:$0xff]
  %v4437 = vld [vmem:[%s4025 + $0x141] sm:$0xff]
  %v4438 = vld [vmem:[%s4025 + $0x151] sm:$0xff]
  %v4439 = vld [vmem:[%s4025 + $0x159] sm:$0xff]
  %v4440 = vld [vmem:[%s4025 + $0x169] sm:$0xff]
  %v4441 = vld [vmem:[%s4025 + $0x171] sm:$0xff]
  %v4442 = vld [vmem:[%s4025 + $0x1b1] sm:$0xff]
  %v4443 = vld [vmem:[%s4025 + $0x1b9] sm:$0xff]
  %v4444 = vld [vmem:[%s4025 + $0x1c9] sm:$0xff]
  %v4445 = vld [vmem:[%s4025 + $0x1d1] sm:$0xff]
  %v4446 = vld [vmem:[%s4025 + $0x1e1] sm:$0xff]
  %v4447 = vld [vmem:[%s4025 + $0x1e9] sm:$0xff]
  %v4448 = vld [vmem:[%s4025 + $0x1f9] sm:$0xff]
  %v4449 = vld [vmem:[%s4025 + $0x201] sm:$0xff]
  %v4450 = vld [vmem:[%s4025 + $0x211] sm:$0xff]
  %v4451 = vld [vmem:[%s4025 + $0x219] sm:$0xff]
  %v4452 = vld [vmem:[%s4025 + $0x229] sm:$0xff]
  %v4453 = vld [vmem:[%s4025 + $0x231] sm:$0xff]
  %v4454 = vld [vmem:[%s4025 + $0x241] sm:$0xff]
  %v4455 = vld [vmem:[%s4025 + $0x249] sm:$0xff]
  %v4456 = vld [vmem:[%s4025 + $0x259] sm:$0xff]
  %v4457 = vld [vmem:[%s4025 + $0x261] sm:$0xff]
  %v4458 = vld [vmem:[%s4025 + $0x271] sm:$0xff]
  %v4459 = vld [vmem:[%s4025 + $0x279] sm:$0xff]
  %v4460 = vld [vmem:[%s4025 + $0x289] sm:$0xff]
  %v4461 = vld [vmem:[%s4025 + $0x291] sm:$0xff]
  %v4462 = vld [vmem:[%s4025 + $0x2a1] sm:$0xff]
  %v4463 = vld [vmem:[%s4025 + $0x2a9] sm:$0xff]
  %v4464 = vld [vmem:[%s4025 + $0x2b9] sm:$0xff]
  %v4465 = vld [vmem:[%s4025 + $0x2c1] sm:$0xff]
  %v4466 = vld [vmem:[%s4025 + $0x2d1] sm:$0xff]
  %v4467 = vld [vmem:[%s4025 + $0x2d9] sm:$0xff]
  %v4468 = vld [vmem:[%s4025 + $0x2e9] sm:$0xff]
  %v4469 = vld [vmem:[%s4025 + $0x2f1] sm:$0xff]
  %v4470 = vld [vmem:[%s4025 + $0x301] sm:$0xff]
  %v4471 = vld [vmem:[%s4025 + $0x309] sm:$0xff]
  %v4472 = vld [vmem:[%s4025 + $0x319] sm:$0xff]
  %v4473 = vld [vmem:[%s4025 + $0x321] sm:$0xff]
  %4474 = vset.pattern.permute.xlu0 7
  %4475 = vperm.xlu0 %4474, %v775
  %v4476 = vpop.permute.xlu0 %4475
  %4478 = vset.pattern.permute.xlu0 7
  %4479 = vperm.xlu0 %4478, %v790
  %v4480 = vpop.permute.xlu0 %4479
  %4482 = vset.pattern.permute.xlu0 7
  %4483 = vperm.xlu0 %4482, %v805
  %v4484 = vpop.permute.xlu0 %4483
  %4486 = vset.pattern.permute.xlu0 7
  %4487 = vperm.xlu0 %4486, %v820
  %v4488 = vpop.permute.xlu0 %4487
  %4490 = vset.pattern.permute.xlu0 7
  %4491 = vperm.xlu0 %4490, %v835
  %v4492 = vpop.permute.xlu0 %4491
  %4494 = vset.pattern.permute.xlu0 7
  %4495 = vperm.xlu0 %4494, %v850
  %v4496 = vpop.permute.xlu0 %4495
  %4498 = vset.pattern.permute.xlu0 7
  %4499 = vperm.xlu0 %4498, %v865
  %v4500 = vpop.permute.xlu0 %4499
  %4502 = vset.pattern.permute.xlu0 7
  %4503 = vperm.xlu0 %4502, %v880
  %v4504 = vpop.permute.xlu0 %4503
  %4506 = vset.pattern.permute.xlu0 7
  %4507 = vperm.xlu0 %4506, %v895
  %v4508 = vpop.permute.xlu0 %4507
  %4510 = vset.pattern.permute.xlu0 7
  %4511 = vperm.xlu0 %4510, %v910
  %v4512 = vpop.permute.xlu0 %4511
  %4514 = vset.pattern.permute.xlu0 7
  %4515 = vperm.xlu0 %4514, %v925
  %v4516 = vpop.permute.xlu0 %4515
  %4518 = vset.pattern.permute.xlu0 7
  %4519 = vperm.xlu0 %4518, %v940
  %v4520 = vpop.permute.xlu0 %4519
  %4522 = vset.pattern.permute.xlu0 7
  %4523 = vperm.xlu0 %4522, %v955
  %v4524 = vpop.permute.xlu0 %4523
  %4526 = vset.pattern.permute.xlu0 7
  %4527 = vperm.xlu0 %4526, %v970
  %v4528 = vpop.permute.xlu0 %4527
  %4530 = vset.pattern.permute.xlu0 7
  %4531 = vperm.xlu0 %4530, %v985
  %v4532 = vpop.permute.xlu0 %4531
  %4534 = vset.pattern.permute.xlu0 7
  %4535 = vperm.xlu0 %4534, %v1000
  %v4536 = vpop.permute.xlu0 %4535
  %4538 = vset.pattern.permute.xlu0 7
  %4539 = vperm.xlu0 %4538, %v1015
  %v4540 = vpop.permute.xlu0 %4539
  %4542 = vset.pattern.permute.xlu0 7
  %4543 = vperm.xlu0 %4542, %v1030
  %v4544 = vpop.permute.xlu0 %4543
  %4546 = vset.pattern.permute.xlu0 7
  %4547 = vperm.xlu0 %4546, %v1045
  %v4548 = vpop.permute.xlu0 %4547
  %4550 = vset.pattern.permute.xlu0 7
  %4551 = vperm.xlu0 %4550, %v1060
  %v4552 = vpop.permute.xlu0 %4551
  %4554 = vset.pattern.permute.xlu0 7
  %4555 = vperm.xlu0 %4554, %v1075
  %v4556 = vpop.permute.xlu0 %4555
  %4558 = vset.pattern.permute.xlu0 7
  %4559 = vperm.xlu0 %4558, %v1090
  %v4560 = vpop.permute.xlu0 %4559
  %4562 = vset.pattern.permute.xlu0 7
  %4563 = vperm.xlu0 %4562, %v1105
  %v4564 = vpop.permute.xlu0 %4563
  %4566 = vset.pattern.permute.xlu0 7
  %4567 = vperm.xlu0 %4566, %v1120
  %v4568 = vpop.permute.xlu0 %4567
  %4570 = vset.pattern.permute.xlu0 7
  %4571 = vperm.xlu0 %4570, %v1135
  %v4572 = vpop.permute.xlu0 %4571
  %4574 = vset.pattern.permute.xlu0 7
  %4575 = vperm.xlu0 %4574, %v1150
  %v4576 = vpop.permute.xlu0 %4575
  %4578 = vset.pattern.permute.xlu0 7
  %4579 = vperm.xlu0 %4578, %v1165
  %v4580 = vpop.permute.xlu0 %4579
  %4582 = vset.pattern.permute.xlu0 7
  %4583 = vperm.xlu0 %4582, %v1180
  %v4584 = vpop.permute.xlu0 %4583
  %4586 = vset.pattern.permute.xlu0 7
  %4587 = vperm.xlu0 %4586, %v1195
  %v4588 = vpop.permute.xlu0 %4587
  %4590 = vset.pattern.permute.xlu0 7
  %4591 = vperm.xlu0 %4590, %v1210
  %v4592 = vpop.permute.xlu0 %4591
  %4594 = vset.pattern.permute.xlu0 7
  %4595 = vperm.xlu0 %4594, %v1225
  %v4596 = vpop.permute.xlu0 %4595
  %4598 = vset.pattern.permute.xlu0 7
  %4599 = vperm.xlu0 %4598, %v1240
  %v4600 = vpop.permute.xlu0 %4599
  %4602 = vset.pattern.permute.xlu0 7
  %4603 = vperm.xlu0 %4602, %v1255
  %v4604 = vpop.permute.xlu0 %4603
  %4606 = vset.pattern.permute.xlu0 7
  %4607 = vperm.xlu0 %4606, %v1270
  %v4608 = vpop.permute.xlu0 %4607
  %4610 = vset.pattern.permute.xlu0 7
  %4611 = vperm.xlu0 %4610, %v1285
  %v4612 = vpop.permute.xlu0 %4611
  %4614 = vset.pattern.permute.xlu0 7
  %4615 = vperm.xlu0 %4614, %v1300
  %v4616 = vpop.permute.xlu0 %4615
  %4618 = vset.pattern.permute.xlu0 7
  %4619 = vperm.xlu0 %4618, %v1315
  %v4620 = vpop.permute.xlu0 %4619
  %4622 = vset.pattern.permute.xlu0 7
  %4623 = vperm.xlu0 %4622, %v1330
  %v4624 = vpop.permute.xlu0 %4623
  %4626 = vset.pattern.permute.xlu0 7
  %4627 = vperm.xlu0 %4626, %v1345
  %v4628 = vpop.permute.xlu0 %4627
  %4630 = vset.pattern.permute.xlu0 7
  %4631 = vperm.xlu0 %4630, %v1360
  %v4632 = vpop.permute.xlu0 %4631
  %4634 = vset.pattern.permute.xlu0 7
  %4635 = vperm.xlu0 %4634, %v1375
  %v4636 = vpop.permute.xlu0 %4635
  %4638 = vset.pattern.permute.xlu0 7
  %4639 = vperm.xlu0 %4638, %v1390
  %v4640 = vpop.permute.xlu0 %4639
  %4642 = vset.pattern.permute.xlu0 7
  %4643 = vperm.xlu0 %4642, %v1405
  %v4644 = vpop.permute.xlu0 %4643
  %4646 = vset.pattern.permute.xlu0 7
  %4647 = vperm.xlu0 %4646, %v1420
  %v4648 = vpop.permute.xlu0 %4647
  %4650 = vset.pattern.permute.xlu0 7
  %4651 = vperm.xlu0 %4650, %v1435
  %v4652 = vpop.permute.xlu0 %4651
  %4654 = vset.pattern.permute.xlu0 7
  %4655 = vperm.xlu0 %4654, %v1450
  %v4656 = vpop.permute.xlu0 %4655
  %4658 = vset.pattern.permute.xlu0 7
  %4659 = vperm.xlu0 %4658, %v1465
  %v4660 = vpop.permute.xlu0 %4659
  %4662 = vset.pattern.permute.xlu0 7
  %4663 = vperm.xlu0 %4662, %v1480
  %v4664 = vpop.permute.xlu0 %4663
  %4666 = vset.pattern.permute.xlu0 7
  %4667 = vperm.xlu0 %4666, %v1495
  %v4668 = vpop.permute.xlu0 %4667
  %4670 = vset.pattern.permute.xlu0 7
  %4671 = vperm.xlu0 %4670, %v1510
  %v4672 = vpop.permute.xlu0 %4671
  %4674 = vset.pattern.permute.xlu0 7
  %4675 = vperm.xlu0 %4674, %v1525
  %v4676 = vpop.permute.xlu0 %4675
  %4678 = vset.pattern.permute.xlu0 7
  %4679 = vperm.xlu0 %4678, %v1540
  %v4680 = vpop.permute.xlu0 %4679
  %4682 = vset.pattern.permute.xlu0 7
  %4683 = vperm.xlu0 %4682, %v1555
  %v4684 = vpop.permute.xlu0 %4683
  %4686 = vset.pattern.permute.xlu0 7
  %4687 = vperm.xlu0 %4686, %v1570
  %v4688 = vpop.permute.xlu0 %4687
  %4690 = vset.pattern.permute.xlu0 7
  %4691 = vperm.xlu0 %4690, %v1585
  %v4692 = vpop.permute.xlu0 %4691
  %4694 = vset.pattern.permute.xlu0 7
  %4695 = vperm.xlu0 %4694, %v1600
  %v4696 = vpop.permute.xlu0 %4695
  %4698 = vset.pattern.permute.xlu0 7
  %4699 = vperm.xlu0 %4698, %v1615
  %v4700 = vpop.permute.xlu0 %4699
  %4702 = vset.pattern.permute.xlu0 7
  %4703 = vperm.xlu0 %4702, %v1630
  %v4704 = vpop.permute.xlu0 %4703
  %4706 = vset.pattern.permute.xlu0 7
  %4707 = vperm.xlu0 %4706, %v1645
  %v4708 = vpop.permute.xlu0 %4707
  %4710 = vset.pattern.permute.xlu0 7
  %4711 = vperm.xlu0 %4710, %v1660
  %v4712 = vpop.permute.xlu0 %4711
  %4714 = vset.pattern.permute.xlu0 7
  %4715 = vperm.xlu0 %4714, %v1675
  %v4716 = vpop.permute.xlu0 %4715
  %4718 = vset.pattern.permute.xlu0 7
  %4719 = vperm.xlu0 %4718, %v1690
  %v4720 = vpop.permute.xlu0 %4719
  %4722 = vset.pattern.permute.xlu0 7
  %4723 = vperm.xlu0 %4722, %v1705
  %v4724 = vpop.permute.xlu0 %4723
  %4726 = vset.pattern.permute.xlu0 7
  %4727 = vperm.xlu0 %4726, %v1720
  %v4728 = vpop.permute.xlu0 %4727
  %v4730 = vmul.f32 %v4410, %v4476
  %v4731 = vmul.f32 %v4411, %v4480
  %v4732 = vmul.f32 %v4412, %v4484
  %v4733 = vmul.f32 %v4413, %v4488
  %v4734 = vmul.f32 %v4414, %v4492
  %v4735 = vmul.f32 %v4415, %v4496
  %v4736 = vmul.f32 %v4416, %v4500
  %v4737 = vmul.f32 %v4417, %v4504
  %v4738 = vmul.f32 %v4418, %v4508
  %v4739 = vmul.f32 %v4419, %v4512
  %v4740 = vmul.f32 %v4420, %v4516
  %v4741 = vmul.f32 %v4421, %v4520
  %v4742 = vmul.f32 %v4422, %v4524
  %v4743 = vmul.f32 %v4423, %v4528
  %v4744 = vmul.f32 %v4424, %v4532
  %v4745 = vmul.f32 %v4425, %v4536
  %v4746 = vmul.f32 %v4426, %v4540
  %v4747 = vmul.f32 %v4427, %v4544
  %v4748 = vmul.f32 %v4428, %v4548
  %v4749 = vmul.f32 %v4429, %v4552
  %v4750 = vmul.f32 %v4430, %v4556
  %v4751 = vmul.f32 %v4431, %v4560
  %v4752 = vmul.f32 %v4432, %v4564
  %v4753 = vmul.f32 %v4433, %v4568
  %v4754 = vmul.f32 %v4434, %v4572
  %v4755 = vmul.f32 %v4435, %v4576
  %v4756 = vmul.f32 %v4436, %v4580
  %v4757 = vmul.f32 %v4437, %v4584
  %v4758 = vmul.f32 %v4438, %v4588
  %v4759 = vmul.f32 %v4439, %v4592
  %v4760 = vmul.f32 %v4440, %v4596
  %v4761 = vmul.f32 %v4441, %v4600
  %v4762 = vmul.f32 %v4442, %v4604
  %v4763 = vmul.f32 %v4443, %v4608
  %v4764 = vmul.f32 %v4444, %v4612
  %v4765 = vmul.f32 %v4445, %v4616
  %v4766 = vmul.f32 %v4446, %v4620
  %v4767 = vmul.f32 %v4447, %v4624
  %v4768 = vmul.f32 %v4448, %v4628
  %v4769 = vmul.f32 %v4449, %v4632
  %v4770 = vmul.f32 %v4450, %v4636
  %v4771 = vmul.f32 %v4451, %v4640
  %v4772 = vmul.f32 %v4452, %v4644
  %v4773 = vmul.f32 %v4453, %v4648
  %v4774 = vmul.f32 %v4454, %v4652
  %v4775 = vmul.f32 %v4455, %v4656
  %v4776 = vmul.f32 %v4456, %v4660
  %v4777 = vmul.f32 %v4457, %v4664
  %v4778 = vmul.f32 %v4458, %v4668
  %v4779 = vmul.f32 %v4459, %v4672
  %v4780 = vmul.f32 %v4460, %v4676
  %v4781 = vmul.f32 %v4461, %v4680
  %v4782 = vmul.f32 %v4462, %v4684
  %v4783 = vmul.f32 %v4463, %v4688
  %v4784 = vmul.f32 %v4464, %v4692
  %v4785 = vmul.f32 %v4465, %v4696
  %v4786 = vmul.f32 %v4466, %v4700
  %v4787 = vmul.f32 %v4467, %v4704
  %v4788 = vmul.f32 %v4468, %v4708
  %v4789 = vmul.f32 %v4469, %v4712
  %v4790 = vmul.f32 %v4470, %v4716
  %v4791 = vmul.f32 %v4471, %v4720
  %v4792 = vmul.f32 %v4472, %v4724
  %v4793 = vmul.f32 %v4473, %v4728
  %v4794 = vld [vmem:[%s4025 + $0x2] sm:$0xff]
  %v4795 = vld [vmem:[%s4025 + $0xa] sm:$0xff]
  %v4796 = vld [vmem:[%s4025 + $0x1a] sm:$0xff]
  %v4797 = vld [vmem:[%s4025 + $0x22] sm:$0xff]
  %v4798 = vld [vmem:[%s4025 + $0x32] sm:$0xff]
  %v4799 = vld [vmem:[%s4025 + $0x3a] sm:$0xff]
  %v4800 = vld [vmem:[%s4025 + $0x4a] sm:$0xff]
  %v4801 = vld [vmem:[%s4025 + $0x52] sm:$0xff]
  %v4802 = vld [vmem:[%s4025 + $0x62] sm:$0xff]
  %v4803 = vld [vmem:[%s4025 + $0x6a] sm:$0xff]
  %v4804 = vld [vmem:[%s4025 + $0x7a] sm:$0xff]
  %v4805 = vld [vmem:[%s4025 + $0x82] sm:$0xff]
  %v4806 = vld [vmem:[%s4025 + $0x92] sm:$0xff]
  %v4807 = vld [vmem:[%s4025 + $0x9a] sm:$0xff]
  %v4808 = vld [vmem:[%s4025 + $0xaa] sm:$0xff]
  %v4809 = vld [vmem:[%s4025 + $0xb2] sm:$0xff]
  %v4810 = vld [vmem:[%s4025 + $0xc2] sm:$0xff]
  %v4811 = vld [vmem:[%s4025 + $0xca] sm:$0xff]
  %v4812 = vld [vmem:[%s4025 + $0xda] sm:$0xff]
  %v4813 = vld [vmem:[%s4025 + $0xe2] sm:$0xff]
  %v4814 = vld [vmem:[%s4025 + $0xf2] sm:$0xff]
  %v4815 = vld [vmem:[%s4025 + $0xfa] sm:$0xff]
  %v4816 = vld [vmem:[%s4025 + $0x10a] sm:$0xff]
  %v4817 = vld [vmem:[%s4025 + $0x112] sm:$0xff]
  %v4818 = vld [vmem:[%s4025 + $0x122] sm:$0xff]
  %v4819 = vld [vmem:[%s4025 + $0x12a] sm:$0xff]
  %v4820 = vld [vmem:[%s4025 + $0x13a] sm:$0xff]
  %v4821 = vld [vmem:[%s4025 + $0x142] sm:$0xff]
  %v4822 = vld [vmem:[%s4025 + $0x152] sm:$0xff]
  %v4823 = vld [vmem:[%s4025 + $0x15a] sm:$0xff]
  %v4824 = vld [vmem:[%s4025 + $0x16a] sm:$0xff]
  %v4825 = vld [vmem:[%s4025 + $0x172] sm:$0xff]
  %v4826 = vld [vmem:[%s4025 + $0x1b2] sm:$0xff]
  %v4827 = vld [vmem:[%s4025 + $0x1ba] sm:$0xff]
  %v4828 = vld [vmem:[%s4025 + $0x1ca] sm:$0xff]
  %v4829 = vld [vmem:[%s4025 + $0x1d2] sm:$0xff]
  %v4830 = vld [vmem:[%s4025 + $0x1e2] sm:$0xff]
  %v4831 = vld [vmem:[%s4025 + $0x1ea] sm:$0xff]
  %v4832 = vld [vmem:[%s4025 + $0x1fa] sm:$0xff]
  %v4833 = vld [vmem:[%s4025 + $0x202] sm:$0xff]
  %v4834 = vld [vmem:[%s4025 + $0x212] sm:$0xff]
  %v4835 = vld [vmem:[%s4025 + $0x21a] sm:$0xff]
  %v4836 = vld [vmem:[%s4025 + $0x22a] sm:$0xff]
  %v4837 = vld [vmem:[%s4025 + $0x232] sm:$0xff]
  %v4838 = vld [vmem:[%s4025 + $0x242] sm:$0xff]
  %v4839 = vld [vmem:[%s4025 + $0x24a] sm:$0xff]
  %v4840 = vld [vmem:[%s4025 + $0x25a] sm:$0xff]
  %v4841 = vld [vmem:[%s4025 + $0x262] sm:$0xff]
  %v4842 = vld [vmem:[%s4025 + $0x272] sm:$0xff]
  %v4843 = vld [vmem:[%s4025 + $0x27a] sm:$0xff]
  %v4844 = vld [vmem:[%s4025 + $0x28a] sm:$0xff]
  %v4845 = vld [vmem:[%s4025 + $0x292] sm:$0xff]
  %v4846 = vld [vmem:[%s4025 + $0x2a2] sm:$0xff]
  %v4847 = vld [vmem:[%s4025 + $0x2aa] sm:$0xff]
  %v4848 = vld [vmem:[%s4025 + $0x2ba] sm:$0xff]
  %v4849 = vld [vmem:[%s4025 + $0x2c2] sm:$0xff]
  %v4850 = vld [vmem:[%s4025 + $0x2d2] sm:$0xff]
  %v4851 = vld [vmem:[%s4025 + $0x2da] sm:$0xff]
  %v4852 = vld [vmem:[%s4025 + $0x2ea] sm:$0xff]
  %v4853 = vld [vmem:[%s4025 + $0x2f2] sm:$0xff]
  %v4854 = vld [vmem:[%s4025 + $0x302] sm:$0xff]
  %v4855 = vld [vmem:[%s4025 + $0x30a] sm:$0xff]
  %v4856 = vld [vmem:[%s4025 + $0x31a] sm:$0xff]
  %v4857 = vld [vmem:[%s4025 + $0x322] sm:$0xff]
  %4858 = vset.pattern.permute.xlu0 8
  %4859 = vperm.xlu0 %4858, %v775
  %v4860 = vpop.permute.xlu0 %4859
  %4862 = vset.pattern.permute.xlu0 8
  %4863 = vperm.xlu0 %4862, %v790
  %v4864 = vpop.permute.xlu0 %4863
  %4866 = vset.pattern.permute.xlu0 8
  %4867 = vperm.xlu0 %4866, %v805
  %v4868 = vpop.permute.xlu0 %4867
  %4870 = vset.pattern.permute.xlu0 8
  %4871 = vperm.xlu0 %4870, %v820
  %v4872 = vpop.permute.xlu0 %4871
  %4874 = vset.pattern.permute.xlu0 8
  %4875 = vperm.xlu0 %4874, %v835
  %v4876 = vpop.permute.xlu0 %4875
  %4878 = vset.pattern.permute.xlu0 8
  %4879 = vperm.xlu0 %4878, %v850
  %v4880 = vpop.permute.xlu0 %4879
  %4882 = vset.pattern.permute.xlu0 8
  %4883 = vperm.xlu0 %4882, %v865
  %v4884 = vpop.permute.xlu0 %4883
  %4886 = vset.pattern.permute.xlu0 8
  %4887 = vperm.xlu0 %4886, %v880
  %v4888 = vpop.permute.xlu0 %4887
  %4890 = vset.pattern.permute.xlu0 8
  %4891 = vperm.xlu0 %4890, %v895
  %v4892 = vpop.permute.xlu0 %4891
  %4894 = vset.pattern.permute.xlu0 8
  %4895 = vperm.xlu0 %4894, %v910
  %v4896 = vpop.permute.xlu0 %4895
  %4898 = vset.pattern.permute.xlu0 8
  %4899 = vperm.xlu0 %4898, %v925
  %v4900 = vpop.permute.xlu0 %4899
  %4902 = vset.pattern.permute.xlu0 8
  %4903 = vperm.xlu0 %4902, %v940
  %v4904 = vpop.permute.xlu0 %4903
  %4906 = vset.pattern.permute.xlu0 8
  %4907 = vperm.xlu0 %4906, %v955
  %v4908 = vpop.permute.xlu0 %4907
  %4910 = vset.pattern.permute.xlu0 8
  %4911 = vperm.xlu0 %4910, %v970
  %v4912 = vpop.permute.xlu0 %4911
  %4914 = vset.pattern.permute.xlu0 8
  %4915 = vperm.xlu0 %4914, %v985
  %v4916 = vpop.permute.xlu0 %4915
  %4918 = vset.pattern.permute.xlu0 8
  %4919 = vperm.xlu0 %4918, %v1000
  %v4920 = vpop.permute.xlu0 %4919
  %4922 = vset.pattern.permute.xlu0 8
  %4923 = vperm.xlu0 %4922, %v1015
  %v4924 = vpop.permute.xlu0 %4923
  %4926 = vset.pattern.permute.xlu0 8
  %4927 = vperm.xlu0 %4926, %v1030
  %v4928 = vpop.permute.xlu0 %4927
  %4930 = vset.pattern.permute.xlu0 8
  %4931 = vperm.xlu0 %4930, %v1045
  %v4932 = vpop.permute.xlu0 %4931
  %4934 = vset.pattern.permute.xlu0 8
  %4935 = vperm.xlu0 %4934, %v1060
  %v4936 = vpop.permute.xlu0 %4935
  %4938 = vset.pattern.permute.xlu0 8
  %4939 = vperm.xlu0 %4938, %v1075
  %v4940 = vpop.permute.xlu0 %4939
  %4942 = vset.pattern.permute.xlu0 8
  %4943 = vperm.xlu0 %4942, %v1090
  %v4944 = vpop.permute.xlu0 %4943
  %4946 = vset.pattern.permute.xlu0 8
  %4947 = vperm.xlu0 %4946, %v1105
  %v4948 = vpop.permute.xlu0 %4947
  %4950 = vset.pattern.permute.xlu0 8
  %4951 = vperm.xlu0 %4950, %v1120
  %v4952 = vpop.permute.xlu0 %4951
  %4954 = vset.pattern.permute.xlu0 8
  %4955 = vperm.xlu0 %4954, %v1135
  %v4956 = vpop.permute.xlu0 %4955
  %4958 = vset.pattern.permute.xlu0 8
  %4959 = vperm.xlu0 %4958, %v1150
  %v4960 = vpop.permute.xlu0 %4959
  %4962 = vset.pattern.permute.xlu0 8
  %4963 = vperm.xlu0 %4962, %v1165
  %v4964 = vpop.permute.xlu0 %4963
  %4966 = vset.pattern.permute.xlu0 8
  %4967 = vperm.xlu0 %4966, %v1180
  %v4968 = vpop.permute.xlu0 %4967
  %4970 = vset.pattern.permute.xlu0 8
  %4971 = vperm.xlu0 %4970, %v1195
  %v4972 = vpop.permute.xlu0 %4971
  %4974 = vset.pattern.permute.xlu0 8
  %4975 = vperm.xlu0 %4974, %v1210
  %v4976 = vpop.permute.xlu0 %4975
  %4978 = vset.pattern.permute.xlu0 8
  %4979 = vperm.xlu0 %4978, %v1225
  %v4980 = vpop.permute.xlu0 %4979
  %4982 = vset.pattern.permute.xlu0 8
  %4983 = vperm.xlu0 %4982, %v1240
  %v4984 = vpop.permute.xlu0 %4983
  %4986 = vset.pattern.permute.xlu0 8
  %4987 = vperm.xlu0 %4986, %v1255
  %v4988 = vpop.permute.xlu0 %4987
  %4990 = vset.pattern.permute.xlu0 8
  %4991 = vperm.xlu0 %4990, %v1270
  %v4992 = vpop.permute.xlu0 %4991
  %4994 = vset.pattern.permute.xlu0 8
  %4995 = vperm.xlu0 %4994, %v1285
  %v4996 = vpop.permute.xlu0 %4995
  %4998 = vset.pattern.permute.xlu0 8
  %4999 = vperm.xlu0 %4998, %v1300
  %v5000 = vpop.permute.xlu0 %4999
  %5002 = vset.pattern.permute.xlu0 8
  %5003 = vperm.xlu0 %5002, %v1315
  %v5004 = vpop.permute.xlu0 %5003
  %5006 = vset.pattern.permute.xlu0 8
  %5007 = vperm.xlu0 %5006, %v1330
  %v5008 = vpop.permute.xlu0 %5007
  %5010 = vset.pattern.permute.xlu0 8
  %5011 = vperm.xlu0 %5010, %v1345
  %v5012 = vpop.permute.xlu0 %5011
  %5014 = vset.pattern.permute.xlu0 8
  %5015 = vperm.xlu0 %5014, %v1360
  %v5016 = vpop.permute.xlu0 %5015
  %5018 = vset.pattern.permute.xlu0 8
  %5019 = vperm.xlu0 %5018, %v1375
  %v5020 = vpop.permute.xlu0 %5019
  %5022 = vset.pattern.permute.xlu0 8
  %5023 = vperm.xlu0 %5022, %v1390
  %v5024 = vpop.permute.xlu0 %5023
  %5026 = vset.pattern.permute.xlu0 8
  %5027 = vperm.xlu0 %5026, %v1405
  %v5028 = vpop.permute.xlu0 %5027
  %5030 = vset.pattern.permute.xlu0 8
  %5031 = vperm.xlu0 %5030, %v1420
  %v5032 = vpop.permute.xlu0 %5031
  %5034 = vset.pattern.permute.xlu0 8
  %5035 = vperm.xlu0 %5034, %v1435
  %v5036 = vpop.permute.xlu0 %5035
  %5038 = vset.pattern.permute.xlu0 8
  %5039 = vperm.xlu0 %5038, %v1450
  %v5040 = vpop.permute.xlu0 %5039
  %5042 = vset.pattern.permute.xlu0 8
  %5043 = vperm.xlu0 %5042, %v1465
  %v5044 = vpop.permute.xlu0 %5043
  %5046 = vset.pattern.permute.xlu0 8
  %5047 = vperm.xlu0 %5046, %v1480
  %v5048 = vpop.permute.xlu0 %5047
  %5050 = vset.pattern.permute.xlu0 8
  %5051 = vperm.xlu0 %5050, %v1495
  %v5052 = vpop.permute.xlu0 %5051
  %5054 = vset.pattern.permute.xlu0 8
  %5055 = vperm.xlu0 %5054, %v1510
  %v5056 = vpop.permute.xlu0 %5055
  %5058 = vset.pattern.permute.xlu0 8
  %5059 = vperm.xlu0 %5058, %v1525
  %v5060 = vpop.permute.xlu0 %5059
  %5062 = vset.pattern.permute.xlu0 8
  %5063 = vperm.xlu0 %5062, %v1540
  %v5064 = vpop.permute.xlu0 %5063
  %5066 = vset.pattern.permute.xlu0 8
  %5067 = vperm.xlu0 %5066, %v1555
  %v5068 = vpop.permute.xlu0 %5067
  %5070 = vset.pattern.permute.xlu0 8
  %5071 = vperm.xlu0 %5070, %v1570
  %v5072 = vpop.permute.xlu0 %5071
  %5074 = vset.pattern.permute.xlu0 8
  %5075 = vperm.xlu0 %5074, %v1585
  %v5076 = vpop.permute.xlu0 %5075
  %5078 = vset.pattern.permute.xlu0 8
  %5079 = vperm.xlu0 %5078, %v1600
  %v5080 = vpop.permute.xlu0 %5079
  %5082 = vset.pattern.permute.xlu0 8
  %5083 = vperm.xlu0 %5082, %v1615
  %v5084 = vpop.permute.xlu0 %5083
  %5086 = vset.pattern.permute.xlu0 8
  %5087 = vperm.xlu0 %5086, %v1630
  %v5088 = vpop.permute.xlu0 %5087
  %5090 = vset.pattern.permute.xlu0 8
  %5091 = vperm.xlu0 %5090, %v1645
  %v5092 = vpop.permute.xlu0 %5091
  %5094 = vset.pattern.permute.xlu0 8
  %5095 = vperm.xlu0 %5094, %v1660
  %v5096 = vpop.permute.xlu0 %5095
  %5098 = vset.pattern.permute.xlu0 8
  %5099 = vperm.xlu0 %5098, %v1675
  %v5100 = vpop.permute.xlu0 %5099
  %5102 = vset.pattern.permute.xlu0 8
  %5103 = vperm.xlu0 %5102, %v1690
  %v5104 = vpop.permute.xlu0 %5103
  %5106 = vset.pattern.permute.xlu0 8
  %5107 = vperm.xlu0 %5106, %v1705
  %v5108 = vpop.permute.xlu0 %5107
  %5110 = vset.pattern.permute.xlu0 8
  %5111 = vperm.xlu0 %5110, %v1720
  %v5112 = vpop.permute.xlu0 %5111
  %v5114 = vmul.f32 %v4794, %v4860
  %v5115 = vmul.f32 %v4795, %v4864
  %v5116 = vmul.f32 %v4796, %v4868
  %v5117 = vmul.f32 %v4797, %v4872
  %v5118 = vmul.f32 %v4798, %v4876
  %v5119 = vmul.f32 %v4799, %v4880
  %v5120 = vmul.f32 %v4800, %v4884
  %v5121 = vmul.f32 %v4801, %v4888
  %v5122 = vmul.f32 %v4802, %v4892
  %v5123 = vmul.f32 %v4803, %v4896
  %v5124 = vmul.f32 %v4804, %v4900
  %v5125 = vmul.f32 %v4805, %v4904
  %v5126 = vmul.f32 %v4806, %v4908
  %v5127 = vmul.f32 %v4807, %v4912
  %v5128 = vmul.f32 %v4808, %v4916
  %v5129 = vmul.f32 %v4809, %v4920
  %v5130 = vmul.f32 %v4810, %v4924
  %v5131 = vmul.f32 %v4811, %v4928
  %v5132 = vmul.f32 %v4812, %v4932
  %v5133 = vmul.f32 %v4813, %v4936
  %v5134 = vmul.f32 %v4814, %v4940
  %v5135 = vmul.f32 %v4815, %v4944
  %v5136 = vmul.f32 %v4816, %v4948
  %v5137 = vmul.f32 %v4817, %v4952
  %v5138 = vmul.f32 %v4818, %v4956
  %v5139 = vmul.f32 %v4819, %v4960
  %v5140 = vmul.f32 %v4820, %v4964
  %v5141 = vmul.f32 %v4821, %v4968
  %v5142 = vmul.f32 %v4822, %v4972
  %v5143 = vmul.f32 %v4823, %v4976
  %v5144 = vmul.f32 %v4824, %v4980
  %v5145 = vmul.f32 %v4825, %v4984
  %v5146 = vmul.f32 %v4826, %v4988
  %v5147 = vmul.f32 %v4827, %v4992
  %v5148 = vmul.f32 %v4828, %v4996
  %v5149 = vmul.f32 %v4829, %v5000
  %v5150 = vmul.f32 %v4830, %v5004
  %v5151 = vmul.f32 %v4831, %v5008
  %v5152 = vmul.f32 %v4832, %v5012
  %v5153 = vmul.f32 %v4833, %v5016
  %v5154 = vmul.f32 %v4834, %v5020
  %v5155 = vmul.f32 %v4835, %v5024
  %v5156 = vmul.f32 %v4836, %v5028
  %v5157 = vmul.f32 %v4837, %v5032
  %v5158 = vmul.f32 %v4838, %v5036
  %v5159 = vmul.f32 %v4839, %v5040
  %v5160 = vmul.f32 %v4840, %v5044
  %v5161 = vmul.f32 %v4841, %v5048
  %v5162 = vmul.f32 %v4842, %v5052
  %v5163 = vmul.f32 %v4843, %v5056
  %v5164 = vmul.f32 %v4844, %v5060
  %v5165 = vmul.f32 %v4845, %v5064
  %v5166 = vmul.f32 %v4846, %v5068
  %v5167 = vmul.f32 %v4847, %v5072
  %v5168 = vmul.f32 %v4848, %v5076
  %v5169 = vmul.f32 %v4849, %v5080
  %v5170 = vmul.f32 %v4850, %v5084
  %v5171 = vmul.f32 %v4851, %v5088
  %v5172 = vmul.f32 %v4852, %v5092
  %v5173 = vmul.f32 %v4853, %v5096
  %v5174 = vmul.f32 %v4854, %v5100
  %v5175 = vmul.f32 %v4855, %v5104
  %v5176 = vmul.f32 %v4856, %v5108
  %v5177 = vmul.f32 %v4857, %v5112
  %5242 = vrot.lane.b32.xlu0 %v2489, 16
  %v5243 = vpop.permute.xlu0 %5242
  %5244 = vrot.lane.b32.xlu0 %v2490, 16
  %v5245 = vpop.permute.xlu0 %5244
  %5246 = vrot.lane.b32.xlu0 %v2491, 16
  %v5247 = vpop.permute.xlu0 %5246
  %5248 = vrot.lane.b32.xlu0 %v2492, 16
  %v5249 = vpop.permute.xlu0 %5248
  %5250 = vrot.lane.b32.xlu0 %v2493, 16
  %v5251 = vpop.permute.xlu0 %5250
  %5252 = vrot.lane.b32.xlu0 %v2494, 16
  %v5253 = vpop.permute.xlu0 %5252
  %5254 = vrot.lane.b32.xlu0 %v2495, 16
  %v5255 = vpop.permute.xlu0 %5254
  %5256 = vrot.lane.b32.xlu0 %v2496, 16
  %v5257 = vpop.permute.xlu0 %5256
  %5258 = vrot.lane.b32.xlu0 %v2497, 16
  %v5259 = vpop.permute.xlu0 %5258
  %5260 = vrot.lane.b32.xlu0 %v2498, 16
  %v5261 = vpop.permute.xlu0 %5260
  %5262 = vrot.lane.b32.xlu0 %v2499, 16
  %v5263 = vpop.permute.xlu0 %5262
  %5264 = vrot.lane.b32.xlu0 %v2500, 16
  %v5265 = vpop.permute.xlu0 %5264
  %5266 = vrot.lane.b32.xlu0 %v2501, 16
  %v5267 = vpop.permute.xlu0 %5266
  %5268 = vrot.lane.b32.xlu0 %v2502, 16
  %v5269 = vpop.permute.xlu0 %5268
  %5270 = vrot.lane.b32.xlu0 %v2503, 16
  %v5271 = vpop.permute.xlu0 %5270
  %5272 = vrot.lane.b32.xlu0 %v2504, 16
  %v5273 = vpop.permute.xlu0 %5272
  %5274 = vrot.lane.b32.xlu0 %v2505, 16
  %v5275 = vpop.permute.xlu0 %5274
  %5276 = vrot.lane.b32.xlu0 %v2506, 16
  %v5277 = vpop.permute.xlu0 %5276
  %5278 = vrot.lane.b32.xlu0 %v2507, 16
  %v5279 = vpop.permute.xlu0 %5278
  %5280 = vrot.lane.b32.xlu0 %v2508, 16
  %v5281 = vpop.permute.xlu0 %5280
  %5282 = vrot.lane.b32.xlu0 %v2509, 16
  %v5283 = vpop.permute.xlu0 %5282
  %5284 = vrot.lane.b32.xlu0 %v2510, 16
  %v5285 = vpop.permute.xlu0 %5284
  %5286 = vrot.lane.b32.xlu0 %v2511, 16
  %v5287 = vpop.permute.xlu0 %5286
  %5288 = vrot.lane.b32.xlu0 %v2512, 16
  %v5289 = vpop.permute.xlu0 %5288
  %5290 = vrot.lane.b32.xlu0 %v2513, 16
  %v5291 = vpop.permute.xlu0 %5290
  %5292 = vrot.lane.b32.xlu0 %v2514, 16
  %v5293 = vpop.permute.xlu0 %5292
  %5294 = vrot.lane.b32.xlu0 %v2515, 16
  %v5295 = vpop.permute.xlu0 %5294
  %5296 = vrot.lane.b32.xlu0 %v2516, 16
  %v5297 = vpop.permute.xlu0 %5296
  %5298 = vrot.lane.b32.xlu0 %v2517, 16
  %v5299 = vpop.permute.xlu0 %5298
  %5300 = vrot.lane.b32.xlu0 %v2518, 16
  %v5301 = vpop.permute.xlu0 %5300
  %5302 = vrot.lane.b32.xlu0 %v2519, 16
  %v5303 = vpop.permute.xlu0 %5302
  %5304 = vrot.lane.b32.xlu0 %v2520, 16
  %v5305 = vpop.permute.xlu0 %5304
  %5306 = vrot.lane.b32.xlu0 %v2521, 16
  %v5307 = vpop.permute.xlu0 %5306
  %5308 = vrot.lane.b32.xlu0 %v2522, 16
  %v5309 = vpop.permute.xlu0 %5308
  %5310 = vrot.lane.b32.xlu0 %v2523, 16
  %v5311 = vpop.permute.xlu0 %5310
  %5312 = vrot.lane.b32.xlu0 %v2524, 16
  %v5313 = vpop.permute.xlu0 %5312
  %5314 = vrot.lane.b32.xlu0 %v2525, 16
  %v5315 = vpop.permute.xlu0 %5314
  %5316 = vrot.lane.b32.xlu0 %v2526, 16
  %v5317 = vpop.permute.xlu0 %5316
  %5318 = vrot.lane.b32.xlu0 %v2527, 16
  %v5319 = vpop.permute.xlu0 %5318
  %5320 = vrot.lane.b32.xlu0 %v2528, 16
  %v5321 = vpop.permute.xlu0 %5320
  %5322 = vrot.lane.b32.xlu0 %v2529, 16
  %v5323 = vpop.permute.xlu0 %5322
  %5324 = vrot.lane.b32.xlu0 %v2530, 16
  %v5325 = vpop.permute.xlu0 %5324
  %5326 = vrot.lane.b32.xlu0 %v2531, 16
  %v5327 = vpop.permute.xlu0 %5326
  %5328 = vrot.lane.b32.xlu0 %v2532, 16
  %v5329 = vpop.permute.xlu0 %5328
  %5330 = vrot.lane.b32.xlu0 %v2533, 16
  %v5331 = vpop.permute.xlu0 %5330
  %5332 = vrot.lane.b32.xlu0 %v2534, 16
  %v5333 = vpop.permute.xlu0 %5332
  %5334 = vrot.lane.b32.xlu0 %v2535, 16
  %v5335 = vpop.permute.xlu0 %5334
  %5336 = vrot.lane.b32.xlu0 %v2536, 16
  %v5337 = vpop.permute.xlu0 %5336
  %5338 = vrot.lane.b32.xlu0 %v2537, 16
  %v5339 = vpop.permute.xlu0 %5338
  %5340 = vrot.lane.b32.xlu0 %v2538, 16
  %v5341 = vpop.permute.xlu0 %5340
  %5342 = vrot.lane.b32.xlu0 %v2539, 16
  %v5343 = vpop.permute.xlu0 %5342
  %5344 = vrot.lane.b32.xlu0 %v2540, 16
  %v5345 = vpop.permute.xlu0 %5344
  %5346 = vrot.lane.b32.xlu0 %v2541, 16
  %v5347 = vpop.permute.xlu0 %5346
  %5348 = vrot.lane.b32.xlu0 %v2542, 16
  %v5349 = vpop.permute.xlu0 %5348
  %5350 = vrot.lane.b32.xlu0 %v2543, 16
  %v5351 = vpop.permute.xlu0 %5350
  %5352 = vrot.lane.b32.xlu0 %v2544, 16
  %v5353 = vpop.permute.xlu0 %5352
  %5354 = vrot.lane.b32.xlu0 %v2545, 16
  %v5355 = vpop.permute.xlu0 %5354
  %5356 = vrot.lane.b32.xlu0 %v2546, 16
  %v5357 = vpop.permute.xlu0 %5356
  %5358 = vrot.lane.b32.xlu0 %v2547, 16
  %v5359 = vpop.permute.xlu0 %5358
  %5360 = vrot.lane.b32.xlu0 %v2548, 16
  %v5361 = vpop.permute.xlu0 %5360
  %5362 = vrot.lane.b32.xlu0 %v2549, 16
  %v5363 = vpop.permute.xlu0 %5362
  %5364 = vrot.lane.b32.xlu0 %v2550, 16
  %v5365 = vpop.permute.xlu0 %5364
  %5366 = vrot.lane.b32.xlu0 %v2551, 16
  %v5367 = vpop.permute.xlu0 %5366
  %5368 = vrot.lane.b32.xlu0 %v2552, 16
  %v5369 = vpop.permute.xlu0 %5368
  %5498 = vrot.lane.b32.xlu0 %v2873, 32
  %v5499 = vpop.permute.xlu0 %5498
  %5500 = vrot.lane.b32.xlu0 %v2874, 32
  %v5501 = vpop.permute.xlu0 %5500
  %5502 = vrot.lane.b32.xlu0 %v2875, 32
  %v5503 = vpop.permute.xlu0 %5502
  %5504 = vrot.lane.b32.xlu0 %v2876, 32
  %v5505 = vpop.permute.xlu0 %5504
  %5506 = vrot.lane.b32.xlu0 %v2877, 32
  %v5507 = vpop.permute.xlu0 %5506
  %5508 = vrot.lane.b32.xlu0 %v2878, 32
  %v5509 = vpop.permute.xlu0 %5508
  %5510 = vrot.lane.b32.xlu0 %v2879, 32
  %v5511 = vpop.permute.xlu0 %5510
  %5512 = vrot.lane.b32.xlu0 %v2880, 32
  %v5513 = vpop.permute.xlu0 %5512
  %5514 = vrot.lane.b32.xlu0 %v2881, 32
  %v5515 = vpop.permute.xlu0 %5514
  %5516 = vrot.lane.b32.xlu0 %v2882, 32
  %v5517 = vpop.permute.xlu0 %5516
  %5518 = vrot.lane.b32.xlu0 %v2883, 32
  %v5519 = vpop.permute.xlu0 %5518
  %5520 = vrot.lane.b32.xlu0 %v2884, 32
  %v5521 = vpop.permute.xlu0 %5520
  %5522 = vrot.lane.b32.xlu0 %v2885, 32
  %v5523 = vpop.permute.xlu0 %5522
  %5524 = vrot.lane.b32.xlu0 %v2886, 32
  %v5525 = vpop.permute.xlu0 %5524
  %5526 = vrot.lane.b32.xlu0 %v2887, 32
  %v5527 = vpop.permute.xlu0 %5526
  %5528 = vrot.lane.b32.xlu0 %v2888, 32
  %v5529 = vpop.permute.xlu0 %5528
  %5530 = vrot.lane.b32.xlu0 %v2889, 32
  %v5531 = vpop.permute.xlu0 %5530
  %5532 = vrot.lane.b32.xlu0 %v2890, 32
  %v5533 = vpop.permute.xlu0 %5532
  %5534 = vrot.lane.b32.xlu0 %v2891, 32
  %v5535 = vpop.permute.xlu0 %5534
  %5536 = vrot.lane.b32.xlu0 %v2892, 32
  %v5537 = vpop.permute.xlu0 %5536
  %5538 = vrot.lane.b32.xlu0 %v2893, 32
  %v5539 = vpop.permute.xlu0 %5538
  %5540 = vrot.lane.b32.xlu0 %v2894, 32
  %v5541 = vpop.permute.xlu0 %5540
  %5542 = vrot.lane.b32.xlu0 %v2895, 32
  %v5543 = vpop.permute.xlu0 %5542
  %5544 = vrot.lane.b32.xlu0 %v2896, 32
  %v5545 = vpop.permute.xlu0 %5544
  %5546 = vrot.lane.b32.xlu0 %v2897, 32
  %v5547 = vpop.permute.xlu0 %5546
  %5548 = vrot.lane.b32.xlu0 %v2898, 32
  %v5549 = vpop.permute.xlu0 %5548
  %5550 = vrot.lane.b32.xlu0 %v2899, 32
  %v5551 = vpop.permute.xlu0 %5550
  %5552 = vrot.lane.b32.xlu0 %v2900, 32
  %v5553 = vpop.permute.xlu0 %5552
  %5554 = vrot.lane.b32.xlu0 %v2901, 32
  %v5555 = vpop.permute.xlu0 %5554
  %5556 = vrot.lane.b32.xlu0 %v2902, 32
  %v5557 = vpop.permute.xlu0 %5556
  %5558 = vrot.lane.b32.xlu0 %v2903, 32
  %v5559 = vpop.permute.xlu0 %5558
  %5560 = vrot.lane.b32.xlu0 %v2904, 32
  %v5561 = vpop.permute.xlu0 %5560
  %5562 = vrot.lane.b32.xlu0 %v2905, 32
  %v5563 = vpop.permute.xlu0 %5562
  %5564 = vrot.lane.b32.xlu0 %v2906, 32
  %v5565 = vpop.permute.xlu0 %5564
  %5566 = vrot.lane.b32.xlu0 %v2907, 32
  %v5567 = vpop.permute.xlu0 %5566
  %5568 = vrot.lane.b32.xlu0 %v2908, 32
  %v5569 = vpop.permute.xlu0 %5568
  %5570 = vrot.lane.b32.xlu0 %v2909, 32
  %v5571 = vpop.permute.xlu0 %5570
  %5572 = vrot.lane.b32.xlu0 %v2910, 32
  %v5573 = vpop.permute.xlu0 %5572
  %5574 = vrot.lane.b32.xlu0 %v2911, 32
  %v5575 = vpop.permute.xlu0 %5574
  %5576 = vrot.lane.b32.xlu0 %v2912, 32
  %v5577 = vpop.permute.xlu0 %5576
  %5578 = vrot.lane.b32.xlu0 %v2913, 32
  %v5579 = vpop.permute.xlu0 %5578
  %5580 = vrot.lane.b32.xlu0 %v2914, 32
  %v5581 = vpop.permute.xlu0 %5580
  %5582 = vrot.lane.b32.xlu0 %v2915, 32
  %v5583 = vpop.permute.xlu0 %5582
  %5584 = vrot.lane.b32.xlu0 %v2916, 32
  %v5585 = vpop.permute.xlu0 %5584
  %5586 = vrot.lane.b32.xlu0 %v2917, 32
  %v5587 = vpop.permute.xlu0 %5586
  %5588 = vrot.lane.b32.xlu0 %v2918, 32
  %v5589 = vpop.permute.xlu0 %5588
  %5590 = vrot.lane.b32.xlu0 %v2919, 32
  %v5591 = vpop.permute.xlu0 %5590
  %5592 = vrot.lane.b32.xlu0 %v2920, 32
  %v5593 = vpop.permute.xlu0 %5592
  %5594 = vrot.lane.b32.xlu0 %v2921, 32
  %v5595 = vpop.permute.xlu0 %5594
  %5596 = vrot.lane.b32.xlu0 %v2922, 32
  %v5597 = vpop.permute.xlu0 %5596
  %5598 = vrot.lane.b32.xlu0 %v2923, 32
  %v5599 = vpop.permute.xlu0 %5598
  %5600 = vrot.lane.b32.xlu0 %v2924, 32
  %v5601 = vpop.permute.xlu0 %5600
  %5602 = vrot.lane.b32.xlu0 %v2925, 32
  %v5603 = vpop.permute.xlu0 %5602
  %5604 = vrot.lane.b32.xlu0 %v2926, 32
  %v5605 = vpop.permute.xlu0 %5604
  %5606 = vrot.lane.b32.xlu0 %v2927, 32
  %v5607 = vpop.permute.xlu0 %5606
  %5608 = vrot.lane.b32.xlu0 %v2928, 32
  %v5609 = vpop.permute.xlu0 %5608
  %5610 = vrot.lane.b32.xlu0 %v2929, 32
  %v5611 = vpop.permute.xlu0 %5610
  %5612 = vrot.lane.b32.xlu0 %v2930, 32
  %v5613 = vpop.permute.xlu0 %5612
  %5614 = vrot.lane.b32.xlu0 %v2931, 32
  %v5615 = vpop.permute.xlu0 %5614
  %5616 = vrot.lane.b32.xlu0 %v2932, 32
  %v5617 = vpop.permute.xlu0 %5616
  %5618 = vrot.lane.b32.xlu0 %v2933, 32
  %v5619 = vpop.permute.xlu0 %5618
  %5620 = vrot.lane.b32.xlu0 %v2934, 32
  %v5621 = vpop.permute.xlu0 %5620
  %5622 = vrot.lane.b32.xlu0 %v2935, 32
  %v5623 = vpop.permute.xlu0 %5622
  %5624 = vrot.lane.b32.xlu0 %v2936, 32
  %v5625 = vpop.permute.xlu0 %5624
  %5754 = vrot.lane.b32.xlu0 %v3257, 48
  %v5755 = vpop.permute.xlu0 %5754
  %5756 = vrot.lane.b32.xlu0 %v3258, 48
  %v5757 = vpop.permute.xlu0 %5756
  %5758 = vrot.lane.b32.xlu0 %v3259, 48
  %v5759 = vpop.permute.xlu0 %5758
  %5760 = vrot.lane.b32.xlu0 %v3260, 48
  %v5761 = vpop.permute.xlu0 %5760
  %5762 = vrot.lane.b32.xlu0 %v3261, 48
  %v5763 = vpop.permute.xlu0 %5762
  %5764 = vrot.lane.b32.xlu0 %v3262, 48
  %v5765 = vpop.permute.xlu0 %5764
  %5766 = vrot.lane.b32.xlu0 %v3263, 48
  %v5767 = vpop.permute.xlu0 %5766
  %5768 = vrot.lane.b32.xlu0 %v3264, 48
  %v5769 = vpop.permute.xlu0 %5768
  %5770 = vrot.lane.b32.xlu0 %v3265, 48
  %v5771 = vpop.permute.xlu0 %5770
  %5772 = vrot.lane.b32.xlu0 %v3266, 48
  %v5773 = vpop.permute.xlu0 %5772
  %5774 = vrot.lane.b32.xlu0 %v3267, 48
  %v5775 = vpop.permute.xlu0 %5774
  %5776 = vrot.lane.b32.xlu0 %v3268, 48
  %v5777 = vpop.permute.xlu0 %5776
  %5778 = vrot.lane.b32.xlu0 %v3269, 48
  %v5779 = vpop.permute.xlu0 %5778
  %5780 = vrot.lane.b32.xlu0 %v3270, 48
  %v5781 = vpop.permute.xlu0 %5780
  %5782 = vrot.lane.b32.xlu0 %v3271, 48
  %v5783 = vpop.permute.xlu0 %5782
  %5784 = vrot.lane.b32.xlu0 %v3272, 48
  %v5785 = vpop.permute.xlu0 %5784
  %5786 = vrot.lane.b32.xlu0 %v3273, 48
  %v5787 = vpop.permute.xlu0 %5786
  %5788 = vrot.lane.b32.xlu0 %v3274, 48
  %v5789 = vpop.permute.xlu0 %5788
  %5790 = vrot.lane.b32.xlu0 %v3275, 48
  %v5791 = vpop.permute.xlu0 %5790
  %5792 = vrot.lane.b32.xlu0 %v3276, 48
  %v5793 = vpop.permute.xlu0 %5792
  %5794 = vrot.lane.b32.xlu0 %v3277, 48
  %v5795 = vpop.permute.xlu0 %5794
  %5796 = vrot.lane.b32.xlu0 %v3278, 48
  %v5797 = vpop.permute.xlu0 %5796
  %5798 = vrot.lane.b32.xlu0 %v3279, 48
  %v5799 = vpop.permute.xlu0 %5798
  %5800 = vrot.lane.b32.xlu0 %v3280, 48
  %v5801 = vpop.permute.xlu0 %5800
  %5802 = vrot.lane.b32.xlu0 %v3281, 48
  %v5803 = vpop.permute.xlu0 %5802
  %5804 = vrot.lane.b32.xlu0 %v3282, 48
  %v5805 = vpop.permute.xlu0 %5804
  %5806 = vrot.lane.b32.xlu0 %v3283, 48
  %v5807 = vpop.permute.xlu0 %5806
  %5808 = vrot.lane.b32.xlu0 %v3284, 48
  %v5809 = vpop.permute.xlu0 %5808
  %5810 = vrot.lane.b32.xlu0 %v3285, 48
  %v5811 = vpop.permute.xlu0 %5810
  %5812 = vrot.lane.b32.xlu0 %v3286, 48
  %v5813 = vpop.permute.xlu0 %5812
  %5814 = vrot.lane.b32.xlu0 %v3287, 48
  %v5815 = vpop.permute.xlu0 %5814
  %5816 = vrot.lane.b32.xlu0 %v3288, 48
  %v5817 = vpop.permute.xlu0 %5816
  %5818 = vrot.lane.b32.xlu0 %v3289, 48
  %v5819 = vpop.permute.xlu0 %5818
  %5820 = vrot.lane.b32.xlu0 %v3290, 48
  %v5821 = vpop.permute.xlu0 %5820
  %5822 = vrot.lane.b32.xlu0 %v3291, 48
  %v5823 = vpop.permute.xlu0 %5822
  %5824 = vrot.lane.b32.xlu0 %v3292, 48
  %v5825 = vpop.permute.xlu0 %5824
  %5826 = vrot.lane.b32.xlu0 %v3293, 48
  %v5827 = vpop.permute.xlu0 %5826
  %5828 = vrot.lane.b32.xlu0 %v3294, 48
  %v5829 = vpop.permute.xlu0 %5828
  %5830 = vrot.lane.b32.xlu0 %v3295, 48
  %v5831 = vpop.permute.xlu0 %5830
  %5832 = vrot.lane.b32.xlu0 %v3296, 48
  %v5833 = vpop.permute.xlu0 %5832
  %5834 = vrot.lane.b32.xlu0 %v3297, 48
  %v5835 = vpop.permute.xlu0 %5834
  %5836 = vrot.lane.b32.xlu0 %v3298, 48
  %v5837 = vpop.permute.xlu0 %5836
  %5838 = vrot.lane.b32.xlu0 %v3299, 48
  %v5839 = vpop.permute.xlu0 %5838
  %5840 = vrot.lane.b32.xlu0 %v3300, 48
  %v5841 = vpop.permute.xlu0 %5840
  %5842 = vrot.lane.b32.xlu0 %v3301, 48
  %v5843 = vpop.permute.xlu0 %5842
  %5844 = vrot.lane.b32.xlu0 %v3302, 48
  %v5845 = vpop.permute.xlu0 %5844
  %5846 = vrot.lane.b32.xlu0 %v3303, 48
  %v5847 = vpop.permute.xlu0 %5846
  %5848 = vrot.lane.b32.xlu0 %v3304, 48
  %v5849 = vpop.permute.xlu0 %5848
  %5850 = vrot.lane.b32.xlu0 %v3305, 48
  %v5851 = vpop.permute.xlu0 %5850
  %5852 = vrot.lane.b32.xlu0 %v3306, 48
  %v5853 = vpop.permute.xlu0 %5852
  %5854 = vrot.lane.b32.xlu0 %v3307, 48
  %v5855 = vpop.permute.xlu0 %5854
  %5856 = vrot.lane.b32.xlu0 %v3308, 48
  %v5857 = vpop.permute.xlu0 %5856
  %5858 = vrot.lane.b32.xlu0 %v3309, 48
  %v5859 = vpop.permute.xlu0 %5858
  %5860 = vrot.lane.b32.xlu0 %v3310, 48
  %v5861 = vpop.permute.xlu0 %5860
  %5862 = vrot.lane.b32.xlu0 %v3311, 48
  %v5863 = vpop.permute.xlu0 %5862
  %5864 = vrot.lane.b32.xlu0 %v3312, 48
  %v5865 = vpop.permute.xlu0 %5864
  %5866 = vrot.lane.b32.xlu0 %v3313, 48
  %v5867 = vpop.permute.xlu0 %5866
  %5868 = vrot.lane.b32.xlu0 %v3314, 48
  %v5869 = vpop.permute.xlu0 %5868
  %5870 = vrot.lane.b32.xlu0 %v3315, 48
  %v5871 = vpop.permute.xlu0 %5870
  %5872 = vrot.lane.b32.xlu0 %v3316, 48
  %v5873 = vpop.permute.xlu0 %5872
  %5874 = vrot.lane.b32.xlu0 %v3317, 48
  %v5875 = vpop.permute.xlu0 %5874
  %5876 = vrot.lane.b32.xlu0 %v3318, 48
  %v5877 = vpop.permute.xlu0 %5876
  %5878 = vrot.lane.b32.xlu0 %v3319, 48
  %v5879 = vpop.permute.xlu0 %5878
  %5880 = vrot.lane.b32.xlu0 %v3320, 48
  %v5881 = vpop.permute.xlu0 %5880
  %6010 = vrot.lane.b32.xlu0 %v3577, 64
  %v6011 = vpop.permute.xlu0 %6010
  %6012 = vrot.lane.b32.xlu0 %v3578, 64
  %v6013 = vpop.permute.xlu0 %6012
  %6014 = vrot.lane.b32.xlu0 %v3579, 64
  %v6015 = vpop.permute.xlu0 %6014
  %6016 = vrot.lane.b32.xlu0 %v3580, 64
  %v6017 = vpop.permute.xlu0 %6016
  %6018 = vrot.lane.b32.xlu0 %v3581, 64
  %v6019 = vpop.permute.xlu0 %6018
  %6020 = vrot.lane.b32.xlu0 %v3582, 64
  %v6021 = vpop.permute.xlu0 %6020
  %6022 = vrot.lane.b32.xlu0 %v3583, 64
  %v6023 = vpop.permute.xlu0 %6022
  %6024 = vrot.lane.b32.xlu0 %v3584, 64
  %v6025 = vpop.permute.xlu0 %6024
  %6026 = vrot.lane.b32.xlu0 %v3585, 64
  %v6027 = vpop.permute.xlu0 %6026
  %6028 = vrot.lane.b32.xlu0 %v3586, 64
  %v6029 = vpop.permute.xlu0 %6028
  %6030 = vrot.lane.b32.xlu0 %v3587, 64
  %v6031 = vpop.permute.xlu0 %6030
  %6032 = vrot.lane.b32.xlu0 %v3588, 64
  %v6033 = vpop.permute.xlu0 %6032
  %6034 = vrot.lane.b32.xlu0 %v3589, 64
  %v6035 = vpop.permute.xlu0 %6034
  %6036 = vrot.lane.b32.xlu0 %v3590, 64
  %v6037 = vpop.permute.xlu0 %6036
  %6038 = vrot.lane.b32.xlu0 %v3591, 64
  %v6039 = vpop.permute.xlu0 %6038
  %6040 = vrot.lane.b32.xlu0 %v3592, 64
  %v6041 = vpop.permute.xlu0 %6040
  %6042 = vrot.lane.b32.xlu0 %v3593, 64
  %v6043 = vpop.permute.xlu0 %6042
  %6044 = vrot.lane.b32.xlu0 %v3594, 64
  %v6045 = vpop.permute.xlu0 %6044
  %6046 = vrot.lane.b32.xlu0 %v3595, 64
  %v6047 = vpop.permute.xlu0 %6046
  %6048 = vrot.lane.b32.xlu0 %v3596, 64
  %v6049 = vpop.permute.xlu0 %6048
  %6050 = vrot.lane.b32.xlu0 %v3597, 64
  %v6051 = vpop.permute.xlu0 %6050
  %6052 = vrot.lane.b32.xlu0 %v3598, 64
  %v6053 = vpop.permute.xlu0 %6052
  %6054 = vrot.lane.b32.xlu0 %v3599, 64
  %v6055 = vpop.permute.xlu0 %6054
  %6056 = vrot.lane.b32.xlu0 %v3600, 64
  %v6057 = vpop.permute.xlu0 %6056
  %6058 = vrot.lane.b32.xlu0 %v3601, 64
  %v6059 = vpop.permute.xlu0 %6058
  %6060 = vrot.lane.b32.xlu0 %v3602, 64
  %v6061 = vpop.permute.xlu0 %6060
  %6062 = vrot.lane.b32.xlu0 %v3603, 64
  %v6063 = vpop.permute.xlu0 %6062
  %6064 = vrot.lane.b32.xlu0 %v3604, 64
  %v6065 = vpop.permute.xlu0 %6064
  %6066 = vrot.lane.b32.xlu0 %v3605, 64
  %v6067 = vpop.permute.xlu0 %6066
  %6068 = vrot.lane.b32.xlu0 %v3606, 64
  %v6069 = vpop.permute.xlu0 %6068
  %6070 = vrot.lane.b32.xlu0 %v3607, 64
  %v6071 = vpop.permute.xlu0 %6070
  %6072 = vrot.lane.b32.xlu0 %v3608, 64
  %v6073 = vpop.permute.xlu0 %6072
  %6074 = vrot.lane.b32.xlu0 %v3609, 64
  %v6075 = vpop.permute.xlu0 %6074
  %6076 = vrot.lane.b32.xlu0 %v3610, 64
  %v6077 = vpop.permute.xlu0 %6076
  %6078 = vrot.lane.b32.xlu0 %v3611, 64
  %v6079 = vpop.permute.xlu0 %6078
  %6080 = vrot.lane.b32.xlu0 %v3612, 64
  %v6081 = vpop.permute.xlu0 %6080
  %6082 = vrot.lane.b32.xlu0 %v3613, 64
  %v6083 = vpop.permute.xlu0 %6082
  %6084 = vrot.lane.b32.xlu0 %v3614, 64
  %v6085 = vpop.permute.xlu0 %6084
  %6086 = vrot.lane.b32.xlu0 %v3615, 64
  %v6087 = vpop.permute.xlu0 %6086
  %6088 = vrot.lane.b32.xlu0 %v3616, 64
  %v6089 = vpop.permute.xlu0 %6088
  %6090 = vrot.lane.b32.xlu0 %v3617, 64
  %v6091 = vpop.permute.xlu0 %6090
  %6092 = vrot.lane.b32.xlu0 %v3618, 64
  %v6093 = vpop.permute.xlu0 %6092
  %6094 = vrot.lane.b32.xlu0 %v3619, 64
  %v6095 = vpop.permute.xlu0 %6094
  %6096 = vrot.lane.b32.xlu0 %v3620, 64
  %v6097 = vpop.permute.xlu0 %6096
  %6098 = vrot.lane.b32.xlu0 %v3621, 64
  %v6099 = vpop.permute.xlu0 %6098
  %6100 = vrot.lane.b32.xlu0 %v3622, 64
  %v6101 = vpop.permute.xlu0 %6100
  %6102 = vrot.lane.b32.xlu0 %v3623, 64
  %v6103 = vpop.permute.xlu0 %6102
  %6104 = vrot.lane.b32.xlu0 %v3624, 64
  %v6105 = vpop.permute.xlu0 %6104
  %6106 = vrot.lane.b32.xlu0 %v3625, 64
  %v6107 = vpop.permute.xlu0 %6106
  %6108 = vrot.lane.b32.xlu0 %v3626, 64
  %v6109 = vpop.permute.xlu0 %6108
  %6110 = vrot.lane.b32.xlu0 %v3627, 64
  %v6111 = vpop.permute.xlu0 %6110
  %6112 = vrot.lane.b32.xlu0 %v3628, 64
  %v6113 = vpop.permute.xlu0 %6112
  %6114 = vrot.lane.b32.xlu0 %v3629, 64
  %v6115 = vpop.permute.xlu0 %6114
  %6116 = vrot.lane.b32.xlu0 %v3630, 64
  %v6117 = vpop.permute.xlu0 %6116
  %6118 = vrot.lane.b32.xlu0 %v3631, 64
  %v6119 = vpop.permute.xlu0 %6118
  %6120 = vrot.lane.b32.xlu0 %v3632, 64
  %v6121 = vpop.permute.xlu0 %6120
  %6122 = vrot.lane.b32.xlu0 %v3633, 64
  %v6123 = vpop.permute.xlu0 %6122
  %6124 = vrot.lane.b32.xlu0 %v3634, 64
  %v6125 = vpop.permute.xlu0 %6124
  %6126 = vrot.lane.b32.xlu0 %v3635, 64
  %v6127 = vpop.permute.xlu0 %6126
  %6128 = vrot.lane.b32.xlu0 %v3636, 64
  %v6129 = vpop.permute.xlu0 %6128
  %6130 = vrot.lane.b32.xlu0 %v3637, 64
  %v6131 = vpop.permute.xlu0 %6130
  %6132 = vrot.lane.b32.xlu0 %v3638, 64
  %v6133 = vpop.permute.xlu0 %6132
  %6134 = vrot.lane.b32.xlu0 %v3639, 64
  %v6135 = vpop.permute.xlu0 %6134
  %6136 = vrot.lane.b32.xlu0 %v3640, 64
  %v6137 = vpop.permute.xlu0 %6136
  %6266 = vrot.lane.b32.xlu0 %v3961, 80
  %v6267 = vpop.permute.xlu0 %6266
  %6268 = vrot.lane.b32.xlu0 %v3962, 80
  %v6269 = vpop.permute.xlu0 %6268
  %6270 = vrot.lane.b32.xlu0 %v3963, 80
  %v6271 = vpop.permute.xlu0 %6270
  %6272 = vrot.lane.b32.xlu0 %v3964, 80
  %v6273 = vpop.permute.xlu0 %6272
  %6274 = vrot.lane.b32.xlu0 %v3965, 80
  %v6275 = vpop.permute.xlu0 %6274
  %6276 = vrot.lane.b32.xlu0 %v3966, 80
  %v6277 = vpop.permute.xlu0 %6276
  %6278 = vrot.lane.b32.xlu0 %v3967, 80
  %v6279 = vpop.permute.xlu0 %6278
  %6280 = vrot.lane.b32.xlu0 %v3968, 80
  %v6281 = vpop.permute.xlu0 %6280
  %6282 = vrot.lane.b32.xlu0 %v3969, 80
  %v6283 = vpop.permute.xlu0 %6282
  %6284 = vrot.lane.b32.xlu0 %v3970, 80
  %v6285 = vpop.permute.xlu0 %6284
  %6286 = vrot.lane.b32.xlu0 %v3971, 80
  %v6287 = vpop.permute.xlu0 %6286
  %6288 = vrot.lane.b32.xlu0 %v3972, 80
  %v6289 = vpop.permute.xlu0 %6288
  %6290 = vrot.lane.b32.xlu0 %v3973, 80
  %v6291 = vpop.permute.xlu0 %6290
  %6292 = vrot.lane.b32.xlu0 %v3974, 80
  %v6293 = vpop.permute.xlu0 %6292
  %6294 = vrot.lane.b32.xlu0 %v3975, 80
  %v6295 = vpop.permute.xlu0 %6294
  %6296 = vrot.lane.b32.xlu0 %v3976, 80
  %v6297 = vpop.permute.xlu0 %6296
  %6298 = vrot.lane.b32.xlu0 %v3977, 80
  %v6299 = vpop.permute.xlu0 %6298
  %6300 = vrot.lane.b32.xlu0 %v3978, 80
  %v6301 = vpop.permute.xlu0 %6300
  %6302 = vrot.lane.b32.xlu0 %v3979, 80
  %v6303 = vpop.permute.xlu0 %6302
  %6304 = vrot.lane.b32.xlu0 %v3980, 80
  %v6305 = vpop.permute.xlu0 %6304
  %6306 = vrot.lane.b32.xlu0 %v3981, 80
  %v6307 = vpop.permute.xlu0 %6306
  %6308 = vrot.lane.b32.xlu0 %v3982, 80
  %v6309 = vpop.permute.xlu0 %6308
  %6310 = vrot.lane.b32.xlu0 %v3983, 80
  %v6311 = vpop.permute.xlu0 %6310
  %6312 = vrot.lane.b32.xlu0 %v3984, 80
  %v6313 = vpop.permute.xlu0 %6312
  %6314 = vrot.lane.b32.xlu0 %v3985, 80
  %v6315 = vpop.permute.xlu0 %6314
  %6316 = vrot.lane.b32.xlu0 %v3986, 80
  %v6317 = vpop.permute.xlu0 %6316
  %6318 = vrot.lane.b32.xlu0 %v3987, 80
  %v6319 = vpop.permute.xlu0 %6318
  %6320 = vrot.lane.b32.xlu0 %v3988, 80
  %v6321 = vpop.permute.xlu0 %6320
  %6322 = vrot.lane.b32.xlu0 %v3989, 80
  %v6323 = vpop.permute.xlu0 %6322
  %6324 = vrot.lane.b32.xlu0 %v3990, 80
  %v6325 = vpop.permute.xlu0 %6324
  %6326 = vrot.lane.b32.xlu0 %v3991, 80
  %v6327 = vpop.permute.xlu0 %6326
  %6328 = vrot.lane.b32.xlu0 %v3992, 80
  %v6329 = vpop.permute.xlu0 %6328
  %6330 = vrot.lane.b32.xlu0 %v3993, 80
  %v6331 = vpop.permute.xlu0 %6330
  %6332 = vrot.lane.b32.xlu0 %v3994, 80
  %v6333 = vpop.permute.xlu0 %6332
  %6334 = vrot.lane.b32.xlu0 %v3995, 80
  %v6335 = vpop.permute.xlu0 %6334
  %6336 = vrot.lane.b32.xlu0 %v3996, 80
  %v6337 = vpop.permute.xlu0 %6336
  %6338 = vrot.lane.b32.xlu0 %v3997, 80
  %v6339 = vpop.permute.xlu0 %6338
  %6340 = vrot.lane.b32.xlu0 %v3998, 80
  %v6341 = vpop.permute.xlu0 %6340
  %6342 = vrot.lane.b32.xlu0 %v3999, 80
  %v6343 = vpop.permute.xlu0 %6342
  %6344 = vrot.lane.b32.xlu0 %v4000, 80
  %v6345 = vpop.permute.xlu0 %6344
  %6346 = vrot.lane.b32.xlu0 %v4001, 80
  %v6347 = vpop.permute.xlu0 %6346
  %6348 = vrot.lane.b32.xlu0 %v4002, 80
  %v6349 = vpop.permute.xlu0 %6348
  %6350 = vrot.lane.b32.xlu0 %v4003, 80
  %v6351 = vpop.permute.xlu0 %6350
  %6352 = vrot.lane.b32.xlu0 %v4004, 80
  %v6353 = vpop.permute.xlu0 %6352
  %6354 = vrot.lane.b32.xlu0 %v4005, 80
  %v6355 = vpop.permute.xlu0 %6354
  %6356 = vrot.lane.b32.xlu0 %v4006, 80
  %v6357 = vpop.permute.xlu0 %6356
  %6358 = vrot.lane.b32.xlu0 %v4007, 80
  %v6359 = vpop.permute.xlu0 %6358
  %6360 = vrot.lane.b32.xlu0 %v4008, 80
  %v6361 = vpop.permute.xlu0 %6360
  %6362 = vrot.lane.b32.xlu0 %v4009, 80
  %v6363 = vpop.permute.xlu0 %6362
  %6364 = vrot.lane.b32.xlu0 %v4010, 80
  %v6365 = vpop.permute.xlu0 %6364
  %6366 = vrot.lane.b32.xlu0 %v4011, 80
  %v6367 = vpop.permute.xlu0 %6366
  %6368 = vrot.lane.b32.xlu0 %v4012, 80
  %v6369 = vpop.permute.xlu0 %6368
  %6370 = vrot.lane.b32.xlu0 %v4013, 80
  %v6371 = vpop.permute.xlu0 %6370
  %6372 = vrot.lane.b32.xlu0 %v4014, 80
  %v6373 = vpop.permute.xlu0 %6372
  %6374 = vrot.lane.b32.xlu0 %v4015, 80
  %v6375 = vpop.permute.xlu0 %6374
  %6376 = vrot.lane.b32.xlu0 %v4016, 80
  %v6377 = vpop.permute.xlu0 %6376
  %6378 = vrot.lane.b32.xlu0 %v4017, 80
  %v6379 = vpop.permute.xlu0 %6378
  %6380 = vrot.lane.b32.xlu0 %v4018, 80
  %v6381 = vpop.permute.xlu0 %6380
  %6382 = vrot.lane.b32.xlu0 %v4019, 80
  %v6383 = vpop.permute.xlu0 %6382
  %6384 = vrot.lane.b32.xlu0 %v4020, 80
  %v6385 = vpop.permute.xlu0 %6384
  %6386 = vrot.lane.b32.xlu0 %v4021, 80
  %v6387 = vpop.permute.xlu0 %6386
  %6388 = vrot.lane.b32.xlu0 %v4022, 80
  %v6389 = vpop.permute.xlu0 %6388
  %6390 = vrot.lane.b32.xlu0 %v4023, 80
  %v6391 = vpop.permute.xlu0 %6390
  %6392 = vrot.lane.b32.xlu0 %v4024, 80
  %v6393 = vpop.permute.xlu0 %6392
  %6522 = vrot.lane.b32.xlu0 %v4346, 96
  %v6523 = vpop.permute.xlu0 %6522
  %6524 = vrot.lane.b32.xlu0 %v4347, 96
  %v6525 = vpop.permute.xlu0 %6524
  %6526 = vrot.lane.b32.xlu0 %v4348, 96
  %v6527 = vpop.permute.xlu0 %6526
  %6528 = vrot.lane.b32.xlu0 %v4349, 96
  %v6529 = vpop.permute.xlu0 %6528
  %6530 = vrot.lane.b32.xlu0 %v4350, 96
  %v6531 = vpop.permute.xlu0 %6530
  %6532 = vrot.lane.b32.xlu0 %v4351, 96
  %v6533 = vpop.permute.xlu0 %6532
  %6534 = vrot.lane.b32.xlu0 %v4352, 96
  %v6535 = vpop.permute.xlu0 %6534
  %6536 = vrot.lane.b32.xlu0 %v4353, 96
  %v6537 = vpop.permute.xlu0 %6536
  %6538 = vrot.lane.b32.xlu0 %v4354, 96
  %v6539 = vpop.permute.xlu0 %6538
  %6540 = vrot.lane.b32.xlu0 %v4355, 96
  %v6541 = vpop.permute.xlu0 %6540
  %6542 = vrot.lane.b32.xlu0 %v4356, 96
  %v6543 = vpop.permute.xlu0 %6542
  %6544 = vrot.lane.b32.xlu0 %v4357, 96
  %v6545 = vpop.permute.xlu0 %6544
  %6546 = vrot.lane.b32.xlu0 %v4358, 96
  %v6547 = vpop.permute.xlu0 %6546
  %6548 = vrot.lane.b32.xlu0 %v4359, 96
  %v6549 = vpop.permute.xlu0 %6548
  %6550 = vrot.lane.b32.xlu0 %v4360, 96
  %v6551 = vpop.permute.xlu0 %6550
  %6552 = vrot.lane.b32.xlu0 %v4361, 96
  %v6553 = vpop.permute.xlu0 %6552
  %6554 = vrot.lane.b32.xlu0 %v4362, 96
  %v6555 = vpop.permute.xlu0 %6554
  %6556 = vrot.lane.b32.xlu0 %v4363, 96
  %v6557 = vpop.permute.xlu0 %6556
  %6558 = vrot.lane.b32.xlu0 %v4364, 96
  %v6559 = vpop.permute.xlu0 %6558
  %6560 = vrot.lane.b32.xlu0 %v4365, 96
  %v6561 = vpop.permute.xlu0 %6560
  %6562 = vrot.lane.b32.xlu0 %v4366, 96
  %v6563 = vpop.permute.xlu0 %6562
  %6564 = vrot.lane.b32.xlu0 %v4367, 96
  %v6565 = vpop.permute.xlu0 %6564
  %6566 = vrot.lane.b32.xlu0 %v4368, 96
  %v6567 = vpop.permute.xlu0 %6566
  %6568 = vrot.lane.b32.xlu0 %v4369, 96
  %v6569 = vpop.permute.xlu0 %6568
  %6570 = vrot.lane.b32.xlu0 %v4370, 96
  %v6571 = vpop.permute.xlu0 %6570
  %6572 = vrot.lane.b32.xlu0 %v4371, 96
  %v6573 = vpop.permute.xlu0 %6572
  %6574 = vrot.lane.b32.xlu0 %v4372, 96
  %v6575 = vpop.permute.xlu0 %6574
  %6576 = vrot.lane.b32.xlu0 %v4373, 96
  %v6577 = vpop.permute.xlu0 %6576
  %6578 = vrot.lane.b32.xlu0 %v4374, 96
  %v6579 = vpop.permute.xlu0 %6578
  %6580 = vrot.lane.b32.xlu0 %v4375, 96
  %v6581 = vpop.permute.xlu0 %6580
  %6582 = vrot.lane.b32.xlu0 %v4376, 96
  %v6583 = vpop.permute.xlu0 %6582
  %6584 = vrot.lane.b32.xlu0 %v4377, 96
  %v6585 = vpop.permute.xlu0 %6584
  %6586 = vrot.lane.b32.xlu0 %v4378, 96
  %v6587 = vpop.permute.xlu0 %6586
  %6588 = vrot.lane.b32.xlu0 %v4379, 96
  %v6589 = vpop.permute.xlu0 %6588
  %6590 = vrot.lane.b32.xlu0 %v4380, 96
  %v6591 = vpop.permute.xlu0 %6590
  %6592 = vrot.lane.b32.xlu0 %v4381, 96
  %v6593 = vpop.permute.xlu0 %6592
  %6594 = vrot.lane.b32.xlu0 %v4382, 96
  %v6595 = vpop.permute.xlu0 %6594
  %6596 = vrot.lane.b32.xlu0 %v4383, 96
  %v6597 = vpop.permute.xlu0 %6596
  %6598 = vrot.lane.b32.xlu0 %v4384, 96
  %v6599 = vpop.permute.xlu0 %6598
  %6600 = vrot.lane.b32.xlu0 %v4385, 96
  %v6601 = vpop.permute.xlu0 %6600
  %6602 = vrot.lane.b32.xlu0 %v4386, 96
  %v6603 = vpop.permute.xlu0 %6602
  %6604 = vrot.lane.b32.xlu0 %v4387, 96
  %v6605 = vpop.permute.xlu0 %6604
  %6606 = vrot.lane.b32.xlu0 %v4388, 96
  %v6607 = vpop.permute.xlu0 %6606
  %6608 = vrot.lane.b32.xlu0 %v4389, 96
  %v6609 = vpop.permute.xlu0 %6608
  %6610 = vrot.lane.b32.xlu0 %v4390, 96
  %v6611 = vpop.permute.xlu0 %6610
  %6612 = vrot.lane.b32.xlu0 %v4391, 96
  %v6613 = vpop.permute.xlu0 %6612
  %6614 = vrot.lane.b32.xlu0 %v4392, 96
  %v6615 = vpop.permute.xlu0 %6614
  %6616 = vrot.lane.b32.xlu0 %v4393, 96
  %v6617 = vpop.permute.xlu0 %6616
  %6618 = vrot.lane.b32.xlu0 %v4394, 96
  %v6619 = vpop.permute.xlu0 %6618
  %6620 = vrot.lane.b32.xlu0 %v4395, 96
  %v6621 = vpop.permute.xlu0 %6620
  %6622 = vrot.lane.b32.xlu0 %v4396, 96
  %v6623 = vpop.permute.xlu0 %6622
  %6624 = vrot.lane.b32.xlu0 %v4397, 96
  %v6625 = vpop.permute.xlu0 %6624
  %6626 = vrot.lane.b32.xlu0 %v4398, 96
  %v6627 = vpop.permute.xlu0 %6626
  %6628 = vrot.lane.b32.xlu0 %v4399, 96
  %v6629 = vpop.permute.xlu0 %6628
  %6630 = vrot.lane.b32.xlu0 %v4400, 96
  %v6631 = vpop.permute.xlu0 %6630
  %6632 = vrot.lane.b32.xlu0 %v4401, 96
  %v6633 = vpop.permute.xlu0 %6632
  %6634 = vrot.lane.b32.xlu0 %v4402, 96
  %v6635 = vpop.permute.xlu0 %6634
  %6636 = vrot.lane.b32.xlu0 %v4403, 96
  %v6637 = vpop.permute.xlu0 %6636
  %6638 = vrot.lane.b32.xlu0 %v4404, 96
  %v6639 = vpop.permute.xlu0 %6638
  %6640 = vrot.lane.b32.xlu0 %v4405, 96
  %v6641 = vpop.permute.xlu0 %6640
  %6642 = vrot.lane.b32.xlu0 %v4406, 96
  %v6643 = vpop.permute.xlu0 %6642
  %6644 = vrot.lane.b32.xlu0 %v4407, 96
  %v6645 = vpop.permute.xlu0 %6644
  %6646 = vrot.lane.b32.xlu0 %v4408, 96
  %v6647 = vpop.permute.xlu0 %6646
  %6648 = vrot.lane.b32.xlu0 %v4409, 96
  %v6649 = vpop.permute.xlu0 %6648
  %6778 = vrot.lane.b32.xlu0 %v4730, 112
  %v6779 = vpop.permute.xlu0 %6778
  %6780 = vrot.lane.b32.xlu0 %v4731, 112
  %v6781 = vpop.permute.xlu0 %6780
  %6782 = vrot.lane.b32.xlu0 %v4732, 112
  %v6783 = vpop.permute.xlu0 %6782
  %6784 = vrot.lane.b32.xlu0 %v4733, 112
  %v6785 = vpop.permute.xlu0 %6784
  %6786 = vrot.lane.b32.xlu0 %v4734, 112
  %v6787 = vpop.permute.xlu0 %6786
  %6788 = vrot.lane.b32.xlu0 %v4735, 112
  %v6789 = vpop.permute.xlu0 %6788
  %6790 = vrot.lane.b32.xlu0 %v4736, 112
  %v6791 = vpop.permute.xlu0 %6790
  %6792 = vrot.lane.b32.xlu0 %v4737, 112
  %v6793 = vpop.permute.xlu0 %6792
  %6794 = vrot.lane.b32.xlu0 %v4738, 112
  %v6795 = vpop.permute.xlu0 %6794
  %6796 = vrot.lane.b32.xlu0 %v4739, 112
  %v6797 = vpop.permute.xlu0 %6796
  %6798 = vrot.lane.b32.xlu0 %v4740, 112
  %v6799 = vpop.permute.xlu0 %6798
  %6800 = vrot.lane.b32.xlu0 %v4741, 112
  %v6801 = vpop.permute.xlu0 %6800
  %6802 = vrot.lane.b32.xlu0 %v4742, 112
  %v6803 = vpop.permute.xlu0 %6802
  %6804 = vrot.lane.b32.xlu0 %v4743, 112
  %v6805 = vpop.permute.xlu0 %6804
  %6806 = vrot.lane.b32.xlu0 %v4744, 112
  %v6807 = vpop.permute.xlu0 %6806
  %6808 = vrot.lane.b32.xlu0 %v4745, 112
  %v6809 = vpop.permute.xlu0 %6808
  %6810 = vrot.lane.b32.xlu0 %v4746, 112
  %v6811 = vpop.permute.xlu0 %6810
  %6812 = vrot.lane.b32.xlu0 %v4747, 112
  %v6813 = vpop.permute.xlu0 %6812
  %6814 = vrot.lane.b32.xlu0 %v4748, 112
  %v6815 = vpop.permute.xlu0 %6814
  %6816 = vrot.lane.b32.xlu0 %v4749, 112
  %v6817 = vpop.permute.xlu0 %6816
  %6818 = vrot.lane.b32.xlu0 %v4750, 112
  %v6819 = vpop.permute.xlu0 %6818
  %6820 = vrot.lane.b32.xlu0 %v4751, 112
  %v6821 = vpop.permute.xlu0 %6820
  %6822 = vrot.lane.b32.xlu0 %v4752, 112
  %v6823 = vpop.permute.xlu0 %6822
  %6824 = vrot.lane.b32.xlu0 %v4753, 112
  %v6825 = vpop.permute.xlu0 %6824
  %6826 = vrot.lane.b32.xlu0 %v4754, 112
  %v6827 = vpop.permute.xlu0 %6826
  %6828 = vrot.lane.b32.xlu0 %v4755, 112
  %v6829 = vpop.permute.xlu0 %6828
  %6830 = vrot.lane.b32.xlu0 %v4756, 112
  %v6831 = vpop.permute.xlu0 %6830
  %6832 = vrot.lane.b32.xlu0 %v4757, 112
  %v6833 = vpop.permute.xlu0 %6832
  %6834 = vrot.lane.b32.xlu0 %v4758, 112
  %v6835 = vpop.permute.xlu0 %6834
  %6836 = vrot.lane.b32.xlu0 %v4759, 112
  %v6837 = vpop.permute.xlu0 %6836
  %6838 = vrot.lane.b32.xlu0 %v4760, 112
  %v6839 = vpop.permute.xlu0 %6838
  %6840 = vrot.lane.b32.xlu0 %v4761, 112
  %v6841 = vpop.permute.xlu0 %6840
  %6842 = vrot.lane.b32.xlu0 %v4762, 112
  %v6843 = vpop.permute.xlu0 %6842
  %6844 = vrot.lane.b32.xlu0 %v4763, 112
  %v6845 = vpop.permute.xlu0 %6844
  %6846 = vrot.lane.b32.xlu0 %v4764, 112
  %v6847 = vpop.permute.xlu0 %6846
  %6848 = vrot.lane.b32.xlu0 %v4765, 112
  %v6849 = vpop.permute.xlu0 %6848
  %6850 = vrot.lane.b32.xlu0 %v4766, 112
  %v6851 = vpop.permute.xlu0 %6850
  %6852 = vrot.lane.b32.xlu0 %v4767, 112
  %v6853 = vpop.permute.xlu0 %6852
  %6854 = vrot.lane.b32.xlu0 %v4768, 112
  %v6855 = vpop.permute.xlu0 %6854
  %6856 = vrot.lane.b32.xlu0 %v4769, 112
  %v6857 = vpop.permute.xlu0 %6856
  %6858 = vrot.lane.b32.xlu0 %v4770, 112
  %v6859 = vpop.permute.xlu0 %6858
  %6860 = vrot.lane.b32.xlu0 %v4771, 112
  %v6861 = vpop.permute.xlu0 %6860
  %6862 = vrot.lane.b32.xlu0 %v4772, 112
  %v6863 = vpop.permute.xlu0 %6862
  %6864 = vrot.lane.b32.xlu0 %v4773, 112
  %v6865 = vpop.permute.xlu0 %6864
  %6866 = vrot.lane.b32.xlu0 %v4774, 112
  %v6867 = vpop.permute.xlu0 %6866
  %6868 = vrot.lane.b32.xlu0 %v4775, 112
  %v6869 = vpop.permute.xlu0 %6868
  %6870 = vrot.lane.b32.xlu0 %v4776, 112
  %v6871 = vpop.permute.xlu0 %6870
  %6872 = vrot.lane.b32.xlu0 %v4777, 112
  %v6873 = vpop.permute.xlu0 %6872
  %6874 = vrot.lane.b32.xlu0 %v4778, 112
  %v6875 = vpop.permute.xlu0 %6874
  %6876 = vrot.lane.b32.xlu0 %v4779, 112
  %v6877 = vpop.permute.xlu0 %6876
  %6878 = vrot.lane.b32.xlu0 %v4780, 112
  %v6879 = vpop.permute.xlu0 %6878
  %6880 = vrot.lane.b32.xlu0 %v4781, 112
  %v6881 = vpop.permute.xlu0 %6880
  %6882 = vrot.lane.b32.xlu0 %v4782, 112
  %v6883 = vpop.permute.xlu0 %6882
  %6884 = vrot.lane.b32.xlu0 %v4783, 112
  %v6885 = vpop.permute.xlu0 %6884
  %6886 = vrot.lane.b32.xlu0 %v4784, 112
  %v6887 = vpop.permute.xlu0 %6886
  %6888 = vrot.lane.b32.xlu0 %v4785, 112
  %v6889 = vpop.permute.xlu0 %6888
  %6890 = vrot.lane.b32.xlu0 %v4786, 112
  %v6891 = vpop.permute.xlu0 %6890
  %6892 = vrot.lane.b32.xlu0 %v4787, 112
  %v6893 = vpop.permute.xlu0 %6892
  %6894 = vrot.lane.b32.xlu0 %v4788, 112
  %v6895 = vpop.permute.xlu0 %6894
  %6896 = vrot.lane.b32.xlu0 %v4789, 112
  %v6897 = vpop.permute.xlu0 %6896
  %6898 = vrot.lane.b32.xlu0 %v4790, 112
  %v6899 = vpop.permute.xlu0 %6898
  %6900 = vrot.lane.b32.xlu0 %v4791, 112
  %v6901 = vpop.permute.xlu0 %6900
  %6902 = vrot.lane.b32.xlu0 %v4792, 112
  %v6903 = vpop.permute.xlu0 %6902
  %6904 = vrot.lane.b32.xlu0 %v4793, 112
  %v6905 = vpop.permute.xlu0 %6904
  %v6970 = vsel %vm103, %v2105, %v5243
  %v6971 = vsel %vm103, %v2106, %v5245
  %v6972 = vsel %vm103, %v2107, %v5247
  %v6973 = vsel %vm103, %v2108, %v5249
  %v6974 = vsel %vm103, %v2109, %v5251
  %v6975 = vsel %vm103, %v2110, %v5253
  %v6976 = vsel %vm103, %v2111, %v5255
  %v6977 = vsel %vm103, %v2112, %v5257
  %v6978 = vsel %vm103, %v2113, %v5259
  %v6979 = vsel %vm103, %v2114, %v5261
  %v6980 = vsel %vm103, %v2115, %v5263
  %v6981 = vsel %vm103, %v2116, %v5265
  %v6982 = vsel %vm103, %v2117, %v5267
  %v6983 = vsel %vm103, %v2118, %v5269
  %v6984 = vsel %vm103, %v2119, %v5271
  %v6985 = vsel %vm103, %v2120, %v5273
  %v6986 = vsel %vm103, %v2121, %v5275
  %v6987 = vsel %vm103, %v2122, %v5277
  %v6988 = vsel %vm103, %v2123, %v5279
  %v6989 = vsel %vm103, %v2124, %v5281
  %v6990 = vsel %vm103, %v2125, %v5283
  %v6991 = vsel %vm103, %v2126, %v5285
  %v6992 = vsel %vm103, %v2127, %v5287
  %v6993 = vsel %vm103, %v2128, %v5289
  %v6994 = vsel %vm103, %v2129, %v5291
  %v6995 = vsel %vm103, %v2130, %v5293
  %v6996 = vsel %vm103, %v2131, %v5295
  %v6997 = vsel %vm103, %v2132, %v5297
  %v6998 = vsel %vm103, %v2133, %v5299
  %v6999 = vsel %vm103, %v2134, %v5301
  %v7000 = vsel %vm103, %v2135, %v5303
  %v7001 = vsel %vm103, %v2136, %v5305
  %v7002 = vsel %vm103, %v2137, %v5307
  %v7003 = vsel %vm103, %v2138, %v5309
  %v7004 = vsel %vm103, %v2139, %v5311
  %v7005 = vsel %vm103, %v2140, %v5313
  %v7006 = vsel %vm103, %v2141, %v5315
  %v7007 = vsel %vm103, %v2142, %v5317
  %v7008 = vsel %vm103, %v2143, %v5319
  %v7009 = vsel %vm103, %v2144, %v5321
  %v7010 = vsel %vm103, %v2145, %v5323
  %v7011 = vsel %vm103, %v2146, %v5325
  %v7012 = vsel %vm103, %v2147, %v5327
  %v7013 = vsel %vm103, %v2148, %v5329
  %v7014 = vsel %vm103, %v2149, %v5331
  %v7015 = vsel %vm103, %v2150, %v5333
  %v7016 = vsel %vm103, %v2151, %v5335
  %v7017 = vsel %vm103, %v2152, %v5337
  %v7018 = vsel %vm103, %v2153, %v5339
  %v7019 = vsel %vm103, %v2154, %v5341
  %v7020 = vsel %vm103, %v2155, %v5343
  %v7021 = vsel %vm103, %v2156, %v5345
  %v7022 = vsel %vm103, %v2157, %v5347
  %v7023 = vsel %vm103, %v2158, %v5349
  %v7024 = vsel %vm103, %v2159, %v5351
  %v7025 = vsel %vm103, %v2160, %v5353
  %v7026 = vsel %vm103, %v2161, %v5355
  %v7027 = vsel %vm103, %v2162, %v5357
  %v7028 = vsel %vm103, %v2163, %v5359
  %v7029 = vsel %vm103, %v2164, %v5361
  %v7030 = vsel %vm103, %v2165, %v5363
  %v7031 = vsel %vm103, %v2166, %v5365
  %v7032 = vsel %vm103, %v2167, %v5367
  %v7033 = vsel %vm103, %v2168, %v5369
  %vm7034 = vcmask 261120
  %v7035 = vsel %vm7034, %v6970, %v5499
  %v7036 = vsel %vm7034, %v6971, %v5501
  %v7037 = vsel %vm7034, %v6972, %v5503
  %v7038 = vsel %vm7034, %v6973, %v5505
  %v7039 = vsel %vm7034, %v6974, %v5507
  %v7040 = vsel %vm7034, %v6975, %v5509
  %v7041 = vsel %vm7034, %v6976, %v5511
  %v7042 = vsel %vm7034, %v6977, %v5513
  %v7043 = vsel %vm7034, %v6978, %v5515
  %v7044 = vsel %vm7034, %v6979, %v5517
  %v7045 = vsel %vm7034, %v6980, %v5519
  %v7046 = vsel %vm7034, %v6981, %v5521
  %v7047 = vsel %vm7034, %v6982, %v5523
  %v7048 = vsel %vm7034, %v6983, %v5525
  %v7049 = vsel %vm7034, %v6984, %v5527
  %v7050 = vsel %vm7034, %v6985, %v5529
  %v7051 = vsel %vm7034, %v6986, %v5531
  %v7052 = vsel %vm7034, %v6987, %v5533
  %v7053 = vsel %vm7034, %v6988, %v5535
  %v7054 = vsel %vm7034, %v6989, %v5537
  %v7055 = vsel %vm7034, %v6990, %v5539
  %v7056 = vsel %vm7034, %v6991, %v5541
  %v7057 = vsel %vm7034, %v6992, %v5543
  %v7058 = vsel %vm7034, %v6993, %v5545
  %v7059 = vsel %vm7034, %v6994, %v5547
  %v7060 = vsel %vm7034, %v6995, %v5549
  %v7061 = vsel %vm7034, %v6996, %v5551
  %v7062 = vsel %vm7034, %v6997, %v5553
  %v7063 = vsel %vm7034, %v6998, %v5555
  %v7064 = vsel %vm7034, %v6999, %v5557
  %v7065 = vsel %vm7034, %v7000, %v5559
  %v7066 = vsel %vm7034, %v7001, %v5561
  %v7067 = vsel %vm7034, %v7002, %v5563
  %v7068 = vsel %vm7034, %v7003, %v5565
  %v7069 = vsel %vm7034, %v7004, %v5567
  %v7070 = vsel %vm7034, %v7005, %v5569
  %v7071 = vsel %vm7034, %v7006, %v5571
  %v7072 = vsel %vm7034, %v7007, %v5573
  %v7073 = vsel %vm7034, %v7008, %v5575
  %v7074 = vsel %vm7034, %v7009, %v5577
  %v7075 = vsel %vm7034, %v7010, %v5579
  %v7076 = vsel %vm7034, %v7011, %v5581
  %v7077 = vsel %vm7034, %v7012, %v5583
  %v7078 = vsel %vm7034, %v7013, %v5585
  %v7079 = vsel %vm7034, %v7014, %v5587
  %v7080 = vsel %vm7034, %v7015, %v5589
  %v7081 = vsel %vm7034, %v7016, %v5591
  %v7082 = vsel %vm7034, %v7017, %v5593
  %v7083 = vsel %vm7034, %v7018, %v5595
  %v7084 = vsel %vm7034, %v7019, %v5597
  %v7085 = vsel %vm7034, %v7020, %v5599
  %v7086 = vsel %vm7034, %v7021, %v5601
  %v7087 = vsel %vm7034, %v7022, %v5603
  %v7088 = vsel %vm7034, %v7023, %v5605
  %v7089 = vsel %vm7034, %v7024, %v5607
  %v7090 = vsel %vm7034, %v7025, %v5609
  %v7091 = vsel %vm7034, %v7026, %v5611
  %v7092 = vsel %vm7034, %v7027, %v5613
  %v7093 = vsel %vm7034, %v7028, %v5615
  %v7094 = vsel %vm7034, %v7029, %v5617
  %v7095 = vsel %vm7034, %v7030, %v5619
  %v7096 = vsel %vm7034, %v7031, %v5621
  %v7097 = vsel %vm7034, %v7032, %v5623
  %v7098 = vsel %vm7034, %v7033, %v5625
  %vm7099 = vcmask 392192
  %v7100 = vsel %vm7099, %v7035, %v5755
  %v7101 = vsel %vm7099, %v7036, %v5757
  %v7102 = vsel %vm7099, %v7037, %v5759
  %v7103 = vsel %vm7099, %v7038, %v5761
  %v7104 = vsel %vm7099, %v7039, %v5763
  %v7105 = vsel %vm7099, %v7040, %v5765
  %v7106 = vsel %vm7099, %v7041, %v5767
  %v7107 = vsel %vm7099, %v7042, %v5769
  %v7108 = vsel %vm7099, %v7043, %v5771
  %v7109 = vsel %vm7099, %v7044, %v5773
  %v7110 = vsel %vm7099, %v7045, %v5775
  %v7111 = vsel %vm7099, %v7046, %v5777
  %v7112 = vsel %vm7099, %v7047, %v5779
  %v7113 = vsel %vm7099, %v7048, %v5781
  %v7114 = vsel %vm7099, %v7049, %v5783
  %v7115 = vsel %vm7099, %v7050, %v5785
  %v7116 = vsel %vm7099, %v7051, %v5787
  %v7117 = vsel %vm7099, %v7052, %v5789
  %v7118 = vsel %vm7099, %v7053, %v5791
  %v7119 = vsel %vm7099, %v7054, %v5793
  %v7120 = vsel %vm7099, %v7055, %v5795
  %v7121 = vsel %vm7099, %v7056, %v5797
  %v7122 = vsel %vm7099, %v7057, %v5799
  %v7123 = vsel %vm7099, %v7058, %v5801
  %v7124 = vsel %vm7099, %v7059, %v5803
  %v7125 = vsel %vm7099, %v7060, %v5805
  %v7126 = vsel %vm7099, %v7061, %v5807
  %v7127 = vsel %vm7099, %v7062, %v5809
  %v7128 = vsel %vm7099, %v7063, %v5811
  %v7129 = vsel %vm7099, %v7064, %v5813
  %v7130 = vsel %vm7099, %v7065, %v5815
  %v7131 = vsel %vm7099, %v7066, %v5817
  %v7132 = vsel %vm7099, %v7067, %v5819
  %v7133 = vsel %vm7099, %v7068, %v5821
  %v7134 = vsel %vm7099, %v7069, %v5823
  %v7135 = vsel %vm7099, %v7070, %v5825
  %v7136 = vsel %vm7099, %v7071, %v5827
  %v7137 = vsel %vm7099, %v7072, %v5829
  %v7138 = vsel %vm7099, %v7073, %v5831
  %v7139 = vsel %vm7099, %v7074, %v5833
  %v7140 = vsel %vm7099, %v7075, %v5835
  %v7141 = vsel %vm7099, %v7076, %v5837
  %v7142 = vsel %vm7099, %v7077, %v5839
  %v7143 = vsel %vm7099, %v7078, %v5841
  %v7144 = vsel %vm7099, %v7079, %v5843
  %v7145 = vsel %vm7099, %v7080, %v5845
  %v7146 = vsel %vm7099, %v7081, %v5847
  %v7147 = vsel %vm7099, %v7082, %v5849
  %v7148 = vsel %vm7099, %v7083, %v5851
  %v7149 = vsel %vm7099, %v7084, %v5853
  %v7150 = vsel %vm7099, %v7085, %v5855
  %v7151 = vsel %vm7099, %v7086, %v5857
  %v7152 = vsel %vm7099, %v7087, %v5859
  %v7153 = vsel %vm7099, %v7088, %v5861
  %v7154 = vsel %vm7099, %v7089, %v5863
  %v7155 = vsel %vm7099, %v7090, %v5865
  %v7156 = vsel %vm7099, %v7091, %v5867
  %v7157 = vsel %vm7099, %v7092, %v5869
  %v7158 = vsel %vm7099, %v7093, %v5871
  %v7159 = vsel %vm7099, %v7094, %v5873
  %v7160 = vsel %vm7099, %v7095, %v5875
  %v7161 = vsel %vm7099, %v7096, %v5877
  %v7162 = vsel %vm7099, %v7097, %v5879
  %v7163 = vsel %vm7099, %v7098, %v5881
  %vm7164 = vcmask 523264
  %v7165 = vsel %vm7164, %v7100, %v6011
  %v7166 = vsel %vm7164, %v7101, %v6013
  %v7167 = vsel %vm7164, %v7102, %v6015
  %v7168 = vsel %vm7164, %v7103, %v6017
  %v7169 = vsel %vm7164, %v7104, %v6019
  %v7170 = vsel %vm7164, %v7105, %v6021
  %v7171 = vsel %vm7164, %v7106, %v6023
  %v7172 = vsel %vm7164, %v7107, %v6025
  %v7173 = vsel %vm7164, %v7108, %v6027
  %v7174 = vsel %vm7164, %v7109, %v6029
  %v7175 = vsel %vm7164, %v7110, %v6031
  %v7176 = vsel %vm7164, %v7111, %v6033
  %v7177 = vsel %vm7164, %v7112, %v6035
  %v7178 = vsel %vm7164, %v7113, %v6037
  %v7179 = vsel %vm7164, %v7114, %v6039
  %v7180 = vsel %vm7164, %v7115, %v6041
  %v7181 = vsel %vm7164, %v7116, %v6043
  %v7182 = vsel %vm7164, %v7117, %v6045
  %v7183 = vsel %vm7164, %v7118, %v6047
  %v7184 = vsel %vm7164, %v7119, %v6049
  %v7185 = vsel %vm7164, %v7120, %v6051
  %v7186 = vsel %vm7164, %v7121, %v6053
  %v7187 = vsel %vm7164, %v7122, %v6055
  %v7188 = vsel %vm7164, %v7123, %v6057
  %v7189 = vsel %vm7164, %v7124, %v6059
  %v7190 = vsel %vm7164, %v7125, %v6061
  %v7191 = vsel %vm7164, %v7126, %v6063
  %v7192 = vsel %vm7164, %v7127, %v6065
  %v7193 = vsel %vm7164, %v7128, %v6067
  %v7194 = vsel %vm7164, %v7129, %v6069
  %v7195 = vsel %vm7164, %v7130, %v6071
  %v7196 = vsel %vm7164, %v7131, %v6073
  %v7197 = vsel %vm7164, %v7132, %v6075
  %v7198 = vsel %vm7164, %v7133, %v6077
  %v7199 = vsel %vm7164, %v7134, %v6079
  %v7200 = vsel %vm7164, %v7135, %v6081
  %v7201 = vsel %vm7164, %v7136, %v6083
  %v7202 = vsel %vm7164, %v7137, %v6085
  %v7203 = vsel %vm7164, %v7138, %v6087
  %v7204 = vsel %vm7164, %v7139, %v6089
  %v7205 = vsel %vm7164, %v7140, %v6091
  %v7206 = vsel %vm7164, %v7141, %v6093
  %v7207 = vsel %vm7164, %v7142, %v6095
  %v7208 = vsel %vm7164, %v7143, %v6097
  %v7209 = vsel %vm7164, %v7144, %v6099
  %v7210 = vsel %vm7164, %v7145, %v6101
  %v7211 = vsel %vm7164, %v7146, %v6103
  %v7212 = vsel %vm7164, %v7147, %v6105
  %v7213 = vsel %vm7164, %v7148, %v6107
  %v7214 = vsel %vm7164, %v7149, %v6109
  %v7215 = vsel %vm7164, %v7150, %v6111
  %v7216 = vsel %vm7164, %v7151, %v6113
  %v7217 = vsel %vm7164, %v7152, %v6115
  %v7218 = vsel %vm7164, %v7153, %v6117
  %v7219 = vsel %vm7164, %v7154, %v6119
  %v7220 = vsel %vm7164, %v7155, %v6121
  %v7221 = vsel %vm7164, %v7156, %v6123
  %v7222 = vsel %vm7164, %v7157, %v6125
  %v7223 = vsel %vm7164, %v7158, %v6127
  %v7224 = vsel %vm7164, %v7159, %v6129
  %v7225 = vsel %vm7164, %v7160, %v6131
  %v7226 = vsel %vm7164, %v7161, %v6133
  %v7227 = vsel %vm7164, %v7162, %v6135
  %v7228 = vsel %vm7164, %v7163, %v6137
  %vm7229 = vcmask 654336
  %v7230 = vsel %vm7229, %v7165, %v6267
  %v7231 = vsel %vm7229, %v7166, %v6269
  %v7232 = vsel %vm7229, %v7167, %v6271
  %v7233 = vsel %vm7229, %v7168, %v6273
  %v7234 = vsel %vm7229, %v7169, %v6275
  %v7235 = vsel %vm7229, %v7170, %v6277
  %v7236 = vsel %vm7229, %v7171, %v6279
  %v7237 = vsel %vm7229, %v7172, %v6281
  %v7238 = vsel %vm7229, %v7173, %v6283
  %v7239 = vsel %vm7229, %v7174, %v6285
  %v7240 = vsel %vm7229, %v7175, %v6287
  %v7241 = vsel %vm7229, %v7176, %v6289
  %v7242 = vsel %vm7229, %v7177, %v6291
  %v7243 = vsel %vm7229, %v7178, %v6293
  %v7244 = vsel %vm7229, %v7179, %v6295
  %v7245 = vsel %vm7229, %v7180, %v6297
  %v7246 = vsel %vm7229, %v7181, %v6299
  %v7247 = vsel %vm7229, %v7182, %v6301
  %v7248 = vsel %vm7229, %v7183, %v6303
  %v7249 = vsel %vm7229, %v7184, %v6305
  %v7250 = vsel %vm7229, %v7185, %v6307
  %v7251 = vsel %vm7229, %v7186, %v6309
  %v7252 = vsel %vm7229, %v7187, %v6311
  %v7253 = vsel %vm7229, %v7188, %v6313
  %v7254 = vsel %vm7229, %v7189, %v6315
  %v7255 = vsel %vm7229, %v7190, %v6317
  %v7256 = vsel %vm7229, %v7191, %v6319
  %v7257 = vsel %vm7229, %v7192, %v6321
  %v7258 = vsel %vm7229, %v7193, %v6323
  %v7259 = vsel %vm7229, %v7194, %v6325
  %v7260 = vsel %vm7229, %v7195, %v6327
  %v7261 = vsel %vm7229, %v7196, %v6329
  %v7262 = vsel %vm7229, %v7197, %v6331
  %v7263 = vsel %vm7229, %v7198, %v6333
  %v7264 = vsel %vm7229, %v7199, %v6335
  %v7265 = vsel %vm7229, %v7200, %v6337
  %v7266 = vsel %vm7229, %v7201, %v6339
  %v7267 = vsel %vm7229, %v7202, %v6341
  %v7268 = vsel %vm7229, %v7203, %v6343
  %v7269 = vsel %vm7229, %v7204, %v6345
  %v7270 = vsel %vm7229, %v7205, %v6347
  %v7271 = vsel %vm7229, %v7206, %v6349
  %v7272 = vsel %vm7229, %v7207, %v6351
  %v7273 = vsel %vm7229, %v7208, %v6353
  %v7274 = vsel %vm7229, %v7209, %v6355
  %v7275 = vsel %vm7229, %v7210, %v6357
  %v7276 = vsel %vm7229, %v7211, %v6359
  %v7277 = vsel %vm7229, %v7212, %v6361
  %v7278 = vsel %vm7229, %v7213, %v6363
  %v7279 = vsel %vm7229, %v7214, %v6365
  %v7280 = vsel %vm7229, %v7215, %v6367
  %v7281 = vsel %vm7229, %v7216, %v6369
  %v7282 = vsel %vm7229, %v7217, %v6371
  %v7283 = vsel %vm7229, %v7218, %v6373
  %v7284 = vsel %vm7229, %v7219, %v6375
  %v7285 = vsel %vm7229, %v7220, %v6377
  %v7286 = vsel %vm7229, %v7221, %v6379
  %v7287 = vsel %vm7229, %v7222, %v6381
  %v7288 = vsel %vm7229, %v7223, %v6383
  %v7289 = vsel %vm7229, %v7224, %v6385
  %v7290 = vsel %vm7229, %v7225, %v6387
  %v7291 = vsel %vm7229, %v7226, %v6389
  %v7292 = vsel %vm7229, %v7227, %v6391
  %v7293 = vsel %vm7229, %v7228, %v6393
  %vm7294 = vcmask 785408
  %v7295 = vsel %vm7294, %v7230, %v6523
  %v7296 = vsel %vm7294, %v7231, %v6525
  %v7297 = vsel %vm7294, %v7232, %v6527
  %v7298 = vsel %vm7294, %v7233, %v6529
  %v7299 = vsel %vm7294, %v7234, %v6531
  %v7300 = vsel %vm7294, %v7235, %v6533
  %v7301 = vsel %vm7294, %v7236, %v6535
  %v7302 = vsel %vm7294, %v7237, %v6537
  %v7303 = vsel %vm7294, %v7238, %v6539
  %v7304 = vsel %vm7294, %v7239, %v6541
  %v7305 = vsel %vm7294, %v7240, %v6543
  %v7306 = vsel %vm7294, %v7241, %v6545
  %v7307 = vsel %vm7294, %v7242, %v6547
  %v7308 = vsel %vm7294, %v7243, %v6549
  %v7309 = vsel %vm7294, %v7244, %v6551
  %v7310 = vsel %vm7294, %v7245, %v6553
  %v7311 = vsel %vm7294, %v7246, %v6555
  %v7312 = vsel %vm7294, %v7247, %v6557
  %v7313 = vsel %vm7294, %v7248, %v6559
  %v7314 = vsel %vm7294, %v7249, %v6561
  %v7315 = vsel %vm7294, %v7250, %v6563
  %v7316 = vsel %vm7294, %v7251, %v6565
  %v7317 = vsel %vm7294, %v7252, %v6567
  %v7318 = vsel %vm7294, %v7253, %v6569
  %v7319 = vsel %vm7294, %v7254, %v6571
  %v7320 = vsel %vm7294, %v7255, %v6573
  %v7321 = vsel %vm7294, %v7256, %v6575
  %v7322 = vsel %vm7294, %v7257, %v6577
  %v7323 = vsel %vm7294, %v7258, %v6579
  %v7324 = vsel %vm7294, %v7259, %v6581
  %v7325 = vsel %vm7294, %v7260, %v6583
  %v7326 = vsel %vm7294, %v7261, %v6585
  %v7327 = vsel %vm7294, %v7262, %v6587
  %v7328 = vsel %vm7294, %v7263, %v6589
  %v7329 = vsel %vm7294, %v7264, %v6591
  %v7330 = vsel %vm7294, %v7265, %v6593
  %v7331 = vsel %vm7294, %v7266, %v6595
  %v7332 = vsel %vm7294, %v7267, %v6597
  %v7333 = vsel %vm7294, %v7268, %v6599
  %v7334 = vsel %vm7294, %v7269, %v6601
  %v7335 = vsel %vm7294, %v7270, %v6603
  %v7336 = vsel %vm7294, %v7271, %v6605
  %v7337 = vsel %vm7294, %v7272, %v6607
  %v7338 = vsel %vm7294, %v7273, %v6609
  %v7339 = vsel %vm7294, %v7274, %v6611
  %v7340 = vsel %vm7294, %v7275, %v6613
  %v7341 = vsel %vm7294, %v7276, %v6615
  %v7342 = vsel %vm7294, %v7277, %v6617
  %v7343 = vsel %vm7294, %v7278, %v6619
  %v7344 = vsel %vm7294, %v7279, %v6621
  %v7345 = vsel %vm7294, %v7280, %v6623
  %v7346 = vsel %vm7294, %v7281, %v6625
  %v7347 = vsel %vm7294, %v7282, %v6627
  %v7348 = vsel %vm7294, %v7283, %v6629
  %v7349 = vsel %vm7294, %v7284, %v6631
  %v7350 = vsel %vm7294, %v7285, %v6633
  %v7351 = vsel %vm7294, %v7286, %v6635
  %v7352 = vsel %vm7294, %v7287, %v6637
  %v7353 = vsel %vm7294, %v7288, %v6639
  %v7354 = vsel %vm7294, %v7289, %v6641
  %v7355 = vsel %vm7294, %v7290, %v6643
  %v7356 = vsel %vm7294, %v7291, %v6645
  %v7357 = vsel %vm7294, %v7292, %v6647
  %v7358 = vsel %vm7294, %v7293, %v6649
  %vm7359 = vcmask 916480
  %v7360 = vsel %vm7359, %v7295, %v6779
  %v7361 = vsel %vm7359, %v7296, %v6781
  %v7362 = vsel %vm7359, %v7297, %v6783
  %v7363 = vsel %vm7359, %v7298, %v6785
  %v7364 = vsel %vm7359, %v7299, %v6787
  %v7365 = vsel %vm7359, %v7300, %v6789
  %v7366 = vsel %vm7359, %v7301, %v6791
  %v7367 = vsel %vm7359, %v7302, %v6793
  %v7368 = vsel %vm7359, %v7303, %v6795
  %v7369 = vsel %vm7359, %v7304, %v6797
  %v7370 = vsel %vm7359, %v7305, %v6799
  %v7371 = vsel %vm7359, %v7306, %v6801
  %v7372 = vsel %vm7359, %v7307, %v6803
  %v7373 = vsel %vm7359, %v7308, %v6805
  %v7374 = vsel %vm7359, %v7309, %v6807
  %v7375 = vsel %vm7359, %v7310, %v6809
  %v7376 = vsel %vm7359, %v7311, %v6811
  %v7377 = vsel %vm7359, %v7312, %v6813
  %v7378 = vsel %vm7359, %v7313, %v6815
  %v7379 = vsel %vm7359, %v7314, %v6817
  %v7380 = vsel %vm7359, %v7315, %v6819
  %v7381 = vsel %vm7359, %v7316, %v6821
  %v7382 = vsel %vm7359, %v7317, %v6823
  %v7383 = vsel %vm7359, %v7318, %v6825
  %v7384 = vsel %vm7359, %v7319, %v6827
  %v7385 = vsel %vm7359, %v7320, %v6829
  %v7386 = vsel %vm7359, %v7321, %v6831
  %v7387 = vsel %vm7359, %v7322, %v6833
  %v7388 = vsel %vm7359, %v7323, %v6835
  %v7389 = vsel %vm7359, %v7324, %v6837
  %v7390 = vsel %vm7359, %v7325, %v6839
  %v7391 = vsel %vm7359, %v7326, %v6841
  %v7392 = vsel %vm7359, %v7327, %v6843
  %v7393 = vsel %vm7359, %v7328, %v6845
  %v7394 = vsel %vm7359, %v7329, %v6847
  %v7395 = vsel %vm7359, %v7330, %v6849
  %v7396 = vsel %vm7359, %v7331, %v6851
  %v7397 = vsel %vm7359, %v7332, %v6853
  %v7398 = vsel %vm7359, %v7333, %v6855
  %v7399 = vsel %vm7359, %v7334, %v6857
  %v7400 = vsel %vm7359, %v7335, %v6859
  %v7401 = vsel %vm7359, %v7336, %v6861
  %v7402 = vsel %vm7359, %v7337, %v6863
  %v7403 = vsel %vm7359, %v7338, %v6865
  %v7404 = vsel %vm7359, %v7339, %v6867
  %v7405 = vsel %vm7359, %v7340, %v6869
  %v7406 = vsel %vm7359, %v7341, %v6871
  %v7407 = vsel %vm7359, %v7342, %v6873
  %v7408 = vsel %vm7359, %v7343, %v6875
  %v7409 = vsel %vm7359, %v7344, %v6877
  %v7410 = vsel %vm7359, %v7345, %v6879
  %v7411 = vsel %vm7359, %v7346, %v6881
  %v7412 = vsel %vm7359, %v7347, %v6883
  %v7413 = vsel %vm7359, %v7348, %v6885
  %v7414 = vsel %vm7359, %v7349, %v6887
  %v7415 = vsel %vm7359, %v7350, %v6889
  %v7416 = vsel %vm7359, %v7351, %v6891
  %v7417 = vsel %vm7359, %v7352, %v6893
  %v7418 = vsel %vm7359, %v7353, %v6895
  %v7419 = vsel %vm7359, %v7354, %v6897
  %v7420 = vsel %vm7359, %v7355, %v6899
  %v7421 = vsel %vm7359, %v7356, %v6901
  %v7422 = vsel %vm7359, %v7357, %v6903
  %v7423 = vsel %vm7359, %v7358, %v6905
  %v7424 = vld [vmem:[%s3] sm:$0xff]
  %v7425 = vld [vmem:[%s3 + $0x8] sm:$0xff]
  %v7426 = vld [vmem:[%s3 + $0x10] sm:$0xff]
  %v7427 = vld [vmem:[%s3 + $0x18] sm:$0xff]
  %v7428 = vld [vmem:[%s3 + $0x20] sm:$0xff]
  %v7429 = vld [vmem:[%s3 + $0x28] sm:$0xff]
  %v7430 = vld [vmem:[%s3 + $0x30] sm:$0xff]
  %v7431 = vld [vmem:[%s3 + $0x38] sm:$0xff]
  %v7432 = vld [vmem:[%s3 + $0x40] sm:$0xff]
  %v7433 = vld [vmem:[%s3 + $0x48] sm:$0xff]
  %v7434 = vld [vmem:[%s3 + $0x50] sm:$0xff]
  %v7435 = vld [vmem:[%s3 + $0x58] sm:$0xff]
  %v7436 = vld [vmem:[%s3 + $0x60] sm:$0xff]
  %v7437 = vld [vmem:[%s3 + $0x68] sm:$0xff]
  %v7438 = vld [vmem:[%s3 + $0x70] sm:$0xff]
  %v7439 = vld [vmem:[%s3 + $0x78] sm:$0xff]
  %v7440 = vld [vmem:[%s3 + $0x80] sm:$0xff]
  %v7441 = vld [vmem:[%s3 + $0x88] sm:$0xff]
  %v7442 = vld [vmem:[%s4] sm:$0x1]
  %v7444 = vperm.slane %v7442, 0
  %v7447 = vsel %vm103, %v5114, 0
  %v7450 = vsel %vm103, %v5115, 0
  %v7453 = vsel %vm103, %v5116, 0
  %v7456 = vsel %vm103, %v5117, 0
  %v7459 = vsel %vm103, %v5118, 0
  %v7462 = vsel %vm103, %v5119, 0
  %v7465 = vsel %vm103, %v5120, 0
  %v7468 = vsel %vm103, %v5121, 0
  %v7471 = vsel %vm103, %v5122, 0
  %v7474 = vsel %vm103, %v5123, 0
  %v7477 = vsel %vm103, %v5124, 0
  %v7480 = vsel %vm103, %v5125, 0
  %v7483 = vsel %vm103, %v5126, 0
  %v7486 = vsel %vm103, %v5127, 0
  %v7489 = vsel %vm103, %v5128, 0
  %v7492 = vsel %vm103, %v5129, 0
  %v7495 = vsel %vm103, %v5130, 0
  %v7498 = vsel %vm103, %v5131, 0
  %v7501 = vsel %vm103, %v5132, 0
  %v7504 = vsel %vm103, %v5133, 0
  %v7507 = vsel %vm103, %v5134, 0
  %v7510 = vsel %vm103, %v5135, 0
  %v7513 = vsel %vm103, %v5136, 0
  %v7516 = vsel %vm103, %v5137, 0
  %v7519 = vsel %vm103, %v5138, 0
  %v7522 = vsel %vm103, %v5139, 0
  %v7525 = vsel %vm103, %v5140, 0
  %v7528 = vsel %vm103, %v5141, 0
  %v7531 = vsel %vm103, %v5142, 0
  %v7534 = vsel %vm103, %v5143, 0
  %v7537 = vsel %vm103, %v5144, 0
  %v7540 = vsel %vm103, %v5145, 0
  %v7543 = vsel %vm103, %v5146, 0
  %v7546 = vsel %vm103, %v5147, 0
  %v7549 = vsel %vm103, %v5148, 0
  %v7552 = vsel %vm103, %v5149, 0
  %v7555 = vsel %vm103, %v5150, 0
  %v7558 = vsel %vm103, %v5151, 0
  %v7561 = vsel %vm103, %v5152, 0
  %v7564 = vsel %vm103, %v5153, 0
  %v7567 = vsel %vm103, %v5154, 0
  %v7570 = vsel %vm103, %v5155, 0
  %v7573 = vsel %vm103, %v5156, 0
  %v7576 = vsel %vm103, %v5157, 0
  %v7579 = vsel %vm103, %v5158, 0
  %v7582 = vsel %vm103, %v5159, 0
  %v7585 = vsel %vm103, %v5160, 0
  %v7588 = vsel %vm103, %v5161, 0
  %v7591 = vsel %vm103, %v5162, 0
  %v7594 = vsel %vm103, %v5163, 0
  %v7597 = vsel %vm103, %v5164, 0
  %v7600 = vsel %vm103, %v5165, 0
  %v7603 = vsel %vm103, %v5166, 0
  %v7606 = vsel %vm103, %v5167, 0
  %v7609 = vsel %vm103, %v5168, 0
  %v7612 = vsel %vm103, %v5169, 0
  %v7615 = vsel %vm103, %v5170, 0
  %v7618 = vsel %vm103, %v5171, 0
  %v7621 = vsel %vm103, %v5172, 0
  %v7624 = vsel %vm103, %v5173, 0
  %v7627 = vsel %vm103, %v5174, 0
  %v7630 = vsel %vm103, %v5175, 0
  %v7633 = vsel %vm103, %v5176, 0
  %v7636 = vsel %vm103, %v5177, 0
  %7638 = vmatpush.msra.mxu0 %v7439
  %7639 = vmatpush.msra.mxu0 %v7438
  %7640 = vmatpush.msra.mxu0 %v7437
  %7641 = vmatpush.msra.mxu0 %v7436
  %7642 = vmatpush.msra.mxu0 %v7435
  %7643 = vmatpush.msra.mxu0 %v7434
  %7644 = vmatpush.msra.mxu0 %v7433
  %7645 = vmatpush.msra.mxu0 %v7432
  %7646 = vmatpush.msra.mxu0 %v7431
  %7647 = vmatpush.msra.mxu0 %v7430
  %7648 = vmatpush.msra.mxu0 %v7429
  %7649 = vmatpush.msra.mxu0 %v7428
  %7650 = vmatpush.msra.mxu0 %v7427
  %7651 = vmatpush.msra.mxu0 %v7426
  %7652 = vmatpush.msra.mxu0 %v7425
  %7653 = vmatpush.msra.mxu0 %v7424
  %7654 = vmatmul.f32.gmra.mxu0 %v7360
  %v7655 = vpop.f32.mrf.mxu0
  %v7656 = vadd.f32 %v7444, %v7655
  %7657 = vmatmul.f32.gmra.mxu0 %v7361
  %v7658 = vpop.f32.mrf.mxu0
  %v7659 = vadd.f32 %v7444, %v7658
  %7660 = vmatmul.f32.gmra.mxu0 %v7362
  %v7661 = vpop.f32.mrf.mxu0
  %v7662 = vadd.f32 %v7444, %v7661
  %7663 = vmatmul.f32.gmra.mxu0 %v7363
  %v7664 = vpop.f32.mrf.mxu0
  %v7665 = vadd.f32 %v7444, %v7664
  %7666 = vmatmul.f32.gmra.mxu0 %v7364
  %v7667 = vpop.f32.mrf.mxu0
  %v7668 = vadd.f32 %v7444, %v7667
  %7669 = vmatmul.f32.gmra.mxu0 %v7365
  %v7670 = vpop.f32.mrf.mxu0
  %v7671 = vadd.f32 %v7444, %v7670
  %7672 = vmatmul.f32.gmra.mxu0 %v7366
  %v7673 = vpop.f32.mrf.mxu0
  %v7674 = vadd.f32 %v7444, %v7673
  %7675 = vmatmul.f32.gmra.mxu0 %v7367
  %v7676 = vpop.f32.mrf.mxu0
  %v7677 = vadd.f32 %v7444, %v7676
  %7678 = vmatmul.f32.gmra.mxu0 %v7368
  %v7679 = vpop.f32.mrf.mxu0
  %v7680 = vadd.f32 %v7444, %v7679
  %7681 = vmatmul.f32.gmra.mxu0 %v7369
  %v7682 = vpop.f32.mrf.mxu0
  %v7683 = vadd.f32 %v7444, %v7682
  %7684 = vmatmul.f32.gmra.mxu0 %v7370
  %v7685 = vpop.f32.mrf.mxu0
  %v7686 = vadd.f32 %v7444, %v7685
  %7687 = vmatmul.f32.gmra.mxu0 %v7371
  %v7688 = vpop.f32.mrf.mxu0
  %v7689 = vadd.f32 %v7444, %v7688
  %7690 = vmatmul.f32.gmra.mxu0 %v7372
  %v7691 = vpop.f32.mrf.mxu0
  %v7692 = vadd.f32 %v7444, %v7691
  %7693 = vmatmul.f32.gmra.mxu0 %v7373
  %v7694 = vpop.f32.mrf.mxu0
  %v7695 = vadd.f32 %v7444, %v7694
  %7696 = vmatmul.f32.gmra.mxu0 %v7374
  %v7697 = vpop.f32.mrf.mxu0
  %v7698 = vadd.f32 %v7444, %v7697
  %7699 = vmatmul.f32.gmra.mxu0 %v7375
  %v7700 = vpop.f32.mrf.mxu0
  %v7701 = vadd.f32 %v7444, %v7700
  %7702 = vmatmul.f32.gmra.mxu0 %v7376
  %v7703 = vpop.f32.mrf.mxu0
  %v7704 = vadd.f32 %v7444, %v7703
  %7705 = vmatmul.f32.gmra.mxu0 %v7377
  %v7706 = vpop.f32.mrf.mxu0
  %v7707 = vadd.f32 %v7444, %v7706
  %7708 = vmatmul.f32.gmra.mxu0 %v7378
  %v7709 = vpop.f32.mrf.mxu0
  %v7710 = vadd.f32 %v7444, %v7709
  %7711 = vmatmul.f32.gmra.mxu0 %v7379
  %v7712 = vpop.f32.mrf.mxu0
  %v7713 = vadd.f32 %v7444, %v7712
  %7714 = vmatmul.f32.gmra.mxu0 %v7380
  %v7715 = vpop.f32.mrf.mxu0
  %v7716 = vadd.f32 %v7444, %v7715
  %7717 = vmatmul.f32.gmra.mxu0 %v7381
  %v7718 = vpop.f32.mrf.mxu0
  %v7719 = vadd.f32 %v7444, %v7718
  %7720 = vmatmul.f32.gmra.mxu0 %v7382
  %v7721 = vpop.f32.mrf.mxu0
  %v7722 = vadd.f32 %v7444, %v7721
  %7723 = vmatmul.f32.gmra.mxu0 %v7383
  %v7724 = vpop.f32.mrf.mxu0
  %v7725 = vadd.f32 %v7444, %v7724
  %7726 = vmatmul.f32.gmra.mxu0 %v7384
  %v7727 = vpop.f32.mrf.mxu0
  %v7728 = vadd.f32 %v7444, %v7727
  %7729 = vmatmul.f32.gmra.mxu0 %v7385
  %v7730 = vpop.f32.mrf.mxu0
  %v7731 = vadd.f32 %v7444, %v7730
  %7732 = vmatmul.f32.gmra.mxu0 %v7386
  %v7733 = vpop.f32.mrf.mxu0
  %v7734 = vadd.f32 %v7444, %v7733
  %7735 = vmatmul.f32.gmra.mxu0 %v7387
  %v7736 = vpop.f32.mrf.mxu0
  %v7737 = vadd.f32 %v7444, %v7736
  %7738 = vmatmul.f32.gmra.mxu0 %v7388
  %v7739 = vpop.f32.mrf.mxu0
  %v7740 = vadd.f32 %v7444, %v7739
  %7741 = vmatmul.f32.gmra.mxu0 %v7389
  %v7742 = vpop.f32.mrf.mxu0
  %v7743 = vadd.f32 %v7444, %v7742
  %7744 = vmatmul.f32.gmra.mxu0 %v7390
  %v7745 = vpop.f32.mrf.mxu0
  %v7746 = vadd.f32 %v7444, %v7745
  %7747 = vmatmul.f32.gmra.mxu0 %v7391
  %v7748 = vpop.f32.mrf.mxu0
  %v7749 = vadd.f32 %v7444, %v7748
  %7750 = vmatmul.f32.gmra.mxu0 %v7392
  %v7751 = vpop.f32.mrf.mxu0
  %v7752 = vadd.f32 %v7444, %v7751
  %7753 = vmatmul.f32.gmra.mxu0 %v7393
  %v7754 = vpop.f32.mrf.mxu0
  %v7755 = vadd.f32 %v7444, %v7754
  %7756 = vmatmul.f32.gmra.mxu0 %v7394
  %v7757 = vpop.f32.mrf.mxu0
  %v7758 = vadd.f32 %v7444, %v7757
  %7759 = vmatmul.f32.gmra.mxu0 %v7395
  %v7760 = vpop.f32.mrf.mxu0
  %v7761 = vadd.f32 %v7444, %v7760
  %7762 = vmatmul.f32.gmra.mxu0 %v7396
  %v7763 = vpop.f32.mrf.mxu0
  %v7764 = vadd.f32 %v7444, %v7763
  %7765 = vmatmul.f32.gmra.mxu0 %v7397
  %v7766 = vpop.f32.mrf.mxu0
  %v7767 = vadd.f32 %v7444, %v7766
  %7768 = vmatmul.f32.gmra.mxu0 %v7398
  %v7769 = vpop.f32.mrf.mxu0
  %v7770 = vadd.f32 %v7444, %v7769
  %7771 = vmatmul.f32.gmra.mxu0 %v7399
  %v7772 = vpop.f32.mrf.mxu0
  %v7773 = vadd.f32 %v7444, %v7772
  %7774 = vmatmul.f32.gmra.mxu0 %v7400
  %v7775 = vpop.f32.mrf.mxu0
  %v7776 = vadd.f32 %v7444, %v7775
  %7777 = vmatmul.f32.gmra.mxu0 %v7401
  %v7778 = vpop.f32.mrf.mxu0
  %v7779 = vadd.f32 %v7444, %v7778
  %7780 = vmatmul.f32.gmra.mxu0 %v7402
  %v7781 = vpop.f32.mrf.mxu0
  %v7782 = vadd.f32 %v7444, %v7781
  %7783 = vmatmul.f32.gmra.mxu0 %v7403
  %v7784 = vpop.f32.mrf.mxu0
  %v7785 = vadd.f32 %v7444, %v7784
  %7786 = vmatmul.f32.gmra.mxu0 %v7404
  %v7787 = vpop.f32.mrf.mxu0
  %v7788 = vadd.f32 %v7444, %v7787
  %7789 = vmatmul.f32.gmra.mxu0 %v7405
  %v7790 = vpop.f32.mrf.mxu0
  %v7791 = vadd.f32 %v7444, %v7790
  %7792 = vmatmul.f32.gmra.mxu0 %v7406
  %v7793 = vpop.f32.mrf.mxu0
  %v7794 = vadd.f32 %v7444, %v7793
  %7795 = vmatmul.f32.gmra.mxu0 %v7407
  %v7796 = vpop.f32.mrf.mxu0
  %v7797 = vadd.f32 %v7444, %v7796
  %7798 = vmatmul.f32.gmra.mxu0 %v7408
  %v7799 = vpop.f32.mrf.mxu0
  %v7800 = vadd.f32 %v7444, %v7799
  %7801 = vmatmul.f32.gmra.mxu0 %v7409
  %v7802 = vpop.f32.mrf.mxu0
  %v7803 = vadd.f32 %v7444, %v7802
  %7804 = vmatmul.f32.gmra.mxu0 %v7410
  %v7805 = vpop.f32.mrf.mxu0
  %v7806 = vadd.f32 %v7444, %v7805
  %7807 = vmatmul.f32.gmra.mxu0 %v7411
  %v7808 = vpop.f32.mrf.mxu0
  %v7809 = vadd.f32 %v7444, %v7808
  %7810 = vmatmul.f32.gmra.mxu0 %v7412
  %v7811 = vpop.f32.mrf.mxu0
  %v7812 = vadd.f32 %v7444, %v7811
  %7813 = vmatmul.f32.gmra.mxu0 %v7413
  %v7814 = vpop.f32.mrf.mxu0
  %v7815 = vadd.f32 %v7444, %v7814
  %7816 = vmatmul.f32.gmra.mxu0 %v7414
  %v7817 = vpop.f32.mrf.mxu0
  %v7818 = vadd.f32 %v7444, %v7817
  %7819 = vmatmul.f32.gmra.mxu0 %v7415
  %v7820 = vpop.f32.mrf.mxu0
  %v7821 = vadd.f32 %v7444, %v7820
  %7822 = vmatmul.f32.gmra.mxu0 %v7416
  %v7823 = vpop.f32.mrf.mxu0
  %v7824 = vadd.f32 %v7444, %v7823
  %7825 = vmatmul.f32.gmra.mxu0 %v7417
  %v7826 = vpop.f32.mrf.mxu0
  %v7827 = vadd.f32 %v7444, %v7826
  %7828 = vmatmul.f32.gmra.mxu0 %v7418
  %v7829 = vpop.f32.mrf.mxu0
  %v7830 = vadd.f32 %v7444, %v7829
  %7831 = vmatmul.f32.gmra.mxu0 %v7419
  %v7832 = vpop.f32.mrf.mxu0
  %v7833 = vadd.f32 %v7444, %v7832
  %7834 = vmatmul.f32.gmra.mxu0 %v7420
  %v7835 = vpop.f32.mrf.mxu0
  %v7836 = vadd.f32 %v7444, %v7835
  %7837 = vmatmul.f32.gmra.mxu0 %v7421
  %v7838 = vpop.f32.mrf.mxu0
  %v7839 = vadd.f32 %v7444, %v7838
  %7840 = vmatmul.f32.gmra.mxu0 %v7422
  %v7841 = vpop.f32.mrf.mxu0
  %v7842 = vadd.f32 %v7444, %v7841
  %7843 = vmatmul.f32.gmra.mxu0 %v7423
  %v7844 = vpop.f32.mrf.mxu0
  %v7845 = vadd.f32 %v7444, %v7844
  %7846 = vdwg.mxu0
  %7847 = vmatpush.msra.mxu0 0.0
  %7848 = vmatpush.msra.mxu0 0.0
  %7849 = vmatpush.msra.mxu0 0.0
  %7850 = vmatpush.msra.mxu0 0.0
  %7851 = vmatpush.msra.mxu0 0.0
  %7852 = vmatpush.msra.mxu0 0.0
  %7853 = vmatpush.msra.mxu0 0.0
  %7854 = vmatpush.msra.mxu0 0.0
  %7855 = vmatpush.msra.mxu0 0.0
  %7856 = vmatpush.msra.mxu0 0.0
  %7857 = vmatpush.msra.mxu0 0.0
  %7858 = vmatpush.msra.mxu0 0.0
  %7859 = vmatpush.msra.mxu0 0.0
  %7860 = vmatpush.msra.mxu0 0.0
  %7861 = vmatpush.msra.mxu0 %v7441
  %7862 = vmatpush.msra.mxu0 %v7440
  %7863 = vmatmul.f32.gmra.mxu0 %v7447
  %v7864 = vpop.f32.mrf.mxu0
  %v7865 = vadd.f32 %v7656, %v7864
  %7866 = vmatmul.f32.gmra.mxu0 %v7450
  %v7867 = vpop.f32.mrf.mxu0
  %v7868 = vadd.f32 %v7659, %v7867
  %7869 = vmatmul.f32.gmra.mxu0 %v7453
  %v7870 = vpop.f32.mrf.mxu0
  %v7871 = vadd.f32 %v7662, %v7870
  %7872 = vmatmul.f32.gmra.mxu0 %v7456
  %v7873 = vpop.f32.mrf.mxu0
  %v7874 = vadd.f32 %v7665, %v7873
  %7875 = vmatmul.f32.gmra.mxu0 %v7459
  %v7876 = vpop.f32.mrf.mxu0
  %v7877 = vadd.f32 %v7668, %v7876
  %7878 = vmatmul.f32.gmra.mxu0 %v7462
  %v7879 = vpop.f32.mrf.mxu0
  %v7880 = vadd.f32 %v7671, %v7879
  %7881 = vmatmul.f32.gmra.mxu0 %v7465
  %v7882 = vpop.f32.mrf.mxu0
  %v7883 = vadd.f32 %v7674, %v7882
  %7884 = vmatmul.f32.gmra.mxu0 %v7468
  %v7885 = vpop.f32.mrf.mxu0
  %v7886 = vadd.f32 %v7677, %v7885
  %7887 = vmatmul.f32.gmra.mxu0 %v7471
  %v7888 = vpop.f32.mrf.mxu0
  %v7889 = vadd.f32 %v7680, %v7888
  %7890 = vmatmul.f32.gmra.mxu0 %v7474
  %v7891 = vpop.f32.mrf.mxu0
  %v7892 = vadd.f32 %v7683, %v7891
  %7893 = vmatmul.f32.gmra.mxu0 %v7477
  %v7894 = vpop.f32.mrf.mxu0
  %v7895 = vadd.f32 %v7686, %v7894
  %7896 = vmatmul.f32.gmra.mxu0 %v7480
  %v7897 = vpop.f32.mrf.mxu0
  %v7898 = vadd.f32 %v7689, %v7897
  %7899 = vmatmul.f32.gmra.mxu0 %v7483
  %v7900 = vpop.f32.mrf.mxu0
  %v7901 = vadd.f32 %v7692, %v7900
  %7902 = vmatmul.f32.gmra.mxu0 %v7486
  %v7903 = vpop.f32.mrf.mxu0
  %v7904 = vadd.f32 %v7695, %v7903
  %7905 = vmatmul.f32.gmra.mxu0 %v7489
  %v7906 = vpop.f32.mrf.mxu0
  %v7907 = vadd.f32 %v7698, %v7906
  %7908 = vmatmul.f32.gmra.mxu0 %v7492
  %v7909 = vpop.f32.mrf.mxu0
  %v7910 = vadd.f32 %v7701, %v7909
  %7911 = vmatmul.f32.gmra.mxu0 %v7495
  %v7912 = vpop.f32.mrf.mxu0
  %v7913 = vadd.f32 %v7704, %v7912
  %7914 = vmatmul.f32.gmra.mxu0 %v7498
  %v7915 = vpop.f32.mrf.mxu0
  %v7916 = vadd.f32 %v7707, %v7915
  %7917 = vmatmul.f32.gmra.mxu0 %v7501
  %v7918 = vpop.f32.mrf.mxu0
  %v7919 = vadd.f32 %v7710, %v7918
  %7920 = vmatmul.f32.gmra.mxu0 %v7504
  %v7921 = vpop.f32.mrf.mxu0
  %v7922 = vadd.f32 %v7713, %v7921
  %7923 = vmatmul.f32.gmra.mxu0 %v7507
  %v7924 = vpop.f32.mrf.mxu0
  %v7925 = vadd.f32 %v7716, %v7924
  %7926 = vmatmul.f32.gmra.mxu0 %v7510
  %v7927 = vpop.f32.mrf.mxu0
  %v7928 = vadd.f32 %v7719, %v7927
  %7929 = vmatmul.f32.gmra.mxu0 %v7513
  %v7930 = vpop.f32.mrf.mxu0
  %v7931 = vadd.f32 %v7722, %v7930
  %7932 = vmatmul.f32.gmra.mxu0 %v7516
  %v7933 = vpop.f32.mrf.mxu0
  %v7934 = vadd.f32 %v7725, %v7933
  %7935 = vmatmul.f32.gmra.mxu0 %v7519
  %v7936 = vpop.f32.mrf.mxu0
  %v7937 = vadd.f32 %v7728, %v7936
  %7938 = vmatmul.f32.gmra.mxu0 %v7522
  %v7939 = vpop.f32.mrf.mxu0
  %v7940 = vadd.f32 %v7731, %v7939
  %7941 = vmatmul.f32.gmra.mxu0 %v7525
  %v7942 = vpop.f32.mrf.mxu0
  %v7943 = vadd.f32 %v7734, %v7942
  %7944 = vmatmul.f32.gmra.mxu0 %v7528
  %v7945 = vpop.f32.mrf.mxu0
  %v7946 = vadd.f32 %v7737, %v7945
  %7947 = vmatmul.f32.gmra.mxu0 %v7531
  %v7948 = vpop.f32.mrf.mxu0
  %v7949 = vadd.f32 %v7740, %v7948
  %7950 = vmatmul.f32.gmra.mxu0 %v7534
  %v7951 = vpop.f32.mrf.mxu0
  %v7952 = vadd.f32 %v7743, %v7951
  %7953 = vmatmul.f32.gmra.mxu0 %v7537
  %v7954 = vpop.f32.mrf.mxu0
  %v7955 = vadd.f32 %v7746, %v7954
  %7956 = vmatmul.f32.gmra.mxu0 %v7540
  %v7957 = vpop.f32.mrf.mxu0
  %v7958 = vadd.f32 %v7749, %v7957
  %7959 = vmatmul.f32.gmra.mxu0 %v7543
  %v7960 = vpop.f32.mrf.mxu0
  %v7961 = vadd.f32 %v7752, %v7960
  %7962 = vmatmul.f32.gmra.mxu0 %v7546
  %v7963 = vpop.f32.mrf.mxu0
  %v7964 = vadd.f32 %v7755, %v7963
  %7965 = vmatmul.f32.gmra.mxu0 %v7549
  %v7966 = vpop.f32.mrf.mxu0
  %v7967 = vadd.f32 %v7758, %v7966
  %7968 = vmatmul.f32.gmra.mxu0 %v7552
  %v7969 = vpop.f32.mrf.mxu0
  %v7970 = vadd.f32 %v7761, %v7969
  %7971 = vmatmul.f32.gmra.mxu0 %v7555
  %v7972 = vpop.f32.mrf.mxu0
  %v7973 = vadd.f32 %v7764, %v7972
  %7974 = vmatmul.f32.gmra.mxu0 %v7558
  %v7975 = vpop.f32.mrf.mxu0
  %v7976 = vadd.f32 %v7767, %v7975
  %7977 = vmatmul.f32.gmra.mxu0 %v7561
  %v7978 = vpop.f32.mrf.mxu0
  %v7979 = vadd.f32 %v7770, %v7978
  %7980 = vmatmul.f32.gmra.mxu0 %v7564
  %v7981 = vpop.f32.mrf.mxu0
  %v7982 = vadd.f32 %v7773, %v7981
  %7983 = vmatmul.f32.gmra.mxu0 %v7567
  %v7984 = vpop.f32.mrf.mxu0
  %v7985 = vadd.f32 %v7776, %v7984
  %7986 = vmatmul.f32.gmra.mxu0 %v7570
  %v7987 = vpop.f32.mrf.mxu0
  %v7988 = vadd.f32 %v7779, %v7987
  %7989 = vmatmul.f32.gmra.mxu0 %v7573
  %v7990 = vpop.f32.mrf.mxu0
  %v7991 = vadd.f32 %v7782, %v7990
  %7992 = vmatmul.f32.gmra.mxu0 %v7576
  %v7993 = vpop.f32.mrf.mxu0
  %v7994 = vadd.f32 %v7785, %v7993
  %7995 = vmatmul.f32.gmra.mxu0 %v7579
  %v7996 = vpop.f32.mrf.mxu0
  %v7997 = vadd.f32 %v7788, %v7996
  %7998 = vmatmul.f32.gmra.mxu0 %v7582
  %v7999 = vpop.f32.mrf.mxu0
  %v8000 = vadd.f32 %v7791, %v7999
  %8001 = vmatmul.f32.gmra.mxu0 %v7585
  %v8002 = vpop.f32.mrf.mxu0
  %v8003 = vadd.f32 %v7794, %v8002
  %8004 = vmatmul.f32.gmra.mxu0 %v7588
  %v8005 = vpop.f32.mrf.mxu0
  %v8006 = vadd.f32 %v7797, %v8005
  %8007 = vmatmul.f32.gmra.mxu0 %v7591
  %v8008 = vpop.f32.mrf.mxu0
  %v8009 = vadd.f32 %v7800, %v8008
  %8010 = vmatmul.f32.gmra.mxu0 %v7594
  %v8011 = vpop.f32.mrf.mxu0
  %v8012 = vadd.f32 %v7803, %v8011
  %8013 = vmatmul.f32.gmra.mxu0 %v7597
  %v8014 = vpop.f32.mrf.mxu0
  %v8015 = vadd.f32 %v7806, %v8014
  %8016 = vmatmul.f32.gmra.mxu0 %v7600
  %v8017 = vpop.f32.mrf.mxu0
  %v8018 = vadd.f32 %v7809, %v8017
  %8019 = vmatmul.f32.gmra.mxu0 %v7603
  %v8020 = vpop.f32.mrf.mxu0
  %v8021 = vadd.f32 %v7812, %v8020
  %8022 = vmatmul.f32.gmra.mxu0 %v7606
  %v8023 = vpop.f32.mrf.mxu0
  %v8024 = vadd.f32 %v7815, %v8023
  %8025 = vmatmul.f32.gmra.mxu0 %v7609
  %v8026 = vpop.f32.mrf.mxu0
  %v8027 = vadd.f32 %v7818, %v8026
  %8028 = vmatmul.f32.gmra.mxu0 %v7612
  %v8029 = vpop.f32.mrf.mxu0
  %v8030 = vadd.f32 %v7821, %v8029
  %8031 = vmatmul.f32.gmra.mxu0 %v7615
  %v8032 = vpop.f32.mrf.mxu0
  %v8033 = vadd.f32 %v7824, %v8032
  %8034 = vmatmul.f32.gmra.mxu0 %v7618
  %v8035 = vpop.f32.mrf.mxu0
  %v8036 = vadd.f32 %v7827, %v8035
  %8037 = vmatmul.f32.gmra.mxu0 %v7621
  %v8038 = vpop.f32.mrf.mxu0
  %v8039 = vadd.f32 %v7830, %v8038
  %8040 = vmatmul.f32.gmra.mxu0 %v7624
  %v8041 = vpop.f32.mrf.mxu0
  %v8042 = vadd.f32 %v7833, %v8041
  %8043 = vmatmul.f32.gmra.mxu0 %v7627
  %v8044 = vpop.f32.mrf.mxu0
  %v8045 = vadd.f32 %v7836, %v8044
  %8046 = vmatmul.f32.gmra.mxu0 %v7630
  %v8047 = vpop.f32.mrf.mxu0
  %v8048 = vadd.f32 %v7839, %v8047
  %8049 = vmatmul.f32.gmra.mxu0 %v7633
  %v8050 = vpop.f32.mrf.mxu0
  %v8051 = vadd.f32 %v7842, %v8050
  %8052 = vmatmul.f32.gmra.mxu0 %v7636
  %v8053 = vpop.f32.mrf.mxu0
  %v8054 = vadd.f32 %v7845, %v8053
  %8055 = vdwg.mxu0
  %v8056 = vsel %vm7034, %v7865, 0.0
  %v8057 = vsel %vm7034, %v7868, 0.0
  %v8058 = vadd.f32 %v8056, %v8057
  %v8059 = vsel %vm7034, %v7871, 0.0
  %v8060 = vadd.f32 %v8058, %v8059
  %v8061 = vsel %vm7034, %v7874, 0.0
  %v8062 = vadd.f32 %v8060, %v8061
  %v8063 = vsel %vm7034, %v7877, 0.0
  %v8064 = vadd.f32 %v8062, %v8063
  %v8065 = vsel %vm7034, %v7880, 0.0
  %v8066 = vadd.f32 %v8064, %v8065
  %v8067 = vsel %vm7034, %v7883, 0.0
  %v8068 = vadd.f32 %v8066, %v8067
  %v8069 = vsel %vm7034, %v7886, 0.0
  %v8070 = vadd.f32 %v8068, %v8069
  %v8071 = vsel %vm7034, %v7889, 0.0
  %v8072 = vadd.f32 %v8070, %v8071
  %v8073 = vsel %vm7034, %v7892, 0.0
  %v8074 = vadd.f32 %v8072, %v8073
  %v8075 = vsel %vm7034, %v7895, 0.0
  %v8076 = vadd.f32 %v8074, %v8075
  %v8077 = vsel %vm7034, %v7898, 0.0
  %v8078 = vadd.f32 %v8076, %v8077
  %v8079 = vsel %vm7034, %v7901, 0.0
  %v8080 = vadd.f32 %v8078, %v8079
  %v8081 = vsel %vm7034, %v7904, 0.0
  %v8082 = vadd.f32 %v8080, %v8081
  %v8083 = vsel %vm7034, %v7907, 0.0
  %v8084 = vadd.f32 %v8082, %v8083
  %v8085 = vsel %vm7034, %v7910, 0.0
  %v8086 = vadd.f32 %v8084, %v8085
  %v8087 = vsel %vm7034, %v7913, 0.0
  %v8088 = vadd.f32 %v8086, %v8087
  %v8089 = vsel %vm7034, %v7916, 0.0
  %v8090 = vadd.f32 %v8088, %v8089
  %v8091 = vsel %vm7034, %v7919, 0.0
  %v8092 = vadd.f32 %v8090, %v8091
  %v8093 = vsel %vm7034, %v7922, 0.0
  %v8094 = vadd.f32 %v8092, %v8093
  %v8095 = vsel %vm7034, %v7925, 0.0
  %v8096 = vadd.f32 %v8094, %v8095
  %v8097 = vsel %vm7034, %v7928, 0.0
  %v8098 = vadd.f32 %v8096, %v8097
  %v8099 = vsel %vm7034, %v7931, 0.0
  %v8100 = vadd.f32 %v8098, %v8099
  %v8101 = vsel %vm7034, %v7934, 0.0
  %v8102 = vadd.f32 %v8100, %v8101
  %v8103 = vsel %vm7034, %v7937, 0.0
  %v8104 = vadd.f32 %v8102, %v8103
  %v8105 = vsel %vm7034, %v7940, 0.0
  %v8106 = vadd.f32 %v8104, %v8105
  %v8107 = vsel %vm7034, %v7943, 0.0
  %v8108 = vadd.f32 %v8106, %v8107
  %v8109 = vsel %vm7034, %v7946, 0.0
  %v8110 = vadd.f32 %v8108, %v8109
  %v8111 = vsel %vm7034, %v7949, 0.0
  %v8112 = vadd.f32 %v8110, %v8111
  %v8113 = vsel %vm7034, %v7952, 0.0
  %v8114 = vadd.f32 %v8112, %v8113
  %v8115 = vsel %vm7034, %v7955, 0.0
  %v8116 = vadd.f32 %v8114, %v8115
  %v8117 = vsel %vm7034, %v7958, 0.0
  %v8118 = vadd.f32 %v8116, %v8117
  %v8119 = vsel %vm7034, %v7961, 0.0
  %v8120 = vadd.f32 %v8118, %v8119
  %v8121 = vsel %vm7034, %v7964, 0.0
  %v8122 = vadd.f32 %v8120, %v8121
  %v8123 = vsel %vm7034, %v7967, 0.0
  %v8124 = vadd.f32 %v8122, %v8123
  %v8125 = vsel %vm7034, %v7970, 0.0
  %v8126 = vadd.f32 %v8124, %v8125
  %v8127 = vsel %vm7034, %v7973, 0.0
  %v8128 = vadd.f32 %v8126, %v8127
  %v8129 = vsel %vm7034, %v7976, 0.0
  %v8130 = vadd.f32 %v8128, %v8129
  %v8131 = vsel %vm7034, %v7979, 0.0
  %v8132 = vadd.f32 %v8130, %v8131
  %v8133 = vsel %vm7034, %v7982, 0.0
  %v8134 = vadd.f32 %v8132, %v8133
  %v8135 = vsel %vm7034, %v7985, 0.0
  %v8136 = vadd.f32 %v8134, %v8135
  %v8137 = vsel %vm7034, %v7988, 0.0
  %v8138 = vadd.f32 %v8136, %v8137
  %v8139 = vsel %vm7034, %v7991, 0.0
  %v8140 = vadd.f32 %v8138, %v8139
  %v8141 = vsel %vm7034, %v7994, 0.0
  %v8142 = vadd.f32 %v8140, %v8141
  %v8143 = vsel %vm7034, %v7997, 0.0
  %v8144 = vadd.f32 %v8142, %v8143
  %v8145 = vsel %vm7034, %v8000, 0.0
  %v8146 = vadd.f32 %v8144, %v8145
  %v8147 = vsel %vm7034, %v8003, 0.0
  %v8148 = vadd.f32 %v8146, %v8147
  %v8149 = vsel %vm7034, %v8006, 0.0
  %v8150 = vadd.f32 %v8148, %v8149
  %v8151 = vsel %vm7034, %v8009, 0.0
  %v8152 = vadd.f32 %v8150, %v8151
  %v8153 = vsel %vm7034, %v8012, 0.0
  %v8154 = vadd.f32 %v8152, %v8153
  %v8155 = vsel %vm7034, %v8015, 0.0
  %v8156 = vadd.f32 %v8154, %v8155
  %v8157 = vsel %vm7034, %v8018, 0.0
  %v8158 = vadd.f32 %v8156, %v8157
  %v8159 = vsel %vm7034, %v8021, 0.0
  %v8160 = vadd.f32 %v8158, %v8159
  %v8161 = vsel %vm7034, %v8024, 0.0
  %v8162 = vadd.f32 %v8160, %v8161
  %v8163 = vsel %vm7034, %v8027, 0.0
  %v8164 = vadd.f32 %v8162, %v8163
  %v8165 = vsel %vm7034, %v8030, 0.0
  %v8166 = vadd.f32 %v8164, %v8165
  %v8167 = vsel %vm7034, %v8033, 0.0
  %v8168 = vadd.f32 %v8166, %v8167
  %v8169 = vsel %vm7034, %v8036, 0.0
  %v8170 = vadd.f32 %v8168, %v8169
  %v8171 = vsel %vm7034, %v8039, 0.0
  %v8172 = vadd.f32 %v8170, %v8171
  %v8173 = vsel %vm7034, %v8042, 0.0
  %v8174 = vadd.f32 %v8172, %v8173
  %v8175 = vsel %vm7034, %v8045, 0.0
  %v8176 = vadd.f32 %v8174, %v8175
  %v8177 = vsel %vm7034, %v8048, 0.0
  %v8178 = vadd.f32 %v8176, %v8177
  %v8179 = vsel %vm7034, %v8051, 0.0
  %v8180 = vadd.f32 %v8178, %v8179
  %v8181 = vsel %vm7034, %v8054, 0.0
  %v8182 = vadd.f32 %v8180, %v8181
  %v8183 = vrot.slane %v8182, 4
  %v8184 = vadd.f32 %v8182, %v8183
  %v8185 = vrot.slane %v8184, 2
  %v8186 = vadd.f32 %v8184, %v8185
  %v8187 = vrot.slane %v8186, 1
  %v8188 = vadd.f32 %v8186, %v8187
  %v8189 = vrcp.pop 512.0
  %v8190 = vmul.f32 512.0, %v8189
  %v8191 = vsub.f32 1.0, %v8190
  %v8192 = vmul.f32 %v8189, %v8191
  %v8193 = vadd.f32 %v8189, %v8192
  %vm8194 = vweird.f32 %v8189
  %v8195 = vsel %vm8194, %v8189, %v8193
  %v8196 = vmul.f32 %v8188, %v8195
  %v8197 = vsub.f32 %v7865, %v8196
  %v8198 = vsub.f32 %v7868, %v8196
  %v8199 = vsub.f32 %v7871, %v8196
  %v8200 = vsub.f32 %v7874, %v8196
  %v8201 = vsub.f32 %v7877, %v8196
  %v8202 = vsub.f32 %v7880, %v8196
  %v8203 = vsub.f32 %v7883, %v8196
  %v8204 = vsub.f32 %v7886, %v8196
  %v8205 = vsub.f32 %v7889, %v8196
  %v8206 = vsub.f32 %v7892, %v8196
  %v8207 = vsub.f32 %v7895, %v8196
  %v8208 = vsub.f32 %v7898, %v8196
  %v8209 = vsub.f32 %v7901, %v8196
  %v8210 = vsub.f32 %v7904, %v8196
  %v8211 = vsub.f32 %v7907, %v8196
  %v8212 = vsub.f32 %v7910, %v8196
  %v8213 = vsub.f32 %v7913, %v8196
  %v8214 = vsub.f32 %v7916, %v8196
  %v8215 = vsub.f32 %v7919, %v8196
  %v8216 = vsub.f32 %v7922, %v8196
  %v8217 = vsub.f32 %v7925, %v8196
  %v8218 = vsub.f32 %v7928, %v8196
  %v8219 = vsub.f32 %v7931, %v8196
  %v8220 = vsub.f32 %v7934, %v8196
  %v8221 = vsub.f32 %v7937, %v8196
  %v8222 = vsub.f32 %v7940, %v8196
  %v8223 = vsub.f32 %v7943, %v8196
  %v8224 = vsub.f32 %v7946, %v8196
  %v8225 = vsub.f32 %v7949, %v8196
  %v8226 = vsub.f32 %v7952, %v8196
  %v8227 = vsub.f32 %v7955, %v8196
  %v8228 = vsub.f32 %v7958, %v8196
  %v8229 = vsub.f32 %v7961, %v8196
  %v8230 = vsub.f32 %v7964, %v8196
  %v8231 = vsub.f32 %v7967, %v8196
  %v8232 = vsub.f32 %v7970, %v8196
  %v8233 = vsub.f32 %v7973, %v8196
  %v8234 = vsub.f32 %v7976, %v8196
  %v8235 = vsub.f32 %v7979, %v8196
  %v8236 = vsub.f32 %v7982, %v8196
  %v8237 = vsub.f32 %v7985, %v8196
  %v8238 = vsub.f32 %v7988, %v8196
  %v8239 = vsub.f32 %v7991, %v8196
  %v8240 = vsub.f32 %v7994, %v8196
  %v8241 = vsub.f32 %v7997, %v8196
  %v8242 = vsub.f32 %v8000, %v8196
  %v8243 = vsub.f32 %v8003, %v8196
  %v8244 = vsub.f32 %v8006, %v8196
  %v8245 = vsub.f32 %v8009, %v8196
  %v8246 = vsub.f32 %v8012, %v8196
  %v8247 = vsub.f32 %v8015, %v8196
  %v8248 = vsub.f32 %v8018, %v8196
  %v8249 = vsub.f32 %v8021, %v8196
  %v8250 = vsub.f32 %v8024, %v8196
  %v8251 = vsub.f32 %v8027, %v8196
  %v8252 = vsub.f32 %v8030, %v8196
  %v8253 = vsub.f32 %v8033, %v8196
  %v8254 = vsub.f32 %v8036, %v8196
  %v8255 = vsub.f32 %v8039, %v8196
  %v8256 = vsub.f32 %v8042, %v8196
  %v8257 = vsub.f32 %v8045, %v8196
  %v8258 = vsub.f32 %v8048, %v8196
  %v8259 = vsub.f32 %v8051, %v8196
  %v8260 = vsub.f32 %v8054, %v8196
  %v8261 = vmul.f32 %v8197, %v8197
  %v8262 = vmul.f32 %v8198, %v8198
  %v8263 = vmul.f32 %v8199, %v8199
  %v8264 = vmul.f32 %v8200, %v8200
  %v8265 = vmul.f32 %v8201, %v8201
  %v8266 = vmul.f32 %v8202, %v8202
  %v8267 = vmul.f32 %v8203, %v8203
  %v8268 = vmul.f32 %v8204, %v8204
  %v8269 = vmul.f32 %v8205, %v8205
  %v8270 = vmul.f32 %v8206, %v8206
  %v8271 = vmul.f32 %v8207, %v8207
  %v8272 = vmul.f32 %v8208, %v8208
  %v8273 = vmul.f32 %v8209, %v8209
  %v8274 = vmul.f32 %v8210, %v8210
  %v8275 = vmul.f32 %v8211, %v8211
  %v8276 = vmul.f32 %v8212, %v8212
  %v8277 = vmul.f32 %v8213, %v8213
  %v8278 = vmul.f32 %v8214, %v8214
  %v8279 = vmul.f32 %v8215, %v8215
  %v8280 = vmul.f32 %v8216, %v8216
  %v8281 = vmul.f32 %v8217, %v8217
  %v8282 = vmul.f32 %v8218, %v8218
  %v8283 = vmul.f32 %v8219, %v8219
  %v8284 = vmul.f32 %v8220, %v8220
  %v8285 = vmul.f32 %v8221, %v8221
  %v8286 = vmul.f32 %v8222, %v8222
  %v8287 = vmul.f32 %v8223, %v8223
  %v8288 = vmul.f32 %v8224, %v8224
  %v8289 = vmul.f32 %v8225, %v8225
  %v8290 = vmul.f32 %v8226, %v8226
  %v8291 = vmul.f32 %v8227, %v8227
  %v8292 = vmul.f32 %v8228, %v8228
  %v8293 = vmul.f32 %v8229, %v8229
  %v8294 = vmul.f32 %v8230, %v8230
  %v8295 = vmul.f32 %v8231, %v8231
  %v8296 = vmul.f32 %v8232, %v8232
  %v8297 = vmul.f32 %v8233, %v8233
  %v8298 = vmul.f32 %v8234, %v8234
  %v8299 = vmul.f32 %v8235, %v8235
  %v8300 = vmul.f32 %v8236, %v8236
  %v8301 = vmul.f32 %v8237, %v8237
  %v8302 = vmul.f32 %v8238, %v8238
  %v8303 = vmul.f32 %v8239, %v8239
  %v8304 = vmul.f32 %v8240, %v8240
  %v8305 = vmul.f32 %v8241, %v8241
  %v8306 = vmul.f32 %v8242, %v8242
  %v8307 = vmul.f32 %v8243, %v8243
  %v8308 = vmul.f32 %v8244, %v8244
  %v8309 = vmul.f32 %v8245, %v8245
  %v8310 = vmul.f32 %v8246, %v8246
  %v8311 = vmul.f32 %v8247, %v8247
  %v8312 = vmul.f32 %v8248, %v8248
  %v8313 = vmul.f32 %v8249, %v8249
  %v8314 = vmul.f32 %v8250, %v8250
  %v8315 = vmul.f32 %v8251, %v8251
  %v8316 = vmul.f32 %v8252, %v8252
  %v8317 = vmul.f32 %v8253, %v8253
  %v8318 = vmul.f32 %v8254, %v8254
  %v8319 = vmul.f32 %v8255, %v8255
  %v8320 = vmul.f32 %v8256, %v8256
  %v8321 = vmul.f32 %v8257, %v8257
  %v8322 = vmul.f32 %v8258, %v8258
  %v8323 = vmul.f32 %v8259, %v8259
  %v8324 = vmul.f32 %v8260, %v8260
  %v8325 = vsel %vm7034, %v8261, 0.0
  %v8326 = vsel %vm7034, %v8262, 0.0
  %v8327 = vadd.f32 %v8325, %v8326
  %v8328 = vsel %vm7034, %v8263, 0.0
  %v8329 = vadd.f32 %v8327, %v8328
  %v8330 = vsel %vm7034, %v8264, 0.0
  %v8331 = vadd.f32 %v8329, %v8330
  %v8332 = vsel %vm7034, %v8265, 0.0
  %v8333 = vadd.f32 %v8331, %v8332
  %v8334 = vsel %vm7034, %v8266, 0.0
  %v8335 = vadd.f32 %v8333, %v8334
  %v8336 = vsel %vm7034, %v8267, 0.0
  %v8337 = vadd.f32 %v8335, %v8336
  %v8338 = vsel %vm7034, %v8268, 0.0
  %v8339 = vadd.f32 %v8337, %v8338
  %v8340 = vsel %vm7034, %v8269, 0.0
  %v8341 = vadd.f32 %v8339, %v8340
  %v8342 = vsel %vm7034, %v8270, 0.0
  %v8343 = vadd.f32 %v8341, %v8342
  %v8344 = vsel %vm7034, %v8271, 0.0
  %v8345 = vadd.f32 %v8343, %v8344
  %v8346 = vsel %vm7034, %v8272, 0.0
  %v8347 = vadd.f32 %v8345, %v8346
  %v8348 = vsel %vm7034, %v8273, 0.0
  %v8349 = vadd.f32 %v8347, %v8348
  %v8350 = vsel %vm7034, %v8274, 0.0
  %v8351 = vadd.f32 %v8349, %v8350
  %v8352 = vsel %vm7034, %v8275, 0.0
  %v8353 = vadd.f32 %v8351, %v8352
  %v8354 = vsel %vm7034, %v8276, 0.0
  %v8355 = vadd.f32 %v8353, %v8354
  %v8356 = vsel %vm7034, %v8277, 0.0
  %v8357 = vadd.f32 %v8355, %v8356
  %v8358 = vsel %vm7034, %v8278, 0.0
  %v8359 = vadd.f32 %v8357, %v8358
  %v8360 = vsel %vm7034, %v8279, 0.0
  %v8361 = vadd.f32 %v8359, %v8360
  %v8362 = vsel %vm7034, %v8280, 0.0
  %v8363 = vadd.f32 %v8361, %v8362
  %v8364 = vsel %vm7034, %v8281, 0.0
  %v8365 = vadd.f32 %v8363, %v8364
  %v8366 = vsel %vm7034, %v8282, 0.0
  %v8367 = vadd.f32 %v8365, %v8366
  %v8368 = vsel %vm7034, %v8283, 0.0
  %v8369 = vadd.f32 %v8367, %v8368
  %v8370 = vsel %vm7034, %v8284, 0.0
  %v8371 = vadd.f32 %v8369, %v8370
  %v8372 = vsel %vm7034, %v8285, 0.0
  %v8373 = vadd.f32 %v8371, %v8372
  %v8374 = vsel %vm7034, %v8286, 0.0
  %v8375 = vadd.f32 %v8373, %v8374
  %v8376 = vsel %vm7034, %v8287, 0.0
  %v8377 = vadd.f32 %v8375, %v8376
  %v8378 = vsel %vm7034, %v8288, 0.0
  %v8379 = vadd.f32 %v8377, %v8378
  %v8380 = vsel %vm7034, %v8289, 0.0
  %v8381 = vadd.f32 %v8379, %v8380
  %v8382 = vsel %vm7034, %v8290, 0.0
  %v8383 = vadd.f32 %v8381, %v8382
  %v8384 = vsel %vm7034, %v8291, 0.0
  %v8385 = vadd.f32 %v8383, %v8384
  %v8386 = vsel %vm7034, %v8292, 0.0
  %v8387 = vadd.f32 %v8385, %v8386
  %v8388 = vsel %vm7034, %v8293, 0.0
  %v8389 = vadd.f32 %v8387, %v8388
  %v8390 = vsel %vm7034, %v8294, 0.0
  %v8391 = vadd.f32 %v8389, %v8390
  %v8392 = vsel %vm7034, %v8295, 0.0
  %v8393 = vadd.f32 %v8391, %v8392
  %v8394 = vsel %vm7034, %v8296, 0.0
  %v8395 = vadd.f32 %v8393, %v8394
  %v8396 = vsel %vm7034, %v8297, 0.0
  %v8397 = vadd.f32 %v8395, %v8396
  %v8398 = vsel %vm7034, %v8298, 0.0
  %v8399 = vadd.f32 %v8397, %v8398
  %v8400 = vsel %vm7034, %v8299, 0.0
  %v8401 = vadd.f32 %v8399, %v8400
  %v8402 = vsel %vm7034, %v8300, 0.0
  %v8403 = vadd.f32 %v8401, %v8402
  %v8404 = vsel %vm7034, %v8301, 0.0
  %v8405 = vadd.f32 %v8403, %v8404
  %v8406 = vsel %vm7034, %v8302, 0.0
  %v8407 = vadd.f32 %v8405, %v8406
  %v8408 = vsel %vm7034, %v8303, 0.0
  %v8409 = vadd.f32 %v8407, %v8408
  %v8410 = vsel %vm7034, %v8304, 0.0
  %v8411 = vadd.f32 %v8409, %v8410
  %v8412 = vsel %vm7034, %v8305, 0.0
  %v8413 = vadd.f32 %v8411, %v8412
  %v8414 = vsel %vm7034, %v8306, 0.0
  %v8415 = vadd.f32 %v8413, %v8414
  %v8416 = vsel %vm7034, %v8307, 0.0
  %v8417 = vadd.f32 %v8415, %v8416
  %v8418 = vsel %vm7034, %v8308, 0.0
  %v8419 = vadd.f32 %v8417, %v8418
  %v8420 = vsel %vm7034, %v8309, 0.0
  %v8421 = vadd.f32 %v8419, %v8420
  %v8422 = vsel %vm7034, %v8310, 0.0
  %v8423 = vadd.f32 %v8421, %v8422
  %v8424 = vsel %vm7034, %v8311, 0.0
  %v8425 = vadd.f32 %v8423, %v8424
  %v8426 = vsel %vm7034, %v8312, 0.0
  %v8427 = vadd.f32 %v8425, %v8426
  %v8428 = vsel %vm7034, %v8313, 0.0
  %v8429 = vadd.f32 %v8427, %v8428
  %v8430 = vsel %vm7034, %v8314, 0.0
  %v8431 = vadd.f32 %v8429, %v8430
  %v8432 = vsel %vm7034, %v8315, 0.0
  %v8433 = vadd.f32 %v8431, %v8432
  %v8434 = vsel %vm7034, %v8316, 0.0
  %v8435 = vadd.f32 %v8433, %v8434
  %v8436 = vsel %vm7034, %v8317, 0.0
  %v8437 = vadd.f32 %v8435, %v8436
  %v8438 = vsel %vm7034, %v8318, 0.0
  %v8439 = vadd.f32 %v8437, %v8438
  %v8440 = vsel %vm7034, %v8319, 0.0
  %v8441 = vadd.f32 %v8439, %v8440
  %v8442 = vsel %vm7034, %v8320, 0.0
  %v8443 = vadd.f32 %v8441, %v8442
  %v8444 = vsel %vm7034, %v8321, 0.0
  %v8445 = vadd.f32 %v8443, %v8444
  %v8446 = vsel %vm7034, %v8322, 0.0
  %v8447 = vadd.f32 %v8445, %v8446
  %v8448 = vsel %vm7034, %v8323, 0.0
  %v8449 = vadd.f32 %v8447, %v8448
  %v8450 = vsel %vm7034, %v8324, 0.0
  %v8451 = vadd.f32 %v8449, %v8450
  %v8452 = vrot.slane %v8451, 4
  %v8453 = vadd.f32 %v8451, %v8452
  %v8454 = vrot.slane %v8453, 2
  %v8455 = vadd.f32 %v8453, %v8454
  %v8456 = vrot.slane %v8455, 1
  %v8457 = vadd.f32 %v8455, %v8456
  %v8458 = vmul.f32 %v8457, %v8195
  %v8459 = vadd.f32 %v8458, 1e-05
  %v8460 = vrsqrt.pop %v8459
  %v8461 = vmul.f32 %v8460, %v8459
  %v8462 = vmul.f32 %v8461, %v8460
  %v8463 = vmul.f32 0.5, %v8462
  %v8464 = vsub.f32 1.5, %v8463
  %v8465 = vmul.f32 %v8460, %v8464
  %vm8466 = vweird.f32 %v8459
  %vm8467 = vweird.f32 %v8460
  %vm8468 = vmor %vm8466, %vm8467
  %v8469 = vsel %vm8468, %v8460, %v8465
  %v8470 = vmul.f32 %v8197, %v8469
  %v8471 = vmul.f32 %v8198, %v8469
  %v8472 = vmul.f32 %v8199, %v8469
  %v8473 = vmul.f32 %v8200, %v8469
  %v8474 = vmul.f32 %v8201, %v8469
  %v8475 = vmul.f32 %v8202, %v8469
  %v8476 = vmul.f32 %v8203, %v8469
  %v8477 = vmul.f32 %v8204, %v8469
  %v8478 = vmul.f32 %v8205, %v8469
  %v8479 = vmul.f32 %v8206, %v8469
  %v8480 = vmul.f32 %v8207, %v8469
  %v8481 = vmul.f32 %v8208, %v8469
  %v8482 = vmul.f32 %v8209, %v8469
  %v8483 = vmul.f32 %v8210, %v8469
  %v8484 = vmul.f32 %v8211, %v8469
  %v8485 = vmul.f32 %v8212, %v8469
  %v8486 = vmul.f32 %v8213, %v8469
  %v8487 = vmul.f32 %v8214, %v8469
  %v8488 = vmul.f32 %v8215, %v8469
  %v8489 = vmul.f32 %v8216, %v8469
  %v8490 = vmul.f32 %v8217, %v8469
  %v8491 = vmul.f32 %v8218, %v8469
  %v8492 = vmul.f32 %v8219, %v8469
  %v8493 = vmul.f32 %v8220, %v8469
  %v8494 = vmul.f32 %v8221, %v8469
  %v8495 = vmul.f32 %v8222, %v8469
  %v8496 = vmul.f32 %v8223, %v8469
  %v8497 = vmul.f32 %v8224, %v8469
  %v8498 = vmul.f32 %v8225, %v8469
  %v8499 = vmul.f32 %v8226, %v8469
  %v8500 = vmul.f32 %v8227, %v8469
  %v8501 = vmul.f32 %v8228, %v8469
  %v8502 = vmul.f32 %v8229, %v8469
  %v8503 = vmul.f32 %v8230, %v8469
  %v8504 = vmul.f32 %v8231, %v8469
  %v8505 = vmul.f32 %v8232, %v8469
  %v8506 = vmul.f32 %v8233, %v8469
  %v8507 = vmul.f32 %v8234, %v8469
  %v8508 = vmul.f32 %v8235, %v8469
  %v8509 = vmul.f32 %v8236, %v8469
  %v8510 = vmul.f32 %v8237, %v8469
  %v8511 = vmul.f32 %v8238, %v8469
  %v8512 = vmul.f32 %v8239, %v8469
  %v8513 = vmul.f32 %v8240, %v8469
  %v8514 = vmul.f32 %v8241, %v8469
  %v8515 = vmul.f32 %v8242, %v8469
  %v8516 = vmul.f32 %v8243, %v8469
  %v8517 = vmul.f32 %v8244, %v8469
  %v8518 = vmul.f32 %v8245, %v8469
  %v8519 = vmul.f32 %v8246, %v8469
  %v8520 = vmul.f32 %v8247, %v8469
  %v8521 = vmul.f32 %v8248, %v8469
  %v8522 = vmul.f32 %v8249, %v8469
  %v8523 = vmul.f32 %v8250, %v8469
  %v8524 = vmul.f32 %v8251, %v8469
  %v8525 = vmul.f32 %v8252, %v8469
  %v8526 = vmul.f32 %v8253, %v8469
  %v8527 = vmul.f32 %v8254, %v8469
  %v8528 = vmul.f32 %v8255, %v8469
  %v8529 = vmul.f32 %v8256, %v8469
  %v8530 = vmul.f32 %v8257, %v8469
  %v8531 = vmul.f32 %v8258, %v8469
  %v8532 = vmul.f32 %v8259, %v8469
  %v8533 = vmul.f32 %v8260, %v8469
  %v8534 = vld [vmem:[%s5] sm:$0x1]
  %v8536 = vperm.slane %v8534, 0
  %v8538 = vmul.f32 %v8470, %v8536
  %v8539 = vmul.f32 %v8471, %v8536
  %v8540 = vmul.f32 %v8472, %v8536
  %v8541 = vmul.f32 %v8473, %v8536
  %v8542 = vmul.f32 %v8474, %v8536
  %v8543 = vmul.f32 %v8475, %v8536
  %v8544 = vmul.f32 %v8476, %v8536
  %v8545 = vmul.f32 %v8477, %v8536
  %v8546 = vmul.f32 %v8478, %v8536
  %v8547 = vmul.f32 %v8479, %v8536
  %v8548 = vmul.f32 %v8480, %v8536
  %v8549 = vmul.f32 %v8481, %v8536
  %v8550 = vmul.f32 %v8482, %v8536
  %v8551 = vmul.f32 %v8483, %v8536
  %v8552 = vmul.f32 %v8484, %v8536
  %v8553 = vmul.f32 %v8485, %v8536
  %v8554 = vmul.f32 %v8486, %v8536
  %v8555 = vmul.f32 %v8487, %v8536
  %v8556 = vmul.f32 %v8488, %v8536
  %v8557 = vmul.f32 %v8489, %v8536
  %v8558 = vmul.f32 %v8490, %v8536
  %v8559 = vmul.f32 %v8491, %v8536
  %v8560 = vmul.f32 %v8492, %v8536
  %v8561 = vmul.f32 %v8493, %v8536
  %v8562 = vmul.f32 %v8494, %v8536
  %v8563 = vmul.f32 %v8495, %v8536
  %v8564 = vmul.f32 %v8496, %v8536
  %v8565 = vmul.f32 %v8497, %v8536
  %v8566 = vmul.f32 %v8498, %v8536
  %v8567 = vmul.f32 %v8499, %v8536
  %v8568 = vmul.f32 %v8500, %v8536
  %v8569 = vmul.f32 %v8501, %v8536
  %v8570 = vmul.f32 %v8502, %v8536
  %v8571 = vmul.f32 %v8503, %v8536
  %v8572 = vmul.f32 %v8504, %v8536
  %v8573 = vmul.f32 %v8505, %v8536
  %v8574 = vmul.f32 %v8506, %v8536
  %v8575 = vmul.f32 %v8507, %v8536
  %v8576 = vmul.f32 %v8508, %v8536
  %v8577 = vmul.f32 %v8509, %v8536
  %v8578 = vmul.f32 %v8510, %v8536
  %v8579 = vmul.f32 %v8511, %v8536
  %v8580 = vmul.f32 %v8512, %v8536
  %v8581 = vmul.f32 %v8513, %v8536
  %v8582 = vmul.f32 %v8514, %v8536
  %v8583 = vmul.f32 %v8515, %v8536
  %v8584 = vmul.f32 %v8516, %v8536
  %v8585 = vmul.f32 %v8517, %v8536
  %v8586 = vmul.f32 %v8518, %v8536
  %v8587 = vmul.f32 %v8519, %v8536
  %v8588 = vmul.f32 %v8520, %v8536
  %v8589 = vmul.f32 %v8521, %v8536
  %v8590 = vmul.f32 %v8522, %v8536
  %v8591 = vmul.f32 %v8523, %v8536
  %v8592 = vmul.f32 %v8524, %v8536
  %v8593 = vmul.f32 %v8525, %v8536
  %v8594 = vmul.f32 %v8526, %v8536
  %v8595 = vmul.f32 %v8527, %v8536
  %v8596 = vmul.f32 %v8528, %v8536
  %v8597 = vmul.f32 %v8529, %v8536
  %v8598 = vmul.f32 %v8530, %v8536
  %v8599 = vmul.f32 %v8531, %v8536
  %v8600 = vmul.f32 %v8532, %v8536
  %v8601 = vmul.f32 %v8533, %v8536
  %v8602 = vld [vmem:[%s6] sm:$0x1]
  %v8604 = vperm.slane %v8602, 0
  %v8606 = vadd.f32 %v8538, %v8604
  %v8607 = vadd.f32 %v8539, %v8604
  %v8608 = vadd.f32 %v8540, %v8604
  %v8609 = vadd.f32 %v8541, %v8604
  %v8610 = vadd.f32 %v8542, %v8604
  %v8611 = vadd.f32 %v8543, %v8604
  %v8612 = vadd.f32 %v8544, %v8604
  %v8613 = vadd.f32 %v8545, %v8604
  %v8614 = vadd.f32 %v8546, %v8604
  %v8615 = vadd.f32 %v8547, %v8604
  %v8616 = vadd.f32 %v8548, %v8604
  %v8617 = vadd.f32 %v8549, %v8604
  %v8618 = vadd.f32 %v8550, %v8604
  %v8619 = vadd.f32 %v8551, %v8604
  %v8620 = vadd.f32 %v8552, %v8604
  %v8621 = vadd.f32 %v8553, %v8604
  %v8622 = vadd.f32 %v8554, %v8604
  %v8623 = vadd.f32 %v8555, %v8604
  %v8624 = vadd.f32 %v8556, %v8604
  %v8625 = vadd.f32 %v8557, %v8604
  %v8626 = vadd.f32 %v8558, %v8604
  %v8627 = vadd.f32 %v8559, %v8604
  %v8628 = vadd.f32 %v8560, %v8604
  %v8629 = vadd.f32 %v8561, %v8604
  %v8630 = vadd.f32 %v8562, %v8604
  %v8631 = vadd.f32 %v8563, %v8604
  %v8632 = vadd.f32 %v8564, %v8604
  %v8633 = vadd.f32 %v8565, %v8604
  %v8634 = vadd.f32 %v8566, %v8604
  %v8635 = vadd.f32 %v8567, %v8604
  %v8636 = vadd.f32 %v8568, %v8604
  %v8637 = vadd.f32 %v8569, %v8604
  %v8638 = vadd.f32 %v8570, %v8604
  %v8639 = vadd.f32 %v8571, %v8604
  %v8640 = vadd.f32 %v8572, %v8604
  %v8641 = vadd.f32 %v8573, %v8604
  %v8642 = vadd.f32 %v8574, %v8604
  %v8643 = vadd.f32 %v8575, %v8604
  %v8644 = vadd.f32 %v8576, %v8604
  %v8645 = vadd.f32 %v8577, %v8604
  %v8646 = vadd.f32 %v8578, %v8604
  %v8647 = vadd.f32 %v8579, %v8604
  %v8648 = vadd.f32 %v8580, %v8604
  %v8649 = vadd.f32 %v8581, %v8604
  %v8650 = vadd.f32 %v8582, %v8604
  %v8651 = vadd.f32 %v8583, %v8604
  %v8652 = vadd.f32 %v8584, %v8604
  %v8653 = vadd.f32 %v8585, %v8604
  %v8654 = vadd.f32 %v8586, %v8604
  %v8655 = vadd.f32 %v8587, %v8604
  %v8656 = vadd.f32 %v8588, %v8604
  %v8657 = vadd.f32 %v8589, %v8604
  %v8658 = vadd.f32 %v8590, %v8604
  %v8659 = vadd.f32 %v8591, %v8604
  %v8660 = vadd.f32 %v8592, %v8604
  %v8661 = vadd.f32 %v8593, %v8604
  %v8662 = vadd.f32 %v8594, %v8604
  %v8663 = vadd.f32 %v8595, %v8604
  %v8664 = vadd.f32 %v8596, %v8604
  %v8665 = vadd.f32 %v8597, %v8604
  %v8666 = vadd.f32 %v8598, %v8604
  %v8667 = vadd.f32 %v8599, %v8604
  %v8668 = vadd.f32 %v8600, %v8604
  %v8669 = vadd.f32 %v8601, %v8604
  %vm8670 = vcmp.ge.f32.partialorder %v8606, 0.0
  %vm8671 = vcmp.ge.f32.partialorder %v8607, 0.0
  %vm8672 = vcmp.ge.f32.partialorder %v8608, 0.0
  %vm8673 = vcmp.ge.f32.partialorder %v8609, 0.0
  %vm8674 = vcmp.ge.f32.partialorder %v8610, 0.0
  %vm8675 = vcmp.ge.f32.partialorder %v8611, 0.0
  %vm8676 = vcmp.ge.f32.partialorder %v8612, 0.0
  %vm8677 = vcmp.ge.f32.partialorder %v8613, 0.0
  %vm8678 = vcmp.ge.f32.partialorder %v8614, 0.0
  %vm8679 = vcmp.ge.f32.partialorder %v8615, 0.0
  %vm8680 = vcmp.ge.f32.partialorder %v8616, 0.0
  %vm8681 = vcmp.ge.f32.partialorder %v8617, 0.0
  %vm8682 = vcmp.ge.f32.partialorder %v8618, 0.0
  %vm8683 = vcmp.ge.f32.partialorder %v8619, 0.0
  %vm8684 = vcmp.ge.f32.partialorder %v8620, 0.0
  %vm8685 = vcmp.ge.f32.partialorder %v8621, 0.0
  %vm8686 = vcmp.ge.f32.partialorder %v8622, 0.0
  %vm8687 = vcmp.ge.f32.partialorder %v8623, 0.0
  %vm8688 = vcmp.ge.f32.partialorder %v8624, 0.0
  %vm8689 = vcmp.ge.f32.partialorder %v8625, 0.0
  %vm8690 = vcmp.ge.f32.partialorder %v8626, 0.0
  %vm8691 = vcmp.ge.f32.partialorder %v8627, 0.0
  %vm8692 = vcmp.ge.f32.partialorder %v8628, 0.0
  %vm8693 = vcmp.ge.f32.partialorder %v8629, 0.0
  %vm8694 = vcmp.ge.f32.partialorder %v8630, 0.0
  %vm8695 = vcmp.ge.f32.partialorder %v8631, 0.0
  %vm8696 = vcmp.ge.f32.partialorder %v8632, 0.0
  %vm8697 = vcmp.ge.f32.partialorder %v8633, 0.0
  %vm8698 = vcmp.ge.f32.partialorder %v8634, 0.0
  %vm8699 = vcmp.ge.f32.partialorder %v8635, 0.0
  %vm8700 = vcmp.ge.f32.partialorder %v8636, 0.0
  %vm8701 = vcmp.ge.f32.partialorder %v8637, 0.0
  %vm8702 = vcmp.ge.f32.partialorder %v8638, 0.0
  %vm8703 = vcmp.ge.f32.partialorder %v8639, 0.0
  %vm8704 = vcmp.ge.f32.partialorder %v8640, 0.0
  %vm8705 = vcmp.ge.f32.partialorder %v8641, 0.0
  %vm8706 = vcmp.ge.f32.partialorder %v8642, 0.0
  %vm8707 = vcmp.ge.f32.partialorder %v8643, 0.0
  %vm8708 = vcmp.ge.f32.partialorder %v8644, 0.0
  %vm8709 = vcmp.ge.f32.partialorder %v8645, 0.0
  %vm8710 = vcmp.ge.f32.partialorder %v8646, 0.0
  %vm8711 = vcmp.ge.f32.partialorder %v8647, 0.0
  %vm8712 = vcmp.ge.f32.partialorder %v8648, 0.0
  %vm8713 = vcmp.ge.f32.partialorder %v8649, 0.0
  %vm8714 = vcmp.ge.f32.partialorder %v8650, 0.0
  %vm8715 = vcmp.ge.f32.partialorder %v8651, 0.0
  %vm8716 = vcmp.ge.f32.partialorder %v8652, 0.0
  %vm8717 = vcmp.ge.f32.partialorder %v8653, 0.0
  %vm8718 = vcmp.ge.f32.partialorder %v8654, 0.0
  %vm8719 = vcmp.ge.f32.partialorder %v8655, 0.0
  %vm8720 = vcmp.ge.f32.partialorder %v8656, 0.0
  %vm8721 = vcmp.ge.f32.partialorder %v8657, 0.0
  %vm8722 = vcmp.ge.f32.partialorder %v8658, 0.0
  %vm8723 = vcmp.ge.f32.partialorder %v8659, 0.0
  %vm8724 = vcmp.ge.f32.partialorder %v8660, 0.0
  %vm8725 = vcmp.ge.f32.partialorder %v8661, 0.0
  %vm8726 = vcmp.ge.f32.partialorder %v8662, 0.0
  %vm8727 = vcmp.ge.f32.partialorder %v8663, 0.0
  %vm8728 = vcmp.ge.f32.partialorder %v8664, 0.0
  %vm8729 = vcmp.ge.f32.partialorder %v8665, 0.0
  %vm8730 = vcmp.ge.f32.partialorder %v8666, 0.0
  %vm8731 = vcmp.ge.f32.partialorder %v8667, 0.0
  %vm8732 = vcmp.ge.f32.partialorder %v8668, 0.0
  %vm8733 = vcmp.ge.f32.partialorder %v8669, 0.0
  %v8734 = vmul.f32 %v8606, 0.01
  %v8735 = vmul.f32 %v8607, 0.01
  %v8736 = vmul.f32 %v8608, 0.01
  %v8737 = vmul.f32 %v8609, 0.01
  %v8738 = vmul.f32 %v8610, 0.01
  %v8739 = vmul.f32 %v8611, 0.01
  %v8740 = vmul.f32 %v8612, 0.01
  %v8741 = vmul.f32 %v8613, 0.01
  %v8742 = vmul.f32 %v8614, 0.01
  %v8743 = vmul.f32 %v8615, 0.01
  %v8744 = vmul.f32 %v8616, 0.01
  %v8745 = vmul.f32 %v8617, 0.01
  %v8746 = vmul.f32 %v8618, 0.01
  %v8747 = vmul.f32 %v8619, 0.01
  %v8748 = vmul.f32 %v8620, 0.01
  %v8749 = vmul.f32 %v8621, 0.01
  %v8750 = vmul.f32 %v8622, 0.01
  %v8751 = vmul.f32 %v8623, 0.01
  %v8752 = vmul.f32 %v8624, 0.01
  %v8753 = vmul.f32 %v8625, 0.01
  %v8754 = vmul.f32 %v8626, 0.01
  %v8755 = vmul.f32 %v8627, 0.01
  %v8756 = vmul.f32 %v8628, 0.01
  %v8757 = vmul.f32 %v8629, 0.01
  %v8758 = vmul.f32 %v8630, 0.01
  %v8759 = vmul.f32 %v8631, 0.01
  %v8760 = vmul.f32 %v8632, 0.01
  %v8761 = vmul.f32 %v8633, 0.01
  %v8762 = vmul.f32 %v8634, 0.01
  %v8763 = vmul.f32 %v8635, 0.01
  %v8764 = vmul.f32 %v8636, 0.01
  %v8765 = vmul.f32 %v8637, 0.01
  %v8766 = vmul.f32 %v8638, 0.01
  %v8767 = vmul.f32 %v8639, 0.01
  %v8768 = vmul.f32 %v8640, 0.01
  %v8769 = vmul.f32 %v8641, 0.01
  %v8770 = vmul.f32 %v8642, 0.01
  %v8771 = vmul.f32 %v8643, 0.01
  %v8772 = vmul.f32 %v8644, 0.01
  %v8773 = vmul.f32 %v8645, 0.01
  %v8774 = vmul.f32 %v8646, 0.01
  %v8775 = vmul.f32 %v8647, 0.01
  %v8776 = vmul.f32 %v8648, 0.01
  %v8777 = vmul.f32 %v8649, 0.01
  %v8778 = vmul.f32 %v8650, 0.01
  %v8779 = vmul.f32 %v8651, 0.01
  %v8780 = vmul.f32 %v8652, 0.01
  %v8781 = vmul.f32 %v8653, 0.01
  %v8782 = vmul.f32 %v8654, 0.01
  %v8783 = vmul.f32 %v8655, 0.01
  %v8784 = vmul.f32 %v8656, 0.01
  %v8785 = vmul.f32 %v8657, 0.01
  %v8786 = vmul.f32 %v8658, 0.01
  %v8787 = vmul.f32 %v8659, 0.01
  %v8788 = vmul.f32 %v8660, 0.01
  %v8789 = vmul.f32 %v8661, 0.01
  %v8790 = vmul.f32 %v8662, 0.01
  %v8791 = vmul.f32 %v8663, 0.01
  %v8792 = vmul.f32 %v8664, 0.01
  %v8793 = vmul.f32 %v8665, 0.01
  %v8794 = vmul.f32 %v8666, 0.01
  %v8795 = vmul.f32 %v8667, 0.01
  %v8796 = vmul.f32 %v8668, 0.01
  %v8797 = vmul.f32 %v8669, 0.01
  %v8798 = vsel %vm8670, %v8606, %v8734
  %v8799 = vsel %vm8671, %v8607, %v8735
  %v8800 = vsel %vm8672, %v8608, %v8736
  %v8801 = vsel %vm8673, %v8609, %v8737
  %v8802 = vsel %vm8674, %v8610, %v8738
  %v8803 = vsel %vm8675, %v8611, %v8739
  %v8804 = vsel %vm8676, %v8612, %v8740
  %v8805 = vsel %vm8677, %v8613, %v8741
  %v8806 = vsel %vm8678, %v8614, %v8742
  %v8807 = vsel %vm8679, %v8615, %v8743
  %v8808 = vsel %vm8680, %v8616, %v8744
  %v8809 = vsel %vm8681, %v8617, %v8745
  %v8810 = vsel %vm8682, %v8618, %v8746
  %v8811 = vsel %vm8683, %v8619, %v8747
  %v8812 = vsel %vm8684, %v8620, %v8748
  %v8813 = vsel %vm8685, %v8621, %v8749
  %v8814 = vsel %vm8686, %v8622, %v8750
  %v8815 = vsel %vm8687, %v8623, %v8751
  %v8816 = vsel %vm8688, %v8624, %v8752
  %v8817 = vsel %vm8689, %v8625, %v8753
  %v8818 = vsel %vm8690, %v8626, %v8754
  %v8819 = vsel %vm8691, %v8627, %v8755
  %v8820 = vsel %vm8692, %v8628, %v8756
  %v8821 = vsel %vm8693, %v8629, %v8757
  %v8822 = vsel %vm8694, %v8630, %v8758
  %v8823 = vsel %vm8695, %v8631, %v8759
  %v8824 = vsel %vm8696, %v8632, %v8760
  %v8825 = vsel %vm8697, %v8633, %v8761
  %v8826 = vsel %vm8698, %v8634, %v8762
  %v8827 = vsel %vm8699, %v8635, %v8763
  %v8828 = vsel %vm8700, %v8636, %v8764
  %v8829 = vsel %vm8701, %v8637, %v8765
  %v8830 = vsel %vm8702, %v8638, %v8766
  %v8831 = vsel %vm8703, %v8639, %v8767
  %v8832 = vsel %vm8704, %v8640, %v8768
  %v8833 = vsel %vm8705, %v8641, %v8769
  %v8834 = vsel %vm8706, %v8642, %v8770
  %v8835 = vsel %vm8707, %v8643, %v8771
  %v8836 = vsel %vm8708, %v8644, %v8772
  %v8837 = vsel %vm8709, %v8645, %v8773
  %v8838 = vsel %vm8710, %v8646, %v8774
  %v8839 = vsel %vm8711, %v8647, %v8775
  %v8840 = vsel %vm8712, %v8648, %v8776
  %v8841 = vsel %vm8713, %v8649, %v8777
  %v8842 = vsel %vm8714, %v8650, %v8778
  %v8843 = vsel %vm8715, %v8651, %v8779
  %v8844 = vsel %vm8716, %v8652, %v8780
  %v8845 = vsel %vm8717, %v8653, %v8781
  %v8846 = vsel %vm8718, %v8654, %v8782
  %v8847 = vsel %vm8719, %v8655, %v8783
  %v8848 = vsel %vm8720, %v8656, %v8784
  %v8849 = vsel %vm8721, %v8657, %v8785
  %v8850 = vsel %vm8722, %v8658, %v8786
  %v8851 = vsel %vm8723, %v8659, %v8787
  %v8852 = vsel %vm8724, %v8660, %v8788
  %v8853 = vsel %vm8725, %v8661, %v8789
  %v8854 = vsel %vm8726, %v8662, %v8790
  %v8855 = vsel %vm8727, %v8663, %v8791
  %v8856 = vsel %vm8728, %v8664, %v8792
  %v8857 = vsel %vm8729, %v8665, %v8793
  %v8858 = vsel %vm8730, %v8666, %v8794
  %v8859 = vsel %vm8731, %v8667, %v8795
  %v8860 = vsel %vm8732, %v8668, %v8796
  %v8861 = vsel %vm8733, %v8669, %v8797
  %v8862 = vld [vmem:[%s7] sm:$0xff]
  %v8863 = vld [vmem:[%s7 + $0x8] sm:$0xff]
  %v8864 = vld [vmem:[%s7 + $0x10] sm:$0xff]
  %v8865 = vld [vmem:[%s7 + $0x18] sm:$0xff]
  %v8866 = vld [vmem:[%s7 + $0x20] sm:$0xff]
  %v8867 = vld [vmem:[%s7 + $0x28] sm:$0xff]
  %8868 = vmatpush.msra.mxu0 0.0
  %8869 = vmatpush.msra.mxu0 0.0
  %8870 = vmatpush.msra.mxu0 0.0
  %8871 = vmatpush.msra.mxu0 0.0
  %8872 = vmatpush.msra.mxu0 0.0
  %8873 = vmatpush.msra.mxu0 0.0
  %8874 = vmatpush.msra.mxu0 0.0
  %8875 = vmatpush.msra.mxu0 0.0
  %8876 = vmatpush.msra.mxu0 0.0
  %8877 = vmatpush.msra.mxu0 0.0
  %8878 = vmatpush.msra.mxu0 0.0
  %8879 = vmatpush.msra.mxu0 0.0
  %8880 = vmatpush.msra.mxu0 0.0
  %8881 = vmatpush.msra.mxu0 0.0
  %8882 = vmatpush.msra.mxu0 %v8867
  %8883 = vmatpush.msra.mxu0 %v8866
  %8884 = vmatmul.f32.gmra.mxu0 %v105
  %v8885 = vpop.f32.mrf.mxu0
  %v8886 = vadd.f32 0.0, %v8885
  %8887 = vmatmul.f32.gmra.mxu0 %v108
  %v8888 = vpop.f32.mrf.mxu0
  %v8889 = vadd.f32 0.0, %v8888
  %8890 = vmatmul.f32.gmra.mxu0 %v111
  %v8891 = vpop.f32.mrf.mxu0
  %v8892 = vadd.f32 0.0, %v8891
  %8893 = vmatmul.f32.gmra.mxu0 %v114
  %v8894 = vpop.f32.mrf.mxu0
  %v8895 = vadd.f32 0.0, %v8894
  %8896 = vmatmul.f32.gmra.mxu0 %v117
  %v8897 = vpop.f32.mrf.mxu0
  %v8898 = vadd.f32 0.0, %v8897
  %8899 = vmatmul.f32.gmra.mxu0 %v120
  %v8900 = vpop.f32.mrf.mxu0
  %v8901 = vadd.f32 0.0, %v8900
  %8902 = vmatmul.f32.gmra.mxu0 %v123
  %v8903 = vpop.f32.mrf.mxu0
  %v8904 = vadd.f32 0.0, %v8903
  %8905 = vmatmul.f32.gmra.mxu0 %v126
  %v8906 = vpop.f32.mrf.mxu0
  %v8907 = vadd.f32 0.0, %v8906
  %8908 = vmatmul.f32.gmra.mxu0 %v129
  %v8909 = vpop.f32.mrf.mxu0
  %v8910 = vadd.f32 0.0, %v8909
  %8911 = vmatmul.f32.gmra.mxu0 %v132
  %v8912 = vpop.f32.mrf.mxu0
  %v8913 = vadd.f32 0.0, %v8912
  %8914 = vmatmul.f32.gmra.mxu0 %v135
  %v8915 = vpop.f32.mrf.mxu0
  %v8916 = vadd.f32 0.0, %v8915
  %8917 = vmatmul.f32.gmra.mxu0 %v138
  %v8918 = vpop.f32.mrf.mxu0
  %v8919 = vadd.f32 0.0, %v8918
  %8920 = vmatmul.f32.gmra.mxu0 %v141
  %v8921 = vpop.f32.mrf.mxu0
  %v8922 = vadd.f32 0.0, %v8921
  %8923 = vmatmul.f32.gmra.mxu0 %v144
  %v8924 = vpop.f32.mrf.mxu0
  %v8925 = vadd.f32 0.0, %v8924
  %8926 = vmatmul.f32.gmra.mxu0 %v147
  %v8927 = vpop.f32.mrf.mxu0
  %v8928 = vadd.f32 0.0, %v8927
  %8929 = vmatmul.f32.gmra.mxu0 %v150
  %v8930 = vpop.f32.mrf.mxu0
  %v8931 = vadd.f32 0.0, %v8930
  %8932 = vmatmul.f32.gmra.mxu0 %v153
  %v8933 = vpop.f32.mrf.mxu0
  %v8934 = vadd.f32 0.0, %v8933
  %8935 = vmatmul.f32.gmra.mxu0 %v156
  %v8936 = vpop.f32.mrf.mxu0
  %v8937 = vadd.f32 0.0, %v8936
  %8938 = vmatmul.f32.gmra.mxu0 %v159
  %v8939 = vpop.f32.mrf.mxu0
  %v8940 = vadd.f32 0.0, %v8939
  %8941 = vmatmul.f32.gmra.mxu0 %v162
  %v8942 = vpop.f32.mrf.mxu0
  %v8943 = vadd.f32 0.0, %v8942
  %8944 = vmatmul.f32.gmra.mxu0 %v165
  %v8945 = vpop.f32.mrf.mxu0
  %v8946 = vadd.f32 0.0, %v8945
  %8947 = vmatmul.f32.gmra.mxu0 %v168
  %v8948 = vpop.f32.mrf.mxu0
  %v8949 = vadd.f32 0.0, %v8948
  %8950 = vmatmul.f32.gmra.mxu0 %v171
  %v8951 = vpop.f32.mrf.mxu0
  %v8952 = vadd.f32 0.0, %v8951
  %8953 = vmatmul.f32.gmra.mxu0 %v174
  %v8954 = vpop.f32.mrf.mxu0
  %v8955 = vadd.f32 0.0, %v8954
  %8956 = vmatmul.f32.gmra.mxu0 %v177
  %v8957 = vpop.f32.mrf.mxu0
  %v8958 = vadd.f32 0.0, %v8957
  %8959 = vmatmul.f32.gmra.mxu0 %v180
  %v8960 = vpop.f32.mrf.mxu0
  %v8961 = vadd.f32 0.0, %v8960
  %8962 = vmatmul.f32.gmra.mxu0 %v183
  %v8963 = vpop.f32.mrf.mxu0
  %v8964 = vadd.f32 0.0, %v8963
  %8965 = vmatmul.f32.gmra.mxu0 %v186
  %v8966 = vpop.f32.mrf.mxu0
  %v8967 = vadd.f32 0.0, %v8966
  %8968 = vmatmul.f32.gmra.mxu0 %v189
  %v8969 = vpop.f32.mrf.mxu0
  %v8970 = vadd.f32 0.0, %v8969
  %8971 = vmatmul.f32.gmra.mxu0 %v192
  %v8972 = vpop.f32.mrf.mxu0
  %v8973 = vadd.f32 0.0, %v8972
  %8974 = vmatmul.f32.gmra.mxu0 %v195
  %v8975 = vpop.f32.mrf.mxu0
  %v8976 = vadd.f32 0.0, %v8975
  %8977 = vmatmul.f32.gmra.mxu0 %v198
  %v8978 = vpop.f32.mrf.mxu0
  %v8979 = vadd.f32 0.0, %v8978
  %8980 = vmatmul.f32.gmra.mxu0 %v201
  %v8981 = vpop.f32.mrf.mxu0
  %v8982 = vadd.f32 0.0, %v8981
  %8983 = vmatmul.f32.gmra.mxu0 %v204
  %v8984 = vpop.f32.mrf.mxu0
  %v8985 = vadd.f32 0.0, %v8984
  %8986 = vmatmul.f32.gmra.mxu0 %v207
  %v8987 = vpop.f32.mrf.mxu0
  %v8988 = vadd.f32 0.0, %v8987
  %8989 = vmatmul.f32.gmra.mxu0 %v210
  %v8990 = vpop.f32.mrf.mxu0
  %v8991 = vadd.f32 0.0, %v8990
  %8992 = vmatmul.f32.gmra.mxu0 %v213
  %v8993 = vpop.f32.mrf.mxu0
  %v8994 = vadd.f32 0.0, %v8993
  %8995 = vmatmul.f32.gmra.mxu0 %v216
  %v8996 = vpop.f32.mrf.mxu0
  %v8997 = vadd.f32 0.0, %v8996
  %8998 = vmatmul.f32.gmra.mxu0 %v219
  %v8999 = vpop.f32.mrf.mxu0
  %v9000 = vadd.f32 0.0, %v8999
  %9001 = vmatmul.f32.gmra.mxu0 %v222
  %v9002 = vpop.f32.mrf.mxu0
  %v9003 = vadd.f32 0.0, %v9002
  %9004 = vmatmul.f32.gmra.mxu0 %v225
  %v9005 = vpop.f32.mrf.mxu0
  %v9006 = vadd.f32 0.0, %v9005
  %9007 = vmatmul.f32.gmra.mxu0 %v228
  %v9008 = vpop.f32.mrf.mxu0
  %v9009 = vadd.f32 0.0, %v9008
  %9010 = vmatmul.f32.gmra.mxu0 %v231
  %v9011 = vpop.f32.mrf.mxu0
  %v9012 = vadd.f32 0.0, %v9011
  %9013 = vmatmul.f32.gmra.mxu0 %v234
  %v9014 = vpop.f32.mrf.mxu0
  %v9015 = vadd.f32 0.0, %v9014
  %9016 = vmatmul.f32.gmra.mxu0 %v237
  %v9017 = vpop.f32.mrf.mxu0
  %v9018 = vadd.f32 0.0, %v9017
  %9019 = vmatmul.f32.gmra.mxu0 %v240
  %v9020 = vpop.f32.mrf.mxu0
  %v9021 = vadd.f32 0.0, %v9020
  %9022 = vmatmul.f32.gmra.mxu0 %v243
  %v9023 = vpop.f32.mrf.mxu0
  %v9024 = vadd.f32 0.0, %v9023
  %9025 = vmatmul.f32.gmra.mxu0 %v246
  %v9026 = vpop.f32.mrf.mxu0
  %v9027 = vadd.f32 0.0, %v9026
  %9028 = vmatmul.f32.gmra.mxu0 %v249
  %v9029 = vpop.f32.mrf.mxu0
  %v9030 = vadd.f32 0.0, %v9029
  %9031 = vmatmul.f32.gmra.mxu0 %v252
  %v9032 = vpop.f32.mrf.mxu0
  %v9033 = vadd.f32 0.0, %v9032
  %9034 = vmatmul.f32.gmra.mxu0 %v255
  %v9035 = vpop.f32.mrf.mxu0
  %v9036 = vadd.f32 0.0, %v9035
  %9037 = vmatmul.f32.gmra.mxu0 %v258
  %v9038 = vpop.f32.mrf.mxu0
  %v9039 = vadd.f32 0.0, %v9038
  %9040 = vmatmul.f32.gmra.mxu0 %v261
  %v9041 = vpop.f32.mrf.mxu0
  %v9042 = vadd.f32 0.0, %v9041
  %9043 = vmatmul.f32.gmra.mxu0 %v264
  %v9044 = vpop.f32.mrf.mxu0
  %v9045 = vadd.f32 0.0, %v9044
  %9046 = vmatmul.f32.gmra.mxu0 %v267
  %v9047 = vpop.f32.mrf.mxu0
  %v9048 = vadd.f32 0.0, %v9047
  %9049 = vmatmul.f32.gmra.mxu0 %v270
  %v9050 = vpop.f32.mrf.mxu0
  %v9051 = vadd.f32 0.0, %v9050
  %9052 = vmatmul.f32.gmra.mxu0 %v273
  %v9053 = vpop.f32.mrf.mxu0
  %v9054 = vadd.f32 0.0, %v9053
  %9055 = vmatmul.f32.gmra.mxu0 %v276
  %v9056 = vpop.f32.mrf.mxu0
  %v9057 = vadd.f32 0.0, %v9056
  %9058 = vmatmul.f32.gmra.mxu0 %v279
  %v9059 = vpop.f32.mrf.mxu0
  %v9060 = vadd.f32 0.0, %v9059
  %9061 = vmatmul.f32.gmra.mxu0 %v282
  %v9062 = vpop.f32.mrf.mxu0
  %v9063 = vadd.f32 0.0, %v9062
  %9064 = vmatmul.f32.gmra.mxu0 %v285
  %v9065 = vpop.f32.mrf.mxu0
  %v9066 = vadd.f32 0.0, %v9065
  %9067 = vmatmul.f32.gmra.mxu0 %v288
  %v9068 = vpop.f32.mrf.mxu0
  %v9069 = vadd.f32 0.0, %v9068
  %9070 = vmatmul.f32.gmra.mxu0 %v291
  %v9071 = vpop.f32.mrf.mxu0
  %v9072 = vadd.f32 0.0, %v9071
  %9073 = vmatmul.f32.gmra.mxu0 %v294
  %v9074 = vpop.f32.mrf.mxu0
  %v9075 = vadd.f32 0.0, %v9074
  %9076 = vdwg.mxu0
  %v9078 = vsel %vm7034, %v8798, 0
  %v9081 = vsel %vm7034, %v8799, 0
  %v9084 = vsel %vm7034, %v8800, 0
  %v9087 = vsel %vm7034, %v8801, 0
  %v9090 = vsel %vm7034, %v8802, 0
  %v9093 = vsel %vm7034, %v8803, 0
  %v9096 = vsel %vm7034, %v8804, 0
  %v9099 = vsel %vm7034, %v8805, 0
  %v9102 = vsel %vm7034, %v8806, 0
  %v9105 = vsel %vm7034, %v8807, 0
  %v9108 = vsel %vm7034, %v8808, 0
  %v9111 = vsel %vm7034, %v8809, 0
  %v9114 = vsel %vm7034, %v8810, 0
  %v9117 = vsel %vm7034, %v8811, 0
  %v9120 = vsel %vm7034, %v8812, 0
  %v9123 = vsel %vm7034, %v8813, 0
  %v9126 = vsel %vm7034, %v8814, 0
  %v9129 = vsel %vm7034, %v8815, 0
  %v9132 = vsel %vm7034, %v8816, 0
  %v9135 = vsel %vm7034, %v8817, 0
  %v9138 = vsel %vm7034, %v8818, 0
  %v9141 = vsel %vm7034, %v8819, 0
  %v9144 = vsel %vm7034, %v8820, 0
  %v9147 = vsel %vm7034, %v8821, 0
  %v9150 = vsel %vm7034, %v8822, 0
  %v9153 = vsel %vm7034, %v8823, 0
  %v9156 = vsel %vm7034, %v8824, 0
  %v9159 = vsel %vm7034, %v8825, 0
  %v9162 = vsel %vm7034, %v8826, 0
  %v9165 = vsel %vm7034, %v8827, 0
  %v9168 = vsel %vm7034, %v8828, 0
  %v9171 = vsel %vm7034, %v8829, 0
  %v9174 = vsel %vm7034, %v8830, 0
  %v9177 = vsel %vm7034, %v8831, 0
  %v9180 = vsel %vm7034, %v8832, 0
  %v9183 = vsel %vm7034, %v8833, 0
  %v9186 = vsel %vm7034, %v8834, 0
  %v9189 = vsel %vm7034, %v8835, 0
  %v9192 = vsel %vm7034, %v8836, 0
  %v9195 = vsel %vm7034, %v8837, 0
  %v9198 = vsel %vm7034, %v8838, 0
  %v9201 = vsel %vm7034, %v8839, 0
  %v9204 = vsel %vm7034, %v8840, 0
  %v9207 = vsel %vm7034, %v8841, 0
  %v9210 = vsel %vm7034, %v8842, 0
  %v9213 = vsel %vm7034, %v8843, 0
  %v9216 = vsel %vm7034, %v8844, 0
  %v9219 = vsel %vm7034, %v8845, 0
  %v9222 = vsel %vm7034, %v8846, 0
  %v9225 = vsel %vm7034, %v8847, 0
  %v9228 = vsel %vm7034, %v8848, 0
  %v9231 = vsel %vm7034, %v8849, 0
  %v9234 = vsel %vm7034, %v8850, 0
  %v9237 = vsel %vm7034, %v8851, 0
  %v9240 = vsel %vm7034, %v8852, 0
  %v9243 = vsel %vm7034, %v8853, 0
  %v9246 = vsel %vm7034, %v8854, 0
  %v9249 = vsel %vm7034, %v8855, 0
  %v9252 = vsel %vm7034, %v8856, 0
  %v9255 = vsel %vm7034, %v8857, 0
  %v9258 = vsel %vm7034, %v8858, 0
  %v9261 = vsel %vm7034, %v8859, 0
  %v9264 = vsel %vm7034, %v8860, 0
  %v9267 = vsel %vm7034, %v8861, 0
  %9269 = vmatpush.msra.mxu0 0.0
  %9270 = vmatpush.msra.mxu0 0.0
  %9271 = vmatpush.msra.mxu0 0.0
  %9272 = vmatpush.msra.mxu0 0.0
  %9273 = vmatpush.msra.mxu0 0.0
  %9274 = vmatpush.msra.mxu0 0.0
  %9275 = vmatpush.msra.mxu0 0.0
  %9276 = vmatpush.msra.mxu0 0.0
  %9277 = vmatpush.msra.mxu0 0.0
  %9278 = vmatpush.msra.mxu0 0.0
  %9279 = vmatpush.msra.mxu0 0.0
  %9280 = vmatpush.msra.mxu0 0.0
  %9281 = vmatpush.msra.mxu0 %v8865
  %9282 = vmatpush.msra.mxu0 %v8864
  %9283 = vmatpush.msra.mxu0 %v8863
  %9284 = vmatpush.msra.mxu0 %v8862
  %9285 = vmatmul.f32.gmra.mxu0 %v9078
  %v9286 = vpop.f32.mrf.mxu0
  %v9287 = vadd.f32 %v8886, %v9286
  %9288 = vmatmul.f32.gmra.mxu0 %v9081
  %v9289 = vpop.f32.mrf.mxu0
  %v9290 = vadd.f32 %v8889, %v9289
  %9291 = vmatmul.f32.gmra.mxu0 %v9084
  %v9292 = vpop.f32.mrf.mxu0
  %v9293 = vadd.f32 %v8892, %v9292
  %9294 = vmatmul.f32.gmra.mxu0 %v9087
  %v9295 = vpop.f32.mrf.mxu0
  %v9296 = vadd.f32 %v8895, %v9295
  %9297 = vmatmul.f32.gmra.mxu0 %v9090
  %v9298 = vpop.f32.mrf.mxu0
  %v9299 = vadd.f32 %v8898, %v9298
  %9300 = vmatmul.f32.gmra.mxu0 %v9093
  %v9301 = vpop.f32.mrf.mxu0
  %v9302 = vadd.f32 %v8901, %v9301
  %9303 = vmatmul.f32.gmra.mxu0 %v9096
  %v9304 = vpop.f32.mrf.mxu0
  %v9305 = vadd.f32 %v8904, %v9304
  %9306 = vmatmul.f32.gmra.mxu0 %v9099
  %v9307 = vpop.f32.mrf.mxu0
  %v9308 = vadd.f32 %v8907, %v9307
  %9309 = vmatmul.f32.gmra.mxu0 %v9102
  %v9310 = vpop.f32.mrf.mxu0
  %v9311 = vadd.f32 %v8910, %v9310
  %9312 = vmatmul.f32.gmra.mxu0 %v9105
  %v9313 = vpop.f32.mrf.mxu0
  %v9314 = vadd.f32 %v8913, %v9313
  %9315 = vmatmul.f32.gmra.mxu0 %v9108
  %v9316 = vpop.f32.mrf.mxu0
  %v9317 = vadd.f32 %v8916, %v9316
  %9318 = vmatmul.f32.gmra.mxu0 %v9111
  %v9319 = vpop.f32.mrf.mxu0
  %v9320 = vadd.f32 %v8919, %v9319
  %9321 = vmatmul.f32.gmra.mxu0 %v9114
  %v9322 = vpop.f32.mrf.mxu0
  %v9323 = vadd.f32 %v8922, %v9322
  %9324 = vmatmul.f32.gmra.mxu0 %v9117
  %v9325 = vpop.f32.mrf.mxu0
  %v9326 = vadd.f32 %v8925, %v9325
  %9327 = vmatmul.f32.gmra.mxu0 %v9120
  %v9328 = vpop.f32.mrf.mxu0
  %v9329 = vadd.f32 %v8928, %v9328
  %9330 = vmatmul.f32.gmra.mxu0 %v9123
  %v9331 = vpop.f32.mrf.mxu0
  %v9332 = vadd.f32 %v8931, %v9331
  %9333 = vmatmul.f32.gmra.mxu0 %v9126
  %v9334 = vpop.f32.mrf.mxu0
  %v9335 = vadd.f32 %v8934, %v9334
  %9336 = vmatmul.f32.gmra.mxu0 %v9129
  %v9337 = vpop.f32.mrf.mxu0
  %v9338 = vadd.f32 %v8937, %v9337
  %9339 = vmatmul.f32.gmra.mxu0 %v9132
  %v9340 = vpop.f32.mrf.mxu0
  %v9341 = vadd.f32 %v8940, %v9340
  %9342 = vmatmul.f32.gmra.mxu0 %v9135
  %v9343 = vpop.f32.mrf.mxu0
  %v9344 = vadd.f32 %v8943, %v9343
  %9345 = vmatmul.f32.gmra.mxu0 %v9138
  %v9346 = vpop.f32.mrf.mxu0
  %v9347 = vadd.f32 %v8946, %v9346
  %9348 = vmatmul.f32.gmra.mxu0 %v9141
  %v9349 = vpop.f32.mrf.mxu0
  %v9350 = vadd.f32 %v8949, %v9349
  %9351 = vmatmul.f32.gmra.mxu0 %v9144
  %v9352 = vpop.f32.mrf.mxu0
  %v9353 = vadd.f32 %v8952, %v9352
  %9354 = vmatmul.f32.gmra.mxu0 %v9147
  %v9355 = vpop.f32.mrf.mxu0
  %v9356 = vadd.f32 %v8955, %v9355
  %9357 = vmatmul.f32.gmra.mxu0 %v9150
  %v9358 = vpop.f32.mrf.mxu0
  %v9359 = vadd.f32 %v8958, %v9358
  %9360 = vmatmul.f32.gmra.mxu0 %v9153
  %v9361 = vpop.f32.mrf.mxu0
  %v9362 = vadd.f32 %v8961, %v9361
  %9363 = vmatmul.f32.gmra.mxu0 %v9156
  %v9364 = vpop.f32.mrf.mxu0
  %v9365 = vadd.f32 %v8964, %v9364
  %9366 = vmatmul.f32.gmra.mxu0 %v9159
  %v9367 = vpop.f32.mrf.mxu0
  %v9368 = vadd.f32 %v8967, %v9367
  %9369 = vmatmul.f32.gmra.mxu0 %v9162
  %v9370 = vpop.f32.mrf.mxu0
  %v9371 = vadd.f32 %v8970, %v9370
  %9372 = vmatmul.f32.gmra.mxu0 %v9165
  %v9373 = vpop.f32.mrf.mxu0
  %v9374 = vadd.f32 %v8973, %v9373
  %9375 = vmatmul.f32.gmra.mxu0 %v9168
  %v9376 = vpop.f32.mrf.mxu0
  %v9377 = vadd.f32 %v8976, %v9376
  %9378 = vmatmul.f32.gmra.mxu0 %v9171
  %v9379 = vpop.f32.mrf.mxu0
  %v9380 = vadd.f32 %v8979, %v9379
  %9381 = vmatmul.f32.gmra.mxu0 %v9174
  %v9382 = vpop.f32.mrf.mxu0
  %v9383 = vadd.f32 %v8982, %v9382
  %9384 = vmatmul.f32.gmra.mxu0 %v9177
  %v9385 = vpop.f32.mrf.mxu0
  %v9386 = vadd.f32 %v8985, %v9385
  %9387 = vmatmul.f32.gmra.mxu0 %v9180
  %v9388 = vpop.f32.mrf.mxu0
  %v9389 = vadd.f32 %v8988, %v9388
  %9390 = vmatmul.f32.gmra.mxu0 %v9183
  %v9391 = vpop.f32.mrf.mxu0
  %v9392 = vadd.f32 %v8991, %v9391
  %9393 = vmatmul.f32.gmra.mxu0 %v9186
  %v9394 = vpop.f32.mrf.mxu0
  %v9395 = vadd.f32 %v8994, %v9394
  %9396 = vmatmul.f32.gmra.mxu0 %v9189
  %v9397 = vpop.f32.mrf.mxu0
  %v9398 = vadd.f32 %v8997, %v9397
  %9399 = vmatmul.f32.gmra.mxu0 %v9192
  %v9400 = vpop.f32.mrf.mxu0
  %v9401 = vadd.f32 %v9000, %v9400
  %9402 = vmatmul.f32.gmra.mxu0 %v9195
  %v9403 = vpop.f32.mrf.mxu0
  %v9404 = vadd.f32 %v9003, %v9403
  %9405 = vmatmul.f32.gmra.mxu0 %v9198
  %v9406 = vpop.f32.mrf.mxu0
  %v9407 = vadd.f32 %v9006, %v9406
  %9408 = vmatmul.f32.gmra.mxu0 %v9201
  %v9409 = vpop.f32.mrf.mxu0
  %v9410 = vadd.f32 %v9009, %v9409
  %9411 = vmatmul.f32.gmra.mxu0 %v9204
  %v9412 = vpop.f32.mrf.mxu0
  %v9413 = vadd.f32 %v9012, %v9412
  %9414 = vmatmul.f32.gmra.mxu0 %v9207
  %v9415 = vpop.f32.mrf.mxu0
  %v9416 = vadd.f32 %v9015, %v9415
  %9417 = vmatmul.f32.gmra.mxu0 %v9210
  %v9418 = vpop.f32.mrf.mxu0
  %v9419 = vadd.f32 %v9018, %v9418
  %9420 = vmatmul.f32.gmra.mxu0 %v9213
  %v9421 = vpop.f32.mrf.mxu0
  %v9422 = vadd.f32 %v9021, %v9421
  %9423 = vmatmul.f32.gmra.mxu0 %v9216
  %v9424 = vpop.f32.mrf.mxu0
  %v9425 = vadd.f32 %v9024, %v9424
  %9426 = vmatmul.f32.gmra.mxu0 %v9219
  %v9427 = vpop.f32.mrf.mxu0
  %v9428 = vadd.f32 %v9027, %v9427
  %9429 = vmatmul.f32.gmra.mxu0 %v9222
  %v9430 = vpop.f32.mrf.mxu0
  %v9431 = vadd.f32 %v9030, %v9430
  %9432 = vmatmul.f32.gmra.mxu0 %v9225
  %v9433 = vpop.f32.mrf.mxu0
  %v9434 = vadd.f32 %v9033, %v9433
  %9435 = vmatmul.f32.gmra.mxu0 %v9228
  %v9436 = vpop.f32.mrf.mxu0
  %v9437 = vadd.f32 %v9036, %v9436
  %9438 = vmatmul.f32.gmra.mxu0 %v9231
  %v9439 = vpop.f32.mrf.mxu0
  %v9440 = vadd.f32 %v9039, %v9439
  %9441 = vmatmul.f32.gmra.mxu0 %v9234
  %v9442 = vpop.f32.mrf.mxu0
  %v9443 = vadd.f32 %v9042, %v9442
  %9444 = vmatmul.f32.gmra.mxu0 %v9237
  %v9445 = vpop.f32.mrf.mxu0
  %v9446 = vadd.f32 %v9045, %v9445
  %9447 = vmatmul.f32.gmra.mxu0 %v9240
  %v9448 = vpop.f32.mrf.mxu0
  %v9449 = vadd.f32 %v9048, %v9448
  %9450 = vmatmul.f32.gmra.mxu0 %v9243
  %v9451 = vpop.f32.mrf.mxu0
  %v9452 = vadd.f32 %v9051, %v9451
  %9453 = vmatmul.f32.gmra.mxu0 %v9246
  %v9454 = vpop.f32.mrf.mxu0
  %v9455 = vadd.f32 %v9054, %v9454
  %9456 = vmatmul.f32.gmra.mxu0 %v9249
  %v9457 = vpop.f32.mrf.mxu0
  %v9458 = vadd.f32 %v9057, %v9457
  %9459 = vmatmul.f32.gmra.mxu0 %v9252
  %v9460 = vpop.f32.mrf.mxu0
  %v9461 = vadd.f32 %v9060, %v9460
  %9462 = vmatmul.f32.gmra.mxu0 %v9255
  %v9463 = vpop.f32.mrf.mxu0
  %v9464 = vadd.f32 %v9063, %v9463
  %9465 = vmatmul.f32.gmra.mxu0 %v9258
  %v9466 = vpop.f32.mrf.mxu0
  %v9467 = vadd.f32 %v9066, %v9466
  %9468 = vmatmul.f32.gmra.mxu0 %v9261
  %v9469 = vpop.f32.mrf.mxu0
  %v9470 = vadd.f32 %v9069, %v9469
  %9471 = vmatmul.f32.gmra.mxu0 %v9264
  %v9472 = vpop.f32.mrf.mxu0
  %v9473 = vadd.f32 %v9072, %v9472
  %9474 = vmatmul.f32.gmra.mxu0 %v9267
  %v9475 = vpop.f32.mrf.mxu0
  %v9476 = vadd.f32 %v9075, %v9475
  %9477 = vdwg.mxu0
  %v9478 = vld [vmem:[%s8] sm:$0x1]
  %v9480 = vperm.slane %v9478, 0
  %v9482 = vadd.f32 %v9287, %v9480
  %v9483 = vadd.f32 %v9290, %v9480
  %v9484 = vadd.f32 %v9293, %v9480
  %v9485 = vadd.f32 %v9296, %v9480
  %v9486 = vadd.f32 %v9299, %v9480
  %v9487 = vadd.f32 %v9302, %v9480
  %v9488 = vadd.f32 %v9305, %v9480
  %v9489 = vadd.f32 %v9308, %v9480
  %v9490 = vadd.f32 %v9311, %v9480
  %v9491 = vadd.f32 %v9314, %v9480
  %v9492 = vadd.f32 %v9317, %v9480
  %v9493 = vadd.f32 %v9320, %v9480
  %v9494 = vadd.f32 %v9323, %v9480
  %v9495 = vadd.f32 %v9326, %v9480
  %v9496 = vadd.f32 %v9329, %v9480
  %v9497 = vadd.f32 %v9332, %v9480
  %v9498 = vadd.f32 %v9335, %v9480
  %v9499 = vadd.f32 %v9338, %v9480
  %v9500 = vadd.f32 %v9341, %v9480
  %v9501 = vadd.f32 %v9344, %v9480
  %v9502 = vadd.f32 %v9347, %v9480
  %v9503 = vadd.f32 %v9350, %v9480
  %v9504 = vadd.f32 %v9353, %v9480
  %v9505 = vadd.f32 %v9356, %v9480
  %v9506 = vadd.f32 %v9359, %v9480
  %v9507 = vadd.f32 %v9362, %v9480
  %v9508 = vadd.f32 %v9365, %v9480
  %v9509 = vadd.f32 %v9368, %v9480
  %v9510 = vadd.f32 %v9371, %v9480
  %v9511 = vadd.f32 %v9374, %v9480
  %v9512 = vadd.f32 %v9377, %v9480
  %v9513 = vadd.f32 %v9380, %v9480
  %v9514 = vadd.f32 %v9383, %v9480
  %v9515 = vadd.f32 %v9386, %v9480
  %v9516 = vadd.f32 %v9389, %v9480
  %v9517 = vadd.f32 %v9392, %v9480
  %v9518 = vadd.f32 %v9395, %v9480
  %v9519 = vadd.f32 %v9398, %v9480
  %v9520 = vadd.f32 %v9401, %v9480
  %v9521 = vadd.f32 %v9404, %v9480
  %v9522 = vadd.f32 %v9407, %v9480
  %v9523 = vadd.f32 %v9410, %v9480
  %v9524 = vadd.f32 %v9413, %v9480
  %v9525 = vadd.f32 %v9416, %v9480
  %v9526 = vadd.f32 %v9419, %v9480
  %v9527 = vadd.f32 %v9422, %v9480
  %v9528 = vadd.f32 %v9425, %v9480
  %v9529 = vadd.f32 %v9428, %v9480
  %v9530 = vadd.f32 %v9431, %v9480
  %v9531 = vadd.f32 %v9434, %v9480
  %v9532 = vadd.f32 %v9437, %v9480
  %v9533 = vadd.f32 %v9440, %v9480
  %v9534 = vadd.f32 %v9443, %v9480
  %v9535 = vadd.f32 %v9446, %v9480
  %v9536 = vadd.f32 %v9449, %v9480
  %v9537 = vadd.f32 %v9452, %v9480
  %v9538 = vadd.f32 %v9455, %v9480
  %v9539 = vadd.f32 %v9458, %v9480
  %v9540 = vadd.f32 %v9461, %v9480
  %v9541 = vadd.f32 %v9464, %v9480
  %v9542 = vadd.f32 %v9467, %v9480
  %v9543 = vadd.f32 %v9470, %v9480
  %v9544 = vadd.f32 %v9473, %v9480
  %v9545 = vadd.f32 %v9476, %v9480
  %vm9546 = vcmask 220160
  %9547 = vst.msk [vmem:[%s9] sm:$0xff] %vm9546, %v9482
  %9548 = vst.msk [vmem:[%s9 + $0x8] sm:$0xff] %vm9546, %v9483
  %9549 = vst.msk [vmem:[%s9 + $0x10] sm:$0xff] %vm9546, %v9484
  %9550 = vst.msk [vmem:[%s9 + $0x18] sm:$0xff] %vm9546, %v9485
  %9551 = vst.msk [vmem:[%s9 + $0x20] sm:$0xff] %vm9546, %v9486
  %9552 = vst.msk [vmem:[%s9 + $0x28] sm:$0xff] %vm9546, %v9487
  %9553 = vst.msk [vmem:[%s9 + $0x30] sm:$0xff] %vm9546, %v9488
  %9554 = vst.msk [vmem:[%s9 + $0x38] sm:$0xff] %vm9546, %v9489
  %9555 = vst.msk [vmem:[%s9 + $0x40] sm:$0xff] %vm9546, %v9490
  %9556 = vst.msk [vmem:[%s9 + $0x48] sm:$0xff] %vm9546, %v9491
  %9557 = vst.msk [vmem:[%s9 + $0x50] sm:$0xff] %vm9546, %v9492
  %9558 = vst.msk [vmem:[%s9 + $0x58] sm:$0xff] %vm9546, %v9493
  %9559 = vst.msk [vmem:[%s9 + $0x60] sm:$0xff] %vm9546, %v9494
  %9560 = vst.msk [vmem:[%s9 + $0x68] sm:$0xff] %vm9546, %v9495
  %9561 = vst.msk [vmem:[%s9 + $0x70] sm:$0xff] %vm9546, %v9496
  %9562 = vst.msk [vmem:[%s9 + $0x78] sm:$0xff] %vm9546, %v9497
  %9563 = vst.msk [vmem:[%s9 + $0x80] sm:$0xff] %vm9546, %v9498
  %9564 = vst.msk [vmem:[%s9 + $0x88] sm:$0xff] %vm9546, %v9499
  %9565 = vst.msk [vmem:[%s9 + $0x90] sm:$0xff] %vm9546, %v9500
  %9566 = vst.msk [vmem:[%s9 + $0x98] sm:$0xff] %vm9546, %v9501
  %9567 = vst.msk [vmem:[%s9 + $0xa0] sm:$0xff] %vm9546, %v9502
  %9568 = vst.msk [vmem:[%s9 + $0xa8] sm:$0xff] %vm9546, %v9503
  %9569 = vst.msk [vmem:[%s9 + $0xb0] sm:$0xff] %vm9546, %v9504
  %9570 = vst.msk [vmem:[%s9 + $0xb8] sm:$0xff] %vm9546, %v9505
  %9571 = vst.msk [vmem:[%s9 + $0xc0] sm:$0xff] %vm9546, %v9506
  %9572 = vst.msk [vmem:[%s9 + $0xc8] sm:$0xff] %vm9546, %v9507
  %9573 = vst.msk [vmem:[%s9 + $0xd0] sm:$0xff] %vm9546, %v9508
  %9574 = vst.msk [vmem:[%s9 + $0xd8] sm:$0xff] %vm9546, %v9509
  %9575 = vst.msk [vmem:[%s9 + $0xe0] sm:$0xff] %vm9546, %v9510
  %9576 = vst.msk [vmem:[%s9 + $0xe8] sm:$0xff] %vm9546, %v9511
  %9577 = vst.msk [vmem:[%s9 + $0xf0] sm:$0xff] %vm9546, %v9512
  %9578 = vst.msk [vmem:[%s9 + $0xf8] sm:$0xff] %vm9546, %v9513
  %9579 = vst.msk [vmem:[%s9 + $0x100] sm:$0xff] %vm9546, %v9514
  %9580 = vst.msk [vmem:[%s9 + $0x108] sm:$0xff] %vm9546, %v9515
  %9581 = vst.msk [vmem:[%s9 + $0x110] sm:$0xff] %vm9546, %v9516
  %9582 = vst.msk [vmem:[%s9 + $0x118] sm:$0xff] %vm9546, %v9517
  %9583 = vst.msk [vmem:[%s9 + $0x120] sm:$0xff] %vm9546, %v9518
  %9584 = vst.msk [vmem:[%s9 + $0x128] sm:$0xff] %vm9546, %v9519
  %9585 = vst.msk [vmem:[%s9 + $0x130] sm:$0xff] %vm9546, %v9520
  %9586 = vst.msk [vmem:[%s9 + $0x138] sm:$0xff] %vm9546, %v9521
  %9587 = vst.msk [vmem:[%s9 + $0x140] sm:$0xff] %vm9546, %v9522
  %9588 = vst.msk [vmem:[%s9 + $0x148] sm:$0xff] %vm9546, %v9523
  %9589 = vst.msk [vmem:[%s9 + $0x150] sm:$0xff] %vm9546, %v9524
  %9590 = vst.msk [vmem:[%s9 + $0x158] sm:$0xff] %vm9546, %v9525
  %9591 = vst.msk [vmem:[%s9 + $0x160] sm:$0xff] %vm9546, %v9526
  %9592 = vst.msk [vmem:[%s9 + $0x168] sm:$0xff] %vm9546, %v9527
  %9593 = vst.msk [vmem:[%s9 + $0x170] sm:$0xff] %vm9546, %v9528
  %9594 = vst.msk [vmem:[%s9 + $0x178] sm:$0xff] %vm9546, %v9529
  %9595 = vst.msk [vmem:[%s9 + $0x180] sm:$0xff] %vm9546, %v9530
  %9596 = vst.msk [vmem:[%s9 + $0x188] sm:$0xff] %vm9546, %v9531
  %9597 = vst.msk [vmem:[%s9 + $0x190] sm:$0xff] %vm9546, %v9532
  %9598 = vst.msk [vmem:[%s9 + $0x198] sm:$0xff] %vm9546, %v9533
  %9599 = vst.msk [vmem:[%s9 + $0x1a0] sm:$0xff] %vm9546, %v9534
  %9600 = vst.msk [vmem:[%s9 + $0x1a8] sm:$0xff] %vm9546, %v9535
  %9601 = vst.msk [vmem:[%s9 + $0x1b0] sm:$0xff] %vm9546, %v9536
  %9602 = vst.msk [vmem:[%s9 + $0x1b8] sm:$0xff] %vm9546, %v9537
  %9603 = vst.msk [vmem:[%s9 + $0x1c0] sm:$0xff] %vm9546, %v9538
  %9604 = vst.msk [vmem:[%s9 + $0x1c8] sm:$0xff] %vm9546, %v9539
  %9605 = vst.msk [vmem:[%s9 + $0x1d0] sm:$0xff] %vm9546, %v9540
  %9606 = vst.msk [vmem:[%s9 + $0x1d8] sm:$0xff] %vm9546, %v9541
  %9607 = vst.msk [vmem:[%s9 + $0x1e0] sm:$0xff] %vm9546, %v9542
  %9608 = vst.msk [vmem:[%s9 + $0x1e8] sm:$0xff] %vm9546, %v9543
  %9609 = vst.msk [vmem:[%s9 + $0x1f0] sm:$0xff] %vm9546, %v9544
  %9610 = vst.msk [vmem:[%s9 + $0x1f8] sm:$0xff] %vm9546, %v9545
  // Predicated region
  $region38: #{mtr_head1_forward.1} parent=0 // pred_check
    _
  $region39: #{mtr_head1_forward.1} parent=0 // pred_check_branch
    %9612 = sbr.rel (0) target = $region41
  $region40: #{mtr_head1_forward.1} parent=0 // pred_region
    _
  $region41: #{mtr_head1_forward.1} parent=0 // pred_fallthru
    _
  // Predicated region
  $region42: #{mtr_head1_forward.1} parent=0 // pred_check
    _
  $region43: #{mtr_head1_forward.1} parent=0 // pred_check_branch
    %9614 = sbr.rel (0) target = $region45
  $region44: #{mtr_head1_forward.1} parent=0 // pred_region
    _
  $region45: #{mtr_head1_forward.1} parent=0 // pred_fallthru
    _

</llo_original>
